<compile_context>
chip_gen: v7x
topology: tpu7x:2x2x1
jax: 0.10.0
libtpu: 0.0.40
codegen_flags: <defaults>
</compile_context>

<pallas_src>
import functools

import jax
import jax.numpy as jnp
import numpy as np
from jax import lax
from jax.experimental import pallas as pl
from jax.experimental.pallas import tpu as pltpu


# -----------------------------------------------------------------------------
# Pallas kernel: one bidirectional LSTM layer (+ optional fused fc_qa projection)
# -----------------------------------------------------------------------------
def _bilstm_layer_kernel(*refs, with_fc):
    if with_fc:
        (x_ref, len_ref,
         wih_f_ref, whh_f_ref, b_f_ref,
         wih_b_ref, whh_b_ref, b_b_ref,
         fc_wf_ref, fc_wb_ref, fc_b_ref,
         out_ref,
         gf_scr, gb_scr, hf_scr, cf_scr, hb_scr, cb_scr, yf_scr, yb_scr) = refs
    else:
        (x_ref, len_ref,
         wih_f_ref, whh_f_ref, b_f_ref,
         wih_b_ref, whh_b_ref, b_b_ref,
         out_ref,
         gf_scr, gb_scr, hf_scr, cf_scr, hb_scr, cb_scr, yf_scr, yb_scr) = refs

    T, TB, Din = x_ref.shape
    H = whh_f_ref.shape[0]
    G = 4 * H
    f32 = jnp.float32
    bf16 = jnp.bfloat16

    lengths = len_ref[...]                               # (TB, 1) int32

    # ---- prologue: hoisted input projections -----------------------------------
    # One (T*TB, Din) @ (Din, 4H) bf16 matmul per direction, bias folded in once,
    # instead of 2*T tiny per-step matmuls inside the serial recurrence.
    x2 = x_ref[...].reshape(T * TB, Din).astype(bf16)    # f32 reshape (free), then cast
    gf = jnp.dot(x2, wih_f_ref[...], preferred_element_type=f32) + b_f_ref[...]
    gb = jnp.dot(x2, wih_b_ref[...], preferred_element_type=f32) + b_b_ref[...]
    gf_scr[...] = gf.reshape(T, TB, G)
    gb_scr[...] = gb.reshape(T, TB, G)

    hf_scr[...] = jnp.zeros((TB, H), f32)
    cf_scr[...] = jnp.zeros((TB, H), f32)
    hb_scr[...] = jnp.zeros((TB, H), f32)
    cb_scr[...] = jnp.zeros((TB, H), f32)

    def cell(gates, c):
        # PyTorch gate order [i, f, g, o]
        i = jax.nn.sigmoid(gates[:, 0 * H:1 * H])
        f = jax.nn.sigmoid(gates[:, 1 * H:2 * H])
        g = jnp.tanh(gates[:, 2 * H:3 * H])
        o = jax.nn.sigmoid(gates[:, 3 * H:4 * H])
        c_new = f * c + i * g
        h_new = o * jnp.tanh(c_new)
        return h_new, c_new

    # ---- recurrence: fwd step t and bwd step T-1-t interleaved in one body -----
    def step(s, carry):
        t_f = s
        t_b = T - 1 - s
        rec_f = jnp.dot(hf_scr[...].astype(bf16), whh_f_ref[...],
                        preferred_element_type=f32)
        rec_b = jnp.dot(hb_scr[...].astype(bf16), whh_b_ref[...],
                        preferred_element_type=f32)
        hf_new, cf_new = cell(gf_scr[t_f] + rec_f, cf_scr[...])
        hb_new, cb_new = cell(gb_scr[t_b] + rec_b, cb_scr[...])
        valid_f = t_f < lengths                          # (TB, 1) bool
        valid_b = t_b < lengths
        hf_scr[...] = jnp.where(valid_f, hf_new, hf_scr[...])
        cf_scr[...] = jnp.where(valid_f, cf_new, cf_scr[...])
        hb_scr[...] = jnp.where(valid_b, hb_new, hb_scr[...])
        cb_scr[...] = jnp.where(valid_b, cb_new, cb_scr[...])
        yf_scr[t_f] = jnp.where(valid_f, hf_new, 0.0)    # packed-seq padding -> 0
        yb_scr[t_b] = jnp.where(valid_b, hb_new, 0.0)
        return carry

    unroll_amt = True if T <= 16 else 4                  # LLO cross-iteration visibility
    lax.fori_loop(0, T, step, 0, unroll=unroll_amt)

    # ---- epilogue ---------------------------------------------------------------
    if with_fc:
        # fused fc_qa: logits = [y_f | y_b] @ W + b, output lane-padded to 128 cols
        yf2 = yf_scr[...].reshape(T * TB, H).astype(bf16)
        yb2 = yb_scr[...].reshape(T * TB, H).astype(bf16)
        logits = (jnp.dot(yf2, fc_wf_ref[...], preferred_element_type=f32)
                  + jnp.dot(yb2, fc_wb_ref[...], preferred_element_type=f32)
                  + fc_b_ref[...])
        out_ref[...] = logits.reshape(T, TB, fc_wf_ref.shape[1])
    else:
        # fused direction concat (no wrapper concatenate / extra HBM pass)
        out_ref[:, :, 0:H] = yf_scr[...]
        out_ref[:, :, H:2 * H] = yb_scr[...]


# -----------------------------------------------------------------------------
# Wrapper
# -----------------------------------------------------------------------------
def bilstm_layer(x_tbd, lengths_b1, p, fc_w_f=None, fc_w_b=None, fc_b=None,
                 *, batch_tile=8):
    """x_tbd: (T, B, Din) f32 -> (T, B, 2H) f32, or (T, B, 128) f32 logits if fc fused."""
    T, B, Din = x_tbd.shape
    H = p["whh_f"].shape[0]
    TB = min(batch_tile, B)
    assert B % TB == 0 and TB % 8 == 0, "batch tile must be sublane-aligned"
    with_fc = fc_w_f is not None

    bf16 = jnp.bfloat16
    wih_f = p["wih_f"].astype(bf16)
    whh_f = p["whh_f"].astype(bf16)
    wih_b = p["wih_b"].astype(bf16)
    whh_b = p["whh_b"].astype(bf16)
    b_f = p["b_f"].astype(jnp.float32)
    b_b = p["b_b"].astype(jnp.float32)

    def resident(a):  # weights: same block for every batch tile -> stay VMEM-resident
        return pl.BlockSpec(a.shape, lambda i: (0, 0))

    in_specs = [
        pl.BlockSpec((T, TB, Din), lambda i: (0, i, 0)),   # activations: batch-tiled
        pl.BlockSpec((TB, 1), lambda i: (i, 0)),           # sequence lengths
        resident(wih_f), resident(whh_f), resident(b_f),
        resident(wih_b), resident(whh_b), resident(b_b),
    ]
    args = [x_tbd, lengths_b1, wih_f, whh_f, b_f, wih_b, whh_b, b_b]

    if with_fc:
        in_specs += [resident(fc_w_f), resident(fc_w_b), resident(fc_b)]
        args += [fc_w_f, fc_w_b, fc_b]
        P = fc_w_f.shape[1]
        out_shape = jax.ShapeDtypeStruct((T, B, P), jnp.float32)
        out_spec = pl.BlockSpec((T, TB, P), lambda i: (0, i, 0))
    else:
        out_shape = jax.ShapeDtypeStruct((T, B, 2 * H), jnp.float32)
        out_spec = pl.BlockSpec((T, TB, 2 * H), lambda i: (0, i, 0))

    scratch = [
        pltpu.VMEM((T, TB, 4 * H), jnp.float32),   # hoisted fwd input-projection gates
        pltpu.VMEM((T, TB, 4 * H), jnp.float32),   # hoisted bwd input-projection gates
        pltpu.VMEM((TB, H), jnp.float32),          # h fwd
        pltpu.VMEM((TB, H), jnp.float32),          # c fwd
        pltpu.VMEM((TB, H), jnp.float32),          # h bwd
        pltpu.VMEM((TB, H), jnp.float32),          # c bwd
        pltpu.VMEM((T, TB, H), jnp.float32),       # per-step fwd hidden states
        pltpu.VMEM((T, TB, H), jnp.float32),       # per-step bwd hidden states
    ]

    return pl.pallas_call(
        functools.partial(_bilstm_layer_kernel, with_fc=with_fc),
        out_shape=out_shape,
        grid=(B // TB,),
        in_specs=in_specs,
        out_specs=out_spec,
        scratch_shapes=scratch,
        compiler_params=pltpu.CompilerParams(
            dimension_semantics=("parallel",),          # megacore-shard batch tiles (v7x)
            vmem_limit_bytes=32 * 1024 * 1024),         # safe on v5e/v6e/v7x at these tiles
    )(*args)


@jax.jit
def recurrent_qa_head_forward(sequence_output, seq_lengths, params):
    """QA forward path of RecurrentQAHead.

    sequence_output: (B, T, in_size)  == distilbert_output[0]
    seq_lengths    : (B,) int32
    returns (start_logits, end_logits), each (B, T).
    """
    # qa_dropout in eval mode is identity.
    # NOTE: single time-major transpose of the model input; everything downstream stays
    # time-major inside the kernels (no intermediate transposes / concats).
    x = jnp.transpose(sequence_output, (1, 0, 2)).astype(jnp.float32)  # (T, B, D)
    lengths = seq_lengths.astype(jnp.int32).reshape(-1, 1)             # (B, 1)

    # Layer 1: BiLSTM, fused (T, B, 2H) output.
    y1 = bilstm_layer(x, lengths, params["layer1"])

    # Layer 2: BiLSTM with fc_qa fused into its epilogue (lane-padded to 128 columns).
    in_size = params["fc_qa_w"].shape[0]
    n_labels = params["fc_qa_w"].shape[1]
    H = in_size // 2
    LANE = 128
    fc_wf = jnp.zeros((H, LANE), jnp.bfloat16).at[:, :n_labels].set(
        params["fc_qa_w"][:H].astype(jnp.bfloat16))
    fc_wb = jnp.zeros((H, LANE), jnp.bfloat16).at[:, :n_labels].set(
        params["fc_qa_w"][H:].astype(jnp.bfloat16))
    fc_bp = jnp.zeros((1, LANE), jnp.float32).at[:, :n_labels].set(
        params["fc_qa_b"].astype(jnp.float32))

    logits_pad = bilstm_layer(y1, lengths, params["layer2"],
                              fc_w_f=fc_wf, fc_w_b=fc_wb, fc_b=fc_bp)  # (T, B, 128)

    logits = jnp.transpose(logits_pad[:, :, :n_labels], (1, 0, 2))     # (B, T, 2)
    start_logits = logits[..., 0]
    end_logits = logits[..., 1]
    return start_logits, end_logits


# -----------------------------------------------------------------------------
# Deterministic parameter init (mirrors the module's __init__ shapes)
# -----------------------------------------------------------------------------
def init_params(key, in_size, hidden):
    def uniform(k, shape, bound):
        return jax.random.uniform(k, shape, jnp.float32, -bound, bound)

    def lstm_dir(k, din, h):
        k1, k2, k3 = jax.random.split(k, 3)
        s = 1.0 / np.sqrt(h)                      # PyTorch LSTM default init scale
        return {"wih": uniform(k1, (din, 4 * h), s),
                "whh": uniform(k2, (h, 4 * h), s),
                "b": uniform(k3, (1, 4 * h), s)}  # combined b_ih + b_hh

    keys = jax.random.split(key, 6)
    l1f, l1b = lstm_dir(keys[0], in_size, hidden), lstm_dir(keys[1], in_size, hidden)
    l2f, l2b = lstm_dir(keys[2], 2 * hidden, hidden), lstm_dir(keys[3], 2 * hidden, hidden)

    # fc_qa: Linear(in_size, 2), xavier_uniform weight, default-uniform bias
    xav = np.sqrt(6.0 / (in_size + 2))
    fc_w = uniform(keys[4], (in_size, 2), xav)
    fc_b = uniform(keys[5], (1, 2), 1.0 / np.sqrt(in_size))

    def pack(f, b):
        return {"wih_f": f["wih"], "whh_f": f["whh"], "b_f": f["b"],
                "wih_b": b["wih"], "whh_b": b["whh"], "b_b": b["b"]}

    return {"layer1": pack(l1f, l1b), "layer2": pack(l2f, l2b),
            "fc_qa_w": fc_w, "fc_qa_b": fc_b}


# -----------------------------------------------------------------------------
# Pure-JAX reference (same math & bf16 matmul casts, lax.scan) for a sanity check
# -----------------------------------------------------------------------------
def _ref_lstm_dir(x_tbd, lengths_b1, wih, whh, b, reverse):
    T, B, Din = x_tbd.shape
    H = whh.shape[0]
    x2 = x_tbd.reshape(T * B, Din).astype(jnp.bfloat16)
    gin = (jnp.dot(x2, wih.astype(jnp.bfloat16),
                   preferred_element_type=jnp.float32) + b).reshape(T, B, 4 * H)
    whh_bf = whh.astype(jnp.bfloat16)

    def step(carry, inp):
        h, c = carry
        g_in, t = inp
        gates = g_in + jnp.dot(h.astype(jnp.bfloat16), whh_bf,
                               preferred_element_type=jnp.float32)
        i = jax.nn.sigmoid(gates[:, 0 * H:1 * H])
        f = jax.nn.sigmoid(gates[:, 1 * H:2 * H])
        g = jnp.tanh(gates[:, 2 * H:3 * H])
        o = jax.nn.sigmoid(gates[:, 3 * H:4 * H])
        c_new = f * c + i * g
        h_new = o * jnp.tanh(c_new)
        valid = t < lengths_b1
        h = jnp.where(valid, h_new, h)
        c = jnp.where(valid, c_new, c)
        y = jnp.where(valid, h_new, 0.0)
        return (h, c), y

    ts = jnp.arange(T, dtype=jnp.int32)
    xs = (gin[::-1], ts[::-1]) if reverse else (gin, ts)
    h0 = jnp.zeros((B, H), jnp.float32)
    (_, _), ys = lax.scan(step, (h0, h0), xs)
    return ys[::-1] if reverse else ys


def reference_forward(sequence_output, seq_lengths, params):
    x = jnp.transpose(sequence_output, (1, 0, 2)).astype(jnp.float32)
    lengths = seq_lengths.astype(jnp.int32).reshape(-1, 1)

    def layer(xin, p):
        yf = _ref_lstm_dir(xin, lengths, p["wih_f"], p["whh_f"], p["b_f"], False)
        yb = _ref_lstm_dir(xin, lengths, p["wih_b"], p["whh_b"], p["b_b"], True)
        return jnp.concatenate([yf, yb], axis=-1)

    h2 = layer(layer(x, params["layer1"]), params["layer2"])    # (T, B, 2H)
    T, B, D2 = h2.shape
    logits = (jnp.dot(h2.reshape(T * B, D2).astype(jnp.bfloat16),
                      params["fc_qa_w"].astype(jnp.bfloat16),
                      preferred_element_type=jnp.float32)
              + params["fc_qa_b"]).reshape(T, B, -1)
    logits = jnp.transpose(logits, (1, 0, 2))
    return logits[..., 0], logits[..., 1]


# -----------------------------------------------------------------------------
if __name__ == "__main__":
    B, T, IN_SIZE = 8, 8, 64           # max_seq_length = T, hidden = in_size // 2
    HIDDEN = IN_SIZE // 2

    key = jax.random.PRNGKey(0)
    k_x, k_p = jax.random.split(key)

    sequence_output = jax.random.normal(k_x, (B, T, IN_SIZE), jnp.float32)
    seq_lengths = jnp.array([8, 7, 6, 5, 8, 4, 8, 3], dtype=jnp.int32)
    params = init_params(k_p, IN_SIZE, HIDDEN)

    start_logits, end_logits = recurrent_qa_head_forward(
        sequence_output, seq_lengths, params)
    jax.block_until_ready((start_logits, end_logits))

    # sanity check against a pure-JAX reference with matching bf16 matmul casts
    ref_start, ref_end = reference_forward(sequence_output, seq_lengths, params)
    np.testing.assert_allclose(np.asarray(start_logits), np.asarray(ref_start),
                               rtol=5e-3, atol=5e-3)
    np.testing.assert_allclose(np.asarray(end_logits), np.asarray(ref_end),
                               rtol=5e-3, atol=5e-3)
    assert start_logits.shape == (B, T) and end_logits.shape == (B, T)

    print("KERNEL_OK")
</pallas_src>

<mosaic_0001>
module attributes {stable_mosaic.version = 11 : i64} {
  func.func @_bilstm_layer_kernel(%arg0: i32, %arg1: memref<8x8x64xf32, #tpu.memory_space<vmem>>, %arg2: memref<8x1xi32, #tpu.memory_space<vmem>>, %arg3: memref<64x128xbf16, #tpu.memory_space<vmem>>, %arg4: memref<32x128xbf16, #tpu.memory_space<vmem>>, %arg5: memref<1x128xf32, #tpu.memory_space<vmem>>, %arg6: memref<64x128xbf16, #tpu.memory_space<vmem>>, %arg7: memref<32x128xbf16, #tpu.memory_space<vmem>>, %arg8: memref<1x128xf32, #tpu.memory_space<vmem>>, %arg9: memref<32x128xbf16, #tpu.memory_space<vmem>>, %arg10: memref<32x128xbf16, #tpu.memory_space<vmem>>, %arg11: memref<1x128xf32, #tpu.memory_space<vmem>>, %arg12: memref<8x8x128xf32, #tpu.memory_space<vmem>>, %arg13: memref<8x8x128xf32, #tpu.memory_space<vmem>>, %arg14: memref<8x8x128xf32, #tpu.memory_space<vmem>>, %arg15: memref<8x32xf32, #tpu.memory_space<vmem>>, %arg16: memref<8x32xf32, #tpu.memory_space<vmem>>, %arg17: memref<8x32xf32, #tpu.memory_space<vmem>>, %arg18: memref<8x32xf32, #tpu.memory_space<vmem>>, %arg19: memref<8x8x32xf32, #tpu.memory_space<vmem>>, %arg20: memref<8x8x32xf32, #tpu.memory_space<vmem>>) attributes {dimension_semantics = [#tpu.dimension_semantics<parallel>], iteration_bounds = array<i64: 1>, scalar_prefetch = 0 : i64, scratch_operands = 8 : i64, tpu.core_type = #tpu.core_type<tc>, window_params = [{transform_indices = @transform_0, window_bounds = array<i64: 8, 8, 64>}, {transform_indices = @transform_1, window_bounds = array<i64: 8, 1>}, {pipeline_mode = #tpu.pipeline_mode<synchronous>, transform_indices = @transform_2, window_bounds = array<i64: 64, 128>}, {pipeline_mode = #tpu.pipeline_mode<synchronous>, transform_indices = @transform_3, window_bounds = array<i64: 32, 128>}, {pipeline_mode = #tpu.pipeline_mode<synchronous>, transform_indices = @transform_4, window_bounds = array<i64: 1, 128>}, {pipeline_mode = #tpu.pipeline_mode<synchronous>, transform_indices = @transform_5, window_bounds = array<i64: 64, 128>}, {pipeline_mode = #tpu.pipeline_mode<synchronous>, transform_indices = @transform_6, window_bounds = array<i64: 32, 128>}, {pipeline_mode = #tpu.pipeline_mode<synchronous>, transform_indices = @transform_7, window_bounds = array<i64: 1, 128>}, {pipeline_mode = #tpu.pipeline_mode<synchronous>, transform_indices = @transform_8, window_bounds = array<i64: 32, 128>}, {pipeline_mode = #tpu.pipeline_mode<synchronous>, transform_indices = @transform_9, window_bounds = array<i64: 32, 128>}, {pipeline_mode = #tpu.pipeline_mode<synchronous>, transform_indices = @transform_10, window_bounds = array<i64: 1, 128>}, {transform_indices = @transform_11, window_bounds = array<i64: 8, 8, 128>}]} {
    %c0 = arith.constant 0 : index
    %c0_0 = arith.constant 0 : index
    %0 = vector.load %arg2[%c0, %c0_0] : memref<8x1xi32, #tpu.memory_space<vmem>>, vector<8x1xi32>
    %c0_1 = arith.constant 0 : index
    %c0_2 = arith.constant 0 : index
    %c0_3 = arith.constant 0 : index
    %1 = vector.load %arg1[%c0_1, %c0_2, %c0_3] : memref<8x8x64xf32, #tpu.memory_space<vmem>>, vector<8x8x64xf32>
    %2 = vector.shape_cast %1 : vector<8x8x64xf32> to vector<64x64xf32>
    %3 = arith.truncf %2 : vector<64x64xf32> to vector<64x64xbf16>
    %c0_4 = arith.constant 0 : index
    %c0_5 = arith.constant 0 : index
    %4 = vector.load %arg3[%c0_4, %c0_5] : memref<64x128xbf16, #tpu.memory_space<vmem>>, vector<64x128xbf16>
    %cst = arith.constant dense<0.000000e+00> : vector<64x128xf32>
    %5 = tpu.matmul %3, %4, %cst {dimension_numbers = #tpu.dot_dimension_numbers<[1], [0], [0], [1], [0, 0, 1, 1], [], []>} : vector<64x64xbf16>, vector<64x128xbf16>, vector<64x128xf32> -> vector<64x128xf32>
    %c0_6 = arith.constant 0 : index
    %c0_7 = arith.constant 0 : index
    %6 = vector.load %arg5[%c0_6, %c0_7] : memref<1x128xf32, #tpu.memory_space<vmem>>, vector<1x128xf32>
    %7 = vector.broadcast %6 : vector<1x128xf32> to vector<64x128xf32>
    %8 = arith.addf %5, %7 : vector<64x128xf32>
    %c0_8 = arith.constant 0 : index
    %c0_9 = arith.constant 0 : index
    %9 = vector.load %arg6[%c0_8, %c0_9] : memref<64x128xbf16, #tpu.memory_space<vmem>>, vector<64x128xbf16>
    %cst_10 = arith.constant dense<0.000000e+00> : vector<64x128xf32>
    %10 = tpu.matmul %3, %9, %cst_10 {dimension_numbers = #tpu.dot_dimension_numbers<[1], [0], [0], [1], [0, 0, 1, 1], [], []>} : vector<64x64xbf16>, vector<64x128xbf16>, vector<64x128xf32> -> vector<64x128xf32>
    %c0_11 = arith.constant 0 : index
    %c0_12 = arith.constant 0 : index
    %11 = vector.load %arg8[%c0_11, %c0_12] : memref<1x128xf32, #tpu.memory_space<vmem>>, vector<1x128xf32>
    %12 = vector.broadcast %11 : vector<1x128xf32> to vector<64x128xf32>
    %13 = arith.addf %10, %12 : vector<64x128xf32>
    %14 = vector.shape_cast %8 : vector<64x128xf32> to vector<8x8x128xf32>
    %c0_13 = arith.constant 0 : index
    %c0_14 = arith.constant 0 : index
    %c0_15 = arith.constant 0 : index
    %15 = vector.load %arg13[%c0_13, %c0_14, %c0_15] : memref<8x8x128xf32, #tpu.memory_space<vmem>>, vector<8x8x128xf32>
    tpu.vector_store %arg13[%c0_13, %c0_14, %c0_15], %14 {strides = array<i32>} : memref<8x8x128xf32, #tpu.memory_space<vmem>>, vector<8x8x128xf32>,
    %16 = vector.shape_cast %13 : vector<64x128xf32> to vector<8x8x128xf32>
    %c0_16 = arith.constant 0 : index
    %c0_17 = arith.constant 0 : index
    %c0_18 = arith.constant 0 : index
    %17 = vector.load %arg14[%c0_16, %c0_17, %c0_18] : memref<8x8x128xf32, #tpu.memory_space<vmem>>, vector<8x8x128xf32>
    tpu.vector_store %arg14[%c0_16, %c0_17, %c0_18], %16 {strides = array<i32>} : memref<8x8x128xf32, #tpu.memory_space<vmem>>, vector<8x8x128xf32>,
    %cst_19 = arith.constant 0.000000e+00 : f32
    %18 = vector.broadcast %cst_19 : f32 to vector<8x32xf32>
    %c0_20 = arith.constant 0 : index
    %c0_21 = arith.constant 0 : index
    %19 = vector.load %arg15[%c0_20, %c0_21] : memref<8x32xf32, #tpu.memory_space<vmem>>, vector<8x32xf32>
    tpu.vector_store %arg15[%c0_20, %c0_21], %18 {strides = array<i32>} : memref<8x32xf32, #tpu.memory_space<vmem>>, vector<8x32xf32>,
    %cst_22 = arith.constant 0.000000e+00 : f32
    %20 = vector.broadcast %cst_22 : f32 to vector<8x32xf32>
    %c0_23 = arith.constant 0 : index
    %c0_24 = arith.constant 0 : index
    %21 = vector.load %arg16[%c0_23, %c0_24] : memref<8x32xf32, #tpu.memory_space<vmem>>, vector<8x32xf32>
    tpu.vector_store %arg16[%c0_23, %c0_24], %20 {strides = array<i32>} : memref<8x32xf32, #tpu.memory_space<vmem>>, vector<8x32xf32>,
    %cst_25 = arith.constant 0.000000e+00 : f32
    %22 = vector.broadcast %cst_25 : f32 to vector<8x32xf32>
    %c0_26 = arith.constant 0 : index
    %c0_27 = arith.constant 0 : index
    %23 = vector.load %arg17[%c0_26, %c0_27] : memref<8x32xf32, #tpu.memory_space<vmem>>, vector<8x32xf32>
    tpu.vector_store %arg17[%c0_26, %c0_27], %22 {strides = array<i32>} : memref<8x32xf32, #tpu.memory_space<vmem>>, vector<8x32xf32>,
    %cst_28 = arith.constant 0.000000e+00 : f32
    %24 = vector.broadcast %cst_28 : f32 to vector<8x32xf32>
    %c0_29 = arith.constant 0 : index
    %c0_30 = arith.constant 0 : index
    %25 = vector.load %arg18[%c0_29, %c0_30] : memref<8x32xf32, #tpu.memory_space<vmem>>, vector<8x32xf32>
    tpu.vector_store %arg18[%c0_29, %c0_30], %24 {strides = array<i32>} : memref<8x32xf32, #tpu.memory_space<vmem>>, vector<8x32xf32>,
    %c0_i32 = arith.constant 0 : i32
    %c7_i32 = arith.constant 7 : i32
    %26 = arith.subi %c7_i32, %c0_i32 : i32
    %c0_31 = arith.constant 0 : index
    %c0_32 = arith.constant 0 : index
    %27 = vector.load %arg15[%c0_31, %c0_32] : memref<8x32xf32, #tpu.memory_space<vmem>>, vector<8x32xf32>
    %28 = arith.truncf %27 : vector<8x32xf32> to vector<8x32xbf16>
    %c0_33 = arith.constant 0 : index
    %c0_34 = arith.constant 0 : index
    %29 = vector.load %arg4[%c0_33, %c0_34] : memref<32x128xbf16, #tpu.memory_space<vmem>>, vector<32x128xbf16>
    %cst_35 = arith.constant dense<0.000000e+00> : vector<8x128xf32>
    %30 = tpu.matmul %28, %29, %cst_35 {dimension_numbers = #tpu.dot_dimension_numbers<[1], [0], [0], [1], [0, 0, 1, 1], [], []>} : vector<8x32xbf16>, vector<32x128xbf16>, vector<8x128xf32> -> vector<8x128xf32>
    %c0_36 = arith.constant 0 : index
    %c0_37 = arith.constant 0 : index
    %31 = vector.load %arg17[%c0_36, %c0_37] : memref<8x32xf32, #tpu.memory_space<vmem>>, vector<8x32xf32>
    %32 = arith.truncf %31 : vector<8x32xf32> to vector<8x32xbf16>
    %c0_38 = arith.constant 0 : index
    %c0_39 = arith.constant 0 : index
    %33 = vector.load %arg7[%c0_38, %c0_39] : memref<32x128xbf16, #tpu.memory_space<vmem>>, vector<32x128xbf16>
    %cst_40 = arith.constant dense<0.000000e+00> : vector<8x128xf32>
    %34 = tpu.matmul %32, %33, %cst_40 {dimension_numbers = #tpu.dot_dimension_numbers<[1], [0], [0], [1], [0, 0, 1, 1], [], []>} : vector<8x32xbf16>, vector<32x128xbf16>, vector<8x128xf32> -> vector<8x128xf32>
    %35 = arith.index_cast %c0_i32 : i32 to index
    %c0_41 = arith.constant 0 : index
    %c0_42 = arith.constant 0 : index
    %36 = vector.load %arg13[%35, %c0_41, %c0_42] : memref<8x8x128xf32, #tpu.memory_space<vmem>>, vector<1x8x128xf32>
    %37 = vector.shape_cast %36 : vector<1x8x128xf32> to vector<8x128xf32>
    %38 = arith.addf %37, %30 : vector<8x128xf32>
    %c0_43 = arith.constant 0 : index
    %c0_44 = arith.constant 0 : index
    %39 = vector.load %arg16[%c0_43, %c0_44] : memref<8x32xf32, #tpu.memory_space<vmem>>, vector<8x32xf32>
    %40 = vector.extract_strided_slice %38 {offsets = [0, 0], sizes = [8, 32], strides = [1, 1]} : vector<8x128xf32> to vector<8x32xf32>
    %41 = arith.negf %40 : vector<8x32xf32>
    %42 = math.exp %41 : vector<8x32xf32>
    %cst_45 = arith.constant 1.000000e+00 : f32
    %43 = vector.broadcast %cst_45 : f32 to vector<8x32xf32>
    %44 = arith.addf %43, %42 : vector<8x32xf32>
    %45 = arith.divf %43, %44 : vector<8x32xf32>
    %46 = vector.extract_strided_slice %38 {offsets = [0, 32], sizes = [8, 32], strides = [1, 1]} : vector<8x128xf32> to vector<8x32xf32>
    %47 = arith.negf %46 : vector<8x32xf32>
    %48 = math.exp %47 : vector<8x32xf32>
    %cst_46 = arith.constant 1.000000e+00 : f32
    %49 = vector.broadcast %cst_46 : f32 to vector<8x32xf32>
    %50 = arith.addf %49, %48 : vector<8x32xf32>
    %51 = arith.divf %49, %50 : vector<8x32xf32>
    %52 = vector.extract_strided_slice %38 {offsets = [0, 64], sizes = [8, 32], strides = [1, 1]} : vector<8x128xf32> to vector<8x32xf32>
    %53 = math.tanh %52 : vector<8x32xf32>
    %54 = vector.extract_strided_slice %38 {offsets = [0, 96], sizes = [8, 32], strides = [1, 1]} : vector<8x128xf32> to vector<8x32xf32>
    %55 = arith.negf %54 : vector<8x32xf32>
    %56 = math.exp %55 : vector<8x32xf32>
    %cst_47 = arith.constant 1.000000e+00 : f32
    %57 = vector.broadcast %cst_47 : f32 to vector<8x32xf32>
    %58 = arith.addf %57, %56 : vector<8x32xf32>
    %59 = arith.divf %57, %58 : vector<8x32xf32>
    %60 = arith.mulf %51, %39 : vector<8x32xf32>
    %61 = arith.mulf %45, %53 : vector<8x32xf32>
    %62 = arith.addf %60, %61 : vector<8x32xf32>
    %63 = math.tanh %62 : vector<8x32xf32>
    %64 = arith.mulf %59, %63 : vector<8x32xf32>
    %65 = arith.index_cast %26 : i32 to index
    %c0_48 = arith.constant 0 : index
    %c0_49 = arith.constant 0 : index
    %66 = vector.load %arg14[%65, %c0_48, %c0_49] : memref<8x8x128xf32, #tpu.memory_space<vmem>>, vector<1x8x128xf32>
    %67 = vector.shape_cast %66 : vector<1x8x128xf32> to vector<8x128xf32>
    %68 = arith.addf %67, %34 : vector<8x128xf32>
    %c0_50 = arith.constant 0 : index
    %c0_51 = arith.constant 0 : index
    %69 = vector.load %arg18[%c0_50, %c0_51] : memref<8x32xf32, #tpu.memory_space<vmem>>, vector<8x32xf32>
    %70 = vector.extract_strided_slice %68 {offsets = [0, 0], sizes = [8, 32], strides = [1, 1]} : vector<8x128xf32> to vector<8x32xf32>
    %71 = arith.negf %70 : vector<8x32xf32>
    %72 = math.exp %71 : vector<8x32xf32>
    %cst_52 = arith.constant 1.000000e+00 : f32
    %73 = vector.broadcast %cst_52 : f32 to vector<8x32xf32>
    %74 = arith.addf %73, %72 : vector<8x32xf32>
    %75 = arith.divf %73, %74 : vector<8x32xf32>
    %76 = vector.extract_strided_slice %68 {offsets = [0, 32], sizes = [8, 32], strides = [1, 1]} : vector<8x128xf32> to vector<8x32xf32>
    %77 = arith.negf %76 : vector<8x32xf32>
    %78 = math.exp %77 : vector<8x32xf32>
    %cst_53 = arith.constant 1.000000e+00 : f32
    %79 = vector.broadcast %cst_53 : f32 to vector<8x32xf32>
    %80 = arith.addf %79, %78 : vector<8x32xf32>
    %81 = arith.divf %79, %80 : vector<8x32xf32>
    %82 = vector.extract_strided_slice %68 {offsets = [0, 64], sizes = [8, 32], strides = [1, 1]} : vector<8x128xf32> to vector<8x32xf32>
    %83 = math.tanh %82 : vector<8x32xf32>
    %84 = vector.extract_strided_slice %68 {offsets = [0, 96], sizes = [8, 32], strides = [1, 1]} : vector<8x128xf32> to vector<8x32xf32>
    %85 = arith.negf %84 : vector<8x32xf32>
    %86 = math.exp %85 : vector<8x32xf32>
    %cst_54 = arith.constant 1.000000e+00 : f32
    %87 = vector.broadcast %cst_54 : f32 to vector<8x32xf32>
    %88 = arith.addf %87, %86 : vector<8x32xf32>
    %89 = arith.divf %87, %88 : vector<8x32xf32>
    %90 = arith.mulf %81, %69 : vector<8x32xf32>
    %91 = arith.mulf %75, %83 : vector<8x32xf32>
    %92 = arith.addf %90, %91 : vector<8x32xf32>
    %93 = math.tanh %92 : vector<8x32xf32>
    %94 = arith.mulf %89, %93 : vector<8x32xf32>
    %95 = vector.broadcast %c0_i32 : i32 to vector<8x1xi32>
    %96 = arith.cmpi slt, %95, %0 : vector<8x1xi32>
    %97 = vector.broadcast %26 : i32 to vector<8x1xi32>
    %98 = arith.cmpi slt, %97, %0 : vector<8x1xi32>
    %c0_55 = arith.constant 0 : index
    %c0_56 = arith.constant 0 : index
    %99 = vector.load %arg15[%c0_55, %c0_56] : memref<8x32xf32, #tpu.memory_space<vmem>>, vector<8x32xf32>
    %100 = vector.shape_cast %96 : vector<8x1xi1> to vector<8x1xi1>
    %101 = vector.broadcast %100 : vector<8x1xi1> to vector<8x32xi1>
    %102 = arith.select %101, %64, %99 : vector<8x32xi1>, vector<8x32xf32>
    %c0_57 = arith.constant 0 : index
    %c0_58 = arith.constant 0 : index
    %103 = vector.load %arg15[%c0_57, %c0_58] : memref<8x32xf32, #tpu.memory_space<vmem>>, vector<8x32xf32>
    tpu.vector_store %arg15[%c0_57, %c0_58], %102 {strides = array<i32>} : memref<8x32xf32, #tpu.memory_space<vmem>>, vector<8x32xf32>,
    %c0_59 = arith.constant 0 : index
    %c0_60 = arith.constant 0 : index
    %104 = vector.load %arg16[%c0_59, %c0_60] : memref<8x32xf32, #tpu.memory_space<vmem>>, vector<8x32xf32>
    %105 = vector.shape_cast %96 : vector<8x1xi1> to vector<8x1xi1>
    %106 = vector.broadcast %105 : vector<8x1xi1> to vector<8x32xi1>
    %107 = arith.select %106, %62, %104 : vector<8x32xi1>, vector<8x32xf32>
    %c0_61 = arith.constant 0 : index
    %c0_62 = arith.constant 0 : index
    %108 = vector.load %arg16[%c0_61, %c0_62] : memref<8x32xf32, #tpu.memory_space<vmem>>, vector<8x32xf32>
    tpu.vector_store %arg16[%c0_61, %c0_62], %107 {strides = array<i32>} : memref<8x32xf32, #tpu.memory_space<vmem>>, vector<8x32xf32>,
    %c0_63 = arith.constant 0 : index
    %c0_64 = arith.constant 0 : index
    %109 = vector.load %arg17[%c0_63, %c0_64] : memref<8x32xf32, #tpu.memory_space<vmem>>, vector<8x32xf32>
    %110 = vector.shape_cast %98 : vector<8x1xi1> to vector<8x1xi1>
    %111 = vector.broadcast %110 : vector<8x1xi1> to vector<8x32xi1>
    %112 = arith.select %111, %94, %109 : vector<8x32xi1>, vector<8x32xf32>
    %c0_65 = arith.constant 0 : index
    %c0_66 = arith.constant 0 : index
    %113 = vector.load %arg17[%c0_65, %c0_66] : memref<8x32xf32, #tpu.memory_space<vmem>>, vector<8x32xf32>
    tpu.vector_store %arg17[%c0_65, %c0_66], %112 {strides = array<i32>} : memref<8x32xf32, #tpu.memory_space<vmem>>, vector<8x32xf32>,
    %c0_67 = arith.constant 0 : index
    %c0_68 = arith.constant 0 : index
    %114 = vector.load %arg18[%c0_67, %c0_68] : memref<8x32xf32, #tpu.memory_space<vmem>>, vector<8x32xf32>
    %115 = vector.shape_cast %98 : vector<8x1xi1> to vector<8x1xi1>
    %116 = vector.broadcast %115 : vector<8x1xi1> to vector<8x32xi1>
    %117 = arith.select %116, %92, %114 : vector<8x32xi1>, vector<8x32xf32>
    %c0_69 = arith.constant 0 : index
    %c0_70 = arith.constant 0 : index
    %118 = vector.load %arg18[%c0_69, %c0_70] : memref<8x32xf32, #tpu.memory_space<vmem>>, vector<8x32xf32>
    tpu.vector_store %arg18[%c0_69, %c0_70], %117 {strides = array<i32>} : memref<8x32xf32, #tpu.memory_space<vmem>>, vector<8x32xf32>,
    %cst_71 = arith.constant 0.000000e+00 : f32
    %119 = vector.shape_cast %96 : vector<8x1xi1> to vector<8x1xi1>
    %120 = vector.broadcast %119 : vector<8x1xi1> to vector<8x32xi1>
    %121 = vector.broadcast %cst_71 : f32 to vector<8x32xf32>
    %122 = arith.select %120, %64, %121 : vector<8x32xi1>, vector<8x32xf32>
    %123 = arith.index_cast %c0_i32 : i32 to index
    %c0_72 = arith.constant 0 : index
    %c0_73 = arith.constant 0 : index
    %124 = vector.load %arg19[%123, %c0_72, %c0_73] : memref<8x8x32xf32, #tpu.memory_space<vmem>>, vector<1x8x32xf32>
    %125 = vector.shape_cast %124 : vector<1x8x32xf32> to vector<8x32xf32>
    %126 = vector.shape_cast %122 : vector<8x32xf32> to vector<1x8x32xf32>
    tpu.vector_store %arg19[%123, %c0_72, %c0_73], %126 {strides = array<i32>} : memref<8x8x32xf32, #tpu.memory_space<vmem>>, vector<1x8x32xf32>,
    %cst_74 = arith.constant 0.000000e+00 : f32
    %127 = vector.shape_cast %98 : vector<8x1xi1> to vector<8x1xi1>
    %128 = vector.broadcast %127 : vector<8x1xi1> to vector<8x32xi1>
    %129 = vector.broadcast %cst_74 : f32 to vector<8x32xf32>
    %130 = arith.select %128, %94, %129 : vector<8x32xi1>, vector<8x32xf32>
    %131 = arith.index_cast %26 : i32 to index
    %c0_75 = arith.constant 0 : index
    %c0_76 = arith.constant 0 : index
    %132 = vector.load %arg20[%131, %c0_75, %c0_76] : memref<8x8x32xf32, #tpu.memory_space<vmem>>, vector<1x8x32xf32>
    %133 = vector.shape_cast %132 : vector<1x8x32xf32> to vector<8x32xf32>
    %134 = vector.shape_cast %130 : vector<8x32xf32> to vector<1x8x32xf32>
    tpu.vector_store %arg20[%131, %c0_75, %c0_76], %134 {strides = array<i32>} : memref<8x8x32xf32, #tpu.memory_space<vmem>>, vector<1x8x32xf32>,
    %c1_i32 = arith.constant 1 : i32
    %c7_i32_77 = arith.constant 7 : i32
    %135 = arith.subi %c7_i32_77, %c1_i32 : i32
    %c0_78 = arith.constant 0 : index
    %c0_79 = arith.constant 0 : index
    %136 = vector.load %arg15[%c0_78, %c0_79] : memref<8x32xf32, #tpu.memory_space<vmem>>, vector<8x32xf32>
    %137 = arith.truncf %136 : vector<8x32xf32> to vector<8x32xbf16>
    %c0_80 = arith.constant 0 : index
    %c0_81 = arith.constant 0 : index
    %138 = vector.load %arg4[%c0_80, %c0_81] : memref<32x128xbf16, #tpu.memory_space<vmem>>, vector<32x128xbf16>
    %cst_82 = arith.constant dense<0.000000e+00> : vector<8x128xf32>
    %139 = tpu.matmul %137, %138, %cst_82 {dimension_numbers = #tpu.dot_dimension_numbers<[1], [0], [0], [1], [0, 0, 1, 1], [], []>} : vector<8x32xbf16>, vector<32x128xbf16>, vector<8x128xf32> -> vector<8x128xf32>
    %c0_83 = arith.constant 0 : index
    %c0_84 = arith.constant 0 : index
    %140 = vector.load %arg17[%c0_83, %c0_84] : memref<8x32xf32, #tpu.memory_space<vmem>>, vector<8x32xf32>
    %141 = arith.truncf %140 : vector<8x32xf32> to vector<8x32xbf16>
    %c0_85 = arith.constant 0 : index
    %c0_86 = arith.constant 0 : index
    %142 = vector.load %arg7[%c0_85, %c0_86] : memref<32x128xbf16, #tpu.memory_space<vmem>>, vector<32x128xbf16>
    %cst_87 = arith.constant dense<0.000000e+00> : vector<8x128xf32>
    %143 = tpu.matmul %141, %142, %cst_87 {dimension_numbers = #tpu.dot_dimension_numbers<[1], [0], [0], [1], [0, 0, 1, 1], [], []>} : vector<8x32xbf16>, vector<32x128xbf16>, vector<8x128xf32> -> vector<8x128xf32>
    %144 = arith.index_cast %c1_i32 : i32 to index
    %c0_88 = arith.constant 0 : index
    %c0_89 = arith.constant 0 : index
    %145 = vector.load %arg13[%144, %c0_88, %c0_89] : memref<8x8x128xf32, #tpu.memory_space<vmem>>, vector<1x8x128xf32>
    %146 = vector.shape_cast %145 : vector<1x8x128xf32> to vector<8x128xf32>
    %147 = arith.addf %146, %139 : vector<8x128xf32>
    %c0_90 = arith.constant 0 : index
    %c0_91 = arith.constant 0 : index
    %148 = vector.load %arg16[%c0_90, %c0_91] : memref<8x32xf32, #tpu.memory_space<vmem>>, vector<8x32xf32>
    %149 = vector.extract_strided_slice %147 {offsets = [0, 0], sizes = [8, 32], strides = [1, 1]} : vector<8x128xf32> to vector<8x32xf32>
    %150 = arith.negf %149 : vector<8x32xf32>
    %151 = math.exp %150 : vector<8x32xf32>
    %cst_92 = arith.constant 1.000000e+00 : f32
    %152 = vector.broadcast %cst_92 : f32 to vector<8x32xf32>
    %153 = arith.addf %152, %151 : vector<8x32xf32>
    %154 = arith.divf %152, %153 : vector<8x32xf32>
    %155 = vector.extract_strided_slice %147 {offsets = [0, 32], sizes = [8, 32], strides = [1, 1]} : vector<8x128xf32> to vector<8x32xf32>
    %156 = arith.negf %155 : vector<8x32xf32>
    %157 = math.exp %156 : vector<8x32xf32>
    %cst_93 = arith.constant 1.000000e+00 : f32
    %158 = vector.broadcast %cst_93 : f32 to vector<8x32xf32>
    %159 = arith.addf %158, %157 : vector<8x32xf32>
    %160 = arith.divf %158, %159 : vector<8x32xf32>
    %161 = vector.extract_strided_slice %147 {offsets = [0, 64], sizes = [8, 32], strides = [1, 1]} : vector<8x128xf32> to vector<8x32xf32>
    %162 = math.tanh %161 : vector<8x32xf32>
    %163 = vector.extract_strided_slice %147 {offsets = [0, 96], sizes = [8, 32], strides = [1, 1]} : vector<8x128xf32> to vector<8x32xf32>
    %164 = arith.negf %163 : vector<8x32xf32>
    %165 = math.exp %164 : vector<8x32xf32>
    %cst_94 = arith.constant 1.000000e+00 : f32
    %166 = vector.broadcast %cst_94 : f32 to vector<8x32xf32>
    %167 = arith.addf %166, %165 : vector<8x32xf32>
    %168 = arith.divf %166, %167 : vector<8x32xf32>
    %169 = arith.mulf %160, %148 : vector<8x32xf32>
    %170 = arith.mulf %154, %162 : vector<8x32xf32>
    %171 = arith.addf %169, %170 : vector<8x32xf32>
    %172 = math.tanh %171 : vector<8x32xf32>
    %173 = arith.mulf %168, %172 : vector<8x32xf32>
    %174 = arith.index_cast %135 : i32 to index
    %c0_95 = arith.constant 0 : index
    %c0_96 = arith.constant 0 : index
    %175 = vector.load %arg14[%174, %c0_95, %c0_96] : memref<8x8x128xf32, #tpu.memory_space<vmem>>, vector<1x8x128xf32>
    %176 = vector.shape_cast %175 : vector<1x8x128xf32> to vector<8x128xf32>
    %177 = arith.addf %176, %143 : vector<8x128xf32>
    %c0_97 = arith.constant 0 : index
    %c0_98 = arith.constant 0 : index
    %178 = vector.load %arg18[%c0_97, %c0_98] : memref<8x32xf32, #tpu.memory_space<vmem>>, vector<8x32xf32>
    %179 = vector.extract_strided_slice %177 {offsets = [0, 0], sizes = [8, 32], strides = [1, 1]} : vector<8x128xf32> to vector<8x32xf32>
    %180 = arith.negf %179 : vector<8x32xf32>
    %181 = math.exp %180 : vector<8x32xf32>
    %cst_99 = arith.constant 1.000000e+00 : f32
    %182 = vector.broadcast %cst_99 : f32 to vector<8x32xf32>
    %183 = arith.addf %182, %181 : vector<8x32xf32>
    %184 = arith.divf %182, %183 : vector<8x32xf32>
    %185 = vector.extract_strided_slice %177 {offsets = [0, 32], sizes = [8, 32], strides = [1, 1]} : vector<8x128xf32> to vector<8x32xf32>
    %186 = arith.negf %185 : vector<8x32xf32>
    %187 = math.exp %186 : vector<8x32xf32>
    %cst_100 = arith.constant 1.000000e+00 : f32
    %188 = vector.broadcast %cst_100 : f32 to vector<8x32xf32>
    %189 = arith.addf %188, %187 : vector<8x32xf32>
    %190 = arith.divf %188, %189 : vector<8x32xf32>
    %191 = vector.extract_strided_slice %177 {offsets = [0, 64], sizes = [8, 32], strides = [1, 1]} : vector<8x128xf32> to vector<8x32xf32>
    %192 = math.tanh %191 : vector<8x32xf32>
    %193 = vector.extract_strided_slice %177 {offsets = [0, 96], sizes = [8, 32], strides = [1, 1]} : vector<8x128xf32> to vector<8x32xf32>
    %194 = arith.negf %193 : vector<8x32xf32>
    %195 = math.exp %194 : vector<8x32xf32>
    %cst_101 = arith.constant 1.000000e+00 : f32
    %196 = vector.broadcast %cst_101 : f32 to vector<8x32xf32>
    %197 = arith.addf %196, %195 : vector<8x32xf32>
    %198 = arith.divf %196, %197 : vector<8x32xf32>
    %199 = arith.mulf %190, %178 : vector<8x32xf32>
    %200 = arith.mulf %184, %192 : vector<8x32xf32>
    %201 = arith.addf %199, %200 : vector<8x32xf32>
    %202 = math.tanh %201 : vector<8x32xf32>
    %203 = arith.mulf %198, %202 : vector<8x32xf32>
    %204 = vector.broadcast %c1_i32 : i32 to vector<8x1xi32>
    %205 = arith.cmpi slt, %204, %0 : vector<8x1xi32>
    %206 = vector.broadcast %135 : i32 to vector<8x1xi32>
    %207 = arith.cmpi slt, %206, %0 : vector<8x1xi32>
    %c0_102 = arith.constant 0 : index
    %c0_103 = arith.constant 0 : index
    %208 = vector.load %arg15[%c0_102, %c0_103] : memref<8x32xf32, #tpu.memory_space<vmem>>, vector<8x32xf32>
    %209 = vector.shape_cast %205 : vector<8x1xi1> to vector<8x1xi1>
    %210 = vector.broadcast %209 : vector<8x1xi1> to vector<8x32xi1>
    %211 = arith.select %210, %173, %208 : vector<8x32xi1>, vector<8x32xf32>
    %c0_104 = arith.constant 0 : index
    %c0_105 = arith.constant 0 : index
    %212 = vector.load %arg15[%c0_104, %c0_105] : memref<8x32xf32, #tpu.memory_space<vmem>>, vector<8x32xf32>
    tpu.vector_store %arg15[%c0_104, %c0_105], %211 {strides = array<i32>} : memref<8x32xf32, #tpu.memory_space<vmem>>, vector<8x32xf32>,
    %c0_106 = arith.constant 0 : index
    %c0_107 = arith.constant 0 : index
    %213 = vector.load %arg16[%c0_106, %c0_107] : memref<8x32xf32, #tpu.memory_space<vmem>>, vector<8x32xf32>
    %214 = vector.shape_cast %205 : vector<8x1xi1> to vector<8x1xi1>
    %215 = vector.broadcast %214 : vector<8x1xi1> to vector<8x32xi1>
    %216 = arith.select %215, %171, %213 : vector<8x32xi1>, vector<8x32xf32>
    %c0_108 = arith.constant 0 : index
    %c0_109 = arith.constant 0 : index
    %217 = vector.load %arg16[%c0_108, %c0_109] : memref<8x32xf32, #tpu.memory_space<vmem>>, vector<8x32xf32>
    tpu.vector_store %arg16[%c0_108, %c0_109], %216 {strides = array<i32>} : memref<8x32xf32, #tpu.memory_space<vmem>>, vector<8x32xf32>,
    %c0_110 = arith.constant 0 : index
    %c0_111 = arith.constant 0 : index
    %218 = vector.load %arg17[%c0_110, %c0_111] : memref<8x32xf32, #tpu.memory_space<vmem>>, vector<8x32xf32>
    %219 = vector.shape_cast %207 : vector<8x1xi1> to vector<8x1xi1>
    %220 = vector.broadcast %219 : vector<8x1xi1> to vector<8x32xi1>
    %221 = arith.select %220, %203, %218 : vector<8x32xi1>, vector<8x32xf32>
    %c0_112 = arith.constant 0 : index
    %c0_113 = arith.constant 0 : index
    %222 = vector.load %arg17[%c0_112, %c0_113] : memref<8x32xf32, #tpu.memory_space<vmem>>, vector<8x32xf32>
    tpu.vector_store %arg17[%c0_112, %c0_113], %221 {strides = array<i32>} : memref<8x32xf32, #tpu.memory_space<vmem>>, vector<8x32xf32>,
    %c0_114 = arith.constant 0 : index
    %c0_115 = arith.constant 0 : index
    %223 = vector.load %arg18[%c0_114, %c0_115] : memref<8x32xf32, #tpu.memory_space<vmem>>, vector<8x32xf32>
    %224 = vector.shape_cast %207 : vector<8x1xi1> to vector<8x1xi1>
    %225 = vector.broadcast %224 : vector<8x1xi1> to vector<8x32xi1>
    %226 = arith.select %225, %201, %223 : vector<8x32xi1>, vector<8x32xf32>
    %c0_116 = arith.constant 0 : index
    %c0_117 = arith.constant 0 : index
    %227 = vector.load %arg18[%c0_116, %c0_117] : memref<8x32xf32, #tpu.memory_space<vmem>>, vector<8x32xf32>
    tpu.vector_store %arg18[%c0_116, %c0_117], %226 {strides = array<i32>} : memref<8x32xf32, #tpu.memory_space<vmem>>, vector<8x32xf32>,
    %cst_118 = arith.constant 0.000000e+00 : f32
    %228 = vector.shape_cast %205 : vector<8x1xi1> to vector<8x1xi1>
    %229 = vector.broadcast %228 : vector<8x1xi1> to vector<8x32xi1>
    %230 = vector.broadcast %cst_118 : f32 to vector<8x32xf32>
    %231 = arith.select %229, %173, %230 : vector<8x32xi1>, vector<8x32xf32>
    %232 = arith.index_cast %c1_i32 : i32 to index
    %c0_119 = arith.constant 0 : index
    %c0_120 = arith.constant 0 : index
    %233 = vector.load %arg19[%232, %c0_119, %c0_120] : memref<8x8x32xf32, #tpu.memory_space<vmem>>, vector<1x8x32xf32>
    %234 = vector.shape_cast %233 : vector<1x8x32xf32> to vector<8x32xf32>
    %235 = vector.shape_cast %231 : vector<8x32xf32> to vector<1x8x32xf32>
    tpu.vector_store %arg19[%232, %c0_119, %c0_120], %235 {strides = array<i32>} : memref<8x8x32xf32, #tpu.memory_space<vmem>>, vector<1x8x32xf32>,
    %cst_121 = arith.constant 0.000000e+00 : f32
    %236 = vector.shape_cast %207 : vector<8x1xi1> to vector<8x1xi1>
    %237 = vector.broadcast %236 : vector<8x1xi1> to vector<8x32xi1>
    %238 = vector.broadcast %cst_121 : f32 to vector<8x32xf32>
    %239 = arith.select %237, %203, %238 : vector<8x32xi1>, vector<8x32xf32>
    %240 = arith.index_cast %135 : i32 to index
    %c0_122 = arith.constant 0 : index
    %c0_123 = arith.constant 0 : index
    %241 = vector.load %arg20[%240, %c0_122, %c0_123] : memref<8x8x32xf32, #tpu.memory_space<vmem>>, vector<1x8x32xf32>
    %242 = vector.shape_cast %241 : vector<1x8x32xf32> to vector<8x32xf32>
    %243 = vector.shape_cast %239 : vector<8x32xf32> to vector<1x8x32xf32>
    tpu.vector_store %arg20[%240, %c0_122, %c0_123], %243 {strides = array<i32>} : memref<8x8x32xf32, #tpu.memory_space<vmem>>, vector<1x8x32xf32>,
    %c2_i32 = arith.constant 2 : i32
    %c7_i32_124 = arith.constant 7 : i32
    %244 = arith.subi %c7_i32_124, %c2_i32 : i32
    %c0_125 = arith.constant 0 : index
    %c0_126 = arith.constant 0 : index
    %245 = vector.load %arg15[%c0_125, %c0_126] : memref<8x32xf32, #tpu.memory_space<vmem>>, vector<8x32xf32>
    %246 = arith.truncf %245 : vector<8x32xf32> to vector<8x32xbf16>
    %c0_127 = arith.constant 0 : index
    %c0_128 = arith.constant 0 : index
    %247 = vector.load %arg4[%c0_127, %c0_128] : memref<32x128xbf16, #tpu.memory_space<vmem>>, vector<32x128xbf16>
    %cst_129 = arith.constant dense<0.000000e+00> : vector<8x128xf32>
    %248 = tpu.matmul %246, %247, %cst_129 {dimension_numbers = #tpu.dot_dimension_numbers<[1], [0], [0], [1], [0, 0, 1, 1], [], []>} : vector<8x32xbf16>, vector<32x128xbf16>, vector<8x128xf32> -> vector<8x128xf32>
    %c0_130 = arith.constant 0 : index
    %c0_131 = arith.constant 0 : index
    %249 = vector.load %arg17[%c0_130, %c0_131] : memref<8x32xf32, #tpu.memory_space<vmem>>, vector<8x32xf32>
    %250 = arith.truncf %249 : vector<8x32xf32> to vector<8x32xbf16>
    %c0_132 = arith.constant 0 : index
    %c0_133 = arith.constant 0 : index
    %251 = vector.load %arg7[%c0_132, %c0_133] : memref<32x128xbf16, #tpu.memory_space<vmem>>, vector<32x128xbf16>
    %cst_134 = arith.constant dense<0.000000e+00> : vector<8x128xf32>
    %252 = tpu.matmul %250, %251, %cst_134 {dimension_numbers = #tpu.dot_dimension_numbers<[1], [0], [0], [1], [0, 0, 1, 1], [], []>} : vector<8x32xbf16>, vector<32x128xbf16>, vector<8x128xf32> -> vector<8x128xf32>
    %253 = arith.index_cast %c2_i32 : i32 to index
    %c0_135 = arith.constant 0 : index
    %c0_136 = arith.constant 0 : index
    %254 = vector.load %arg13[%253, %c0_135, %c0_136] : memref<8x8x128xf32, #tpu.memory_space<vmem>>, vector<1x8x128xf32>
    %255 = vector.shape_cast %254 : vector<1x8x128xf32> to vector<8x128xf32>
    %256 = arith.addf %255, %248 : vector<8x128xf32>
    %c0_137 = arith.constant 0 : index
    %c0_138 = arith.constant 0 : index
    %257 = vector.load %arg16[%c0_137, %c0_138] : memref<8x32xf32, #tpu.memory_space<vmem>>, vector<8x32xf32>
    %258 = vector.extract_strided_slice %256 {offsets = [0, 0], sizes = [8, 32], strides = [1, 1]} : vector<8x128xf32> to vector<8x32xf32>
    %259 = arith.negf %258 : vector<8x32xf32>
    %260 = math.exp %259 : vector<8x32xf32>
    %cst_139 = arith.constant 1.000000e+00 : f32
    %261 = vector.broadcast %cst_139 : f32 to vector<8x32xf32>
    %262 = arith.addf %261, %260 : vector<8x32xf32>
    %263 = arith.divf %261, %262 : vector<8x32xf32>
    %264 = vector.extract_strided_slice %256 {offsets = [0, 32], sizes = [8, 32], strides = [1, 1]} : vector<8x128xf32> to vector<8x32xf32>
    %265 = arith.negf %264 : vector<8x32xf32>
    %266 = math.exp %265 : vector<8x32xf32>
    %cst_140 = arith.constant 1.000000e+00 : f32
    %267 = vector.broadcast %cst_140 : f32 to vector<8x32xf32>
    %268 = arith.addf %267, %266 : vector<8x32xf32>
    %269 = arith.divf %267, %268 : vector<8x32xf32>
    %270 = vector.extract_strided_slice %256 {offsets = [0, 64], sizes = [8, 32], strides = [1, 1]} : vector<8x128xf32> to vector<8x32xf32>
    %271 = math.tanh %270 : vector<8x32xf32>
    %272 = vector.extract_strided_slice %256 {offsets = [0, 96], sizes = [8, 32], strides = [1, 1]} : vector<8x128xf32> to vector<8x32xf32>
    %273 = arith.negf %272 : vector<8x32xf32>
    %274 = math.exp %273 : vector<8x32xf32>
    %cst_141 = arith.constant 1.000000e+00 : f32
    %275 = vector.broadcast %cst_141 : f32 to vector<8x32xf32>
    %276 = arith.addf %275, %274 : vector<8x32xf32>
    %277 = arith.divf %275, %276 : vector<8x32xf32>
    %278 = arith.mulf %269, %257 : vector<8x32xf32>
    %279 = arith.mulf %263, %271 : vector<8x32xf32>
    %280 = arith.addf %278, %279 : vector<8x32xf32>
    %281 = math.tanh %280 : vector<8x32xf32>
    %282 = arith.mulf %277, %281 : vector<8x32xf32>
    %283 = arith.index_cast %244 : i32 to index
    %c0_142 = arith.constant 0 : index
    %c0_143 = arith.constant 0 : index
    %284 = vector.load %arg14[%283, %c0_142, %c0_143] : memref<8x8x128xf32, #tpu.memory_space<vmem>>, vector<1x8x128xf32>
    %285 = vector.shape_cast %284 : vector<1x8x128xf32> to vector<8x128xf32>
    %286 = arith.addf %285, %252 : vector<8x128xf32>
    %c0_144 = arith.constant 0 : index
    %c0_145 = arith.constant 0 : index
    %287 = vector.load %arg18[%c0_144, %c0_145] : memref<8x32xf32, #tpu.memory_space<vmem>>, vector<8x32xf32>
    %288 = vector.extract_strided_slice %286 {offsets = [0, 0], sizes = [8, 32], strides = [1, 1]} : vector<8x128xf32> to vector<8x32xf32>
    %289 = arith.negf %288 : vector<8x32xf32>
    %290 = math.exp %289 : vector<8x32xf32>
    %cst_146 = arith.constant 1.000000e+00 : f32
    %291 = vector.broadcast %cst_146 : f32 to vector<8x32xf32>
    %292 = arith.addf %291, %290 : vector<8x32xf32>
    %293 = arith.divf %291, %292 : vector<8x32xf32>
    %294 = vector.extract_strided_slice %286 {offsets = [0, 32], sizes = [8, 32], strides = [1, 1]} : vector<8x128xf32> to vector<8x32xf32>
    %295 = arith.negf %294 : vector<8x32xf32>
    %296 = math.exp %295 : vector<8x32xf32>
    %cst_147 = arith.constant 1.000000e+00 : f32
    %297 = vector.broadcast %cst_147 : f32 to vector<8x32xf32>
    %298 = arith.addf %297, %296 : vector<8x32xf32>
    %299 = arith.divf %297, %298 : vector<8x32xf32>
    %300 = vector.extract_strided_slice %286 {offsets = [0, 64], sizes = [8, 32], strides = [1, 1]} : vector<8x128xf32> to vector<8x32xf32>
    %301 = math.tanh %300 : vector<8x32xf32>
    %302 = vector.extract_strided_slice %286 {offsets = [0, 96], sizes = [8, 32], strides = [1, 1]} : vector<8x128xf32> to vector<8x32xf32>
    %303 = arith.negf %302 : vector<8x32xf32>
    %304 = math.exp %303 : vector<8x32xf32>
    %cst_148 = arith.constant 1.000000e+00 : f32
    %305 = vector.broadcast %cst_148 : f32 to vector<8x32xf32>
    %306 = arith.addf %305, %304 : vector<8x32xf32>
    %307 = arith.divf %305, %306 : vector<8x32xf32>
    %308 = arith.mulf %299, %287 : vector<8x32xf32>
    %309 = arith.mulf %293, %301 : vector<8x32xf32>
    %310 = arith.addf %308, %309 : vector<8x32xf32>
    %311 = math.tanh %310 : vector<8x32xf32>
    %312 = arith.mulf %307, %311 : vector<8x32xf32>
    %313 = vector.broadcast %c2_i32 : i32 to vector<8x1xi32>
    %314 = arith.cmpi slt, %313, %0 : vector<8x1xi32>
    %315 = vector.broadcast %244 : i32 to vector<8x1xi32>
    %316 = arith.cmpi slt, %315, %0 : vector<8x1xi32>
    %c0_149 = arith.constant 0 : index
    %c0_150 = arith.constant 0 : index
    %317 = vector.load %arg15[%c0_149, %c0_150] : memref<8x32xf32, #tpu.memory_space<vmem>>, vector<8x32xf32>
    %318 = vector.shape_cast %314 : vector<8x1xi1> to vector<8x1xi1>
    %319 = vector.broadcast %318 : vector<8x1xi1> to vector<8x32xi1>
    %320 = arith.select %319, %282, %317 : vector<8x32xi1>, vector<8x32xf32>
    %c0_151 = arith.constant 0 : index
    %c0_152 = arith.constant 0 : index
    %321 = vector.load %arg15[%c0_151, %c0_152] : memref<8x32xf32, #tpu.memory_space<vmem>>, vector<8x32xf32>
    tpu.vector_store %arg15[%c0_151, %c0_152], %320 {strides = array<i32>} : memref<8x32xf32, #tpu.memory_space<vmem>>, vector<8x32xf32>,
    %c0_153 = arith.constant 0 : index
    %c0_154 = arith.constant 0 : index
    %322 = vector.load %arg16[%c0_153, %c0_154] : memref<8x32xf32, #tpu.memory_space<vmem>>, vector<8x32xf32>
    %323 = vector.shape_cast %314 : vector<8x1xi1> to vector<8x1xi1>
    %324 = vector.broadcast %323 : vector<8x1xi1> to vector<8x32xi1>
    %325 = arith.select %324, %280, %322 : vector<8x32xi1>, vector<8x32xf32>
    %c0_155 = arith.constant 0 : index
    %c0_156 = arith.constant 0 : index
    %326 = vector.load %arg16[%c0_155, %c0_156] : memref<8x32xf32, #tpu.memory_space<vmem>>, vector<8x32xf32>
    tpu.vector_store %arg16[%c0_155, %c0_156], %325 {strides = array<i32>} : memref<8x32xf32, #tpu.memory_space<vmem>>, vector<8x32xf32>,
    %c0_157 = arith.constant 0 : index
    %c0_158 = arith.constant 0 : index
    %327 = vector.load %arg17[%c0_157, %c0_158] : memref<8x32xf32, #tpu.memory_space<vmem>>, vector<8x32xf32>
    %328 = vector.shape_cast %316 : vector<8x1xi1> to vector<8x1xi1>
    %329 = vector.broadcast %328 : vector<8x1xi1> to vector<8x32xi1>
    %330 = arith.select %329, %312, %327 : vector<8x32xi1>, vector<8x32xf32>
    %c0_159 = arith.constant 0 : index
    %c0_160 = arith.constant 0 : index
    %331 = vector.load %arg17[%c0_159, %c0_160] : memref<8x32xf32, #tpu.memory_space<vmem>>, vector<8x32xf32>
    tpu.vector_store %arg17[%c0_159, %c0_160], %330 {strides = array<i32>} : memref<8x32xf32, #tpu.memory_space<vmem>>, vector<8x32xf32>,
    %c0_161 = arith.constant 0 : index
    %c0_162 = arith.constant 0 : index
    %332 = vector.load %arg18[%c0_161, %c0_162] : memref<8x32xf32, #tpu.memory_space<vmem>>, vector<8x32xf32>
    %333 = vector.shape_cast %316 : vector<8x1xi1> to vector<8x1xi1>
    %334 = vector.broadcast %333 : vector<8x1xi1> to vector<8x32xi1>
    %335 = arith.select %334, %310, %332 : vector<8x32xi1>, vector<8x32xf32>
    %c0_163 = arith.constant 0 : index
    %c0_164 = arith.constant 0 : index
    %336 = vector.load %arg18[%c0_163, %c0_164] : memref<8x32xf32, #tpu.memory_space<vmem>>, vector<8x32xf32>
    tpu.vector_store %arg18[%c0_163, %c0_164], %335 {strides = array<i32>} : memref<8x32xf32, #tpu.memory_space<vmem>>, vector<8x32xf32>,
    %cst_165 = arith.constant 0.000000e+00 : f32
    %337 = vector.shape_cast %314 : vector<8x1xi1> to vector<8x1xi1>
    %338 = vector.broadcast %337 : vector<8x1xi1> to vector<8x32xi1>
    %339 = vector.broadcast %cst_165 : f32 to vector<8x32xf32>
    %340 = arith.select %338, %282, %339 : vector<8x32xi1>, vector<8x32xf32>
    %341 = arith.index_cast %c2_i32 : i32 to index
    %c0_166 = arith.constant 0 : index
    %c0_167 = arith.constant 0 : index
    %342 = vector.load %arg19[%341, %c0_166, %c0_167] : memref<8x8x32xf32, #tpu.memory_space<vmem>>, vector<1x8x32xf32>
    %343 = vector.shape_cast %342 : vector<1x8x32xf32> to vector<8x32xf32>
    %344 = vector.shape_cast %340 : vector<8x32xf32> to vector<1x8x32xf32>
    tpu.vector_store %arg19[%341, %c0_166, %c0_167], %344 {strides = array<i32>} : memref<8x8x32xf32, #tpu.memory_space<vmem>>, vector<1x8x32xf32>,
    %cst_168 = arith.constant 0.000000e+00 : f32
    %345 = vector.shape_cast %316 : vector<8x1xi1> to vector<8x1xi1>
    %346 = vector.broadcast %345 : vector<8x1xi1> to vector<8x32xi1>
    %347 = vector.broadcast %cst_168 : f32 to vector<8x32xf32>
    %348 = arith.select %346, %312, %347 : vector<8x32xi1>, vector<8x32xf32>
    %349 = arith.index_cast %244 : i32 to index
    %c0_169 = arith.constant 0 : index
    %c0_170 = arith.constant 0 : index
    %350 = vector.load %arg20[%349, %c0_169, %c0_170] : memref<8x8x32xf32, #tpu.memory_space<vmem>>, vector<1x8x32xf32>
    %351 = vector.shape_cast %350 : vector<1x8x32xf32> to vector<8x32xf32>
    %352 = vector.shape_cast %348 : vector<8x32xf32> to vector<1x8x32xf32>
    tpu.vector_store %arg20[%349, %c0_169, %c0_170], %352 {strides = array<i32>} : memref<8x8x32xf32, #tpu.memory_space<vmem>>, vector<1x8x32xf32>,
    %c3_i32 = arith.constant 3 : i32
    %c7_i32_171 = arith.constant 7 : i32
    %353 = arith.subi %c7_i32_171, %c3_i32 : i32
    %c0_172 = arith.constant 0 : index
    %c0_173 = arith.constant 0 : index
    %354 = vector.load %arg15[%c0_172, %c0_173] : memref<8x32xf32, #tpu.memory_space<vmem>>, vector<8x32xf32>
    %355 = arith.truncf %354 : vector<8x32xf32> to vector<8x32xbf16>
    %c0_174 = arith.constant 0 : index
    %c0_175 = arith.constant 0 : index
    %356 = vector.load %arg4[%c0_174, %c0_175] : memref<32x128xbf16, #tpu.memory_space<vmem>>, vector<32x128xbf16>
    %cst_176 = arith.constant dense<0.000000e+00> : vector<8x128xf32>
    %357 = tpu.matmul %355, %356, %cst_176 {dimension_numbers = #tpu.dot_dimension_numbers<[1], [0], [0], [1], [0, 0, 1, 1], [], []>} : vector<8x32xbf16>, vector<32x128xbf16>, vector<8x128xf32> -> vector<8x128xf32>
    %c0_177 = arith.constant 0 : index
    %c0_178 = arith.constant 0 : index
    %358 = vector.load %arg17[%c0_177, %c0_178] : memref<8x32xf32, #tpu.memory_space<vmem>>, vector<8x32xf32>
    %359 = arith.truncf %358 : vector<8x32xf32> to vector<8x32xbf16>
    %c0_179 = arith.constant 0 : index
    %c0_180 = arith.constant 0 : index
    %360 = vector.load %arg7[%c0_179, %c0_180] : memref<32x128xbf16, #tpu.memory_space<vmem>>, vector<32x128xbf16>
    %cst_181 = arith.constant dense<0.000000e+00> : vector<8x128xf32>
    %361 = tpu.matmul %359, %360, %cst_181 {dimension_numbers = #tpu.dot_dimension_numbers<[1], [0], [0], [1], [0, 0, 1, 1], [], []>} : vector<8x32xbf16>, vector<32x128xbf16>, vector<8x128xf32> -> vector<8x128xf32>
    %362 = arith.index_cast %c3_i32 : i32 to index
    %c0_182 = arith.constant 0 : index
    %c0_183 = arith.constant 0 : index
    %363 = vector.load %arg13[%362, %c0_182, %c0_183] : memref<8x8x128xf32, #tpu.memory_space<vmem>>, vector<1x8x128xf32>
    %364 = vector.shape_cast %363 : vector<1x8x128xf32> to vector<8x128xf32>
    %365 = arith.addf %364, %357 : vector<8x128xf32>
    %c0_184 = arith.constant 0 : index
    %c0_185 = arith.constant 0 : index
    %366 = vector.load %arg16[%c0_184, %c0_185] : memref<8x32xf32, #tpu.memory_space<vmem>>, vector<8x32xf32>
    %367 = vector.extract_strided_slice %365 {offsets = [0, 0], sizes = [8, 32], strides = [1, 1]} : vector<8x128xf32> to vector<8x32xf32>
    %368 = arith.negf %367 : vector<8x32xf32>
    %369 = math.exp %368 : vector<8x32xf32>
    %cst_186 = arith.constant 1.000000e+00 : f32
    %370 = vector.broadcast %cst_186 : f32 to vector<8x32xf32>
    %371 = arith.addf %370, %369 : vector<8x32xf32>
    %372 = arith.divf %370, %371 : vector<8x32xf32>
    %373 = vector.extract_strided_slice %365 {offsets = [0, 32], sizes = [8, 32], strides = [1, 1]} : vector<8x128xf32> to vector<8x32xf32>
    %374 = arith.negf %373 : vector<8x32xf32>
    %375 = math.exp %374 : vector<8x32xf32>
    %cst_187 = arith.constant 1.000000e+00 : f32
    %376 = vector.broadcast %cst_187 : f32 to vector<8x32xf32>
    %377 = arith.addf %376, %375 : vector<8x32xf32>
    %378 = arith.divf %376, %377 : vector<8x32xf32>
    %379 = vector.extract_strided_slice %365 {offsets = [0, 64], sizes = [8, 32], strides = [1, 1]} : vector<8x128xf32> to vector<8x32xf32>
    %380 = math.tanh %379 : vector<8x32xf32>
    %381 = vector.extract_strided_slice %365 {offsets = [0, 96], sizes = [8, 32], strides = [1, 1]} : vector<8x128xf32> to vector<8x32xf32>
    %382 = arith.negf %381 : vector<8x32xf32>
    %383 = math.exp %382 : vector<8x32xf32>
    %cst_188 = arith.constant 1.000000e+00 : f32
    %384 = vector.broadcast %cst_188 : f32 to vector<8x32xf32>
    %385 = arith.addf %384, %383 : vector<8x32xf32>
    %386 = arith.divf %384, %385 : vector<8x32xf32>
    %387 = arith.mulf %378, %366 : vector<8x32xf32>
    %388 = arith.mulf %372, %380 : vector<8x32xf32>
    %389 = arith.addf %387, %388 : vector<8x32xf32>
    %390 = math.tanh %389 : vector<8x32xf32>
    %391 = arith.mulf %386, %390 : vector<8x32xf32>
    %392 = arith.index_cast %353 : i32 to index
    %c0_189 = arith.constant 0 : index
    %c0_190 = arith.constant 0 : index
    %393 = vector.load %arg14[%392, %c0_189, %c0_190] : memref<8x8x128xf32, #tpu.memory_space<vmem>>, vector<1x8x128xf32>
    %394 = vector.shape_cast %393 : vector<1x8x128xf32> to vector<8x128xf32>
    %395 = arith.addf %394, %361 : vector<8x128xf32>
    %c0_191 = arith.constant 0 : index
    %c0_192 = arith.constant 0 : index
    %396 = vector.load %arg18[%c0_191, %c0_192] : memref<8x32xf32, #tpu.memory_space<vmem>>, vector<8x32xf32>
    %397 = vector.extract_strided_slice %395 {offsets = [0, 0], sizes = [8, 32], strides = [1, 1]} : vector<8x128xf32> to vector<8x32xf32>
    %398 = arith.negf %397 : vector<8x32xf32>
    %399 = math.exp %398 : vector<8x32xf32>
    %cst_193 = arith.constant 1.000000e+00 : f32
    %400 = vector.broadcast %cst_193 : f32 to vector<8x32xf32>
    %401 = arith.addf %400, %399 : vector<8x32xf32>
    %402 = arith.divf %400, %401 : vector<8x32xf32>
    %403 = vector.extract_strided_slice %395 {offsets = [0, 32], sizes = [8, 32], strides = [1, 1]} : vector<8x128xf32> to vector<8x32xf32>
    %404 = arith.negf %403 : vector<8x32xf32>
    %405 = math.exp %404 : vector<8x32xf32>
    %cst_194 = arith.constant 1.000000e+00 : f32
    %406 = vector.broadcast %cst_194 : f32 to vector<8x32xf32>
    %407 = arith.addf %406, %405 : vector<8x32xf32>
    %408 = arith.divf %406, %407 : vector<8x32xf32>
    %409 = vector.extract_strided_slice %395 {offsets = [0, 64], sizes = [8, 32], strides = [1, 1]} : vector<8x128xf32> to vector<8x32xf32>
    %410 = math.tanh %409 : vector<8x32xf32>
    %411 = vector.extract_strided_slice %395 {offsets = [0, 96], sizes = [8, 32], strides = [1, 1]} : vector<8x128xf32> to vector<8x32xf32>
    %412 = arith.negf %411 : vector<8x32xf32>
    %413 = math.exp %412 : vector<8x32xf32>
    %cst_195 = arith.constant 1.000000e+00 : f32
    %414 = vector.broadcast %cst_195 : f32 to vector<8x32xf32>
    %415 = arith.addf %414, %413 : vector<8x32xf32>
    %416 = arith.divf %414, %415 : vector<8x32xf32>
    %417 = arith.mulf %408, %396 : vector<8x32xf32>
    %418 = arith.mulf %402, %410 : vector<8x32xf32>
    %419 = arith.addf %417, %418 : vector<8x32xf32>
    %420 = math.tanh %419 : vector<8x32xf32>
    %421 = arith.mulf %416, %420 : vector<8x32xf32>
    %422 = vector.broadcast %c3_i32 : i32 to vector<8x1xi32>
    %423 = arith.cmpi slt, %422, %0 : vector<8x1xi32>
    %424 = vector.broadcast %353 : i32 to vector<8x1xi32>
    %425 = arith.cmpi slt, %424, %0 : vector<8x1xi32>
    %c0_196 = arith.constant 0 : index
    %c0_197 = arith.constant 0 : index
    %426 = vector.load %arg15[%c0_196, %c0_197] : memref<8x32xf32, #tpu.memory_space<vmem>>, vector<8x32xf32>
    %427 = vector.shape_cast %423 : vector<8x1xi1> to vector<8x1xi1>
    %428 = vector.broadcast %427 : vector<8x1xi1> to vector<8x32xi1>
    %429 = arith.select %428, %391, %426 : vector<8x32xi1>, vector<8x32xf32>
    %c0_198 = arith.constant 0 : index
    %c0_199 = arith.constant 0 : index
    %430 = vector.load %arg15[%c0_198, %c0_199] : memref<8x32xf32, #tpu.memory_space<vmem>>, vector<8x32xf32>
    tpu.vector_store %arg15[%c0_198, %c0_199], %429 {strides = array<i32>} : memref<8x32xf32, #tpu.memory_space<vmem>>, vector<8x32xf32>,
    %c0_200 = arith.constant 0 : index
    %c0_201 = arith.constant 0 : index
    %431 = vector.load %arg16[%c0_200, %c0_201] : memref<8x32xf32, #tpu.memory_space<vmem>>, vector<8x32xf32>
    %432 = vector.shape_cast %423 : vector<8x1xi1> to vector<8x1xi1>
    %433 = vector.broadcast %432 : vector<8x1xi1> to vector<8x32xi1>
    %434 = arith.select %433, %389, %431 : vector<8x32xi1>, vector<8x32xf32>
    %c0_202 = arith.constant 0 : index
    %c0_203 = arith.constant 0 : index
    %435 = vector.load %arg16[%c0_202, %c0_203] : memref<8x32xf32, #tpu.memory_space<vmem>>, vector<8x32xf32>
    tpu.vector_store %arg16[%c0_202, %c0_203], %434 {strides = array<i32>} : memref<8x32xf32, #tpu.memory_space<vmem>>, vector<8x32xf32>,
    %c0_204 = arith.constant 0 : index
    %c0_205 = arith.constant 0 : index
    %436 = vector.load %arg17[%c0_204, %c0_205] : memref<8x32xf32, #tpu.memory_space<vmem>>, vector<8x32xf32>
    %437 = vector.shape_cast %425 : vector<8x1xi1> to vector<8x1xi1>
    %438 = vector.broadcast %437 : vector<8x1xi1> to vector<8x32xi1>
    %439 = arith.select %438, %421, %436 : vector<8x32xi1>, vector<8x32xf32>
    %c0_206 = arith.constant 0 : index
    %c0_207 = arith.constant 0 : index
    %440 = vector.load %arg17[%c0_206, %c0_207] : memref<8x32xf32, #tpu.memory_space<vmem>>, vector<8x32xf32>
    tpu.vector_store %arg17[%c0_206, %c0_207], %439 {strides = array<i32>} : memref<8x32xf32, #tpu.memory_space<vmem>>, vector<8x32xf32>,
    %c0_208 = arith.constant 0 : index
    %c0_209 = arith.constant 0 : index
    %441 = vector.load %arg18[%c0_208, %c0_209] : memref<8x32xf32, #tpu.memory_space<vmem>>, vector<8x32xf32>
    %442 = vector.shape_cast %425 : vector<8x1xi1> to vector<8x1xi1>
    %443 = vector.broadcast %442 : vector<8x1xi1> to vector<8x32xi1>
    %444 = arith.select %443, %419, %441 : vector<8x32xi1>, vector<8x32xf32>
    %c0_210 = arith.constant 0 : index
    %c0_211 = arith.constant 0 : index
    %445 = vector.load %arg18[%c0_210, %c0_211] : memref<8x32xf32, #tpu.memory_space<vmem>>, vector<8x32xf32>
    tpu.vector_store %arg18[%c0_210, %c0_211], %444 {strides = array<i32>} : memref<8x32xf32, #tpu.memory_space<vmem>>, vector<8x32xf32>,
    %cst_212 = arith.constant 0.000000e+00 : f32
    %446 = vector.shape_cast %423 : vector<8x1xi1> to vector<8x1xi1>
    %447 = vector.broadcast %446 : vector<8x1xi1> to vector<8x32xi1>
    %448 = vector.broadcast %cst_212 : f32 to vector<8x32xf32>
    %449 = arith.select %447, %391, %448 : vector<8x32xi1>, vector<8x32xf32>
    %450 = arith.index_cast %c3_i32 : i32 to index
    %c0_213 = arith.constant 0 : index
    %c0_214 = arith.constant 0 : index
    %451 = vector.load %arg19[%450, %c0_213, %c0_214] : memref<8x8x32xf32, #tpu.memory_space<vmem>>, vector<1x8x32xf32>
    %452 = vector.shape_cast %451 : vector<1x8x32xf32> to vector<8x32xf32>
    %453 = vector.shape_cast %449 : vector<8x32xf32> to vector<1x8x32xf32>
    tpu.vector_store %arg19[%450, %c0_213, %c0_214], %453 {strides = array<i32>} : memref<8x8x32xf32, #tpu.memory_space<vmem>>, vector<1x8x32xf32>,
    %cst_215 = arith.constant 0.000000e+00 : f32
    %454 = vector.shape_cast %425 : vector<8x1xi1> to vector<8x1xi1>
    %455 = vector.broadcast %454 : vector<8x1xi1> to vector<8x32xi1>
    %456 = vector.broadcast %cst_215 : f32 to vector<8x32xf32>
    %457 = arith.select %455, %421, %456 : vector<8x32xi1>, vector<8x32xf32>
    %458 = arith.index_cast %353 : i32 to index
    %c0_216 = arith.constant 0 : index
    %c0_217 = arith.constant 0 : index
    %459 = vector.load %arg20[%458, %c0_216, %c0_217] : memref<8x8x32xf32, #tpu.memory_space<vmem>>, vector<1x8x32xf32>
    %460 = vector.shape_cast %459 : vector<1x8x32xf32> to vector<8x32xf32>
    %461 = vector.shape_cast %457 : vector<8x32xf32> to vector<1x8x32xf32>
    tpu.vector_store %arg20[%458, %c0_216, %c0_217], %461 {strides = array<i32>} : memref<8x8x32xf32, #tpu.memory_space<vmem>>, vector<1x8x32xf32>,
    %c4_i32 = arith.constant 4 : i32
    %c7_i32_218 = arith.constant 7 : i32
    %462 = arith.subi %c7_i32_218, %c4_i32 : i32
    %c0_219 = arith.constant 0 : index
    %c0_220 = arith.constant 0 : index
    %463 = vector.load %arg15[%c0_219, %c0_220] : memref<8x32xf32, #tpu.memory_space<vmem>>, vector<8x32xf32>
    %464 = arith.truncf %463 : vector<8x32xf32> to vector<8x32xbf16>
    %c0_221 = arith.constant 0 : index
    %c0_222 = arith.constant 0 : index
    %465 = vector.load %arg4[%c0_221, %c0_222] : memref<32x128xbf16, #tpu.memory_space<vmem>>, vector<32x128xbf16>
    %cst_223 = arith.constant dense<0.000000e+00> : vector<8x128xf32>
    %466 = tpu.matmul %464, %465, %cst_223 {dimension_numbers = #tpu.dot_dimension_numbers<[1], [0], [0], [1], [0, 0, 1, 1], [], []>} : vector<8x32xbf16>, vector<32x128xbf16>, vector<8x128xf32> -> vector<8x128xf32>
    %c0_224 = arith.constant 0 : index
    %c0_225 = arith.constant 0 : index
    %467 = vector.load %arg17[%c0_224, %c0_225] : memref<8x32xf32, #tpu.memory_space<vmem>>, vector<8x32xf32>
    %468 = arith.truncf %467 : vector<8x32xf32> to vector<8x32xbf16>
    %c0_226 = arith.constant 0 : index
    %c0_227 = arith.constant 0 : index
    %469 = vector.load %arg7[%c0_226, %c0_227] : memref<32x128xbf16, #tpu.memory_space<vmem>>, vector<32x128xbf16>
    %cst_228 = arith.constant dense<0.000000e+00> : vector<8x128xf32>
    %470 = tpu.matmul %468, %469, %cst_228 {dimension_numbers = #tpu.dot_dimension_numbers<[1], [0], [0], [1], [0, 0, 1, 1], [], []>} : vector<8x32xbf16>, vector<32x128xbf16>, vector<8x128xf32> -> vector<8x128xf32>
    %471 = arith.index_cast %c4_i32 : i32 to index
    %c0_229 = arith.constant 0 : index
    %c0_230 = arith.constant 0 : index
    %472 = vector.load %arg13[%471, %c0_229, %c0_230] : memref<8x8x128xf32, #tpu.memory_space<vmem>>, vector<1x8x128xf32>
    %473 = vector.shape_cast %472 : vector<1x8x128xf32> to vector<8x128xf32>
    %474 = arith.addf %473, %466 : vector<8x128xf32>
    %c0_231 = arith.constant 0 : index
    %c0_232 = arith.constant 0 : index
    %475 = vector.load %arg16[%c0_231, %c0_232] : memref<8x32xf32, #tpu.memory_space<vmem>>, vector<8x32xf32>
    %476 = vector.extract_strided_slice %474 {offsets = [0, 0], sizes = [8, 32], strides = [1, 1]} : vector<8x128xf32> to vector<8x32xf32>
    %477 = arith.negf %476 : vector<8x32xf32>
    %478 = math.exp %477 : vector<8x32xf32>
    %cst_233 = arith.constant 1.000000e+00 : f32
    %479 = vector.broadcast %cst_233 : f32 to vector<8x32xf32>
    %480 = arith.addf %479, %478 : vector<8x32xf32>
    %481 = arith.divf %479, %480 : vector<8x32xf32>
    %482 = vector.extract_strided_slice %474 {offsets = [0, 32], sizes = [8, 32], strides = [1, 1]} : vector<8x128xf32> to vector<8x32xf32>
    %483 = arith.negf %482 : vector<8x32xf32>
    %484 = math.exp %483 : vector<8x32xf32>
    %cst_234 = arith.constant 1.000000e+00 : f32
    %485 = vector.broadcast %cst_234 : f32 to vector<8x32xf32>
    %486 = arith.addf %485, %484 : vector<8x32xf32>
    %487 = arith.divf %485, %486 : vector<8x32xf32>
    %488 = vector.extract_strided_slice %474 {offsets = [0, 64], sizes = [8, 32], strides = [1, 1]} : vector<8x128xf32> to vector<8x32xf32>
    %489 = math.tanh %488 : vector<8x32xf32>
    %490 = vector.extract_strided_slice %474 {offsets = [0, 96], sizes = [8, 32], strides = [1, 1]} : vector<8x128xf32> to vector<8x32xf32>
    %491 = arith.negf %490 : vector<8x32xf32>
    %492 = math.exp %491 : vector<8x32xf32>
    %cst_235 = arith.constant 1.000000e+00 : f32
    %493 = vector.broadcast %cst_235 : f32 to vector<8x32xf32>
    %494 = arith.addf %493, %492 : vector<8x32xf32>
    %495 = arith.divf %493, %494 : vector<8x32xf32>
    %496 = arith.mulf %487, %475 : vector<8x32xf32>
    %497 = arith.mulf %481, %489 : vector<8x32xf32>
    %498 = arith.addf %496, %497 : vector<8x32xf32>
    %499 = math.tanh %498 : vector<8x32xf32>
    %500 = arith.mulf %495, %499 : vector<8x32xf32>
    %501 = arith.index_cast %462 : i32 to index
    %c0_236 = arith.constant 0 : index
    %c0_237 = arith.constant 0 : index
    %502 = vector.load %arg14[%501, %c0_236, %c0_237] : memref<8x8x128xf32, #tpu.memory_space<vmem>>, vector<1x8x128xf32>
    %503 = vector.shape_cast %502 : vector<1x8x128xf32> to vector<8x128xf32>
    %504 = arith.addf %503, %470 : vector<8x128xf32>
    %c0_238 = arith.constant 0 : index
    %c0_239 = arith.constant 0 : index
    %505 = vector.load %arg18[%c0_238, %c0_239] : memref<8x32xf32, #tpu.memory_space<vmem>>, vector<8x32xf32>
    %506 = vector.extract_strided_slice %504 {offsets = [0, 0], sizes = [8, 32], strides = [1, 1]} : vector<8x128xf32> to vector<8x32xf32>
    %507 = arith.negf %506 : vector<8x32xf32>
    %508 = math.exp %507 : vector<8x32xf32>
    %cst_240 = arith.constant 1.000000e+00 : f32
    %509 = vector.broadcast %cst_240 : f32 to vector<8x32xf32>
    %510 = arith.addf %509, %508 : vector<8x32xf32>
    %511 = arith.divf %509, %510 : vector<8x32xf32>
    %512 = vector.extract_strided_slice %504 {offsets = [0, 32], sizes = [8, 32], strides = [1, 1]} : vector<8x128xf32> to vector<8x32xf32>
    %513 = arith.negf %512 : vector<8x32xf32>
    %514 = math.exp %513 : vector<8x32xf32>
    %cst_241 = arith.constant 1.000000e+00 : f32
    %515 = vector.broadcast %cst_241 : f32 to vector<8x32xf32>
    %516 = arith.addf %515, %514 : vector<8x32xf32>
    %517 = arith.divf %515, %516 : vector<8x32xf32>
    %518 = vector.extract_strided_slice %504 {offsets = [0, 64], sizes = [8, 32], strides = [1, 1]} : vector<8x128xf32> to vector<8x32xf32>
    %519 = math.tanh %518 : vector<8x32xf32>
    %520 = vector.extract_strided_slice %504 {offsets = [0, 96], sizes = [8, 32], strides = [1, 1]} : vector<8x128xf32> to vector<8x32xf32>
    %521 = arith.negf %520 : vector<8x32xf32>
    %522 = math.exp %521 : vector<8x32xf32>
    %cst_242 = arith.constant 1.000000e+00 : f32
    %523 = vector.broadcast %cst_242 : f32 to vector<8x32xf32>
    %524 = arith.addf %523, %522 : vector<8x32xf32>
    %525 = arith.divf %523, %524 : vector<8x32xf32>
    %526 = arith.mulf %517, %505 : vector<8x32xf32>
    %527 = arith.mulf %511, %519 : vector<8x32xf32>
    %528 = arith.addf %526, %527 : vector<8x32xf32>
    %529 = math.tanh %528 : vector<8x32xf32>
    %530 = arith.mulf %525, %529 : vector<8x32xf32>
    %531 = vector.broadcast %c4_i32 : i32 to vector<8x1xi32>
    %532 = arith.cmpi slt, %531, %0 : vector<8x1xi32>
    %533 = vector.broadcast %462 : i32 to vector<8x1xi32>
    %534 = arith.cmpi slt, %533, %0 : vector<8x1xi32>
    %c0_243 = arith.constant 0 : index
    %c0_244 = arith.constant 0 : index
    %535 = vector.load %arg15[%c0_243, %c0_244] : memref<8x32xf32, #tpu.memory_space<vmem>>, vector<8x32xf32>
    %536 = vector.shape_cast %532 : vector<8x1xi1> to vector<8x1xi1>
    %537 = vector.broadcast %536 : vector<8x1xi1> to vector<8x32xi1>
    %538 = arith.select %537, %500, %535 : vector<8x32xi1>, vector<8x32xf32>
    %c0_245 = arith.constant 0 : index
    %c0_246 = arith.constant 0 : index
    %539 = vector.load %arg15[%c0_245, %c0_246] : memref<8x32xf32, #tpu.memory_space<vmem>>, vector<8x32xf32>
    tpu.vector_store %arg15[%c0_245, %c0_246], %538 {strides = array<i32>} : memref<8x32xf32, #tpu.memory_space<vmem>>, vector<8x32xf32>,
    %c0_247 = arith.constant 0 : index
    %c0_248 = arith.constant 0 : index
    %540 = vector.load %arg16[%c0_247, %c0_248] : memref<8x32xf32, #tpu.memory_space<vmem>>, vector<8x32xf32>
    %541 = vector.shape_cast %532 : vector<8x1xi1> to vector<8x1xi1>
    %542 = vector.broadcast %541 : vector<8x1xi1> to vector<8x32xi1>
    %543 = arith.select %542, %498, %540 : vector<8x32xi1>, vector<8x32xf32>
    %c0_249 = arith.constant 0 : index
    %c0_250 = arith.constant 0 : index
    %544 = vector.load %arg16[%c0_249, %c0_250] : memref<8x32xf32, #tpu.memory_space<vmem>>, vector<8x32xf32>
    tpu.vector_store %arg16[%c0_249, %c0_250], %543 {strides = array<i32>} : memref<8x32xf32, #tpu.memory_space<vmem>>, vector<8x32xf32>,
    %c0_251 = arith.constant 0 : index
    %c0_252 = arith.constant 0 : index
    %545 = vector.load %arg17[%c0_251, %c0_252] : memref<8x32xf32, #tpu.memory_space<vmem>>, vector<8x32xf32>
    %546 = vector.shape_cast %534 : vector<8x1xi1> to vector<8x1xi1>
    %547 = vector.broadcast %546 : vector<8x1xi1> to vector<8x32xi1>
    %548 = arith.select %547, %530, %545 : vector<8x32xi1>, vector<8x32xf32>
    %c0_253 = arith.constant 0 : index
    %c0_254 = arith.constant 0 : index
    %549 = vector.load %arg17[%c0_253, %c0_254] : memref<8x32xf32, #tpu.memory_space<vmem>>, vector<8x32xf32>
    tpu.vector_store %arg17[%c0_253, %c0_254], %548 {strides = array<i32>} : memref<8x32xf32, #tpu.memory_space<vmem>>, vector<8x32xf32>,
    %c0_255 = arith.constant 0 : index
    %c0_256 = arith.constant 0 : index
    %550 = vector.load %arg18[%c0_255, %c0_256] : memref<8x32xf32, #tpu.memory_space<vmem>>, vector<8x32xf32>
    %551 = vector.shape_cast %534 : vector<8x1xi1> to vector<8x1xi1>
    %552 = vector.broadcast %551 : vector<8x1xi1> to vector<8x32xi1>
    %553 = arith.select %552, %528, %550 : vector<8x32xi1>, vector<8x32xf32>
    %c0_257 = arith.constant 0 : index
    %c0_258 = arith.constant 0 : index
    %554 = vector.load %arg18[%c0_257, %c0_258] : memref<8x32xf32, #tpu.memory_space<vmem>>, vector<8x32xf32>
    tpu.vector_store %arg18[%c0_257, %c0_258], %553 {strides = array<i32>} : memref<8x32xf32, #tpu.memory_space<vmem>>, vector<8x32xf32>,
    %cst_259 = arith.constant 0.000000e+00 : f32
    %555 = vector.shape_cast %532 : vector<8x1xi1> to vector<8x1xi1>
    %556 = vector.broadcast %555 : vector<8x1xi1> to vector<8x32xi1>
    %557 = vector.broadcast %cst_259 : f32 to vector<8x32xf32>
    %558 = arith.select %556, %500, %557 : vector<8x32xi1>, vector<8x32xf32>
    %559 = arith.index_cast %c4_i32 : i32 to index
    %c0_260 = arith.constant 0 : index
    %c0_261 = arith.constant 0 : index
    %560 = vector.load %arg19[%559, %c0_260, %c0_261] : memref<8x8x32xf32, #tpu.memory_space<vmem>>, vector<1x8x32xf32>
    %561 = vector.shape_cast %560 : vector<1x8x32xf32> to vector<8x32xf32>
    %562 = vector.shape_cast %558 : vector<8x32xf32> to vector<1x8x32xf32>
    tpu.vector_store %arg19[%559, %c0_260, %c0_261], %562 {strides = array<i32>} : memref<8x8x32xf32, #tpu.memory_space<vmem>>, vector<1x8x32xf32>,
    %cst_262 = arith.constant 0.000000e+00 : f32
    %563 = vector.shape_cast %534 : vector<8x1xi1> to vector<8x1xi1>
    %564 = vector.broadcast %563 : vector<8x1xi1> to vector<8x32xi1>
    %565 = vector.broadcast %cst_262 : f32 to vector<8x32xf32>
    %566 = arith.select %564, %530, %565 : vector<8x32xi1>, vector<8x32xf32>
    %567 = arith.index_cast %462 : i32 to index
    %c0_263 = arith.constant 0 : index
    %c0_264 = arith.constant 0 : index
    %568 = vector.load %arg20[%567, %c0_263, %c0_264] : memref<8x8x32xf32, #tpu.memory_space<vmem>>, vector<1x8x32xf32>
    %569 = vector.shape_cast %568 : vector<1x8x32xf32> to vector<8x32xf32>
    %570 = vector.shape_cast %566 : vector<8x32xf32> to vector<1x8x32xf32>
    tpu.vector_store %arg20[%567, %c0_263, %c0_264], %570 {strides = array<i32>} : memref<8x8x32xf32, #tpu.memory_space<vmem>>, vector<1x8x32xf32>,
    %c5_i32 = arith.constant 5 : i32
    %c7_i32_265 = arith.constant 7 : i32
    %571 = arith.subi %c7_i32_265, %c5_i32 : i32
    %c0_266 = arith.constant 0 : index
    %c0_267 = arith.constant 0 : index
    %572 = vector.load %arg15[%c0_266, %c0_267] : memref<8x32xf32, #tpu.memory_space<vmem>>, vector<8x32xf32>
    %573 = arith.truncf %572 : vector<8x32xf32> to vector<8x32xbf16>
    %c0_268 = arith.constant 0 : index
    %c0_269 = arith.constant 0 : index
    %574 = vector.load %arg4[%c0_268, %c0_269] : memref<32x128xbf16, #tpu.memory_space<vmem>>, vector<32x128xbf16>
    %cst_270 = arith.constant dense<0.000000e+00> : vector<8x128xf32>
    %575 = tpu.matmul %573, %574, %cst_270 {dimension_numbers = #tpu.dot_dimension_numbers<[1], [0], [0], [1], [0, 0, 1, 1], [], []>} : vector<8x32xbf16>, vector<32x128xbf16>, vector<8x128xf32> -> vector<8x128xf32>
    %c0_271 = arith.constant 0 : index
    %c0_272 = arith.constant 0 : index
    %576 = vector.load %arg17[%c0_271, %c0_272] : memref<8x32xf32, #tpu.memory_space<vmem>>, vector<8x32xf32>
    %577 = arith.truncf %576 : vector<8x32xf32> to vector<8x32xbf16>
    %c0_273 = arith.constant 0 : index
    %c0_274 = arith.constant 0 : index
    %578 = vector.load %arg7[%c0_273, %c0_274] : memref<32x128xbf16, #tpu.memory_space<vmem>>, vector<32x128xbf16>
    %cst_275 = arith.constant dense<0.000000e+00> : vector<8x128xf32>
    %579 = tpu.matmul %577, %578, %cst_275 {dimension_numbers = #tpu.dot_dimension_numbers<[1], [0], [0], [1], [0, 0, 1, 1], [], []>} : vector<8x32xbf16>, vector<32x128xbf16>, vector<8x128xf32> -> vector<8x128xf32>
    %580 = arith.index_cast %c5_i32 : i32 to index
    %c0_276 = arith.constant 0 : index
    %c0_277 = arith.constant 0 : index
    %581 = vector.load %arg13[%580, %c0_276, %c0_277] : memref<8x8x128xf32, #tpu.memory_space<vmem>>, vector<1x8x128xf32>
    %582 = vector.shape_cast %581 : vector<1x8x128xf32> to vector<8x128xf32>
    %583 = arith.addf %582, %575 : vector<8x128xf32>
    %c0_278 = arith.constant 0 : index
    %c0_279 = arith.constant 0 : index
    %584 = vector.load %arg16[%c0_278, %c0_279] : memref<8x32xf32, #tpu.memory_space<vmem>>, vector<8x32xf32>
    %585 = vector.extract_strided_slice %583 {offsets = [0, 0], sizes = [8, 32], strides = [1, 1]} : vector<8x128xf32> to vector<8x32xf32>
    %586 = arith.negf %585 : vector<8x32xf32>
    %587 = math.exp %586 : vector<8x32xf32>
    %cst_280 = arith.constant 1.000000e+00 : f32
    %588 = vector.broadcast %cst_280 : f32 to vector<8x32xf32>
    %589 = arith.addf %588, %587 : vector<8x32xf32>
    %590 = arith.divf %588, %589 : vector<8x32xf32>
    %591 = vector.extract_strided_slice %583 {offsets = [0, 32], sizes = [8, 32], strides = [1, 1]} : vector<8x128xf32> to vector<8x32xf32>
    %592 = arith.negf %591 : vector<8x32xf32>
    %593 = math.exp %592 : vector<8x32xf32>
    %cst_281 = arith.constant 1.000000e+00 : f32
    %594 = vector.broadcast %cst_281 : f32 to vector<8x32xf32>
    %595 = arith.addf %594, %593 : vector<8x32xf32>
    %596 = arith.divf %594, %595 : vector<8x32xf32>
    %597 = vector.extract_strided_slice %583 {offsets = [0, 64], sizes = [8, 32], strides = [1, 1]} : vector<8x128xf32> to vector<8x32xf32>
    %598 = math.tanh %597 : vector<8x32xf32>
    %599 = vector.extract_strided_slice %583 {offsets = [0, 96], sizes = [8, 32], strides = [1, 1]} : vector<8x128xf32> to vector<8x32xf32>
    %600 = arith.negf %599 : vector<8x32xf32>
    %601 = math.exp %600 : vector<8x32xf32>
    %cst_282 = arith.constant 1.000000e+00 : f32
    %602 = vector.broadcast %cst_282 : f32 to vector<8x32xf32>
    %603 = arith.addf %602, %601 : vector<8x32xf32>
    %604 = arith.divf %602, %603 : vector<8x32xf32>
    %605 = arith.mulf %596, %584 : vector<8x32xf32>
    %606 = arith.mulf %590, %598 : vector<8x32xf32>
    %607 = arith.addf %605, %606 : vector<8x32xf32>
    %608 = math.tanh %607 : vector<8x32xf32>
    %609 = arith.mulf %604, %608 : vector<8x32xf32>
    %610 = arith.index_cast %571 : i32 to index
    %c0_283 = arith.constant 0 : index
    %c0_284 = arith.constant 0 : index
    %611 = vector.load %arg14[%610, %c0_283, %c0_284] : memref<8x8x128xf32, #tpu.memory_space<vmem>>, vector<1x8x128xf32>
    %612 = vector.shape_cast %611 : vector<1x8x128xf32> to vector<8x128xf32>
    %613 = arith.addf %612, %579 : vector<8x128xf32>
    %c0_285 = arith.constant 0 : index
    %c0_286 = arith.constant 0 : index
    %614 = vector.load %arg18[%c0_285, %c0_286] : memref<8x32xf32, #tpu.memory_space<vmem>>, vector<8x32xf32>
    %615 = vector.extract_strided_slice %613 {offsets = [0, 0], sizes = [8, 32], strides = [1, 1]} : vector<8x128xf32> to vector<8x32xf32>
    %616 = arith.negf %615 : vector<8x32xf32>
    %617 = math.exp %616 : vector<8x32xf32>
    %cst_287 = arith.constant 1.000000e+00 : f32
    %618 = vector.broadcast %cst_287 : f32 to vector<8x32xf32>
    %619 = arith.addf %618, %617 : vector<8x32xf32>
    %620 = arith.divf %618, %619 : vector<8x32xf32>
    %621 = vector.extract_strided_slice %613 {offsets = [0, 32], sizes = [8, 32], strides = [1, 1]} : vector<8x128xf32> to vector<8x32xf32>
    %622 = arith.negf %621 : vector<8x32xf32>
    %623 = math.exp %622 : vector<8x32xf32>
    %cst_288 = arith.constant 1.000000e+00 : f32
    %624 = vector.broadcast %cst_288 : f32 to vector<8x32xf32>
    %625 = arith.addf %624, %623 : vector<8x32xf32>
    %626 = arith.divf %624, %625 : vector<8x32xf32>
    %627 = vector.extract_strided_slice %613 {offsets = [0, 64], sizes = [8, 32], strides = [1, 1]} : vector<8x128xf32> to vector<8x32xf32>
    %628 = math.tanh %627 : vector<8x32xf32>
    %629 = vector.extract_strided_slice %613 {offsets = [0, 96], sizes = [8, 32], strides = [1, 1]} : vector<8x128xf32> to vector<8x32xf32>
    %630 = arith.negf %629 : vector<8x32xf32>
    %631 = math.exp %630 : vector<8x32xf32>
    %cst_289 = arith.constant 1.000000e+00 : f32
    %632 = vector.broadcast %cst_289 : f32 to vector<8x32xf32>
    %633 = arith.addf %632, %631 : vector<8x32xf32>
    %634 = arith.divf %632, %633 : vector<8x32xf32>
    %635 = arith.mulf %626, %614 : vector<8x32xf32>
    %636 = arith.mulf %620, %628 : vector<8x32xf32>
    %637 = arith.addf %635, %636 : vector<8x32xf32>
    %638 = math.tanh %637 : vector<8x32xf32>
    %639 = arith.mulf %634, %638 : vector<8x32xf32>
    %640 = vector.broadcast %c5_i32 : i32 to vector<8x1xi32>
    %641 = arith.cmpi slt, %640, %0 : vector<8x1xi32>
    %642 = vector.broadcast %571 : i32 to vector<8x1xi32>
    %643 = arith.cmpi slt, %642, %0 : vector<8x1xi32>
    %c0_290 = arith.constant 0 : index
    %c0_291 = arith.constant 0 : index
    %644 = vector.load %arg15[%c0_290, %c0_291] : memref<8x32xf32, #tpu.memory_space<vmem>>, vector<8x32xf32>
    %645 = vector.shape_cast %641 : vector<8x1xi1> to vector<8x1xi1>
    %646 = vector.broadcast %645 : vector<8x1xi1> to vector<8x32xi1>
    %647 = arith.select %646, %609, %644 : vector<8x32xi1>, vector<8x32xf32>
    %c0_292 = arith.constant 0 : index
    %c0_293 = arith.constant 0 : index
    %648 = vector.load %arg15[%c0_292, %c0_293] : memref<8x32xf32, #tpu.memory_space<vmem>>, vector<8x32xf32>
    tpu.vector_store %arg15[%c0_292, %c0_293], %647 {strides = array<i32>} : memref<8x32xf32, #tpu.memory_space<vmem>>, vector<8x32xf32>,
    %c0_294 = arith.constant 0 : index
    %c0_295 = arith.constant 0 : index
    %649 = vector.load %arg16[%c0_294, %c0_295] : memref<8x32xf32, #tpu.memory_space<vmem>>, vector<8x32xf32>
    %650 = vector.shape_cast %641 : vector<8x1xi1> to vector<8x1xi1>
    %651 = vector.broadcast %650 : vector<8x1xi1> to vector<8x32xi1>
    %652 = arith.select %651, %607, %649 : vector<8x32xi1>, vector<8x32xf32>
    %c0_296 = arith.constant 0 : index
    %c0_297 = arith.constant 0 : index
    %653 = vector.load %arg16[%c0_296, %c0_297] : memref<8x32xf32, #tpu.memory_space<vmem>>, vector<8x32xf32>
    tpu.vector_store %arg16[%c0_296, %c0_297], %652 {strides = array<i32>} : memref<8x32xf32, #tpu.memory_space<vmem>>, vector<8x32xf32>,
    %c0_298 = arith.constant 0 : index
    %c0_299 = arith.constant 0 : index
    %654 = vector.load %arg17[%c0_298, %c0_299] : memref<8x32xf32, #tpu.memory_space<vmem>>, vector<8x32xf32>
    %655 = vector.shape_cast %643 : vector<8x1xi1> to vector<8x1xi1>
    %656 = vector.broadcast %655 : vector<8x1xi1> to vector<8x32xi1>
    %657 = arith.select %656, %639, %654 : vector<8x32xi1>, vector<8x32xf32>
    %c0_300 = arith.constant 0 : index
    %c0_301 = arith.constant 0 : index
    %658 = vector.load %arg17[%c0_300, %c0_301] : memref<8x32xf32, #tpu.memory_space<vmem>>, vector<8x32xf32>
    tpu.vector_store %arg17[%c0_300, %c0_301], %657 {strides = array<i32>} : memref<8x32xf32, #tpu.memory_space<vmem>>, vector<8x32xf32>,
    %c0_302 = arith.constant 0 : index
    %c0_303 = arith.constant 0 : index
    %659 = vector.load %arg18[%c0_302, %c0_303] : memref<8x32xf32, #tpu.memory_space<vmem>>, vector<8x32xf32>
    %660 = vector.shape_cast %643 : vector<8x1xi1> to vector<8x1xi1>
    %661 = vector.broadcast %660 : vector<8x1xi1> to vector<8x32xi1>
    %662 = arith.select %661, %637, %659 : vector<8x32xi1>, vector<8x32xf32>
    %c0_304 = arith.constant 0 : index
    %c0_305 = arith.constant 0 : index
    %663 = vector.load %arg18[%c0_304, %c0_305] : memref<8x32xf32, #tpu.memory_space<vmem>>, vector<8x32xf32>
    tpu.vector_store %arg18[%c0_304, %c0_305], %662 {strides = array<i32>} : memref<8x32xf32, #tpu.memory_space<vmem>>, vector<8x32xf32>,
    %cst_306 = arith.constant 0.000000e+00 : f32
    %664 = vector.shape_cast %641 : vector<8x1xi1> to vector<8x1xi1>
    %665 = vector.broadcast %664 : vector<8x1xi1> to vector<8x32xi1>
    %666 = vector.broadcast %cst_306 : f32 to vector<8x32xf32>
    %667 = arith.select %665, %609, %666 : vector<8x32xi1>, vector<8x32xf32>
    %668 = arith.index_cast %c5_i32 : i32 to index
    %c0_307 = arith.constant 0 : index
    %c0_308 = arith.constant 0 : index
    %669 = vector.load %arg19[%668, %c0_307, %c0_308] : memref<8x8x32xf32, #tpu.memory_space<vmem>>, vector<1x8x32xf32>
    %670 = vector.shape_cast %669 : vector<1x8x32xf32> to vector<8x32xf32>
    %671 = vector.shape_cast %667 : vector<8x32xf32> to vector<1x8x32xf32>
    tpu.vector_store %arg19[%668, %c0_307, %c0_308], %671 {strides = array<i32>} : memref<8x8x32xf32, #tpu.memory_space<vmem>>, vector<1x8x32xf32>,
    %cst_309 = arith.constant 0.000000e+00 : f32
    %672 = vector.shape_cast %643 : vector<8x1xi1> to vector<8x1xi1>
    %673 = vector.broadcast %672 : vector<8x1xi1> to vector<8x32xi1>
    %674 = vector.broadcast %cst_309 : f32 to vector<8x32xf32>
    %675 = arith.select %673, %639, %674 : vector<8x32xi1>, vector<8x32xf32>
    %676 = arith.index_cast %571 : i32 to index
    %c0_310 = arith.constant 0 : index
    %c0_311 = arith.constant 0 : index
    %677 = vector.load %arg20[%676, %c0_310, %c0_311] : memref<8x8x32xf32, #tpu.memory_space<vmem>>, vector<1x8x32xf32>
    %678 = vector.shape_cast %677 : vector<1x8x32xf32> to vector<8x32xf32>
    %679 = vector.shape_cast %675 : vector<8x32xf32> to vector<1x8x32xf32>
    tpu.vector_store %arg20[%676, %c0_310, %c0_311], %679 {strides = array<i32>} : memref<8x8x32xf32, #tpu.memory_space<vmem>>, vector<1x8x32xf32>,
    %c6_i32 = arith.constant 6 : i32
    %c7_i32_312 = arith.constant 7 : i32
    %680 = arith.subi %c7_i32_312, %c6_i32 : i32
    %c0_313 = arith.constant 0 : index
    %c0_314 = arith.constant 0 : index
    %681 = vector.load %arg15[%c0_313, %c0_314] : memref<8x32xf32, #tpu.memory_space<vmem>>, vector<8x32xf32>
    %682 = arith.truncf %681 : vector<8x32xf32> to vector<8x32xbf16>
    %c0_315 = arith.constant 0 : index
    %c0_316 = arith.constant 0 : index
    %683 = vector.load %arg4[%c0_315, %c0_316] : memref<32x128xbf16, #tpu.memory_space<vmem>>, vector<32x128xbf16>
    %cst_317 = arith.constant dense<0.000000e+00> : vector<8x128xf32>
    %684 = tpu.matmul %682, %683, %cst_317 {dimension_numbers = #tpu.dot_dimension_numbers<[1], [0], [0], [1], [0, 0, 1, 1], [], []>} : vector<8x32xbf16>, vector<32x128xbf16>, vector<8x128xf32> -> vector<8x128xf32>
    %c0_318 = arith.constant 0 : index
    %c0_319 = arith.constant 0 : index
    %685 = vector.load %arg17[%c0_318, %c0_319] : memref<8x32xf32, #tpu.memory_space<vmem>>, vector<8x32xf32>
    %686 = arith.truncf %685 : vector<8x32xf32> to vector<8x32xbf16>
    %c0_320 = arith.constant 0 : index
    %c0_321 = arith.constant 0 : index
    %687 = vector.load %arg7[%c0_320, %c0_321] : memref<32x128xbf16, #tpu.memory_space<vmem>>, vector<32x128xbf16>
    %cst_322 = arith.constant dense<0.000000e+00> : vector<8x128xf32>
    %688 = tpu.matmul %686, %687, %cst_322 {dimension_numbers = #tpu.dot_dimension_numbers<[1], [0], [0], [1], [0, 0, 1, 1], [], []>} : vector<8x32xbf16>, vector<32x128xbf16>, vector<8x128xf32> -> vector<8x128xf32>
    %689 = arith.index_cast %c6_i32 : i32 to index
    %c0_323 = arith.constant 0 : index
    %c0_324 = arith.constant 0 : index
    %690 = vector.load %arg13[%689, %c0_323, %c0_324] : memref<8x8x128xf32, #tpu.memory_space<vmem>>, vector<1x8x128xf32>
    %691 = vector.shape_cast %690 : vector<1x8x128xf32> to vector<8x128xf32>
    %692 = arith.addf %691, %684 : vector<8x128xf32>
    %c0_325 = arith.constant 0 : index
    %c0_326 = arith.constant 0 : index
    %693 = vector.load %arg16[%c0_325, %c0_326] : memref<8x32xf32, #tpu.memory_space<vmem>>, vector<8x32xf32>
    %694 = vector.extract_strided_slice %692 {offsets = [0, 0], sizes = [8, 32], strides = [1, 1]} : vector<8x128xf32> to vector<8x32xf32>
    %695 = arith.negf %694 : vector<8x32xf32>
    %696 = math.exp %695 : vector<8x32xf32>
    %cst_327 = arith.constant 1.000000e+00 : f32
    %697 = vector.broadcast %cst_327 : f32 to vector<8x32xf32>
    %698 = arith.addf %697, %696 : vector<8x32xf32>
    %699 = arith.divf %697, %698 : vector<8x32xf32>
    %700 = vector.extract_strided_slice %692 {offsets = [0, 32], sizes = [8, 32], strides = [1, 1]} : vector<8x128xf32> to vector<8x32xf32>
    %701 = arith.negf %700 : vector<8x32xf32>
    %702 = math.exp %701 : vector<8x32xf32>
    %cst_328 = arith.constant 1.000000e+00 : f32
    %703 = vector.broadcast %cst_328 : f32 to vector<8x32xf32>
    %704 = arith.addf %703, %702 : vector<8x32xf32>
    %705 = arith.divf %703, %704 : vector<8x32xf32>
    %706 = vector.extract_strided_slice %692 {offsets = [0, 64], sizes = [8, 32], strides = [1, 1]} : vector<8x128xf32> to vector<8x32xf32>
    %707 = math.tanh %706 : vector<8x32xf32>
    %708 = vector.extract_strided_slice %692 {offsets = [0, 96], sizes = [8, 32], strides = [1, 1]} : vector<8x128xf32> to vector<8x32xf32>
    %709 = arith.negf %708 : vector<8x32xf32>
    %710 = math.exp %709 : vector<8x32xf32>
    %cst_329 = arith.constant 1.000000e+00 : f32
    %711 = vector.broadcast %cst_329 : f32 to vector<8x32xf32>
    %712 = arith.addf %711, %710 : vector<8x32xf32>
    %713 = arith.divf %711, %712 : vector<8x32xf32>
    %714 = arith.mulf %705, %693 : vector<8x32xf32>
    %715 = arith.mulf %699, %707 : vector<8x32xf32>
    %716 = arith.addf %714, %715 : vector<8x32xf32>
    %717 = math.tanh %716 : vector<8x32xf32>
    %718 = arith.mulf %713, %717 : vector<8x32xf32>
    %719 = arith.index_cast %680 : i32 to index
    %c0_330 = arith.constant 0 : index
    %c0_331 = arith.constant 0 : index
    %720 = vector.load %arg14[%719, %c0_330, %c0_331] : memref<8x8x128xf32, #tpu.memory_space<vmem>>, vector<1x8x128xf32>
    %721 = vector.shape_cast %720 : vector<1x8x128xf32> to vector<8x128xf32>
    %722 = arith.addf %721, %688 : vector<8x128xf32>
    %c0_332 = arith.constant 0 : index
    %c0_333 = arith.constant 0 : index
    %723 = vector.load %arg18[%c0_332, %c0_333] : memref<8x32xf32, #tpu.memory_space<vmem>>, vector<8x32xf32>
    %724 = vector.extract_strided_slice %722 {offsets = [0, 0], sizes = [8, 32], strides = [1, 1]} : vector<8x128xf32> to vector<8x32xf32>
    %725 = arith.negf %724 : vector<8x32xf32>
    %726 = math.exp %725 : vector<8x32xf32>
    %cst_334 = arith.constant 1.000000e+00 : f32
    %727 = vector.broadcast %cst_334 : f32 to vector<8x32xf32>
    %728 = arith.addf %727, %726 : vector<8x32xf32>
    %729 = arith.divf %727, %728 : vector<8x32xf32>
    %730 = vector.extract_strided_slice %722 {offsets = [0, 32], sizes = [8, 32], strides = [1, 1]} : vector<8x128xf32> to vector<8x32xf32>
    %731 = arith.negf %730 : vector<8x32xf32>
    %732 = math.exp %731 : vector<8x32xf32>
    %cst_335 = arith.constant 1.000000e+00 : f32
    %733 = vector.broadcast %cst_335 : f32 to vector<8x32xf32>
    %734 = arith.addf %733, %732 : vector<8x32xf32>
    %735 = arith.divf %733, %734 : vector<8x32xf32>
    %736 = vector.extract_strided_slice %722 {offsets = [0, 64], sizes = [8, 32], strides = [1, 1]} : vector<8x128xf32> to vector<8x32xf32>
    %737 = math.tanh %736 : vector<8x32xf32>
    %738 = vector.extract_strided_slice %722 {offsets = [0, 96], sizes = [8, 32], strides = [1, 1]} : vector<8x128xf32> to vector<8x32xf32>
    %739 = arith.negf %738 : vector<8x32xf32>
    %740 = math.exp %739 : vector<8x32xf32>
    %cst_336 = arith.constant 1.000000e+00 : f32
    %741 = vector.broadcast %cst_336 : f32 to vector<8x32xf32>
    %742 = arith.addf %741, %740 : vector<8x32xf32>
    %743 = arith.divf %741, %742 : vector<8x32xf32>
    %744 = arith.mulf %735, %723 : vector<8x32xf32>
    %745 = arith.mulf %729, %737 : vector<8x32xf32>
    %746 = arith.addf %744, %745 : vector<8x32xf32>
    %747 = math.tanh %746 : vector<8x32xf32>
    %748 = arith.mulf %743, %747 : vector<8x32xf32>
    %749 = vector.broadcast %c6_i32 : i32 to vector<8x1xi32>
    %750 = arith.cmpi slt, %749, %0 : vector<8x1xi32>
    %751 = vector.broadcast %680 : i32 to vector<8x1xi32>
    %752 = arith.cmpi slt, %751, %0 : vector<8x1xi32>
    %c0_337 = arith.constant 0 : index
    %c0_338 = arith.constant 0 : index
    %753 = vector.load %arg15[%c0_337, %c0_338] : memref<8x32xf32, #tpu.memory_space<vmem>>, vector<8x32xf32>
    %754 = vector.shape_cast %750 : vector<8x1xi1> to vector<8x1xi1>
    %755 = vector.broadcast %754 : vector<8x1xi1> to vector<8x32xi1>
    %756 = arith.select %755, %718, %753 : vector<8x32xi1>, vector<8x32xf32>
    %c0_339 = arith.constant 0 : index
    %c0_340 = arith.constant 0 : index
    %757 = vector.load %arg15[%c0_339, %c0_340] : memref<8x32xf32, #tpu.memory_space<vmem>>, vector<8x32xf32>
    tpu.vector_store %arg15[%c0_339, %c0_340], %756 {strides = array<i32>} : memref<8x32xf32, #tpu.memory_space<vmem>>, vector<8x32xf32>,
    %c0_341 = arith.constant 0 : index
    %c0_342 = arith.constant 0 : index
    %758 = vector.load %arg16[%c0_341, %c0_342] : memref<8x32xf32, #tpu.memory_space<vmem>>, vector<8x32xf32>
    %759 = vector.shape_cast %750 : vector<8x1xi1> to vector<8x1xi1>
    %760 = vector.broadcast %759 : vector<8x1xi1> to vector<8x32xi1>
    %761 = arith.select %760, %716, %758 : vector<8x32xi1>, vector<8x32xf32>
    %c0_343 = arith.constant 0 : index
    %c0_344 = arith.constant 0 : index
    %762 = vector.load %arg16[%c0_343, %c0_344] : memref<8x32xf32, #tpu.memory_space<vmem>>, vector<8x32xf32>
    tpu.vector_store %arg16[%c0_343, %c0_344], %761 {strides = array<i32>} : memref<8x32xf32, #tpu.memory_space<vmem>>, vector<8x32xf32>,
    %c0_345 = arith.constant 0 : index
    %c0_346 = arith.constant 0 : index
    %763 = vector.load %arg17[%c0_345, %c0_346] : memref<8x32xf32, #tpu.memory_space<vmem>>, vector<8x32xf32>
    %764 = vector.shape_cast %752 : vector<8x1xi1> to vector<8x1xi1>
    %765 = vector.broadcast %764 : vector<8x1xi1> to vector<8x32xi1>
    %766 = arith.select %765, %748, %763 : vector<8x32xi1>, vector<8x32xf32>
    %c0_347 = arith.constant 0 : index
    %c0_348 = arith.constant 0 : index
    %767 = vector.load %arg17[%c0_347, %c0_348] : memref<8x32xf32, #tpu.memory_space<vmem>>, vector<8x32xf32>
    tpu.vector_store %arg17[%c0_347, %c0_348], %766 {strides = array<i32>} : memref<8x32xf32, #tpu.memory_space<vmem>>, vector<8x32xf32>,
    %c0_349 = arith.constant 0 : index
    %c0_350 = arith.constant 0 : index
    %768 = vector.load %arg18[%c0_349, %c0_350] : memref<8x32xf32, #tpu.memory_space<vmem>>, vector<8x32xf32>
    %769 = vector.shape_cast %752 : vector<8x1xi1> to vector<8x1xi1>
    %770 = vector.broadcast %769 : vector<8x1xi1> to vector<8x32xi1>
    %771 = arith.select %770, %746, %768 : vector<8x32xi1>, vector<8x32xf32>
    %c0_351 = arith.constant 0 : index
    %c0_352 = arith.constant 0 : index
    %772 = vector.load %arg18[%c0_351, %c0_352] : memref<8x32xf32, #tpu.memory_space<vmem>>, vector<8x32xf32>
    tpu.vector_store %arg18[%c0_351, %c0_352], %771 {strides = array<i32>} : memref<8x32xf32, #tpu.memory_space<vmem>>, vector<8x32xf32>,
    %cst_353 = arith.constant 0.000000e+00 : f32
    %773 = vector.shape_cast %750 : vector<8x1xi1> to vector<8x1xi1>
    %774 = vector.broadcast %773 : vector<8x1xi1> to vector<8x32xi1>
    %775 = vector.broadcast %cst_353 : f32 to vector<8x32xf32>
    %776 = arith.select %774, %718, %775 : vector<8x32xi1>, vector<8x32xf32>
    %777 = arith.index_cast %c6_i32 : i32 to index
    %c0_354 = arith.constant 0 : index
    %c0_355 = arith.constant 0 : index
    %778 = vector.load %arg19[%777, %c0_354, %c0_355] : memref<8x8x32xf32, #tpu.memory_space<vmem>>, vector<1x8x32xf32>
    %779 = vector.shape_cast %778 : vector<1x8x32xf32> to vector<8x32xf32>
    %780 = vector.shape_cast %776 : vector<8x32xf32> to vector<1x8x32xf32>
    tpu.vector_store %arg19[%777, %c0_354, %c0_355], %780 {strides = array<i32>} : memref<8x8x32xf32, #tpu.memory_space<vmem>>, vector<1x8x32xf32>,
    %cst_356 = arith.constant 0.000000e+00 : f32
    %781 = vector.shape_cast %752 : vector<8x1xi1> to vector<8x1xi1>
    %782 = vector.broadcast %781 : vector<8x1xi1> to vector<8x32xi1>
    %783 = vector.broadcast %cst_356 : f32 to vector<8x32xf32>
    %784 = arith.select %782, %748, %783 : vector<8x32xi1>, vector<8x32xf32>
    %785 = arith.index_cast %680 : i32 to index
    %c0_357 = arith.constant 0 : index
    %c0_358 = arith.constant 0 : index
    %786 = vector.load %arg20[%785, %c0_357, %c0_358] : memref<8x8x32xf32, #tpu.memory_space<vmem>>, vector<1x8x32xf32>
    %787 = vector.shape_cast %786 : vector<1x8x32xf32> to vector<8x32xf32>
    %788 = vector.shape_cast %784 : vector<8x32xf32> to vector<1x8x32xf32>
    tpu.vector_store %arg20[%785, %c0_357, %c0_358], %788 {strides = array<i32>} : memref<8x8x32xf32, #tpu.memory_space<vmem>>, vector<1x8x32xf32>,
    %c7_i32_359 = arith.constant 7 : i32
    %c7_i32_360 = arith.constant 7 : i32
    %789 = arith.subi %c7_i32_360, %c7_i32_359 : i32
    %c0_361 = arith.constant 0 : index
    %c0_362 = arith.constant 0 : index
    %790 = vector.load %arg15[%c0_361, %c0_362] : memref<8x32xf32, #tpu.memory_space<vmem>>, vector<8x32xf32>
    %791 = arith.truncf %790 : vector<8x32xf32> to vector<8x32xbf16>
    %c0_363 = arith.constant 0 : index
    %c0_364 = arith.constant 0 : index
    %792 = vector.load %arg4[%c0_363, %c0_364] : memref<32x128xbf16, #tpu.memory_space<vmem>>, vector<32x128xbf16>
    %cst_365 = arith.constant dense<0.000000e+00> : vector<8x128xf32>
    %793 = tpu.matmul %791, %792, %cst_365 {dimension_numbers = #tpu.dot_dimension_numbers<[1], [0], [0], [1], [0, 0, 1, 1], [], []>} : vector<8x32xbf16>, vector<32x128xbf16>, vector<8x128xf32> -> vector<8x128xf32>
    %c0_366 = arith.constant 0 : index
    %c0_367 = arith.constant 0 : index
    %794 = vector.load %arg17[%c0_366, %c0_367] : memref<8x32xf32, #tpu.memory_space<vmem>>, vector<8x32xf32>
    %795 = arith.truncf %794 : vector<8x32xf32> to vector<8x32xbf16>
    %c0_368 = arith.constant 0 : index
    %c0_369 = arith.constant 0 : index
    %796 = vector.load %arg7[%c0_368, %c0_369] : memref<32x128xbf16, #tpu.memory_space<vmem>>, vector<32x128xbf16>
    %cst_370 = arith.constant dense<0.000000e+00> : vector<8x128xf32>
    %797 = tpu.matmul %795, %796, %cst_370 {dimension_numbers = #tpu.dot_dimension_numbers<[1], [0], [0], [1], [0, 0, 1, 1], [], []>} : vector<8x32xbf16>, vector<32x128xbf16>, vector<8x128xf32> -> vector<8x128xf32>
    %798 = arith.index_cast %c7_i32_359 : i32 to index
    %c0_371 = arith.constant 0 : index
    %c0_372 = arith.constant 0 : index
    %799 = vector.load %arg13[%798, %c0_371, %c0_372] : memref<8x8x128xf32, #tpu.memory_space<vmem>>, vector<1x8x128xf32>
    %800 = vector.shape_cast %799 : vector<1x8x128xf32> to vector<8x128xf32>
    %801 = arith.addf %800, %793 : vector<8x128xf32>
    %c0_373 = arith.constant 0 : index
    %c0_374 = arith.constant 0 : index
    %802 = vector.load %arg16[%c0_373, %c0_374] : memref<8x32xf32, #tpu.memory_space<vmem>>, vector<8x32xf32>
    %803 = vector.extract_strided_slice %801 {offsets = [0, 0], sizes = [8, 32], strides = [1, 1]} : vector<8x128xf32> to vector<8x32xf32>
    %804 = arith.negf %803 : vector<8x32xf32>
    %805 = math.exp %804 : vector<8x32xf32>
    %cst_375 = arith.constant 1.000000e+00 : f32
    %806 = vector.broadcast %cst_375 : f32 to vector<8x32xf32>
    %807 = arith.addf %806, %805 : vector<8x32xf32>
    %808 = arith.divf %806, %807 : vector<8x32xf32>
    %809 = vector.extract_strided_slice %801 {offsets = [0, 32], sizes = [8, 32], strides = [1, 1]} : vector<8x128xf32> to vector<8x32xf32>
    %810 = arith.negf %809 : vector<8x32xf32>
    %811 = math.exp %810 : vector<8x32xf32>
    %cst_376 = arith.constant 1.000000e+00 : f32
    %812 = vector.broadcast %cst_376 : f32 to vector<8x32xf32>
    %813 = arith.addf %812, %811 : vector<8x32xf32>
    %814 = arith.divf %812, %813 : vector<8x32xf32>
    %815 = vector.extract_strided_slice %801 {offsets = [0, 64], sizes = [8, 32], strides = [1, 1]} : vector<8x128xf32> to vector<8x32xf32>
    %816 = math.tanh %815 : vector<8x32xf32>
    %817 = vector.extract_strided_slice %801 {offsets = [0, 96], sizes = [8, 32], strides = [1, 1]} : vector<8x128xf32> to vector<8x32xf32>
    %818 = arith.negf %817 : vector<8x32xf32>
    %819 = math.exp %818 : vector<8x32xf32>
    %cst_377 = arith.constant 1.000000e+00 : f32
    %820 = vector.broadcast %cst_377 : f32 to vector<8x32xf32>
    %821 = arith.addf %820, %819 : vector<8x32xf32>
    %822 = arith.divf %820, %821 : vector<8x32xf32>
    %823 = arith.mulf %814, %802 : vector<8x32xf32>
    %824 = arith.mulf %808, %816 : vector<8x32xf32>
    %825 = arith.addf %823, %824 : vector<8x32xf32>
    %826 = math.tanh %825 : vector<8x32xf32>
    %827 = arith.mulf %822, %826 : vector<8x32xf32>
    %828 = arith.index_cast %789 : i32 to index
    %c0_378 = arith.constant 0 : index
    %c0_379 = arith.constant 0 : index
    %829 = vector.load %arg14[%828, %c0_378, %c0_379] : memref<8x8x128xf32, #tpu.memory_space<vmem>>, vector<1x8x128xf32>
    %830 = vector.shape_cast %829 : vector<1x8x128xf32> to vector<8x128xf32>
    %831 = arith.addf %830, %797 : vector<8x128xf32>
    %c0_380 = arith.constant 0 : index
    %c0_381 = arith.constant 0 : index
    %832 = vector.load %arg18[%c0_380, %c0_381] : memref<8x32xf32, #tpu.memory_space<vmem>>, vector<8x32xf32>
    %833 = vector.extract_strided_slice %831 {offsets = [0, 0], sizes = [8, 32], strides = [1, 1]} : vector<8x128xf32> to vector<8x32xf32>
    %834 = arith.negf %833 : vector<8x32xf32>
    %835 = math.exp %834 : vector<8x32xf32>
    %cst_382 = arith.constant 1.000000e+00 : f32
    %836 = vector.broadcast %cst_382 : f32 to vector<8x32xf32>
    %837 = arith.addf %836, %835 : vector<8x32xf32>
    %838 = arith.divf %836, %837 : vector<8x32xf32>
    %839 = vector.extract_strided_slice %831 {offsets = [0, 32], sizes = [8, 32], strides = [1, 1]} : vector<8x128xf32> to vector<8x32xf32>
    %840 = arith.negf %839 : vector<8x32xf32>
    %841 = math.exp %840 : vector<8x32xf32>
    %cst_383 = arith.constant 1.000000e+00 : f32
    %842 = vector.broadcast %cst_383 : f32 to vector<8x32xf32>
    %843 = arith.addf %842, %841 : vector<8x32xf32>
    %844 = arith.divf %842, %843 : vector<8x32xf32>
    %845 = vector.extract_strided_slice %831 {offsets = [0, 64], sizes = [8, 32], strides = [1, 1]} : vector<8x128xf32> to vector<8x32xf32>
    %846 = math.tanh %845 : vector<8x32xf32>
    %847 = vector.extract_strided_slice %831 {offsets = [0, 96], sizes = [8, 32], strides = [1, 1]} : vector<8x128xf32> to vector<8x32xf32>
    %848 = arith.negf %847 : vector<8x32xf32>
    %849 = math.exp %848 : vector<8x32xf32>
    %cst_384 = arith.constant 1.000000e+00 : f32
    %850 = vector.broadcast %cst_384 : f32 to vector<8x32xf32>
    %851 = arith.addf %850, %849 : vector<8x32xf32>
    %852 = arith.divf %850, %851 : vector<8x32xf32>
    %853 = arith.mulf %844, %832 : vector<8x32xf32>
    %854 = arith.mulf %838, %846 : vector<8x32xf32>
    %855 = arith.addf %853, %854 : vector<8x32xf32>
    %856 = math.tanh %855 : vector<8x32xf32>
    %857 = arith.mulf %852, %856 : vector<8x32xf32>
    %858 = vector.broadcast %c7_i32_359 : i32 to vector<8x1xi32>
    %859 = arith.cmpi slt, %858, %0 : vector<8x1xi32>
    %860 = vector.broadcast %789 : i32 to vector<8x1xi32>
    %861 = arith.cmpi slt, %860, %0 : vector<8x1xi32>
    %c0_385 = arith.constant 0 : index
    %c0_386 = arith.constant 0 : index
    %862 = vector.load %arg15[%c0_385, %c0_386] : memref<8x32xf32, #tpu.memory_space<vmem>>, vector<8x32xf32>
    %863 = vector.shape_cast %859 : vector<8x1xi1> to vector<8x1xi1>
    %864 = vector.broadcast %863 : vector<8x1xi1> to vector<8x32xi1>
    %865 = arith.select %864, %827, %862 : vector<8x32xi1>, vector<8x32xf32>
    %c0_387 = arith.constant 0 : index
    %c0_388 = arith.constant 0 : index
    %866 = vector.load %arg15[%c0_387, %c0_388] : memref<8x32xf32, #tpu.memory_space<vmem>>, vector<8x32xf32>
    tpu.vector_store %arg15[%c0_387, %c0_388], %865 {strides = array<i32>} : memref<8x32xf32, #tpu.memory_space<vmem>>, vector<8x32xf32>,
    %c0_389 = arith.constant 0 : index
    %c0_390 = arith.constant 0 : index
    %867 = vector.load %arg16[%c0_389, %c0_390] : memref<8x32xf32, #tpu.memory_space<vmem>>, vector<8x32xf32>
    %868 = vector.shape_cast %859 : vector<8x1xi1> to vector<8x1xi1>
    %869 = vector.broadcast %868 : vector<8x1xi1> to vector<8x32xi1>
    %870 = arith.select %869, %825, %867 : vector<8x32xi1>, vector<8x32xf32>
    %c0_391 = arith.constant 0 : index
    %c0_392 = arith.constant 0 : index
    %871 = vector.load %arg16[%c0_391, %c0_392] : memref<8x32xf32, #tpu.memory_space<vmem>>, vector<8x32xf32>
    tpu.vector_store %arg16[%c0_391, %c0_392], %870 {strides = array<i32>} : memref<8x32xf32, #tpu.memory_space<vmem>>, vector<8x32xf32>,
    %c0_393 = arith.constant 0 : index
    %c0_394 = arith.constant 0 : index
    %872 = vector.load %arg17[%c0_393, %c0_394] : memref<8x32xf32, #tpu.memory_space<vmem>>, vector<8x32xf32>
    %873 = vector.shape_cast %861 : vector<8x1xi1> to vector<8x1xi1>
    %874 = vector.broadcast %873 : vector<8x1xi1> to vector<8x32xi1>
    %875 = arith.select %874, %857, %872 : vector<8x32xi1>, vector<8x32xf32>
    %c0_395 = arith.constant 0 : index
    %c0_396 = arith.constant 0 : index
    %876 = vector.load %arg17[%c0_395, %c0_396] : memref<8x32xf32, #tpu.memory_space<vmem>>, vector<8x32xf32>
    tpu.vector_store %arg17[%c0_395, %c0_396], %875 {strides = array<i32>} : memref<8x32xf32, #tpu.memory_space<vmem>>, vector<8x32xf32>,
    %c0_397 = arith.constant 0 : index
    %c0_398 = arith.constant 0 : index
    %877 = vector.load %arg18[%c0_397, %c0_398] : memref<8x32xf32, #tpu.memory_space<vmem>>, vector<8x32xf32>
    %878 = vector.shape_cast %861 : vector<8x1xi1> to vector<8x1xi1>
    %879 = vector.broadcast %878 : vector<8x1xi1> to vector<8x32xi1>
    %880 = arith.select %879, %855, %877 : vector<8x32xi1>, vector<8x32xf32>
    %c0_399 = arith.constant 0 : index
    %c0_400 = arith.constant 0 : index
    %881 = vector.load %arg18[%c0_399, %c0_400] : memref<8x32xf32, #tpu.memory_space<vmem>>, vector<8x32xf32>
    tpu.vector_store %arg18[%c0_399, %c0_400], %880 {strides = array<i32>} : memref<8x32xf32, #tpu.memory_space<vmem>>, vector<8x32xf32>,
    %cst_401 = arith.constant 0.000000e+00 : f32
    %882 = vector.shape_cast %859 : vector<8x1xi1> to vector<8x1xi1>
    %883 = vector.broadcast %882 : vector<8x1xi1> to vector<8x32xi1>
    %884 = vector.broadcast %cst_401 : f32 to vector<8x32xf32>
    %885 = arith.select %883, %827, %884 : vector<8x32xi1>, vector<8x32xf32>
    %886 = arith.index_cast %c7_i32_359 : i32 to index
    %c0_402 = arith.constant 0 : index
    %c0_403 = arith.constant 0 : index
    %887 = vector.load %arg19[%886, %c0_402, %c0_403] : memref<8x8x32xf32, #tpu.memory_space<vmem>>, vector<1x8x32xf32>
    %888 = vector.shape_cast %887 : vector<1x8x32xf32> to vector<8x32xf32>
    %889 = vector.shape_cast %885 : vector<8x32xf32> to vector<1x8x32xf32>
    tpu.vector_store %arg19[%886, %c0_402, %c0_403], %889 {strides = array<i32>} : memref<8x8x32xf32, #tpu.memory_space<vmem>>, vector<1x8x32xf32>,
    %cst_404 = arith.constant 0.000000e+00 : f32
    %890 = vector.shape_cast %861 : vector<8x1xi1> to vector<8x1xi1>
    %891 = vector.broadcast %890 : vector<8x1xi1> to vector<8x32xi1>
    %892 = vector.broadcast %cst_404 : f32 to vector<8x32xf32>
    %893 = arith.select %891, %857, %892 : vector<8x32xi1>, vector<8x32xf32>
    %894 = arith.index_cast %789 : i32 to index
    %c0_405 = arith.constant 0 : index
    %c0_406 = arith.constant 0 : index
    %895 = vector.load %arg20[%894, %c0_405, %c0_406] : memref<8x8x32xf32, #tpu.memory_space<vmem>>, vector<1x8x32xf32>
    %896 = vector.shape_cast %895 : vector<1x8x32xf32> to vector<8x32xf32>
    %897 = vector.shape_cast %893 : vector<8x32xf32> to vector<1x8x32xf32>
    tpu.vector_store %arg20[%894, %c0_405, %c0_406], %897 {strides = array<i32>} : memref<8x8x32xf32, #tpu.memory_space<vmem>>, vector<1x8x32xf32>,
    %c8_i32 = arith.constant 8 : i32
    %c0_407 = arith.constant 0 : index
    %c0_408 = arith.constant 0 : index
    %c0_409 = arith.constant 0 : index
    %898 = vector.load %arg19[%c0_407, %c0_408, %c0_409] : memref<8x8x32xf32, #tpu.memory_space<vmem>>, vector<8x8x32xf32>
    %899 = vector.shape_cast %898 : vector<8x8x32xf32> to vector<64x32xf32>
    %900 = arith.truncf %899 : vector<64x32xf32> to vector<64x32xbf16>
    %c0_410 = arith.constant 0 : index
    %c0_411 = arith.constant 0 : index
    %c0_412 = arith.constant 0 : index
    %901 = vector.load %arg20[%c0_410, %c0_411, %c0_412] : memref<8x8x32xf32, #tpu.memory_space<vmem>>, vector<8x8x32xf32>
    %902 = vector.shape_cast %901 : vector<8x8x32xf32> to vector<64x32xf32>
    %903 = arith.truncf %902 : vector<64x32xf32> to vector<64x32xbf16>
    %c0_413 = arith.constant 0 : index
    %c0_414 = arith.constant 0 : index
    %904 = vector.load %arg9[%c0_413, %c0_414] : memref<32x128xbf16, #tpu.memory_space<vmem>>, vector<32x128xbf16>
    %cst_415 = arith.constant dense<0.000000e+00> : vector<64x128xf32>
    %905 = tpu.matmul %900, %904, %cst_415 {dimension_numbers = #tpu.dot_dimension_numbers<[1], [0], [0], [1], [0, 0, 1, 1], [], []>} : vector<64x32xbf16>, vector<32x128xbf16>, vector<64x128xf32> -> vector<64x128xf32>
    %c0_416 = arith.constant 0 : index
    %c0_417 = arith.constant 0 : index
    %906 = vector.load %arg10[%c0_416, %c0_417] : memref<32x128xbf16, #tpu.memory_space<vmem>>, vector<32x128xbf16>
    %cst_418 = arith.constant dense<0.000000e+00> : vector<64x128xf32>
    %907 = tpu.matmul %903, %906, %cst_418 {dimension_numbers = #tpu.dot_dimension_numbers<[1], [0], [0], [1], [0, 0, 1, 1], [], []>} : vector<64x32xbf16>, vector<32x128xbf16>, vector<64x128xf32> -> vector<64x128xf32>
    %908 = arith.addf %905, %907 : vector<64x128xf32>
    %c0_419 = arith.constant 0 : index
    %c0_420 = arith.constant 0 : index
    %909 = vector.load %arg11[%c0_419, %c0_420] : memref<1x128xf32, #tpu.memory_space<vmem>>, vector<1x128xf32>
    %910 = vector.broadcast %909 : vector<1x128xf32> to vector<64x128xf32>
    %911 = arith.addf %908, %910 : vector<64x128xf32>
    %912 = vector.shape_cast %911 : vector<64x128xf32> to vector<8x8x128xf32>
    %c0_421 = arith.constant 0 : index
    %c0_422 = arith.constant 0 : index
    %c0_423 = arith.constant 0 : index
    %913 = vector.load %arg12[%c0_421, %c0_422, %c0_423] : memref<8x8x128xf32, #tpu.memory_space<vmem>>, vector<8x8x128xf32>
    tpu.vector_store %arg12[%c0_421, %c0_422, %c0_423], %912 {strides = array<i32>} : memref<8x8x128xf32, #tpu.memory_space<vmem>>, vector<8x8x128xf32>,
    return
  }
  func.func @transform_0(%arg0: i32) -> (i32, i32, i32) {
    %c0_i32 = arith.constant 0 : i32
    %c0_i32_0 = arith.constant 0 : i32
    %c0_i32_1 = arith.constant 0 : i32
    return %c0_i32, %arg0, %c0_i32_0 : i32, i32, i32
  }
  func.func @transform_1(%arg0: i32) -> (i32, i32) {
    %c0_i32 = arith.constant 0 : i32
    %c0_i32_0 = arith.constant 0 : i32
    return %arg0, %c0_i32 : i32, i32
  }
  func.func @transform_2(%arg0: i32) -> (i32, i32) {
    %c0_i32 = arith.constant 0 : i32
    %c0_i32_0 = arith.constant 0 : i32
    %c0_i32_1 = arith.constant 0 : i32
    return %c0_i32, %c0_i32_0 : i32, i32
  }
  func.func @transform_3(%arg0: i32) -> (i32, i32) {
    %c0_i32 = arith.constant 0 : i32
    %c0_i32_0 = arith.constant 0 : i32
    %c0_i32_1 = arith.constant 0 : i32
    return %c0_i32, %c0_i32_0 : i32, i32
  }
  func.func @transform_4(%arg0: i32) -> (i32, i32) {
    %c0_i32 = arith.constant 0 : i32
    %c0_i32_0 = arith.constant 0 : i32
    %c0_i32_1 = arith.constant 0 : i32
    return %c0_i32, %c0_i32_0 : i32, i32
  }
  func.func @transform_5(%arg0: i32) -> (i32, i32) {
    %c0_i32 = arith.constant 0 : i32
    %c0_i32_0 = arith.constant 0 : i32
    %c0_i32_1 = arith.constant 0 : i32
    return %c0_i32, %c0_i32_0 : i32, i32
  }
  func.func @transform_6(%arg0: i32) -> (i32, i32) {
    %c0_i32 = arith.constant 0 : i32
    %c0_i32_0 = arith.constant 0 : i32
    %c0_i32_1 = arith.constant 0 : i32
    return %c0_i32, %c0_i32_0 : i32, i32
  }
  func.func @transform_7(%arg0: i32) -> (i32, i32) {
    %c0_i32 = arith.constant 0 : i32
    %c0_i32_0 = arith.constant 0 : i32
    %c0_i32_1 = arith.constant 0 : i32
    return %c0_i32, %c0_i32_0 : i32, i32
  }
  func.func @transform_8(%arg0: i32) -> (i32, i32) {
    %c0_i32 = arith.constant 0 : i32
    %c0_i32_0 = arith.constant 0 : i32
    %c0_i32_1 = arith.constant 0 : i32
    return %c0_i32, %c0_i32_0 : i32, i32
  }
  func.func @transform_9(%arg0: i32) -> (i32, i32) {
    %c0_i32 = arith.constant 0 : i32
    %c0_i32_0 = arith.constant 0 : i32
    %c0_i32_1 = arith.constant 0 : i32
    return %c0_i32, %c0_i32_0 : i32, i32
  }
  func.func @transform_10(%arg0: i32) -> (i32, i32) {
    %c0_i32 = arith.constant 0 : i32
    %c0_i32_0 = arith.constant 0 : i32
    %c0_i32_1 = arith.constant 0 : i32
    return %c0_i32, %c0_i32_0 : i32, i32
  }
  func.func @transform_11(%arg0: i32) -> (i32, i32, i32) {
    %c0_i32 = arith.constant 0 : i32
    %c0_i32_0 = arith.constant 0 : i32
    %c0_i32_1 = arith.constant 0 : i32
    return %c0_i32, %arg0, %c0_i32_0 : i32, i32, i32
  }
}

module attributes {stable_mosaic.version = 11 : i64} {
  func.func @_bilstm_layer_kernel(%arg0: i32, %arg1: memref<8x8x64xf32, #tpu.memory_space<vmem>>, %arg2: memref<8x1xi32, #tpu.memory_space<vmem>>, %arg3: memref<64x128xbf16, #tpu.memory_space<vmem>>, %arg4: memref<32x128xbf16, #tpu.memory_space<vmem>>, %arg5: memref<1x128xf32, #tpu.memory_space<vmem>>, %arg6: memref<64x128xbf16, #tpu.memory_space<vmem>>, %arg7: memref<32x128xbf16, #tpu.memory_space<vmem>>, %arg8: memref<1x128xf32, #tpu.memory_space<vmem>>, %arg9: memref<8x8x64xf32, #tpu.memory_space<vmem>>, %arg10: memref<8x8x128xf32, #tpu.memory_space<vmem>>, %arg11: memref<8x8x128xf32, #tpu.memory_space<vmem>>, %arg12: memref<8x32xf32, #tpu.memory_space<vmem>>, %arg13: memref<8x32xf32, #tpu.memory_space<vmem>>, %arg14: memref<8x32xf32, #tpu.memory_space<vmem>>, %arg15: memref<8x32xf32, #tpu.memory_space<vmem>>, %arg16: memref<8x8x32xf32, #tpu.memory_space<vmem>>, %arg17: memref<8x8x32xf32, #tpu.memory_space<vmem>>) attributes {dimension_semantics = [#tpu.dimension_semantics<parallel>], iteration_bounds = array<i64: 1>, scalar_prefetch = 0 : i64, scratch_operands = 8 : i64, tpu.core_type = #tpu.core_type<tc>, window_params = [{transform_indices = @transform_0, window_bounds = array<i64: 8, 8, 64>}, {transform_indices = @transform_1, window_bounds = array<i64: 8, 1>}, {pipeline_mode = #tpu.pipeline_mode<synchronous>, transform_indices = @transform_2, window_bounds = array<i64: 64, 128>}, {pipeline_mode = #tpu.pipeline_mode<synchronous>, transform_indices = @transform_3, window_bounds = array<i64: 32, 128>}, {pipeline_mode = #tpu.pipeline_mode<synchronous>, transform_indices = @transform_4, window_bounds = array<i64: 1, 128>}, {pipeline_mode = #tpu.pipeline_mode<synchronous>, transform_indices = @transform_5, window_bounds = array<i64: 64, 128>}, {pipeline_mode = #tpu.pipeline_mode<synchronous>, transform_indices = @transform_6, window_bounds = array<i64: 32, 128>}, {pipeline_mode = #tpu.pipeline_mode<synchronous>, transform_indices = @transform_7, window_bounds = array<i64: 1, 128>}, {transform_indices = @transform_8, window_bounds = array<i64: 8, 8, 64>}]} {
    %c0 = arith.constant 0 : index
    %c0_0 = arith.constant 0 : index
    %0 = vector.load %arg2[%c0, %c0_0] : memref<8x1xi32, #tpu.memory_space<vmem>>, vector<8x1xi32>
    %c0_1 = arith.constant 0 : index
    %c0_2 = arith.constant 0 : index
    %c0_3 = arith.constant 0 : index
    %1 = vector.load %arg1[%c0_1, %c0_2, %c0_3] : memref<8x8x64xf32, #tpu.memory_space<vmem>>, vector<8x8x64xf32>
    %2 = vector.shape_cast %1 : vector<8x8x64xf32> to vector<64x64xf32>
    %3 = arith.truncf %2 : vector<64x64xf32> to vector<64x64xbf16>
    %c0_4 = arith.constant 0 : index
    %c0_5 = arith.constant 0 : index
    %4 = vector.load %arg3[%c0_4, %c0_5] : memref<64x128xbf16, #tpu.memory_space<vmem>>, vector<64x128xbf16>
    %cst = arith.constant dense<0.000000e+00> : vector<64x128xf32>
    %5 = tpu.matmul %3, %4, %cst {dimension_numbers = #tpu.dot_dimension_numbers<[1], [0], [0], [1], [0, 0, 1, 1], [], []>} : vector<64x64xbf16>, vector<64x128xbf16>, vector<64x128xf32> -> vector<64x128xf32>
    %c0_6 = arith.constant 0 : index
    %c0_7 = arith.constant 0 : index
    %6 = vector.load %arg5[%c0_6, %c0_7] : memref<1x128xf32, #tpu.memory_space<vmem>>, vector<1x128xf32>
    %7 = vector.broadcast %6 : vector<1x128xf32> to vector<64x128xf32>
    %8 = arith.addf %5, %7 : vector<64x128xf32>
    %c0_8 = arith.constant 0 : index
    %c0_9 = arith.constant 0 : index
    %9 = vector.load %arg6[%c0_8, %c0_9] : memref<64x128xbf16, #tpu.memory_space<vmem>>, vector<64x128xbf16>
    %cst_10 = arith.constant dense<0.000000e+00> : vector<64x128xf32>
    %10 = tpu.matmul %3, %9, %cst_10 {dimension_numbers = #tpu.dot_dimension_numbers<[1], [0], [0], [1], [0, 0, 1, 1], [], []>} : vector<64x64xbf16>, vector<64x128xbf16>, vector<64x128xf32> -> vector<64x128xf32>
    %c0_11 = arith.constant 0 : index
    %c0_12 = arith.constant 0 : index
    %11 = vector.load %arg8[%c0_11, %c0_12] : memref<1x128xf32, #tpu.memory_space<vmem>>, vector<1x128xf32>
    %12 = vector.broadcast %11 : vector<1x128xf32> to vector<64x128xf32>
    %13 = arith.addf %10, %12 : vector<64x128xf32>
    %14 = vector.shape_cast %8 : vector<64x128xf32> to vector<8x8x128xf32>
    %c0_13 = arith.constant 0 : index
    %c0_14 = arith.constant 0 : index
    %c0_15 = arith.constant 0 : index
    %15 = vector.load %arg10[%c0_13, %c0_14, %c0_15] : memref<8x8x128xf32, #tpu.memory_space<vmem>>, vector<8x8x128xf32>
    tpu.vector_store %arg10[%c0_13, %c0_14, %c0_15], %14 {strides = array<i32>} : memref<8x8x128xf32, #tpu.memory_space<vmem>>, vector<8x8x128xf32>,
    %16 = vector.shape_cast %13 : vector<64x128xf32> to vector<8x8x128xf32>
    %c0_16 = arith.constant 0 : index
    %c0_17 = arith.constant 0 : index
    %c0_18 = arith.constant 0 : index
    %17 = vector.load %arg11[%c0_16, %c0_17, %c0_18] : memref<8x8x128xf32, #tpu.memory_space<vmem>>, vector<8x8x128xf32>
    tpu.vector_store %arg11[%c0_16, %c0_17, %c0_18], %16 {strides = array<i32>} : memref<8x8x128xf32, #tpu.memory_space<vmem>>, vector<8x8x128xf32>,
    %cst_19 = arith.constant 0.000000e+00 : f32
    %18 = vector.broadcast %cst_19 : f32 to vector<8x32xf32>
    %c0_20 = arith.constant 0 : index
    %c0_21 = arith.constant 0 : index
    %19 = vector.load %arg12[%c0_20, %c0_21] : memref<8x32xf32, #tpu.memory_space<vmem>>, vector<8x32xf32>
    tpu.vector_store %arg12[%c0_20, %c0_21], %18 {strides = array<i32>} : memref<8x32xf32, #tpu.memory_space<vmem>>, vector<8x32xf32>,
    %cst_22 = arith.constant 0.000000e+00 : f32
    %20 = vector.broadcast %cst_22 : f32 to vector<8x32xf32>
    %c0_23 = arith.constant 0 : index
    %c0_24 = arith.constant 0 : index
    %21 = vector.load %arg13[%c0_23, %c0_24] : memref<8x32xf32, #tpu.memory_space<vmem>>, vector<8x32xf32>
    tpu.vector_store %arg13[%c0_23, %c0_24], %20 {strides = array<i32>} : memref<8x32xf32, #tpu.memory_space<vmem>>, vector<8x32xf32>,
    %cst_25 = arith.constant 0.000000e+00 : f32
    %22 = vector.broadcast %cst_25 : f32 to vector<8x32xf32>
    %c0_26 = arith.constant 0 : index
    %c0_27 = arith.constant 0 : index
    %23 = vector.load %arg14[%c0_26, %c0_27] : memref<8x32xf32, #tpu.memory_space<vmem>>, vector<8x32xf32>
    tpu.vector_store %arg14[%c0_26, %c0_27], %22 {strides = array<i32>} : memref<8x32xf32, #tpu.memory_space<vmem>>, vector<8x32xf32>,
    %cst_28 = arith.constant 0.000000e+00 : f32
    %24 = vector.broadcast %cst_28 : f32 to vector<8x32xf32>
    %c0_29 = arith.constant 0 : index
    %c0_30 = arith.constant 0 : index
    %25 = vector.load %arg15[%c0_29, %c0_30] : memref<8x32xf32, #tpu.memory_space<vmem>>, vector<8x32xf32>
    tpu.vector_store %arg15[%c0_29, %c0_30], %24 {strides = array<i32>} : memref<8x32xf32, #tpu.memory_space<vmem>>, vector<8x32xf32>,
    %c0_i32 = arith.constant 0 : i32
    %c7_i32 = arith.constant 7 : i32
    %26 = arith.subi %c7_i32, %c0_i32 : i32
    %c0_31 = arith.constant 0 : index
    %c0_32 = arith.constant 0 : index
    %27 = vector.load %arg12[%c0_31, %c0_32] : memref<8x32xf32, #tpu.memory_space<vmem>>, vector<8x32xf32>
    %28 = arith.truncf %27 : vector<8x32xf32> to vector<8x32xbf16>
    %c0_33 = arith.constant 0 : index
    %c0_34 = arith.constant 0 : index
    %29 = vector.load %arg4[%c0_33, %c0_34] : memref<32x128xbf16, #tpu.memory_space<vmem>>, vector<32x128xbf16>
    %cst_35 = arith.constant dense<0.000000e+00> : vector<8x128xf32>
    %30 = tpu.matmul %28, %29, %cst_35 {dimension_numbers = #tpu.dot_dimension_numbers<[1], [0], [0], [1], [0, 0, 1, 1], [], []>} : vector<8x32xbf16>, vector<32x128xbf16>, vector<8x128xf32> -> vector<8x128xf32>
    %c0_36 = arith.constant 0 : index
    %c0_37 = arith.constant 0 : index
    %31 = vector.load %arg14[%c0_36, %c0_37] : memref<8x32xf32, #tpu.memory_space<vmem>>, vector<8x32xf32>
    %32 = arith.truncf %31 : vector<8x32xf32> to vector<8x32xbf16>
    %c0_38 = arith.constant 0 : index
    %c0_39 = arith.constant 0 : index
    %33 = vector.load %arg7[%c0_38, %c0_39] : memref<32x128xbf16, #tpu.memory_space<vmem>>, vector<32x128xbf16>
    %cst_40 = arith.constant dense<0.000000e+00> : vector<8x128xf32>
    %34 = tpu.matmul %32, %33, %cst_40 {dimension_numbers = #tpu.dot_dimension_numbers<[1], [0], [0], [1], [0, 0, 1, 1], [], []>} : vector<8x32xbf16>, vector<32x128xbf16>, vector<8x128xf32> -> vector<8x128xf32>
    %35 = arith.index_cast %c0_i32 : i32 to index
    %c0_41 = arith.constant 0 : index
    %c0_42 = arith.constant 0 : index
    %36 = vector.load %arg10[%35, %c0_41, %c0_42] : memref<8x8x128xf32, #tpu.memory_space<vmem>>, vector<1x8x128xf32>
    %37 = vector.shape_cast %36 : vector<1x8x128xf32> to vector<8x128xf32>
    %38 = arith.addf %37, %30 : vector<8x128xf32>
    %c0_43 = arith.constant 0 : index
    %c0_44 = arith.constant 0 : index
    %39 = vector.load %arg13[%c0_43, %c0_44] : memref<8x32xf32, #tpu.memory_space<vmem>>, vector<8x32xf32>
    %40 = vector.extract_strided_slice %38 {offsets = [0, 0], sizes = [8, 32], strides = [1, 1]} : vector<8x128xf32> to vector<8x32xf32>
    %41 = arith.negf %40 : vector<8x32xf32>
    %42 = math.exp %41 : vector<8x32xf32>
    %cst_45 = arith.constant 1.000000e+00 : f32
    %43 = vector.broadcast %cst_45 : f32 to vector<8x32xf32>
    %44 = arith.addf %43, %42 : vector<8x32xf32>
    %45 = arith.divf %43, %44 : vector<8x32xf32>
    %46 = vector.extract_strided_slice %38 {offsets = [0, 32], sizes = [8, 32], strides = [1, 1]} : vector<8x128xf32> to vector<8x32xf32>
    %47 = arith.negf %46 : vector<8x32xf32>
    %48 = math.exp %47 : vector<8x32xf32>
    %cst_46 = arith.constant 1.000000e+00 : f32
    %49 = vector.broadcast %cst_46 : f32 to vector<8x32xf32>
    %50 = arith.addf %49, %48 : vector<8x32xf32>
    %51 = arith.divf %49, %50 : vector<8x32xf32>
    %52 = vector.extract_strided_slice %38 {offsets = [0, 64], sizes = [8, 32], strides = [1, 1]} : vector<8x128xf32> to vector<8x32xf32>
    %53 = math.tanh %52 : vector<8x32xf32>
    %54 = vector.extract_strided_slice %38 {offsets = [0, 96], sizes = [8, 32], strides = [1, 1]} : vector<8x128xf32> to vector<8x32xf32>
    %55 = arith.negf %54 : vector<8x32xf32>
    %56 = math.exp %55 : vector<8x32xf32>
    %cst_47 = arith.constant 1.000000e+00 : f32
    %57 = vector.broadcast %cst_47 : f32 to vector<8x32xf32>
    %58 = arith.addf %57, %56 : vector<8x32xf32>
    %59 = arith.divf %57, %58 : vector<8x32xf32>
    %60 = arith.mulf %51, %39 : vector<8x32xf32>
    %61 = arith.mulf %45, %53 : vector<8x32xf32>
    %62 = arith.addf %60, %61 : vector<8x32xf32>
    %63 = math.tanh %62 : vector<8x32xf32>
    %64 = arith.mulf %59, %63 : vector<8x32xf32>
    %65 = arith.index_cast %26 : i32 to index
    %c0_48 = arith.constant 0 : index
    %c0_49 = arith.constant 0 : index
    %66 = vector.load %arg11[%65, %c0_48, %c0_49] : memref<8x8x128xf32, #tpu.memory_space<vmem>>, vector<1x8x128xf32>
    %67 = vector.shape_cast %66 : vector<1x8x128xf32> to vector<8x128xf32>
    %68 = arith.addf %67, %34 : vector<8x128xf32>
    %c0_50 = arith.constant 0 : index
    %c0_51 = arith.constant 0 : index
    %69 = vector.load %arg15[%c0_50, %c0_51] : memref<8x32xf32, #tpu.memory_space<vmem>>, vector<8x32xf32>
    %70 = vector.extract_strided_slice %68 {offsets = [0, 0], sizes = [8, 32], strides = [1, 1]} : vector<8x128xf32> to vector<8x32xf32>
    %71 = arith.negf %70 : vector<8x32xf32>
    %72 = math.exp %71 : vector<8x32xf32>
    %cst_52 = arith.constant 1.000000e+00 : f32
    %73 = vector.broadcast %cst_52 : f32 to vector<8x32xf32>
    %74 = arith.addf %73, %72 : vector<8x32xf32>
    %75 = arith.divf %73, %74 : vector<8x32xf32>
    %76 = vector.extract_strided_slice %68 {offsets = [0, 32], sizes = [8, 32], strides = [1, 1]} : vector<8x128xf32> to vector<8x32xf32>
    %77 = arith.negf %76 : vector<8x32xf32>
    %78 = math.exp %77 : vector<8x32xf32>
    %cst_53 = arith.constant 1.000000e+00 : f32
    %79 = vector.broadcast %cst_53 : f32 to vector<8x32xf32>
    %80 = arith.addf %79, %78 : vector<8x32xf32>
    %81 = arith.divf %79, %80 : vector<8x32xf32>
    %82 = vector.extract_strided_slice %68 {offsets = [0, 64], sizes = [8, 32], strides = [1, 1]} : vector<8x128xf32> to vector<8x32xf32>
    %83 = math.tanh %82 : vector<8x32xf32>
    %84 = vector.extract_strided_slice %68 {offsets = [0, 96], sizes = [8, 32], strides = [1, 1]} : vector<8x128xf32> to vector<8x32xf32>
    %85 = arith.negf %84 : vector<8x32xf32>
    %86 = math.exp %85 : vector<8x32xf32>
    %cst_54 = arith.constant 1.000000e+00 : f32
    %87 = vector.broadcast %cst_54 : f32 to vector<8x32xf32>
    %88 = arith.addf %87, %86 : vector<8x32xf32>
    %89 = arith.divf %87, %88 : vector<8x32xf32>
    %90 = arith.mulf %81, %69 : vector<8x32xf32>
    %91 = arith.mulf %75, %83 : vector<8x32xf32>
    %92 = arith.addf %90, %91 : vector<8x32xf32>
    %93 = math.tanh %92 : vector<8x32xf32>
    %94 = arith.mulf %89, %93 : vector<8x32xf32>
    %95 = vector.broadcast %c0_i32 : i32 to vector<8x1xi32>
    %96 = arith.cmpi slt, %95, %0 : vector<8x1xi32>
    %97 = vector.broadcast %26 : i32 to vector<8x1xi32>
    %98 = arith.cmpi slt, %97, %0 : vector<8x1xi32>
    %c0_55 = arith.constant 0 : index
    %c0_56 = arith.constant 0 : index
    %99 = vector.load %arg12[%c0_55, %c0_56] : memref<8x32xf32, #tpu.memory_space<vmem>>, vector<8x32xf32>
    %100 = vector.shape_cast %96 : vector<8x1xi1> to vector<8x1xi1>
    %101 = vector.broadcast %100 : vector<8x1xi1> to vector<8x32xi1>
    %102 = arith.select %101, %64, %99 : vector<8x32xi1>, vector<8x32xf32>
    %c0_57 = arith.constant 0 : index
    %c0_58 = arith.constant 0 : index
    %103 = vector.load %arg12[%c0_57, %c0_58] : memref<8x32xf32, #tpu.memory_space<vmem>>, vector<8x32xf32>
    tpu.vector_store %arg12[%c0_57, %c0_58], %102 {strides = array<i32>} : memref<8x32xf32, #tpu.memory_space<vmem>>, vector<8x32xf32>,
    %c0_59 = arith.constant 0 : index
    %c0_60 = arith.constant 0 : index
    %104 = vector.load %arg13[%c0_59, %c0_60] : memref<8x32xf32, #tpu.memory_space<vmem>>, vector<8x32xf32>
    %105 = vector.shape_cast %96 : vector<8x1xi1> to vector<8x1xi1>
    %106 = vector.broadcast %105 : vector<8x1xi1> to vector<8x32xi1>
    %107 = arith.select %106, %62, %104 : vector<8x32xi1>, vector<8x32xf32>
    %c0_61 = arith.constant 0 : index
    %c0_62 = arith.constant 0 : index
    %108 = vector.load %arg13[%c0_61, %c0_62] : memref<8x32xf32, #tpu.memory_space<vmem>>, vector<8x32xf32>
    tpu.vector_store %arg13[%c0_61, %c0_62], %107 {strides = array<i32>} : memref<8x32xf32, #tpu.memory_space<vmem>>, vector<8x32xf32>,
    %c0_63 = arith.constant 0 : index
    %c0_64 = arith.constant 0 : index
    %109 = vector.load %arg14[%c0_63, %c0_64] : memref<8x32xf32, #tpu.memory_space<vmem>>, vector<8x32xf32>
    %110 = vector.shape_cast %98 : vector<8x1xi1> to vector<8x1xi1>
    %111 = vector.broadcast %110 : vector<8x1xi1> to vector<8x32xi1>
    %112 = arith.select %111, %94, %109 : vector<8x32xi1>, vector<8x32xf32>
    %c0_65 = arith.constant 0 : index
    %c0_66 = arith.constant 0 : index
    %113 = vector.load %arg14[%c0_65, %c0_66] : memref<8x32xf32, #tpu.memory_space<vmem>>, vector<8x32xf32>
    tpu.vector_store %arg14[%c0_65, %c0_66], %112 {strides = array<i32>} : memref<8x32xf32, #tpu.memory_space<vmem>>, vector<8x32xf32>,
    %c0_67 = arith.constant 0 : index
    %c0_68 = arith.constant 0 : index
    %114 = vector.load %arg15[%c0_67, %c0_68] : memref<8x32xf32, #tpu.memory_space<vmem>>, vector<8x32xf32>
    %115 = vector.shape_cast %98 : vector<8x1xi1> to vector<8x1xi1>
    %116 = vector.broadcast %115 : vector<8x1xi1> to vector<8x32xi1>
    %117 = arith.select %116, %92, %114 : vector<8x32xi1>, vector<8x32xf32>
    %c0_69 = arith.constant 0 : index
    %c0_70 = arith.constant 0 : index
    %118 = vector.load %arg15[%c0_69, %c0_70] : memref<8x32xf32, #tpu.memory_space<vmem>>, vector<8x32xf32>
    tpu.vector_store %arg15[%c0_69, %c0_70], %117 {strides = array<i32>} : memref<8x32xf32, #tpu.memory_space<vmem>>, vector<8x32xf32>,
    %cst_71 = arith.constant 0.000000e+00 : f32
    %119 = vector.shape_cast %96 : vector<8x1xi1> to vector<8x1xi1>
    %120 = vector.broadcast %119 : vector<8x1xi1> to vector<8x32xi1>
    %121 = vector.broadcast %cst_71 : f32 to vector<8x32xf32>
    %122 = arith.select %120, %64, %121 : vector<8x32xi1>, vector<8x32xf32>
    %123 = arith.index_cast %c0_i32 : i32 to index
    %c0_72 = arith.constant 0 : index
    %c0_73 = arith.constant 0 : index
    %124 = vector.load %arg16[%123, %c0_72, %c0_73] : memref<8x8x32xf32, #tpu.memory_space<vmem>>, vector<1x8x32xf32>
    %125 = vector.shape_cast %124 : vector<1x8x32xf32> to vector<8x32xf32>
    %126 = vector.shape_cast %122 : vector<8x32xf32> to vector<1x8x32xf32>
    tpu.vector_store %arg16[%123, %c0_72, %c0_73], %126 {strides = array<i32>} : memref<8x8x32xf32, #tpu.memory_space<vmem>>, vector<1x8x32xf32>,
    %cst_74 = arith.constant 0.000000e+00 : f32
    %127 = vector.shape_cast %98 : vector<8x1xi1> to vector<8x1xi1>
    %128 = vector.broadcast %127 : vector<8x1xi1> to vector<8x32xi1>
    %129 = vector.broadcast %cst_74 : f32 to vector<8x32xf32>
    %130 = arith.select %128, %94, %129 : vector<8x32xi1>, vector<8x32xf32>
    %131 = arith.index_cast %26 : i32 to index
    %c0_75 = arith.constant 0 : index
    %c0_76 = arith.constant 0 : index
    %132 = vector.load %arg17[%131, %c0_75, %c0_76] : memref<8x8x32xf32, #tpu.memory_space<vmem>>, vector<1x8x32xf32>
    %133 = vector.shape_cast %132 : vector<1x8x32xf32> to vector<8x32xf32>
    %134 = vector.shape_cast %130 : vector<8x32xf32> to vector<1x8x32xf32>
    tpu.vector_store %arg17[%131, %c0_75, %c0_76], %134 {strides = array<i32>} : memref<8x8x32xf32, #tpu.memory_space<vmem>>, vector<1x8x32xf32>,
    %c1_i32 = arith.constant 1 : i32
    %c7_i32_77 = arith.constant 7 : i32
    %135 = arith.subi %c7_i32_77, %c1_i32 : i32
    %c0_78 = arith.constant 0 : index
    %c0_79 = arith.constant 0 : index
    %136 = vector.load %arg12[%c0_78, %c0_79] : memref<8x32xf32, #tpu.memory_space<vmem>>, vector<8x32xf32>
    %137 = arith.truncf %136 : vector<8x32xf32> to vector<8x32xbf16>
    %c0_80 = arith.constant 0 : index
    %c0_81 = arith.constant 0 : index
    %138 = vector.load %arg4[%c0_80, %c0_81] : memref<32x128xbf16, #tpu.memory_space<vmem>>, vector<32x128xbf16>
    %cst_82 = arith.constant dense<0.000000e+00> : vector<8x128xf32>
    %139 = tpu.matmul %137, %138, %cst_82 {dimension_numbers = #tpu.dot_dimension_numbers<[1], [0], [0], [1], [0, 0, 1, 1], [], []>} : vector<8x32xbf16>, vector<32x128xbf16>, vector<8x128xf32> -> vector<8x128xf32>
    %c0_83 = arith.constant 0 : index
    %c0_84 = arith.constant 0 : index
    %140 = vector.load %arg14[%c0_83, %c0_84] : memref<8x32xf32, #tpu.memory_space<vmem>>, vector<8x32xf32>
    %141 = arith.truncf %140 : vector<8x32xf32> to vector<8x32xbf16>
    %c0_85 = arith.constant 0 : index
    %c0_86 = arith.constant 0 : index
    %142 = vector.load %arg7[%c0_85, %c0_86] : memref<32x128xbf16, #tpu.memory_space<vmem>>, vector<32x128xbf16>
    %cst_87 = arith.constant dense<0.000000e+00> : vector<8x128xf32>
    %143 = tpu.matmul %141, %142, %cst_87 {dimension_numbers = #tpu.dot_dimension_numbers<[1], [0], [0], [1], [0, 0, 1, 1], [], []>} : vector<8x32xbf16>, vector<32x128xbf16>, vector<8x128xf32> -> vector<8x128xf32>
    %144 = arith.index_cast %c1_i32 : i32 to index
    %c0_88 = arith.constant 0 : index
    %c0_89 = arith.constant 0 : index
    %145 = vector.load %arg10[%144, %c0_88, %c0_89] : memref<8x8x128xf32, #tpu.memory_space<vmem>>, vector<1x8x128xf32>
    %146 = vector.shape_cast %145 : vector<1x8x128xf32> to vector<8x128xf32>
    %147 = arith.addf %146, %139 : vector<8x128xf32>
    %c0_90 = arith.constant 0 : index
    %c0_91 = arith.constant 0 : index
    %148 = vector.load %arg13[%c0_90, %c0_91] : memref<8x32xf32, #tpu.memory_space<vmem>>, vector<8x32xf32>
    %149 = vector.extract_strided_slice %147 {offsets = [0, 0], sizes = [8, 32], strides = [1, 1]} : vector<8x128xf32> to vector<8x32xf32>
    %150 = arith.negf %149 : vector<8x32xf32>
    %151 = math.exp %150 : vector<8x32xf32>
    %cst_92 = arith.constant 1.000000e+00 : f32
    %152 = vector.broadcast %cst_92 : f32 to vector<8x32xf32>
    %153 = arith.addf %152, %151 : vector<8x32xf32>
    %154 = arith.divf %152, %153 : vector<8x32xf32>
    %155 = vector.extract_strided_slice %147 {offsets = [0, 32], sizes = [8, 32], strides = [1, 1]} : vector<8x128xf32> to vector<8x32xf32>
    %156 = arith.negf %155 : vector<8x32xf32>
    %157 = math.exp %156 : vector<8x32xf32>
    %cst_93 = arith.constant 1.000000e+00 : f32
    %158 = vector.broadcast %cst_93 : f32 to vector<8x32xf32>
    %159 = arith.addf %158, %157 : vector<8x32xf32>
    %160 = arith.divf %158, %159 : vector<8x32xf32>
    %161 = vector.extract_strided_slice %147 {offsets = [0, 64], sizes = [8, 32], strides = [1, 1]} : vector<8x128xf32> to vector<8x32xf32>
    %162 = math.tanh %161 : vector<8x32xf32>
    %163 = vector.extract_strided_slice %147 {offsets = [0, 96], sizes = [8, 32], strides = [1, 1]} : vector<8x128xf32> to vector<8x32xf32>
    %164 = arith.negf %163 : vector<8x32xf32>
    %165 = math.exp %164 : vector<8x32xf32>
    %cst_94 = arith.constant 1.000000e+00 : f32
    %166 = vector.broadcast %cst_94 : f32 to vector<8x32xf32>
    %167 = arith.addf %166, %165 : vector<8x32xf32>
    %168 = arith.divf %166, %167 : vector<8x32xf32>
    %169 = arith.mulf %160, %148 : vector<8x32xf32>
    %170 = arith.mulf %154, %162 : vector<8x32xf32>
    %171 = arith.addf %169, %170 : vector<8x32xf32>
    %172 = math.tanh %171 : vector<8x32xf32>
    %173 = arith.mulf %168, %172 : vector<8x32xf32>
    %174 = arith.index_cast %135 : i32 to index
    %c0_95 = arith.constant 0 : index
    %c0_96 = arith.constant 0 : index
    %175 = vector.load %arg11[%174, %c0_95, %c0_96] : memref<8x8x128xf32, #tpu.memory_space<vmem>>, vector<1x8x128xf32>
    %176 = vector.shape_cast %175 : vector<1x8x128xf32> to vector<8x128xf32>
    %177 = arith.addf %176, %143 : vector<8x128xf32>
    %c0_97 = arith.constant 0 : index
    %c0_98 = arith.constant 0 : index
    %178 = vector.load %arg15[%c0_97, %c0_98] : memref<8x32xf32, #tpu.memory_space<vmem>>, vector<8x32xf32>
    %179 = vector.extract_strided_slice %177 {offsets = [0, 0], sizes = [8, 32], strides = [1, 1]} : vector<8x128xf32> to vector<8x32xf32>
    %180 = arith.negf %179 : vector<8x32xf32>
    %181 = math.exp %180 : vector<8x32xf32>
    %cst_99 = arith.constant 1.000000e+00 : f32
    %182 = vector.broadcast %cst_99 : f32 to vector<8x32xf32>
    %183 = arith.addf %182, %181 : vector<8x32xf32>
    %184 = arith.divf %182, %183 : vector<8x32xf32>
    %185 = vector.extract_strided_slice %177 {offsets = [0, 32], sizes = [8, 32], strides = [1, 1]} : vector<8x128xf32> to vector<8x32xf32>
    %186 = arith.negf %185 : vector<8x32xf32>
    %187 = math.exp %186 : vector<8x32xf32>
    %cst_100 = arith.constant 1.000000e+00 : f32
    %188 = vector.broadcast %cst_100 : f32 to vector<8x32xf32>
    %189 = arith.addf %188, %187 : vector<8x32xf32>
    %190 = arith.divf %188, %189 : vector<8x32xf32>
    %191 = vector.extract_strided_slice %177 {offsets = [0, 64], sizes = [8, 32], strides = [1, 1]} : vector<8x128xf32> to vector<8x32xf32>
    %192 = math.tanh %191 : vector<8x32xf32>
    %193 = vector.extract_strided_slice %177 {offsets = [0, 96], sizes = [8, 32], strides = [1, 1]} : vector<8x128xf32> to vector<8x32xf32>
    %194 = arith.negf %193 : vector<8x32xf32>
    %195 = math.exp %194 : vector<8x32xf32>
    %cst_101 = arith.constant 1.000000e+00 : f32
    %196 = vector.broadcast %cst_101 : f32 to vector<8x32xf32>
    %197 = arith.addf %196, %195 : vector<8x32xf32>
    %198 = arith.divf %196, %197 : vector<8x32xf32>
    %199 = arith.mulf %190, %178 : vector<8x32xf32>
    %200 = arith.mulf %184, %192 : vector<8x32xf32>
    %201 = arith.addf %199, %200 : vector<8x32xf32>
    %202 = math.tanh %201 : vector<8x32xf32>
    %203 = arith.mulf %198, %202 : vector<8x32xf32>
    %204 = vector.broadcast %c1_i32 : i32 to vector<8x1xi32>
    %205 = arith.cmpi slt, %204, %0 : vector<8x1xi32>
    %206 = vector.broadcast %135 : i32 to vector<8x1xi32>
    %207 = arith.cmpi slt, %206, %0 : vector<8x1xi32>
    %c0_102 = arith.constant 0 : index
    %c0_103 = arith.constant 0 : index
    %208 = vector.load %arg12[%c0_102, %c0_103] : memref<8x32xf32, #tpu.memory_space<vmem>>, vector<8x32xf32>
    %209 = vector.shape_cast %205 : vector<8x1xi1> to vector<8x1xi1>
    %210 = vector.broadcast %209 : vector<8x1xi1> to vector<8x32xi1>
    %211 = arith.select %210, %173, %208 : vector<8x32xi1>, vector<8x32xf32>
    %c0_104 = arith.constant 0 : index
    %c0_105 = arith.constant 0 : index
    %212 = vector.load %arg12[%c0_104, %c0_105] : memref<8x32xf32, #tpu.memory_space<vmem>>, vector<8x32xf32>
    tpu.vector_store %arg12[%c0_104, %c0_105], %211 {strides = array<i32>} : memref<8x32xf32, #tpu.memory_space<vmem>>, vector<8x32xf32>,
    %c0_106 = arith.constant 0 : index
    %c0_107 = arith.constant 0 : index
    %213 = vector.load %arg13[%c0_106, %c0_107] : memref<8x32xf32, #tpu.memory_space<vmem>>, vector<8x32xf32>
    %214 = vector.shape_cast %205 : vector<8x1xi1> to vector<8x1xi1>
    %215 = vector.broadcast %214 : vector<8x1xi1> to vector<8x32xi1>
    %216 = arith.select %215, %171, %213 : vector<8x32xi1>, vector<8x32xf32>
    %c0_108 = arith.constant 0 : index
    %c0_109 = arith.constant 0 : index
    %217 = vector.load %arg13[%c0_108, %c0_109] : memref<8x32xf32, #tpu.memory_space<vmem>>, vector<8x32xf32>
    tpu.vector_store %arg13[%c0_108, %c0_109], %216 {strides = array<i32>} : memref<8x32xf32, #tpu.memory_space<vmem>>, vector<8x32xf32>,
    %c0_110 = arith.constant 0 : index
    %c0_111 = arith.constant 0 : index
    %218 = vector.load %arg14[%c0_110, %c0_111] : memref<8x32xf32, #tpu.memory_space<vmem>>, vector<8x32xf32>
    %219 = vector.shape_cast %207 : vector<8x1xi1> to vector<8x1xi1>
    %220 = vector.broadcast %219 : vector<8x1xi1> to vector<8x32xi1>
    %221 = arith.select %220, %203, %218 : vector<8x32xi1>, vector<8x32xf32>
    %c0_112 = arith.constant 0 : index
    %c0_113 = arith.constant 0 : index
    %222 = vector.load %arg14[%c0_112, %c0_113] : memref<8x32xf32, #tpu.memory_space<vmem>>, vector<8x32xf32>
    tpu.vector_store %arg14[%c0_112, %c0_113], %221 {strides = array<i32>} : memref<8x32xf32, #tpu.memory_space<vmem>>, vector<8x32xf32>,
    %c0_114 = arith.constant 0 : index
    %c0_115 = arith.constant 0 : index
    %223 = vector.load %arg15[%c0_114, %c0_115] : memref<8x32xf32, #tpu.memory_space<vmem>>, vector<8x32xf32>
    %224 = vector.shape_cast %207 : vector<8x1xi1> to vector<8x1xi1>
    %225 = vector.broadcast %224 : vector<8x1xi1> to vector<8x32xi1>
    %226 = arith.select %225, %201, %223 : vector<8x32xi1>, vector<8x32xf32>
    %c0_116 = arith.constant 0 : index
    %c0_117 = arith.constant 0 : index
    %227 = vector.load %arg15[%c0_116, %c0_117] : memref<8x32xf32, #tpu.memory_space<vmem>>, vector<8x32xf32>
    tpu.vector_store %arg15[%c0_116, %c0_117], %226 {strides = array<i32>} : memref<8x32xf32, #tpu.memory_space<vmem>>, vector<8x32xf32>,
    %cst_118 = arith.constant 0.000000e+00 : f32
    %228 = vector.shape_cast %205 : vector<8x1xi1> to vector<8x1xi1>
    %229 = vector.broadcast %228 : vector<8x1xi1> to vector<8x32xi1>
    %230 = vector.broadcast %cst_118 : f32 to vector<8x32xf32>
    %231 = arith.select %229, %173, %230 : vector<8x32xi1>, vector<8x32xf32>
    %232 = arith.index_cast %c1_i32 : i32 to index
    %c0_119 = arith.constant 0 : index
    %c0_120 = arith.constant 0 : index
    %233 = vector.load %arg16[%232, %c0_119, %c0_120] : memref<8x8x32xf32, #tpu.memory_space<vmem>>, vector<1x8x32xf32>
    %234 = vector.shape_cast %233 : vector<1x8x32xf32> to vector<8x32xf32>
    %235 = vector.shape_cast %231 : vector<8x32xf32> to vector<1x8x32xf32>
    tpu.vector_store %arg16[%232, %c0_119, %c0_120], %235 {strides = array<i32>} : memref<8x8x32xf32, #tpu.memory_space<vmem>>, vector<1x8x32xf32>,
    %cst_121 = arith.constant 0.000000e+00 : f32
    %236 = vector.shape_cast %207 : vector<8x1xi1> to vector<8x1xi1>
    %237 = vector.broadcast %236 : vector<8x1xi1> to vector<8x32xi1>
    %238 = vector.broadcast %cst_121 : f32 to vector<8x32xf32>
    %239 = arith.select %237, %203, %238 : vector<8x32xi1>, vector<8x32xf32>
    %240 = arith.index_cast %135 : i32 to index
    %c0_122 = arith.constant 0 : index
    %c0_123 = arith.constant 0 : index
    %241 = vector.load %arg17[%240, %c0_122, %c0_123] : memref<8x8x32xf32, #tpu.memory_space<vmem>>, vector<1x8x32xf32>
    %242 = vector.shape_cast %241 : vector<1x8x32xf32> to vector<8x32xf32>
    %243 = vector.shape_cast %239 : vector<8x32xf32> to vector<1x8x32xf32>
    tpu.vector_store %arg17[%240, %c0_122, %c0_123], %243 {strides = array<i32>} : memref<8x8x32xf32, #tpu.memory_space<vmem>>, vector<1x8x32xf32>,
    %c2_i32 = arith.constant 2 : i32
    %c7_i32_124 = arith.constant 7 : i32
    %244 = arith.subi %c7_i32_124, %c2_i32 : i32
    %c0_125 = arith.constant 0 : index
    %c0_126 = arith.constant 0 : index
    %245 = vector.load %arg12[%c0_125, %c0_126] : memref<8x32xf32, #tpu.memory_space<vmem>>, vector<8x32xf32>
    %246 = arith.truncf %245 : vector<8x32xf32> to vector<8x32xbf16>
    %c0_127 = arith.constant 0 : index
    %c0_128 = arith.constant 0 : index
    %247 = vector.load %arg4[%c0_127, %c0_128] : memref<32x128xbf16, #tpu.memory_space<vmem>>, vector<32x128xbf16>
    %cst_129 = arith.constant dense<0.000000e+00> : vector<8x128xf32>
    %248 = tpu.matmul %246, %247, %cst_129 {dimension_numbers = #tpu.dot_dimension_numbers<[1], [0], [0], [1], [0, 0, 1, 1], [], []>} : vector<8x32xbf16>, vector<32x128xbf16>, vector<8x128xf32> -> vector<8x128xf32>
    %c0_130 = arith.constant 0 : index
    %c0_131 = arith.constant 0 : index
    %249 = vector.load %arg14[%c0_130, %c0_131] : memref<8x32xf32, #tpu.memory_space<vmem>>, vector<8x32xf32>
    %250 = arith.truncf %249 : vector<8x32xf32> to vector<8x32xbf16>
    %c0_132 = arith.constant 0 : index
    %c0_133 = arith.constant 0 : index
    %251 = vector.load %arg7[%c0_132, %c0_133] : memref<32x128xbf16, #tpu.memory_space<vmem>>, vector<32x128xbf16>
    %cst_134 = arith.constant dense<0.000000e+00> : vector<8x128xf32>
    %252 = tpu.matmul %250, %251, %cst_134 {dimension_numbers = #tpu.dot_dimension_numbers<[1], [0], [0], [1], [0, 0, 1, 1], [], []>} : vector<8x32xbf16>, vector<32x128xbf16>, vector<8x128xf32> -> vector<8x128xf32>
    %253 = arith.index_cast %c2_i32 : i32 to index
    %c0_135 = arith.constant 0 : index
    %c0_136 = arith.constant 0 : index
    %254 = vector.load %arg10[%253, %c0_135, %c0_136] : memref<8x8x128xf32, #tpu.memory_space<vmem>>, vector<1x8x128xf32>
    %255 = vector.shape_cast %254 : vector<1x8x128xf32> to vector<8x128xf32>
    %256 = arith.addf %255, %248 : vector<8x128xf32>
    %c0_137 = arith.constant 0 : index
    %c0_138 = arith.constant 0 : index
    %257 = vector.load %arg13[%c0_137, %c0_138] : memref<8x32xf32, #tpu.memory_space<vmem>>, vector<8x32xf32>
    %258 = vector.extract_strided_slice %256 {offsets = [0, 0], sizes = [8, 32], strides = [1, 1]} : vector<8x128xf32> to vector<8x32xf32>
    %259 = arith.negf %258 : vector<8x32xf32>
    %260 = math.exp %259 : vector<8x32xf32>
    %cst_139 = arith.constant 1.000000e+00 : f32
    %261 = vector.broadcast %cst_139 : f32 to vector<8x32xf32>
    %262 = arith.addf %261, %260 : vector<8x32xf32>
    %263 = arith.divf %261, %262 : vector<8x32xf32>
    %264 = vector.extract_strided_slice %256 {offsets = [0, 32], sizes = [8, 32], strides = [1, 1]} : vector<8x128xf32> to vector<8x32xf32>
    %265 = arith.negf %264 : vector<8x32xf32>
    %266 = math.exp %265 : vector<8x32xf32>
    %cst_140 = arith.constant 1.000000e+00 : f32
    %267 = vector.broadcast %cst_140 : f32 to vector<8x32xf32>
    %268 = arith.addf %267, %266 : vector<8x32xf32>
    %269 = arith.divf %267, %268 : vector<8x32xf32>
    %270 = vector.extract_strided_slice %256 {offsets = [0, 64], sizes = [8, 32], strides = [1, 1]} : vector<8x128xf32> to vector<8x32xf32>
    %271 = math.tanh %270 : vector<8x32xf32>
    %272 = vector.extract_strided_slice %256 {offsets = [0, 96], sizes = [8, 32], strides = [1, 1]} : vector<8x128xf32> to vector<8x32xf32>
    %273 = arith.negf %272 : vector<8x32xf32>
    %274 = math.exp %273 : vector<8x32xf32>
    %cst_141 = arith.constant 1.000000e+00 : f32
    %275 = vector.broadcast %cst_141 : f32 to vector<8x32xf32>
    %276 = arith.addf %275, %274 : vector<8x32xf32>
    %277 = arith.divf %275, %276 : vector<8x32xf32>
    %278 = arith.mulf %269, %257 : vector<8x32xf32>
    %279 = arith.mulf %263, %271 : vector<8x32xf32>
    %280 = arith.addf %278, %279 : vector<8x32xf32>
    %281 = math.tanh %280 : vector<8x32xf32>
    %282 = arith.mulf %277, %281 : vector<8x32xf32>
    %283 = arith.index_cast %244 : i32 to index
    %c0_142 = arith.constant 0 : index
    %c0_143 = arith.constant 0 : index
    %284 = vector.load %arg11[%283, %c0_142, %c0_143] : memref<8x8x128xf32, #tpu.memory_space<vmem>>, vector<1x8x128xf32>
    %285 = vector.shape_cast %284 : vector<1x8x128xf32> to vector<8x128xf32>
    %286 = arith.addf %285, %252 : vector<8x128xf32>
    %c0_144 = arith.constant 0 : index
    %c0_145 = arith.constant 0 : index
    %287 = vector.load %arg15[%c0_144, %c0_145] : memref<8x32xf32, #tpu.memory_space<vmem>>, vector<8x32xf32>
    %288 = vector.extract_strided_slice %286 {offsets = [0, 0], sizes = [8, 32], strides = [1, 1]} : vector<8x128xf32> to vector<8x32xf32>
    %289 = arith.negf %288 : vector<8x32xf32>
    %290 = math.exp %289 : vector<8x32xf32>
    %cst_146 = arith.constant 1.000000e+00 : f32
    %291 = vector.broadcast %cst_146 : f32 to vector<8x32xf32>
    %292 = arith.addf %291, %290 : vector<8x32xf32>
    %293 = arith.divf %291, %292 : vector<8x32xf32>
    %294 = vector.extract_strided_slice %286 {offsets = [0, 32], sizes = [8, 32], strides = [1, 1]} : vector<8x128xf32> to vector<8x32xf32>
    %295 = arith.negf %294 : vector<8x32xf32>
    %296 = math.exp %295 : vector<8x32xf32>
    %cst_147 = arith.constant 1.000000e+00 : f32
    %297 = vector.broadcast %cst_147 : f32 to vector<8x32xf32>
    %298 = arith.addf %297, %296 : vector<8x32xf32>
    %299 = arith.divf %297, %298 : vector<8x32xf32>
    %300 = vector.extract_strided_slice %286 {offsets = [0, 64], sizes = [8, 32], strides = [1, 1]} : vector<8x128xf32> to vector<8x32xf32>
    %301 = math.tanh %300 : vector<8x32xf32>
    %302 = vector.extract_strided_slice %286 {offsets = [0, 96], sizes = [8, 32], strides = [1, 1]} : vector<8x128xf32> to vector<8x32xf32>
    %303 = arith.negf %302 : vector<8x32xf32>
    %304 = math.exp %303 : vector<8x32xf32>
    %cst_148 = arith.constant 1.000000e+00 : f32
    %305 = vector.broadcast %cst_148 : f32 to vector<8x32xf32>
    %306 = arith.addf %305, %304 : vector<8x32xf32>
    %307 = arith.divf %305, %306 : vector<8x32xf32>
    %308 = arith.mulf %299, %287 : vector<8x32xf32>
    %309 = arith.mulf %293, %301 : vector<8x32xf32>
    %310 = arith.addf %308, %309 : vector<8x32xf32>
    %311 = math.tanh %310 : vector<8x32xf32>
    %312 = arith.mulf %307, %311 : vector<8x32xf32>
    %313 = vector.broadcast %c2_i32 : i32 to vector<8x1xi32>
    %314 = arith.cmpi slt, %313, %0 : vector<8x1xi32>
    %315 = vector.broadcast %244 : i32 to vector<8x1xi32>
    %316 = arith.cmpi slt, %315, %0 : vector<8x1xi32>
    %c0_149 = arith.constant 0 : index
    %c0_150 = arith.constant 0 : index
    %317 = vector.load %arg12[%c0_149, %c0_150] : memref<8x32xf32, #tpu.memory_space<vmem>>, vector<8x32xf32>
    %318 = vector.shape_cast %314 : vector<8x1xi1> to vector<8x1xi1>
    %319 = vector.broadcast %318 : vector<8x1xi1> to vector<8x32xi1>
    %320 = arith.select %319, %282, %317 : vector<8x32xi1>, vector<8x32xf32>
    %c0_151 = arith.constant 0 : index
    %c0_152 = arith.constant 0 : index
    %321 = vector.load %arg12[%c0_151, %c0_152] : memref<8x32xf32, #tpu.memory_space<vmem>>, vector<8x32xf32>
    tpu.vector_store %arg12[%c0_151, %c0_152], %320 {strides = array<i32>} : memref<8x32xf32, #tpu.memory_space<vmem>>, vector<8x32xf32>,
    %c0_153 = arith.constant 0 : index
    %c0_154 = arith.constant 0 : index
    %322 = vector.load %arg13[%c0_153, %c0_154] : memref<8x32xf32, #tpu.memory_space<vmem>>, vector<8x32xf32>
    %323 = vector.shape_cast %314 : vector<8x1xi1> to vector<8x1xi1>
    %324 = vector.broadcast %323 : vector<8x1xi1> to vector<8x32xi1>
    %325 = arith.select %324, %280, %322 : vector<8x32xi1>, vector<8x32xf32>
    %c0_155 = arith.constant 0 : index
    %c0_156 = arith.constant 0 : index
    %326 = vector.load %arg13[%c0_155, %c0_156] : memref<8x32xf32, #tpu.memory_space<vmem>>, vector<8x32xf32>
    tpu.vector_store %arg13[%c0_155, %c0_156], %325 {strides = array<i32>} : memref<8x32xf32, #tpu.memory_space<vmem>>, vector<8x32xf32>,
    %c0_157 = arith.constant 0 : index
    %c0_158 = arith.constant 0 : index
    %327 = vector.load %arg14[%c0_157, %c0_158] : memref<8x32xf32, #tpu.memory_space<vmem>>, vector<8x32xf32>
    %328 = vector.shape_cast %316 : vector<8x1xi1> to vector<8x1xi1>
    %329 = vector.broadcast %328 : vector<8x1xi1> to vector<8x32xi1>
    %330 = arith.select %329, %312, %327 : vector<8x32xi1>, vector<8x32xf32>
    %c0_159 = arith.constant 0 : index
    %c0_160 = arith.constant 0 : index
    %331 = vector.load %arg14[%c0_159, %c0_160] : memref<8x32xf32, #tpu.memory_space<vmem>>, vector<8x32xf32>
    tpu.vector_store %arg14[%c0_159, %c0_160], %330 {strides = array<i32>} : memref<8x32xf32, #tpu.memory_space<vmem>>, vector<8x32xf32>,
    %c0_161 = arith.constant 0 : index
    %c0_162 = arith.constant 0 : index
    %332 = vector.load %arg15[%c0_161, %c0_162] : memref<8x32xf32, #tpu.memory_space<vmem>>, vector<8x32xf32>
    %333 = vector.shape_cast %316 : vector<8x1xi1> to vector<8x1xi1>
    %334 = vector.broadcast %333 : vector<8x1xi1> to vector<8x32xi1>
    %335 = arith.select %334, %310, %332 : vector<8x32xi1>, vector<8x32xf32>
    %c0_163 = arith.constant 0 : index
    %c0_164 = arith.constant 0 : index
    %336 = vector.load %arg15[%c0_163, %c0_164] : memref<8x32xf32, #tpu.memory_space<vmem>>, vector<8x32xf32>
    tpu.vector_store %arg15[%c0_163, %c0_164], %335 {strides = array<i32>} : memref<8x32xf32, #tpu.memory_space<vmem>>, vector<8x32xf32>,
    %cst_165 = arith.constant 0.000000e+00 : f32
    %337 = vector.shape_cast %314 : vector<8x1xi1> to vector<8x1xi1>
    %338 = vector.broadcast %337 : vector<8x1xi1> to vector<8x32xi1>
    %339 = vector.broadcast %cst_165 : f32 to vector<8x32xf32>
    %340 = arith.select %338, %282, %339 : vector<8x32xi1>, vector<8x32xf32>
    %341 = arith.index_cast %c2_i32 : i32 to index
    %c0_166 = arith.constant 0 : index
    %c0_167 = arith.constant 0 : index
    %342 = vector.load %arg16[%341, %c0_166, %c0_167] : memref<8x8x32xf32, #tpu.memory_space<vmem>>, vector<1x8x32xf32>
    %343 = vector.shape_cast %342 : vector<1x8x32xf32> to vector<8x32xf32>
    %344 = vector.shape_cast %340 : vector<8x32xf32> to vector<1x8x32xf32>
    tpu.vector_store %arg16[%341, %c0_166, %c0_167], %344 {strides = array<i32>} : memref<8x8x32xf32, #tpu.memory_space<vmem>>, vector<1x8x32xf32>,
    %cst_168 = arith.constant 0.000000e+00 : f32
    %345 = vector.shape_cast %316 : vector<8x1xi1> to vector<8x1xi1>
    %346 = vector.broadcast %345 : vector<8x1xi1> to vector<8x32xi1>
    %347 = vector.broadcast %cst_168 : f32 to vector<8x32xf32>
    %348 = arith.select %346, %312, %347 : vector<8x32xi1>, vector<8x32xf32>
    %349 = arith.index_cast %244 : i32 to index
    %c0_169 = arith.constant 0 : index
    %c0_170 = arith.constant 0 : index
    %350 = vector.load %arg17[%349, %c0_169, %c0_170] : memref<8x8x32xf32, #tpu.memory_space<vmem>>, vector<1x8x32xf32>
    %351 = vector.shape_cast %350 : vector<1x8x32xf32> to vector<8x32xf32>
    %352 = vector.shape_cast %348 : vector<8x32xf32> to vector<1x8x32xf32>
    tpu.vector_store %arg17[%349, %c0_169, %c0_170], %352 {strides = array<i32>} : memref<8x8x32xf32, #tpu.memory_space<vmem>>, vector<1x8x32xf32>,
    %c3_i32 = arith.constant 3 : i32
    %c7_i32_171 = arith.constant 7 : i32
    %353 = arith.subi %c7_i32_171, %c3_i32 : i32
    %c0_172 = arith.constant 0 : index
    %c0_173 = arith.constant 0 : index
    %354 = vector.load %arg12[%c0_172, %c0_173] : memref<8x32xf32, #tpu.memory_space<vmem>>, vector<8x32xf32>
    %355 = arith.truncf %354 : vector<8x32xf32> to vector<8x32xbf16>
    %c0_174 = arith.constant 0 : index
    %c0_175 = arith.constant 0 : index
    %356 = vector.load %arg4[%c0_174, %c0_175] : memref<32x128xbf16, #tpu.memory_space<vmem>>, vector<32x128xbf16>
    %cst_176 = arith.constant dense<0.000000e+00> : vector<8x128xf32>
    %357 = tpu.matmul %355, %356, %cst_176 {dimension_numbers = #tpu.dot_dimension_numbers<[1], [0], [0], [1], [0, 0, 1, 1], [], []>} : vector<8x32xbf16>, vector<32x128xbf16>, vector<8x128xf32> -> vector<8x128xf32>
    %c0_177 = arith.constant 0 : index
    %c0_178 = arith.constant 0 : index
    %358 = vector.load %arg14[%c0_177, %c0_178] : memref<8x32xf32, #tpu.memory_space<vmem>>, vector<8x32xf32>
    %359 = arith.truncf %358 : vector<8x32xf32> to vector<8x32xbf16>
    %c0_179 = arith.constant 0 : index
    %c0_180 = arith.constant 0 : index
    %360 = vector.load %arg7[%c0_179, %c0_180] : memref<32x128xbf16, #tpu.memory_space<vmem>>, vector<32x128xbf16>
    %cst_181 = arith.constant dense<0.000000e+00> : vector<8x128xf32>
    %361 = tpu.matmul %359, %360, %cst_181 {dimension_numbers = #tpu.dot_dimension_numbers<[1], [0], [0], [1], [0, 0, 1, 1], [], []>} : vector<8x32xbf16>, vector<32x128xbf16>, vector<8x128xf32> -> vector<8x128xf32>
    %362 = arith.index_cast %c3_i32 : i32 to index
    %c0_182 = arith.constant 0 : index
    %c0_183 = arith.constant 0 : index
    %363 = vector.load %arg10[%362, %c0_182, %c0_183] : memref<8x8x128xf32, #tpu.memory_space<vmem>>, vector<1x8x128xf32>
    %364 = vector.shape_cast %363 : vector<1x8x128xf32> to vector<8x128xf32>
    %365 = arith.addf %364, %357 : vector<8x128xf32>
    %c0_184 = arith.constant 0 : index
    %c0_185 = arith.constant 0 : index
    %366 = vector.load %arg13[%c0_184, %c0_185] : memref<8x32xf32, #tpu.memory_space<vmem>>, vector<8x32xf32>
    %367 = vector.extract_strided_slice %365 {offsets = [0, 0], sizes = [8, 32], strides = [1, 1]} : vector<8x128xf32> to vector<8x32xf32>
    %368 = arith.negf %367 : vector<8x32xf32>
    %369 = math.exp %368 : vector<8x32xf32>
    %cst_186 = arith.constant 1.000000e+00 : f32
    %370 = vector.broadcast %cst_186 : f32 to vector<8x32xf32>
    %371 = arith.addf %370, %369 : vector<8x32xf32>
    %372 = arith.divf %370, %371 : vector<8x32xf32>
    %373 = vector.extract_strided_slice %365 {offsets = [0, 32], sizes = [8, 32], strides = [1, 1]} : vector<8x128xf32> to vector<8x32xf32>
    %374 = arith.negf %373 : vector<8x32xf32>
    %375 = math.exp %374 : vector<8x32xf32>
    %cst_187 = arith.constant 1.000000e+00 : f32
    %376 = vector.broadcast %cst_187 : f32 to vector<8x32xf32>
    %377 = arith.addf %376, %375 : vector<8x32xf32>
    %378 = arith.divf %376, %377 : vector<8x32xf32>
    %379 = vector.extract_strided_slice %365 {offsets = [0, 64], sizes = [8, 32], strides = [1, 1]} : vector<8x128xf32> to vector<8x32xf32>
    %380 = math.tanh %379 : vector<8x32xf32>
    %381 = vector.extract_strided_slice %365 {offsets = [0, 96], sizes = [8, 32], strides = [1, 1]} : vector<8x128xf32> to vector<8x32xf32>
    %382 = arith.negf %381 : vector<8x32xf32>
    %383 = math.exp %382 : vector<8x32xf32>
    %cst_188 = arith.constant 1.000000e+00 : f32
    %384 = vector.broadcast %cst_188 : f32 to vector<8x32xf32>
    %385 = arith.addf %384, %383 : vector<8x32xf32>
    %386 = arith.divf %384, %385 : vector<8x32xf32>
    %387 = arith.mulf %378, %366 : vector<8x32xf32>
    %388 = arith.mulf %372, %380 : vector<8x32xf32>
    %389 = arith.addf %387, %388 : vector<8x32xf32>
    %390 = math.tanh %389 : vector<8x32xf32>
    %391 = arith.mulf %386, %390 : vector<8x32xf32>
    %392 = arith.index_cast %353 : i32 to index
    %c0_189 = arith.constant 0 : index
    %c0_190 = arith.constant 0 : index
    %393 = vector.load %arg11[%392, %c0_189, %c0_190] : memref<8x8x128xf32, #tpu.memory_space<vmem>>, vector<1x8x128xf32>
    %394 = vector.shape_cast %393 : vector<1x8x128xf32> to vector<8x128xf32>
    %395 = arith.addf %394, %361 : vector<8x128xf32>
    %c0_191 = arith.constant 0 : index
    %c0_192 = arith.constant 0 : index
    %396 = vector.load %arg15[%c0_191, %c0_192] : memref<8x32xf32, #tpu.memory_space<vmem>>, vector<8x32xf32>
    %397 = vector.extract_strided_slice %395 {offsets = [0, 0], sizes = [8, 32], strides = [1, 1]} : vector<8x128xf32> to vector<8x32xf32>
    %398 = arith.negf %397 : vector<8x32xf32>
    %399 = math.exp %398 : vector<8x32xf32>
    %cst_193 = arith.constant 1.000000e+00 : f32
    %400 = vector.broadcast %cst_193 : f32 to vector<8x32xf32>
    %401 = arith.addf %400, %399 : vector<8x32xf32>
    %402 = arith.divf %400, %401 : vector<8x32xf32>
    %403 = vector.extract_strided_slice %395 {offsets = [0, 32], sizes = [8, 32], strides = [1, 1]} : vector<8x128xf32> to vector<8x32xf32>
    %404 = arith.negf %403 : vector<8x32xf32>
    %405 = math.exp %404 : vector<8x32xf32>
    %cst_194 = arith.constant 1.000000e+00 : f32
    %406 = vector.broadcast %cst_194 : f32 to vector<8x32xf32>
    %407 = arith.addf %406, %405 : vector<8x32xf32>
    %408 = arith.divf %406, %407 : vector<8x32xf32>
    %409 = vector.extract_strided_slice %395 {offsets = [0, 64], sizes = [8, 32], strides = [1, 1]} : vector<8x128xf32> to vector<8x32xf32>
    %410 = math.tanh %409 : vector<8x32xf32>
    %411 = vector.extract_strided_slice %395 {offsets = [0, 96], sizes = [8, 32], strides = [1, 1]} : vector<8x128xf32> to vector<8x32xf32>
    %412 = arith.negf %411 : vector<8x32xf32>
    %413 = math.exp %412 : vector<8x32xf32>
    %cst_195 = arith.constant 1.000000e+00 : f32
    %414 = vector.broadcast %cst_195 : f32 to vector<8x32xf32>
    %415 = arith.addf %414, %413 : vector<8x32xf32>
    %416 = arith.divf %414, %415 : vector<8x32xf32>
    %417 = arith.mulf %408, %396 : vector<8x32xf32>
    %418 = arith.mulf %402, %410 : vector<8x32xf32>
    %419 = arith.addf %417, %418 : vector<8x32xf32>
    %420 = math.tanh %419 : vector<8x32xf32>
    %421 = arith.mulf %416, %420 : vector<8x32xf32>
    %422 = vector.broadcast %c3_i32 : i32 to vector<8x1xi32>
    %423 = arith.cmpi slt, %422, %0 : vector<8x1xi32>
    %424 = vector.broadcast %353 : i32 to vector<8x1xi32>
    %425 = arith.cmpi slt, %424, %0 : vector<8x1xi32>
    %c0_196 = arith.constant 0 : index
    %c0_197 = arith.constant 0 : index
    %426 = vector.load %arg12[%c0_196, %c0_197] : memref<8x32xf32, #tpu.memory_space<vmem>>, vector<8x32xf32>
    %427 = vector.shape_cast %423 : vector<8x1xi1> to vector<8x1xi1>
    %428 = vector.broadcast %427 : vector<8x1xi1> to vector<8x32xi1>
    %429 = arith.select %428, %391, %426 : vector<8x32xi1>, vector<8x32xf32>
    %c0_198 = arith.constant 0 : index
    %c0_199 = arith.constant 0 : index
    %430 = vector.load %arg12[%c0_198, %c0_199] : memref<8x32xf32, #tpu.memory_space<vmem>>, vector<8x32xf32>
    tpu.vector_store %arg12[%c0_198, %c0_199], %429 {strides = array<i32>} : memref<8x32xf32, #tpu.memory_space<vmem>>, vector<8x32xf32>,
    %c0_200 = arith.constant 0 : index
    %c0_201 = arith.constant 0 : index
    %431 = vector.load %arg13[%c0_200, %c0_201] : memref<8x32xf32, #tpu.memory_space<vmem>>, vector<8x32xf32>
    %432 = vector.shape_cast %423 : vector<8x1xi1> to vector<8x1xi1>
    %433 = vector.broadcast %432 : vector<8x1xi1> to vector<8x32xi1>
    %434 = arith.select %433, %389, %431 : vector<8x32xi1>, vector<8x32xf32>
    %c0_202 = arith.constant 0 : index
    %c0_203 = arith.constant 0 : index
    %435 = vector.load %arg13[%c0_202, %c0_203] : memref<8x32xf32, #tpu.memory_space<vmem>>, vector<8x32xf32>
    tpu.vector_store %arg13[%c0_202, %c0_203], %434 {strides = array<i32>} : memref<8x32xf32, #tpu.memory_space<vmem>>, vector<8x32xf32>,
    %c0_204 = arith.constant 0 : index
    %c0_205 = arith.constant 0 : index
    %436 = vector.load %arg14[%c0_204, %c0_205] : memref<8x32xf32, #tpu.memory_space<vmem>>, vector<8x32xf32>
    %437 = vector.shape_cast %425 : vector<8x1xi1> to vector<8x1xi1>
    %438 = vector.broadcast %437 : vector<8x1xi1> to vector<8x32xi1>
    %439 = arith.select %438, %421, %436 : vector<8x32xi1>, vector<8x32xf32>
    %c0_206 = arith.constant 0 : index
    %c0_207 = arith.constant 0 : index
    %440 = vector.load %arg14[%c0_206, %c0_207] : memref<8x32xf32, #tpu.memory_space<vmem>>, vector<8x32xf32>
    tpu.vector_store %arg14[%c0_206, %c0_207], %439 {strides = array<i32>} : memref<8x32xf32, #tpu.memory_space<vmem>>, vector<8x32xf32>,
    %c0_208 = arith.constant 0 : index
    %c0_209 = arith.constant 0 : index
    %441 = vector.load %arg15[%c0_208, %c0_209] : memref<8x32xf32, #tpu.memory_space<vmem>>, vector<8x32xf32>
    %442 = vector.shape_cast %425 : vector<8x1xi1> to vector<8x1xi1>
    %443 = vector.broadcast %442 : vector<8x1xi1> to vector<8x32xi1>
    %444 = arith.select %443, %419, %441 : vector<8x32xi1>, vector<8x32xf32>
    %c0_210 = arith.constant 0 : index
    %c0_211 = arith.constant 0 : index
    %445 = vector.load %arg15[%c0_210, %c0_211] : memref<8x32xf32, #tpu.memory_space<vmem>>, vector<8x32xf32>
    tpu.vector_store %arg15[%c0_210, %c0_211], %444 {strides = array<i32>} : memref<8x32xf32, #tpu.memory_space<vmem>>, vector<8x32xf32>,
    %cst_212 = arith.constant 0.000000e+00 : f32
    %446 = vector.shape_cast %423 : vector<8x1xi1> to vector<8x1xi1>
    %447 = vector.broadcast %446 : vector<8x1xi1> to vector<8x32xi1>
    %448 = vector.broadcast %cst_212 : f32 to vector<8x32xf32>
    %449 = arith.select %447, %391, %448 : vector<8x32xi1>, vector<8x32xf32>
    %450 = arith.index_cast %c3_i32 : i32 to index
    %c0_213 = arith.constant 0 : index
    %c0_214 = arith.constant 0 : index
    %451 = vector.load %arg16[%450, %c0_213, %c0_214] : memref<8x8x32xf32, #tpu.memory_space<vmem>>, vector<1x8x32xf32>
    %452 = vector.shape_cast %451 : vector<1x8x32xf32> to vector<8x32xf32>
    %453 = vector.shape_cast %449 : vector<8x32xf32> to vector<1x8x32xf32>
    tpu.vector_store %arg16[%450, %c0_213, %c0_214], %453 {strides = array<i32>} : memref<8x8x32xf32, #tpu.memory_space<vmem>>, vector<1x8x32xf32>,
    %cst_215 = arith.constant 0.000000e+00 : f32
    %454 = vector.shape_cast %425 : vector<8x1xi1> to vector<8x1xi1>
    %455 = vector.broadcast %454 : vector<8x1xi1> to vector<8x32xi1>
    %456 = vector.broadcast %cst_215 : f32 to vector<8x32xf32>
    %457 = arith.select %455, %421, %456 : vector<8x32xi1>, vector<8x32xf32>
    %458 = arith.index_cast %353 : i32 to index
    %c0_216 = arith.constant 0 : index
    %c0_217 = arith.constant 0 : index
    %459 = vector.load %arg17[%458, %c0_216, %c0_217] : memref<8x8x32xf32, #tpu.memory_space<vmem>>, vector<1x8x32xf32>
    %460 = vector.shape_cast %459 : vector<1x8x32xf32> to vector<8x32xf32>
    %461 = vector.shape_cast %457 : vector<8x32xf32> to vector<1x8x32xf32>
    tpu.vector_store %arg17[%458, %c0_216, %c0_217], %461 {strides = array<i32>} : memref<8x8x32xf32, #tpu.memory_space<vmem>>, vector<1x8x32xf32>,
    %c4_i32 = arith.constant 4 : i32
    %c7_i32_218 = arith.constant 7 : i32
    %462 = arith.subi %c7_i32_218, %c4_i32 : i32
    %c0_219 = arith.constant 0 : index
    %c0_220 = arith.constant 0 : index
    %463 = vector.load %arg12[%c0_219, %c0_220] : memref<8x32xf32, #tpu.memory_space<vmem>>, vector<8x32xf32>
    %464 = arith.truncf %463 : vector<8x32xf32> to vector<8x32xbf16>
    %c0_221 = arith.constant 0 : index
    %c0_222 = arith.constant 0 : index
    %465 = vector.load %arg4[%c0_221, %c0_222] : memref<32x128xbf16, #tpu.memory_space<vmem>>, vector<32x128xbf16>
    %cst_223 = arith.constant dense<0.000000e+00> : vector<8x128xf32>
    %466 = tpu.matmul %464, %465, %cst_223 {dimension_numbers = #tpu.dot_dimension_numbers<[1], [0], [0], [1], [0, 0, 1, 1], [], []>} : vector<8x32xbf16>, vector<32x128xbf16>, vector<8x128xf32> -> vector<8x128xf32>
    %c0_224 = arith.constant 0 : index
    %c0_225 = arith.constant 0 : index
    %467 = vector.load %arg14[%c0_224, %c0_225] : memref<8x32xf32, #tpu.memory_space<vmem>>, vector<8x32xf32>
    %468 = arith.truncf %467 : vector<8x32xf32> to vector<8x32xbf16>
    %c0_226 = arith.constant 0 : index
    %c0_227 = arith.constant 0 : index
    %469 = vector.load %arg7[%c0_226, %c0_227] : memref<32x128xbf16, #tpu.memory_space<vmem>>, vector<32x128xbf16>
    %cst_228 = arith.constant dense<0.000000e+00> : vector<8x128xf32>
    %470 = tpu.matmul %468, %469, %cst_228 {dimension_numbers = #tpu.dot_dimension_numbers<[1], [0], [0], [1], [0, 0, 1, 1], [], []>} : vector<8x32xbf16>, vector<32x128xbf16>, vector<8x128xf32> -> vector<8x128xf32>
    %471 = arith.index_cast %c4_i32 : i32 to index
    %c0_229 = arith.constant 0 : index
    %c0_230 = arith.constant 0 : index
    %472 = vector.load %arg10[%471, %c0_229, %c0_230] : memref<8x8x128xf32, #tpu.memory_space<vmem>>, vector<1x8x128xf32>
    %473 = vector.shape_cast %472 : vector<1x8x128xf32> to vector<8x128xf32>
    %474 = arith.addf %473, %466 : vector<8x128xf32>
    %c0_231 = arith.constant 0 : index
    %c0_232 = arith.constant 0 : index
    %475 = vector.load %arg13[%c0_231, %c0_232] : memref<8x32xf32, #tpu.memory_space<vmem>>, vector<8x32xf32>
    %476 = vector.extract_strided_slice %474 {offsets = [0, 0], sizes = [8, 32], strides = [1, 1]} : vector<8x128xf32> to vector<8x32xf32>
    %477 = arith.negf %476 : vector<8x32xf32>
    %478 = math.exp %477 : vector<8x32xf32>
    %cst_233 = arith.constant 1.000000e+00 : f32
    %479 = vector.broadcast %cst_233 : f32 to vector<8x32xf32>
    %480 = arith.addf %479, %478 : vector<8x32xf32>
    %481 = arith.divf %479, %480 : vector<8x32xf32>
    %482 = vector.extract_strided_slice %474 {offsets = [0, 32], sizes = [8, 32], strides = [1, 1]} : vector<8x128xf32> to vector<8x32xf32>
    %483 = arith.negf %482 : vector<8x32xf32>
    %484 = math.exp %483 : vector<8x32xf32>
    %cst_234 = arith.constant 1.000000e+00 : f32
    %485 = vector.broadcast %cst_234 : f32 to vector<8x32xf32>
    %486 = arith.addf %485, %484 : vector<8x32xf32>
    %487 = arith.divf %485, %486 : vector<8x32xf32>
    %488 = vector.extract_strided_slice %474 {offsets = [0, 64], sizes = [8, 32], strides = [1, 1]} : vector<8x128xf32> to vector<8x32xf32>
    %489 = math.tanh %488 : vector<8x32xf32>
    %490 = vector.extract_strided_slice %474 {offsets = [0, 96], sizes = [8, 32], strides = [1, 1]} : vector<8x128xf32> to vector<8x32xf32>
    %491 = arith.negf %490 : vector<8x32xf32>
    %492 = math.exp %491 : vector<8x32xf32>
    %cst_235 = arith.constant 1.000000e+00 : f32
    %493 = vector.broadcast %cst_235 : f32 to vector<8x32xf32>
    %494 = arith.addf %493, %492 : vector<8x32xf32>
    %495 = arith.divf %493, %494 : vector<8x32xf32>
    %496 = arith.mulf %487, %475 : vector<8x32xf32>
    %497 = arith.mulf %481, %489 : vector<8x32xf32>
    %498 = arith.addf %496, %497 : vector<8x32xf32>
    %499 = math.tanh %498 : vector<8x32xf32>
    %500 = arith.mulf %495, %499 : vector<8x32xf32>
    %501 = arith.index_cast %462 : i32 to index
    %c0_236 = arith.constant 0 : index
    %c0_237 = arith.constant 0 : index
    %502 = vector.load %arg11[%501, %c0_236, %c0_237] : memref<8x8x128xf32, #tpu.memory_space<vmem>>, vector<1x8x128xf32>
    %503 = vector.shape_cast %502 : vector<1x8x128xf32> to vector<8x128xf32>
    %504 = arith.addf %503, %470 : vector<8x128xf32>
    %c0_238 = arith.constant 0 : index
    %c0_239 = arith.constant 0 : index
    %505 = vector.load %arg15[%c0_238, %c0_239] : memref<8x32xf32, #tpu.memory_space<vmem>>, vector<8x32xf32>
    %506 = vector.extract_strided_slice %504 {offsets = [0, 0], sizes = [8, 32], strides = [1, 1]} : vector<8x128xf32> to vector<8x32xf32>
    %507 = arith.negf %506 : vector<8x32xf32>
    %508 = math.exp %507 : vector<8x32xf32>
    %cst_240 = arith.constant 1.000000e+00 : f32
    %509 = vector.broadcast %cst_240 : f32 to vector<8x32xf32>
    %510 = arith.addf %509, %508 : vector<8x32xf32>
    %511 = arith.divf %509, %510 : vector<8x32xf32>
    %512 = vector.extract_strided_slice %504 {offsets = [0, 32], sizes = [8, 32], strides = [1, 1]} : vector<8x128xf32> to vector<8x32xf32>
    %513 = arith.negf %512 : vector<8x32xf32>
    %514 = math.exp %513 : vector<8x32xf32>
    %cst_241 = arith.constant 1.000000e+00 : f32
    %515 = vector.broadcast %cst_241 : f32 to vector<8x32xf32>
    %516 = arith.addf %515, %514 : vector<8x32xf32>
    %517 = arith.divf %515, %516 : vector<8x32xf32>
    %518 = vector.extract_strided_slice %504 {offsets = [0, 64], sizes = [8, 32], strides = [1, 1]} : vector<8x128xf32> to vector<8x32xf32>
    %519 = math.tanh %518 : vector<8x32xf32>
    %520 = vector.extract_strided_slice %504 {offsets = [0, 96], sizes = [8, 32], strides = [1, 1]} : vector<8x128xf32> to vector<8x32xf32>
    %521 = arith.negf %520 : vector<8x32xf32>
    %522 = math.exp %521 : vector<8x32xf32>
    %cst_242 = arith.constant 1.000000e+00 : f32
    %523 = vector.broadcast %cst_242 : f32 to vector<8x32xf32>
    %524 = arith.addf %523, %522 : vector<8x32xf32>
    %525 = arith.divf %523, %524 : vector<8x32xf32>
    %526 = arith.mulf %517, %505 : vector<8x32xf32>
    %527 = arith.mulf %511, %519 : vector<8x32xf32>
    %528 = arith.addf %526, %527 : vector<8x32xf32>
    %529 = math.tanh %528 : vector<8x32xf32>
    %530 = arith.mulf %525, %529 : vector<8x32xf32>
    %531 = vector.broadcast %c4_i32 : i32 to vector<8x1xi32>
    %532 = arith.cmpi slt, %531, %0 : vector<8x1xi32>
    %533 = vector.broadcast %462 : i32 to vector<8x1xi32>
    %534 = arith.cmpi slt, %533, %0 : vector<8x1xi32>
    %c0_243 = arith.constant 0 : index
    %c0_244 = arith.constant 0 : index
    %535 = vector.load %arg12[%c0_243, %c0_244] : memref<8x32xf32, #tpu.memory_space<vmem>>, vector<8x32xf32>
    %536 = vector.shape_cast %532 : vector<8x1xi1> to vector<8x1xi1>
    %537 = vector.broadcast %536 : vector<8x1xi1> to vector<8x32xi1>
    %538 = arith.select %537, %500, %535 : vector<8x32xi1>, vector<8x32xf32>
    %c0_245 = arith.constant 0 : index
    %c0_246 = arith.constant 0 : index
    %539 = vector.load %arg12[%c0_245, %c0_246] : memref<8x32xf32, #tpu.memory_space<vmem>>, vector<8x32xf32>
    tpu.vector_store %arg12[%c0_245, %c0_246], %538 {strides = array<i32>} : memref<8x32xf32, #tpu.memory_space<vmem>>, vector<8x32xf32>,
    %c0_247 = arith.constant 0 : index
    %c0_248 = arith.constant 0 : index
    %540 = vector.load %arg13[%c0_247, %c0_248] : memref<8x32xf32, #tpu.memory_space<vmem>>, vector<8x32xf32>
    %541 = vector.shape_cast %532 : vector<8x1xi1> to vector<8x1xi1>
    %542 = vector.broadcast %541 : vector<8x1xi1> to vector<8x32xi1>
    %543 = arith.select %542, %498, %540 : vector<8x32xi1>, vector<8x32xf32>
    %c0_249 = arith.constant 0 : index
    %c0_250 = arith.constant 0 : index
    %544 = vector.load %arg13[%c0_249, %c0_250] : memref<8x32xf32, #tpu.memory_space<vmem>>, vector<8x32xf32>
    tpu.vector_store %arg13[%c0_249, %c0_250], %543 {strides = array<i32>} : memref<8x32xf32, #tpu.memory_space<vmem>>, vector<8x32xf32>,
    %c0_251 = arith.constant 0 : index
    %c0_252 = arith.constant 0 : index
    %545 = vector.load %arg14[%c0_251, %c0_252] : memref<8x32xf32, #tpu.memory_space<vmem>>, vector<8x32xf32>
    %546 = vector.shape_cast %534 : vector<8x1xi1> to vector<8x1xi1>
    %547 = vector.broadcast %546 : vector<8x1xi1> to vector<8x32xi1>
    %548 = arith.select %547, %530, %545 : vector<8x32xi1>, vector<8x32xf32>
    %c0_253 = arith.constant 0 : index
    %c0_254 = arith.constant 0 : index
    %549 = vector.load %arg14[%c0_253, %c0_254] : memref<8x32xf32, #tpu.memory_space<vmem>>, vector<8x32xf32>
    tpu.vector_store %arg14[%c0_253, %c0_254], %548 {strides = array<i32>} : memref<8x32xf32, #tpu.memory_space<vmem>>, vector<8x32xf32>,
    %c0_255 = arith.constant 0 : index
    %c0_256 = arith.constant 0 : index
    %550 = vector.load %arg15[%c0_255, %c0_256] : memref<8x32xf32, #tpu.memory_space<vmem>>, vector<8x32xf32>
    %551 = vector.shape_cast %534 : vector<8x1xi1> to vector<8x1xi1>
    %552 = vector.broadcast %551 : vector<8x1xi1> to vector<8x32xi1>
    %553 = arith.select %552, %528, %550 : vector<8x32xi1>, vector<8x32xf32>
    %c0_257 = arith.constant 0 : index
    %c0_258 = arith.constant 0 : index
    %554 = vector.load %arg15[%c0_257, %c0_258] : memref<8x32xf32, #tpu.memory_space<vmem>>, vector<8x32xf32>
    tpu.vector_store %arg15[%c0_257, %c0_258], %553 {strides = array<i32>} : memref<8x32xf32, #tpu.memory_space<vmem>>, vector<8x32xf32>,
    %cst_259 = arith.constant 0.000000e+00 : f32
    %555 = vector.shape_cast %532 : vector<8x1xi1> to vector<8x1xi1>
    %556 = vector.broadcast %555 : vector<8x1xi1> to vector<8x32xi1>
    %557 = vector.broadcast %cst_259 : f32 to vector<8x32xf32>
    %558 = arith.select %556, %500, %557 : vector<8x32xi1>, vector<8x32xf32>
    %559 = arith.index_cast %c4_i32 : i32 to index
    %c0_260 = arith.constant 0 : index
    %c0_261 = arith.constant 0 : index
    %560 = vector.load %arg16[%559, %c0_260, %c0_261] : memref<8x8x32xf32, #tpu.memory_space<vmem>>, vector<1x8x32xf32>
    %561 = vector.shape_cast %560 : vector<1x8x32xf32> to vector<8x32xf32>
    %562 = vector.shape_cast %558 : vector<8x32xf32> to vector<1x8x32xf32>
    tpu.vector_store %arg16[%559, %c0_260, %c0_261], %562 {strides = array<i32>} : memref<8x8x32xf32, #tpu.memory_space<vmem>>, vector<1x8x32xf32>,
    %cst_262 = arith.constant 0.000000e+00 : f32
    %563 = vector.shape_cast %534 : vector<8x1xi1> to vector<8x1xi1>
    %564 = vector.broadcast %563 : vector<8x1xi1> to vector<8x32xi1>
    %565 = vector.broadcast %cst_262 : f32 to vector<8x32xf32>
    %566 = arith.select %564, %530, %565 : vector<8x32xi1>, vector<8x32xf32>
    %567 = arith.index_cast %462 : i32 to index
    %c0_263 = arith.constant 0 : index
    %c0_264 = arith.constant 0 : index
    %568 = vector.load %arg17[%567, %c0_263, %c0_264] : memref<8x8x32xf32, #tpu.memory_space<vmem>>, vector<1x8x32xf32>
    %569 = vector.shape_cast %568 : vector<1x8x32xf32> to vector<8x32xf32>
    %570 = vector.shape_cast %566 : vector<8x32xf32> to vector<1x8x32xf32>
    tpu.vector_store %arg17[%567, %c0_263, %c0_264], %570 {strides = array<i32>} : memref<8x8x32xf32, #tpu.memory_space<vmem>>, vector<1x8x32xf32>,
    %c5_i32 = arith.constant 5 : i32
    %c7_i32_265 = arith.constant 7 : i32
    %571 = arith.subi %c7_i32_265, %c5_i32 : i32
    %c0_266 = arith.constant 0 : index
    %c0_267 = arith.constant 0 : index
    %572 = vector.load %arg12[%c0_266, %c0_267] : memref<8x32xf32, #tpu.memory_space<vmem>>, vector<8x32xf32>
    %573 = arith.truncf %572 : vector<8x32xf32> to vector<8x32xbf16>
    %c0_268 = arith.constant 0 : index
    %c0_269 = arith.constant 0 : index
    %574 = vector.load %arg4[%c0_268, %c0_269] : memref<32x128xbf16, #tpu.memory_space<vmem>>, vector<32x128xbf16>
    %cst_270 = arith.constant dense<0.000000e+00> : vector<8x128xf32>
    %575 = tpu.matmul %573, %574, %cst_270 {dimension_numbers = #tpu.dot_dimension_numbers<[1], [0], [0], [1], [0, 0, 1, 1], [], []>} : vector<8x32xbf16>, vector<32x128xbf16>, vector<8x128xf32> -> vector<8x128xf32>
    %c0_271 = arith.constant 0 : index
    %c0_272 = arith.constant 0 : index
    %576 = vector.load %arg14[%c0_271, %c0_272] : memref<8x32xf32, #tpu.memory_space<vmem>>, vector<8x32xf32>
    %577 = arith.truncf %576 : vector<8x32xf32> to vector<8x32xbf16>
    %c0_273 = arith.constant 0 : index
    %c0_274 = arith.constant 0 : index
    %578 = vector.load %arg7[%c0_273, %c0_274] : memref<32x128xbf16, #tpu.memory_space<vmem>>, vector<32x128xbf16>
    %cst_275 = arith.constant dense<0.000000e+00> : vector<8x128xf32>
    %579 = tpu.matmul %577, %578, %cst_275 {dimension_numbers = #tpu.dot_dimension_numbers<[1], [0], [0], [1], [0, 0, 1, 1], [], []>} : vector<8x32xbf16>, vector<32x128xbf16>, vector<8x128xf32> -> vector<8x128xf32>
    %580 = arith.index_cast %c5_i32 : i32 to index
    %c0_276 = arith.constant 0 : index
    %c0_277 = arith.constant 0 : index
    %581 = vector.load %arg10[%580, %c0_276, %c0_277] : memref<8x8x128xf32, #tpu.memory_space<vmem>>, vector<1x8x128xf32>
    %582 = vector.shape_cast %581 : vector<1x8x128xf32> to vector<8x128xf32>
    %583 = arith.addf %582, %575 : vector<8x128xf32>
    %c0_278 = arith.constant 0 : index
    %c0_279 = arith.constant 0 : index
    %584 = vector.load %arg13[%c0_278, %c0_279] : memref<8x32xf32, #tpu.memory_space<vmem>>, vector<8x32xf32>
    %585 = vector.extract_strided_slice %583 {offsets = [0, 0], sizes = [8, 32], strides = [1, 1]} : vector<8x128xf32> to vector<8x32xf32>
    %586 = arith.negf %585 : vector<8x32xf32>
    %587 = math.exp %586 : vector<8x32xf32>
    %cst_280 = arith.constant 1.000000e+00 : f32
    %588 = vector.broadcast %cst_280 : f32 to vector<8x32xf32>
    %589 = arith.addf %588, %587 : vector<8x32xf32>
    %590 = arith.divf %588, %589 : vector<8x32xf32>
    %591 = vector.extract_strided_slice %583 {offsets = [0, 32], sizes = [8, 32], strides = [1, 1]} : vector<8x128xf32> to vector<8x32xf32>
    %592 = arith.negf %591 : vector<8x32xf32>
    %593 = math.exp %592 : vector<8x32xf32>
    %cst_281 = arith.constant 1.000000e+00 : f32
    %594 = vector.broadcast %cst_281 : f32 to vector<8x32xf32>
    %595 = arith.addf %594, %593 : vector<8x32xf32>
    %596 = arith.divf %594, %595 : vector<8x32xf32>
    %597 = vector.extract_strided_slice %583 {offsets = [0, 64], sizes = [8, 32], strides = [1, 1]} : vector<8x128xf32> to vector<8x32xf32>
    %598 = math.tanh %597 : vector<8x32xf32>
    %599 = vector.extract_strided_slice %583 {offsets = [0, 96], sizes = [8, 32], strides = [1, 1]} : vector<8x128xf32> to vector<8x32xf32>
    %600 = arith.negf %599 : vector<8x32xf32>
    %601 = math.exp %600 : vector<8x32xf32>
    %cst_282 = arith.constant 1.000000e+00 : f32
    %602 = vector.broadcast %cst_282 : f32 to vector<8x32xf32>
    %603 = arith.addf %602, %601 : vector<8x32xf32>
    %604 = arith.divf %602, %603 : vector<8x32xf32>
    %605 = arith.mulf %596, %584 : vector<8x32xf32>
    %606 = arith.mulf %590, %598 : vector<8x32xf32>
    %607 = arith.addf %605, %606 : vector<8x32xf32>
    %608 = math.tanh %607 : vector<8x32xf32>
    %609 = arith.mulf %604, %608 : vector<8x32xf32>
    %610 = arith.index_cast %571 : i32 to index
    %c0_283 = arith.constant 0 : index
    %c0_284 = arith.constant 0 : index
    %611 = vector.load %arg11[%610, %c0_283, %c0_284] : memref<8x8x128xf32, #tpu.memory_space<vmem>>, vector<1x8x128xf32>
    %612 = vector.shape_cast %611 : vector<1x8x128xf32> to vector<8x128xf32>
    %613 = arith.addf %612, %579 : vector<8x128xf32>
    %c0_285 = arith.constant 0 : index
    %c0_286 = arith.constant 0 : index
    %614 = vector.load %arg15[%c0_285, %c0_286] : memref<8x32xf32, #tpu.memory_space<vmem>>, vector<8x32xf32>
    %615 = vector.extract_strided_slice %613 {offsets = [0, 0], sizes = [8, 32], strides = [1, 1]} : vector<8x128xf32> to vector<8x32xf32>
    %616 = arith.negf %615 : vector<8x32xf32>
    %617 = math.exp %616 : vector<8x32xf32>
    %cst_287 = arith.constant 1.000000e+00 : f32
    %618 = vector.broadcast %cst_287 : f32 to vector<8x32xf32>
    %619 = arith.addf %618, %617 : vector<8x32xf32>
    %620 = arith.divf %618, %619 : vector<8x32xf32>
    %621 = vector.extract_strided_slice %613 {offsets = [0, 32], sizes = [8, 32], strides = [1, 1]} : vector<8x128xf32> to vector<8x32xf32>
    %622 = arith.negf %621 : vector<8x32xf32>
    %623 = math.exp %622 : vector<8x32xf32>
    %cst_288 = arith.constant 1.000000e+00 : f32
    %624 = vector.broadcast %cst_288 : f32 to vector<8x32xf32>
    %625 = arith.addf %624, %623 : vector<8x32xf32>
    %626 = arith.divf %624, %625 : vector<8x32xf32>
    %627 = vector.extract_strided_slice %613 {offsets = [0, 64], sizes = [8, 32], strides = [1, 1]} : vector<8x128xf32> to vector<8x32xf32>
    %628 = math.tanh %627 : vector<8x32xf32>
    %629 = vector.extract_strided_slice %613 {offsets = [0, 96], sizes = [8, 32], strides = [1, 1]} : vector<8x128xf32> to vector<8x32xf32>
    %630 = arith.negf %629 : vector<8x32xf32>
    %631 = math.exp %630 : vector<8x32xf32>
    %cst_289 = arith.constant 1.000000e+00 : f32
    %632 = vector.broadcast %cst_289 : f32 to vector<8x32xf32>
    %633 = arith.addf %632, %631 : vector<8x32xf32>
    %634 = arith.divf %632, %633 : vector<8x32xf32>
    %635 = arith.mulf %626, %614 : vector<8x32xf32>
    %636 = arith.mulf %620, %628 : vector<8x32xf32>
    %637 = arith.addf %635, %636 : vector<8x32xf32>
    %638 = math.tanh %637 : vector<8x32xf32>
    %639 = arith.mulf %634, %638 : vector<8x32xf32>
    %640 = vector.broadcast %c5_i32 : i32 to vector<8x1xi32>
    %641 = arith.cmpi slt, %640, %0 : vector<8x1xi32>
    %642 = vector.broadcast %571 : i32 to vector<8x1xi32>
    %643 = arith.cmpi slt, %642, %0 : vector<8x1xi32>
    %c0_290 = arith.constant 0 : index
    %c0_291 = arith.constant 0 : index
    %644 = vector.load %arg12[%c0_290, %c0_291] : memref<8x32xf32, #tpu.memory_space<vmem>>, vector<8x32xf32>
    %645 = vector.shape_cast %641 : vector<8x1xi1> to vector<8x1xi1>
    %646 = vector.broadcast %645 : vector<8x1xi1> to vector<8x32xi1>
    %647 = arith.select %646, %609, %644 : vector<8x32xi1>, vector<8x32xf32>
    %c0_292 = arith.constant 0 : index
    %c0_293 = arith.constant 0 : index
    %648 = vector.load %arg12[%c0_292, %c0_293] : memref<8x32xf32, #tpu.memory_space<vmem>>, vector<8x32xf32>
    tpu.vector_store %arg12[%c0_292, %c0_293], %647 {strides = array<i32>} : memref<8x32xf32, #tpu.memory_space<vmem>>, vector<8x32xf32>,
    %c0_294 = arith.constant 0 : index
    %c0_295 = arith.constant 0 : index
    %649 = vector.load %arg13[%c0_294, %c0_295] : memref<8x32xf32, #tpu.memory_space<vmem>>, vector<8x32xf32>
    %650 = vector.shape_cast %641 : vector<8x1xi1> to vector<8x1xi1>
    %651 = vector.broadcast %650 : vector<8x1xi1> to vector<8x32xi1>
    %652 = arith.select %651, %607, %649 : vector<8x32xi1>, vector<8x32xf32>
    %c0_296 = arith.constant 0 : index
    %c0_297 = arith.constant 0 : index
    %653 = vector.load %arg13[%c0_296, %c0_297] : memref<8x32xf32, #tpu.memory_space<vmem>>, vector<8x32xf32>
    tpu.vector_store %arg13[%c0_296, %c0_297], %652 {strides = array<i32>} : memref<8x32xf32, #tpu.memory_space<vmem>>, vector<8x32xf32>,
    %c0_298 = arith.constant 0 : index
    %c0_299 = arith.constant 0 : index
    %654 = vector.load %arg14[%c0_298, %c0_299] : memref<8x32xf32, #tpu.memory_space<vmem>>, vector<8x32xf32>
    %655 = vector.shape_cast %643 : vector<8x1xi1> to vector<8x1xi1>
    %656 = vector.broadcast %655 : vector<8x1xi1> to vector<8x32xi1>
    %657 = arith.select %656, %639, %654 : vector<8x32xi1>, vector<8x32xf32>
    %c0_300 = arith.constant 0 : index
    %c0_301 = arith.constant 0 : index
    %658 = vector.load %arg14[%c0_300, %c0_301] : memref<8x32xf32, #tpu.memory_space<vmem>>, vector<8x32xf32>
    tpu.vector_store %arg14[%c0_300, %c0_301], %657 {strides = array<i32>} : memref<8x32xf32, #tpu.memory_space<vmem>>, vector<8x32xf32>,
    %c0_302 = arith.constant 0 : index
    %c0_303 = arith.constant 0 : index
    %659 = vector.load %arg15[%c0_302, %c0_303] : memref<8x32xf32, #tpu.memory_space<vmem>>, vector<8x32xf32>
    %660 = vector.shape_cast %643 : vector<8x1xi1> to vector<8x1xi1>
    %661 = vector.broadcast %660 : vector<8x1xi1> to vector<8x32xi1>
    %662 = arith.select %661, %637, %659 : vector<8x32xi1>, vector<8x32xf32>
    %c0_304 = arith.constant 0 : index
    %c0_305 = arith.constant 0 : index
    %663 = vector.load %arg15[%c0_304, %c0_305] : memref<8x32xf32, #tpu.memory_space<vmem>>, vector<8x32xf32>
    tpu.vector_store %arg15[%c0_304, %c0_305], %662 {strides = array<i32>} : memref<8x32xf32, #tpu.memory_space<vmem>>, vector<8x32xf32>,
    %cst_306 = arith.constant 0.000000e+00 : f32
    %664 = vector.shape_cast %641 : vector<8x1xi1> to vector<8x1xi1>
    %665 = vector.broadcast %664 : vector<8x1xi1> to vector<8x32xi1>
    %666 = vector.broadcast %cst_306 : f32 to vector<8x32xf32>
    %667 = arith.select %665, %609, %666 : vector<8x32xi1>, vector<8x32xf32>
    %668 = arith.index_cast %c5_i32 : i32 to index
    %c0_307 = arith.constant 0 : index
    %c0_308 = arith.constant 0 : index
    %669 = vector.load %arg16[%668, %c0_307, %c0_308] : memref<8x8x32xf32, #tpu.memory_space<vmem>>, vector<1x8x32xf32>
    %670 = vector.shape_cast %669 : vector<1x8x32xf32> to vector<8x32xf32>
    %671 = vector.shape_cast %667 : vector<8x32xf32> to vector<1x8x32xf32>
    tpu.vector_store %arg16[%668, %c0_307, %c0_308], %671 {strides = array<i32>} : memref<8x8x32xf32, #tpu.memory_space<vmem>>, vector<1x8x32xf32>,
    %cst_309 = arith.constant 0.000000e+00 : f32
    %672 = vector.shape_cast %643 : vector<8x1xi1> to vector<8x1xi1>
    %673 = vector.broadcast %672 : vector<8x1xi1> to vector<8x32xi1>
    %674 = vector.broadcast %cst_309 : f32 to vector<8x32xf32>
    %675 = arith.select %673, %639, %674 : vector<8x32xi1>, vector<8x32xf32>
    %676 = arith.index_cast %571 : i32 to index
    %c0_310 = arith.constant 0 : index
    %c0_311 = arith.constant 0 : index
    %677 = vector.load %arg17[%676, %c0_310, %c0_311] : memref<8x8x32xf32, #tpu.memory_space<vmem>>, vector<1x8x32xf32>
    %678 = vector.shape_cast %677 : vector<1x8x32xf32> to vector<8x32xf32>
    %679 = vector.shape_cast %675 : vector<8x32xf32> to vector<1x8x32xf32>
    tpu.vector_store %arg17[%676, %c0_310, %c0_311], %679 {strides = array<i32>} : memref<8x8x32xf32, #tpu.memory_space<vmem>>, vector<1x8x32xf32>,
    %c6_i32 = arith.constant 6 : i32
    %c7_i32_312 = arith.constant 7 : i32
    %680 = arith.subi %c7_i32_312, %c6_i32 : i32
    %c0_313 = arith.constant 0 : index
    %c0_314 = arith.constant 0 : index
    %681 = vector.load %arg12[%c0_313, %c0_314] : memref<8x32xf32, #tpu.memory_space<vmem>>, vector<8x32xf32>
    %682 = arith.truncf %681 : vector<8x32xf32> to vector<8x32xbf16>
    %c0_315 = arith.constant 0 : index
    %c0_316 = arith.constant 0 : index
    %683 = vector.load %arg4[%c0_315, %c0_316] : memref<32x128xbf16, #tpu.memory_space<vmem>>, vector<32x128xbf16>
    %cst_317 = arith.constant dense<0.000000e+00> : vector<8x128xf32>
    %684 = tpu.matmul %682, %683, %cst_317 {dimension_numbers = #tpu.dot_dimension_numbers<[1], [0], [0], [1], [0, 0, 1, 1], [], []>} : vector<8x32xbf16>, vector<32x128xbf16>, vector<8x128xf32> -> vector<8x128xf32>
    %c0_318 = arith.constant 0 : index
    %c0_319 = arith.constant 0 : index
    %685 = vector.load %arg14[%c0_318, %c0_319] : memref<8x32xf32, #tpu.memory_space<vmem>>, vector<8x32xf32>
    %686 = arith.truncf %685 : vector<8x32xf32> to vector<8x32xbf16>
    %c0_320 = arith.constant 0 : index
    %c0_321 = arith.constant 0 : index
    %687 = vector.load %arg7[%c0_320, %c0_321] : memref<32x128xbf16, #tpu.memory_space<vmem>>, vector<32x128xbf16>
    %cst_322 = arith.constant dense<0.000000e+00> : vector<8x128xf32>
    %688 = tpu.matmul %686, %687, %cst_322 {dimension_numbers = #tpu.dot_dimension_numbers<[1], [0], [0], [1], [0, 0, 1, 1], [], []>} : vector<8x32xbf16>, vector<32x128xbf16>, vector<8x128xf32> -> vector<8x128xf32>
    %689 = arith.index_cast %c6_i32 : i32 to index
    %c0_323 = arith.constant 0 : index
    %c0_324 = arith.constant 0 : index
    %690 = vector.load %arg10[%689, %c0_323, %c0_324] : memref<8x8x128xf32, #tpu.memory_space<vmem>>, vector<1x8x128xf32>
    %691 = vector.shape_cast %690 : vector<1x8x128xf32> to vector<8x128xf32>
    %692 = arith.addf %691, %684 : vector<8x128xf32>
    %c0_325 = arith.constant 0 : index
    %c0_326 = arith.constant 0 : index
    %693 = vector.load %arg13[%c0_325, %c0_326] : memref<8x32xf32, #tpu.memory_space<vmem>>, vector<8x32xf32>
    %694 = vector.extract_strided_slice %692 {offsets = [0, 0], sizes = [8, 32], strides = [1, 1]} : vector<8x128xf32> to vector<8x32xf32>
    %695 = arith.negf %694 : vector<8x32xf32>
    %696 = math.exp %695 : vector<8x32xf32>
    %cst_327 = arith.constant 1.000000e+00 : f32
    %697 = vector.broadcast %cst_327 : f32 to vector<8x32xf32>
    %698 = arith.addf %697, %696 : vector<8x32xf32>
    %699 = arith.divf %697, %698 : vector<8x32xf32>
    %700 = vector.extract_strided_slice %692 {offsets = [0, 32], sizes = [8, 32], strides = [1, 1]} : vector<8x128xf32> to vector<8x32xf32>
    %701 = arith.negf %700 : vector<8x32xf32>
    %702 = math.exp %701 : vector<8x32xf32>
    %cst_328 = arith.constant 1.000000e+00 : f32
    %703 = vector.broadcast %cst_328 : f32 to vector<8x32xf32>
    %704 = arith.addf %703, %702 : vector<8x32xf32>
    %705 = arith.divf %703, %704 : vector<8x32xf32>
    %706 = vector.extract_strided_slice %692 {offsets = [0, 64], sizes = [8, 32], strides = [1, 1]} : vector<8x128xf32> to vector<8x32xf32>
    %707 = math.tanh %706 : vector<8x32xf32>
    %708 = vector.extract_strided_slice %692 {offsets = [0, 96], sizes = [8, 32], strides = [1, 1]} : vector<8x128xf32> to vector<8x32xf32>
    %709 = arith.negf %708 : vector<8x32xf32>
    %710 = math.exp %709 : vector<8x32xf32>
    %cst_329 = arith.constant 1.000000e+00 : f32
    %711 = vector.broadcast %cst_329 : f32 to vector<8x32xf32>
    %712 = arith.addf %711, %710 : vector<8x32xf32>
    %713 = arith.divf %711, %712 : vector<8x32xf32>
    %714 = arith.mulf %705, %693 : vector<8x32xf32>
    %715 = arith.mulf %699, %707 : vector<8x32xf32>
    %716 = arith.addf %714, %715 : vector<8x32xf32>
    %717 = math.tanh %716 : vector<8x32xf32>
    %718 = arith.mulf %713, %717 : vector<8x32xf32>
    %719 = arith.index_cast %680 : i32 to index
    %c0_330 = arith.constant 0 : index
    %c0_331 = arith.constant 0 : index
    %720 = vector.load %arg11[%719, %c0_330, %c0_331] : memref<8x8x128xf32, #tpu.memory_space<vmem>>, vector<1x8x128xf32>
    %721 = vector.shape_cast %720 : vector<1x8x128xf32> to vector<8x128xf32>
    %722 = arith.addf %721, %688 : vector<8x128xf32>
    %c0_332 = arith.constant 0 : index
    %c0_333 = arith.constant 0 : index
    %723 = vector.load %arg15[%c0_332, %c0_333] : memref<8x32xf32, #tpu.memory_space<vmem>>, vector<8x32xf32>
    %724 = vector.extract_strided_slice %722 {offsets = [0, 0], sizes = [8, 32], strides = [1, 1]} : vector<8x128xf32> to vector<8x32xf32>
    %725 = arith.negf %724 : vector<8x32xf32>
    %726 = math.exp %725 : vector<8x32xf32>
    %cst_334 = arith.constant 1.000000e+00 : f32
    %727 = vector.broadcast %cst_334 : f32 to vector<8x32xf32>
    %728 = arith.addf %727, %726 : vector<8x32xf32>
    %729 = arith.divf %727, %728 : vector<8x32xf32>
    %730 = vector.extract_strided_slice %722 {offsets = [0, 32], sizes = [8, 32], strides = [1, 1]} : vector<8x128xf32> to vector<8x32xf32>
    %731 = arith.negf %730 : vector<8x32xf32>
    %732 = math.exp %731 : vector<8x32xf32>
    %cst_335 = arith.constant 1.000000e+00 : f32
    %733 = vector.broadcast %cst_335 : f32 to vector<8x32xf32>
    %734 = arith.addf %733, %732 : vector<8x32xf32>
    %735 = arith.divf %733, %734 : vector<8x32xf32>
    %736 = vector.extract_strided_slice %722 {offsets = [0, 64], sizes = [8, 32], strides = [1, 1]} : vector<8x128xf32> to vector<8x32xf32>
    %737 = math.tanh %736 : vector<8x32xf32>
    %738 = vector.extract_strided_slice %722 {offsets = [0, 96], sizes = [8, 32], strides = [1, 1]} : vector<8x128xf32> to vector<8x32xf32>
    %739 = arith.negf %738 : vector<8x32xf32>
    %740 = math.exp %739 : vector<8x32xf32>
    %cst_336 = arith.constant 1.000000e+00 : f32
    %741 = vector.broadcast %cst_336 : f32 to vector<8x32xf32>
    %742 = arith.addf %741, %740 : vector<8x32xf32>
    %743 = arith.divf %741, %742 : vector<8x32xf32>
    %744 = arith.mulf %735, %723 : vector<8x32xf32>
    %745 = arith.mulf %729, %737 : vector<8x32xf32>
    %746 = arith.addf %744, %745 : vector<8x32xf32>
    %747 = math.tanh %746 : vector<8x32xf32>
    %748 = arith.mulf %743, %747 : vector<8x32xf32>
    %749 = vector.broadcast %c6_i32 : i32 to vector<8x1xi32>
    %750 = arith.cmpi slt, %749, %0 : vector<8x1xi32>
    %751 = vector.broadcast %680 : i32 to vector<8x1xi32>
    %752 = arith.cmpi slt, %751, %0 : vector<8x1xi32>
    %c0_337 = arith.constant 0 : index
    %c0_338 = arith.constant 0 : index
    %753 = vector.load %arg12[%c0_337, %c0_338] : memref<8x32xf32, #tpu.memory_space<vmem>>, vector<8x32xf32>
    %754 = vector.shape_cast %750 : vector<8x1xi1> to vector<8x1xi1>
    %755 = vector.broadcast %754 : vector<8x1xi1> to vector<8x32xi1>
    %756 = arith.select %755, %718, %753 : vector<8x32xi1>, vector<8x32xf32>
    %c0_339 = arith.constant 0 : index
    %c0_340 = arith.constant 0 : index
    %757 = vector.load %arg12[%c0_339, %c0_340] : memref<8x32xf32, #tpu.memory_space<vmem>>, vector<8x32xf32>
    tpu.vector_store %arg12[%c0_339, %c0_340], %756 {strides = array<i32>} : memref<8x32xf32, #tpu.memory_space<vmem>>, vector<8x32xf32>,
    %c0_341 = arith.constant 0 : index
    %c0_342 = arith.constant 0 : index
    %758 = vector.load %arg13[%c0_341, %c0_342] : memref<8x32xf32, #tpu.memory_space<vmem>>, vector<8x32xf32>
    %759 = vector.shape_cast %750 : vector<8x1xi1> to vector<8x1xi1>
    %760 = vector.broadcast %759 : vector<8x1xi1> to vector<8x32xi1>
    %761 = arith.select %760, %716, %758 : vector<8x32xi1>, vector<8x32xf32>
    %c0_343 = arith.constant 0 : index
    %c0_344 = arith.constant 0 : index
    %762 = vector.load %arg13[%c0_343, %c0_344] : memref<8x32xf32, #tpu.memory_space<vmem>>, vector<8x32xf32>
    tpu.vector_store %arg13[%c0_343, %c0_344], %761 {strides = array<i32>} : memref<8x32xf32, #tpu.memory_space<vmem>>, vector<8x32xf32>,
    %c0_345 = arith.constant 0 : index
    %c0_346 = arith.constant 0 : index
    %763 = vector.load %arg14[%c0_345, %c0_346] : memref<8x32xf32, #tpu.memory_space<vmem>>, vector<8x32xf32>
    %764 = vector.shape_cast %752 : vector<8x1xi1> to vector<8x1xi1>
    %765 = vector.broadcast %764 : vector<8x1xi1> to vector<8x32xi1>
    %766 = arith.select %765, %748, %763 : vector<8x32xi1>, vector<8x32xf32>
    %c0_347 = arith.constant 0 : index
    %c0_348 = arith.constant 0 : index
    %767 = vector.load %arg14[%c0_347, %c0_348] : memref<8x32xf32, #tpu.memory_space<vmem>>, vector<8x32xf32>
    tpu.vector_store %arg14[%c0_347, %c0_348], %766 {strides = array<i32>} : memref<8x32xf32, #tpu.memory_space<vmem>>, vector<8x32xf32>,
    %c0_349 = arith.constant 0 : index
    %c0_350 = arith.constant 0 : index
    %768 = vector.load %arg15[%c0_349, %c0_350] : memref<8x32xf32, #tpu.memory_space<vmem>>, vector<8x32xf32>
    %769 = vector.shape_cast %752 : vector<8x1xi1> to vector<8x1xi1>
    %770 = vector.broadcast %769 : vector<8x1xi1> to vector<8x32xi1>
    %771 = arith.select %770, %746, %768 : vector<8x32xi1>, vector<8x32xf32>
    %c0_351 = arith.constant 0 : index
    %c0_352 = arith.constant 0 : index
    %772 = vector.load %arg15[%c0_351, %c0_352] : memref<8x32xf32, #tpu.memory_space<vmem>>, vector<8x32xf32>
    tpu.vector_store %arg15[%c0_351, %c0_352], %771 {strides = array<i32>} : memref<8x32xf32, #tpu.memory_space<vmem>>, vector<8x32xf32>,
    %cst_353 = arith.constant 0.000000e+00 : f32
    %773 = vector.shape_cast %750 : vector<8x1xi1> to vector<8x1xi1>
    %774 = vector.broadcast %773 : vector<8x1xi1> to vector<8x32xi1>
    %775 = vector.broadcast %cst_353 : f32 to vector<8x32xf32>
    %776 = arith.select %774, %718, %775 : vector<8x32xi1>, vector<8x32xf32>
    %777 = arith.index_cast %c6_i32 : i32 to index
    %c0_354 = arith.constant 0 : index
    %c0_355 = arith.constant 0 : index
    %778 = vector.load %arg16[%777, %c0_354, %c0_355] : memref<8x8x32xf32, #tpu.memory_space<vmem>>, vector<1x8x32xf32>
    %779 = vector.shape_cast %778 : vector<1x8x32xf32> to vector<8x32xf32>
    %780 = vector.shape_cast %776 : vector<8x32xf32> to vector<1x8x32xf32>
    tpu.vector_store %arg16[%777, %c0_354, %c0_355], %780 {strides = array<i32>} : memref<8x8x32xf32, #tpu.memory_space<vmem>>, vector<1x8x32xf32>,
    %cst_356 = arith.constant 0.000000e+00 : f32
    %781 = vector.shape_cast %752 : vector<8x1xi1> to vector<8x1xi1>
    %782 = vector.broadcast %781 : vector<8x1xi1> to vector<8x32xi1>
    %783 = vector.broadcast %cst_356 : f32 to vector<8x32xf32>
    %784 = arith.select %782, %748, %783 : vector<8x32xi1>, vector<8x32xf32>
    %785 = arith.index_cast %680 : i32 to index
    %c0_357 = arith.constant 0 : index
    %c0_358 = arith.constant 0 : index
    %786 = vector.load %arg17[%785, %c0_357, %c0_358] : memref<8x8x32xf32, #tpu.memory_space<vmem>>, vector<1x8x32xf32>
    %787 = vector.shape_cast %786 : vector<1x8x32xf32> to vector<8x32xf32>
    %788 = vector.shape_cast %784 : vector<8x32xf32> to vector<1x8x32xf32>
    tpu.vector_store %arg17[%785, %c0_357, %c0_358], %788 {strides = array<i32>} : memref<8x8x32xf32, #tpu.memory_space<vmem>>, vector<1x8x32xf32>,
    %c7_i32_359 = arith.constant 7 : i32
    %c7_i32_360 = arith.constant 7 : i32
    %789 = arith.subi %c7_i32_360, %c7_i32_359 : i32
    %c0_361 = arith.constant 0 : index
    %c0_362 = arith.constant 0 : index
    %790 = vector.load %arg12[%c0_361, %c0_362] : memref<8x32xf32, #tpu.memory_space<vmem>>, vector<8x32xf32>
    %791 = arith.truncf %790 : vector<8x32xf32> to vector<8x32xbf16>
    %c0_363 = arith.constant 0 : index
    %c0_364 = arith.constant 0 : index
    %792 = vector.load %arg4[%c0_363, %c0_364] : memref<32x128xbf16, #tpu.memory_space<vmem>>, vector<32x128xbf16>
    %cst_365 = arith.constant dense<0.000000e+00> : vector<8x128xf32>
    %793 = tpu.matmul %791, %792, %cst_365 {dimension_numbers = #tpu.dot_dimension_numbers<[1], [0], [0], [1], [0, 0, 1, 1], [], []>} : vector<8x32xbf16>, vector<32x128xbf16>, vector<8x128xf32> -> vector<8x128xf32>
    %c0_366 = arith.constant 0 : index
    %c0_367 = arith.constant 0 : index
    %794 = vector.load %arg14[%c0_366, %c0_367] : memref<8x32xf32, #tpu.memory_space<vmem>>, vector<8x32xf32>
    %795 = arith.truncf %794 : vector<8x32xf32> to vector<8x32xbf16>
    %c0_368 = arith.constant 0 : index
    %c0_369 = arith.constant 0 : index
    %796 = vector.load %arg7[%c0_368, %c0_369] : memref<32x128xbf16, #tpu.memory_space<vmem>>, vector<32x128xbf16>
    %cst_370 = arith.constant dense<0.000000e+00> : vector<8x128xf32>
    %797 = tpu.matmul %795, %796, %cst_370 {dimension_numbers = #tpu.dot_dimension_numbers<[1], [0], [0], [1], [0, 0, 1, 1], [], []>} : vector<8x32xbf16>, vector<32x128xbf16>, vector<8x128xf32> -> vector<8x128xf32>
    %798 = arith.index_cast %c7_i32_359 : i32 to index
    %c0_371 = arith.constant 0 : index
    %c0_372 = arith.constant 0 : index
    %799 = vector.load %arg10[%798, %c0_371, %c0_372] : memref<8x8x128xf32, #tpu.memory_space<vmem>>, vector<1x8x128xf32>
    %800 = vector.shape_cast %799 : vector<1x8x128xf32> to vector<8x128xf32>
    %801 = arith.addf %800, %793 : vector<8x128xf32>
    %c0_373 = arith.constant 0 : index
    %c0_374 = arith.constant 0 : index
    %802 = vector.load %arg13[%c0_373, %c0_374] : memref<8x32xf32, #tpu.memory_space<vmem>>, vector<8x32xf32>
    %803 = vector.extract_strided_slice %801 {offsets = [0, 0], sizes = [8, 32], strides = [1, 1]} : vector<8x128xf32> to vector<8x32xf32>
    %804 = arith.negf %803 : vector<8x32xf32>
    %805 = math.exp %804 : vector<8x32xf32>
    %cst_375 = arith.constant 1.000000e+00 : f32
    %806 = vector.broadcast %cst_375 : f32 to vector<8x32xf32>
    %807 = arith.addf %806, %805 : vector<8x32xf32>
    %808 = arith.divf %806, %807 : vector<8x32xf32>
    %809 = vector.extract_strided_slice %801 {offsets = [0, 32], sizes = [8, 32], strides = [1, 1]} : vector<8x128xf32> to vector<8x32xf32>
    %810 = arith.negf %809 : vector<8x32xf32>
    %811 = math.exp %810 : vector<8x32xf32>
    %cst_376 = arith.constant 1.000000e+00 : f32
    %812 = vector.broadcast %cst_376 : f32 to vector<8x32xf32>
    %813 = arith.addf %812, %811 : vector<8x32xf32>
    %814 = arith.divf %812, %813 : vector<8x32xf32>
    %815 = vector.extract_strided_slice %801 {offsets = [0, 64], sizes = [8, 32], strides = [1, 1]} : vector<8x128xf32> to vector<8x32xf32>
    %816 = math.tanh %815 : vector<8x32xf32>
    %817 = vector.extract_strided_slice %801 {offsets = [0, 96], sizes = [8, 32], strides = [1, 1]} : vector<8x128xf32> to vector<8x32xf32>
    %818 = arith.negf %817 : vector<8x32xf32>
    %819 = math.exp %818 : vector<8x32xf32>
    %cst_377 = arith.constant 1.000000e+00 : f32
    %820 = vector.broadcast %cst_377 : f32 to vector<8x32xf32>
    %821 = arith.addf %820, %819 : vector<8x32xf32>
    %822 = arith.divf %820, %821 : vector<8x32xf32>
    %823 = arith.mulf %814, %802 : vector<8x32xf32>
    %824 = arith.mulf %808, %816 : vector<8x32xf32>
    %825 = arith.addf %823, %824 : vector<8x32xf32>
    %826 = math.tanh %825 : vector<8x32xf32>
    %827 = arith.mulf %822, %826 : vector<8x32xf32>
    %828 = arith.index_cast %789 : i32 to index
    %c0_378 = arith.constant 0 : index
    %c0_379 = arith.constant 0 : index
    %829 = vector.load %arg11[%828, %c0_378, %c0_379] : memref<8x8x128xf32, #tpu.memory_space<vmem>>, vector<1x8x128xf32>
    %830 = vector.shape_cast %829 : vector<1x8x128xf32> to vector<8x128xf32>
    %831 = arith.addf %830, %797 : vector<8x128xf32>
    %c0_380 = arith.constant 0 : index
    %c0_381 = arith.constant 0 : index
    %832 = vector.load %arg15[%c0_380, %c0_381] : memref<8x32xf32, #tpu.memory_space<vmem>>, vector<8x32xf32>
    %833 = vector.extract_strided_slice %831 {offsets = [0, 0], sizes = [8, 32], strides = [1, 1]} : vector<8x128xf32> to vector<8x32xf32>
    %834 = arith.negf %833 : vector<8x32xf32>
    %835 = math.exp %834 : vector<8x32xf32>
    %cst_382 = arith.constant 1.000000e+00 : f32
    %836 = vector.broadcast %cst_382 : f32 to vector<8x32xf32>
    %837 = arith.addf %836, %835 : vector<8x32xf32>
    %838 = arith.divf %836, %837 : vector<8x32xf32>
    %839 = vector.extract_strided_slice %831 {offsets = [0, 32], sizes = [8, 32], strides = [1, 1]} : vector<8x128xf32> to vector<8x32xf32>
    %840 = arith.negf %839 : vector<8x32xf32>
    %841 = math.exp %840 : vector<8x32xf32>
    %cst_383 = arith.constant 1.000000e+00 : f32
    %842 = vector.broadcast %cst_383 : f32 to vector<8x32xf32>
    %843 = arith.addf %842, %841 : vector<8x32xf32>
    %844 = arith.divf %842, %843 : vector<8x32xf32>
    %845 = vector.extract_strided_slice %831 {offsets = [0, 64], sizes = [8, 32], strides = [1, 1]} : vector<8x128xf32> to vector<8x32xf32>
    %846 = math.tanh %845 : vector<8x32xf32>
    %847 = vector.extract_strided_slice %831 {offsets = [0, 96], sizes = [8, 32], strides = [1, 1]} : vector<8x128xf32> to vector<8x32xf32>
    %848 = arith.negf %847 : vector<8x32xf32>
    %849 = math.exp %848 : vector<8x32xf32>
    %cst_384 = arith.constant 1.000000e+00 : f32
    %850 = vector.broadcast %cst_384 : f32 to vector<8x32xf32>
    %851 = arith.addf %850, %849 : vector<8x32xf32>
    %852 = arith.divf %850, %851 : vector<8x32xf32>
    %853 = arith.mulf %844, %832 : vector<8x32xf32>
    %854 = arith.mulf %838, %846 : vector<8x32xf32>
    %855 = arith.addf %853, %854 : vector<8x32xf32>
    %856 = math.tanh %855 : vector<8x32xf32>
    %857 = arith.mulf %852, %856 : vector<8x32xf32>
    %858 = vector.broadcast %c7_i32_359 : i32 to vector<8x1xi32>
    %859 = arith.cmpi slt, %858, %0 : vector<8x1xi32>
    %860 = vector.broadcast %789 : i32 to vector<8x1xi32>
    %861 = arith.cmpi slt, %860, %0 : vector<8x1xi32>
    %c0_385 = arith.constant 0 : index
    %c0_386 = arith.constant 0 : index
    %862 = vector.load %arg12[%c0_385, %c0_386] : memref<8x32xf32, #tpu.memory_space<vmem>>, vector<8x32xf32>
    %863 = vector.shape_cast %859 : vector<8x1xi1> to vector<8x1xi1>
    %864 = vector.broadcast %863 : vector<8x1xi1> to vector<8x32xi1>
    %865 = arith.select %864, %827, %862 : vector<8x32xi1>, vector<8x32xf32>
    %c0_387 = arith.constant 0 : index
    %c0_388 = arith.constant 0 : index
    %866 = vector.load %arg12[%c0_387, %c0_388] : memref<8x32xf32, #tpu.memory_space<vmem>>, vector<8x32xf32>
    tpu.vector_store %arg12[%c0_387, %c0_388], %865 {strides = array<i32>} : memref<8x32xf32, #tpu.memory_space<vmem>>, vector<8x32xf32>,
    %c0_389 = arith.constant 0 : index
    %c0_390 = arith.constant 0 : index
    %867 = vector.load %arg13[%c0_389, %c0_390] : memref<8x32xf32, #tpu.memory_space<vmem>>, vector<8x32xf32>
    %868 = vector.shape_cast %859 : vector<8x1xi1> to vector<8x1xi1>
    %869 = vector.broadcast %868 : vector<8x1xi1> to vector<8x32xi1>
    %870 = arith.select %869, %825, %867 : vector<8x32xi1>, vector<8x32xf32>
    %c0_391 = arith.constant 0 : index
    %c0_392 = arith.constant 0 : index
    %871 = vector.load %arg13[%c0_391, %c0_392] : memref<8x32xf32, #tpu.memory_space<vmem>>, vector<8x32xf32>
    tpu.vector_store %arg13[%c0_391, %c0_392], %870 {strides = array<i32>} : memref<8x32xf32, #tpu.memory_space<vmem>>, vector<8x32xf32>,
    %c0_393 = arith.constant 0 : index
    %c0_394 = arith.constant 0 : index
    %872 = vector.load %arg14[%c0_393, %c0_394] : memref<8x32xf32, #tpu.memory_space<vmem>>, vector<8x32xf32>
    %873 = vector.shape_cast %861 : vector<8x1xi1> to vector<8x1xi1>
    %874 = vector.broadcast %873 : vector<8x1xi1> to vector<8x32xi1>
    %875 = arith.select %874, %857, %872 : vector<8x32xi1>, vector<8x32xf32>
    %c0_395 = arith.constant 0 : index
    %c0_396 = arith.constant 0 : index
    %876 = vector.load %arg14[%c0_395, %c0_396] : memref<8x32xf32, #tpu.memory_space<vmem>>, vector<8x32xf32>
    tpu.vector_store %arg14[%c0_395, %c0_396], %875 {strides = array<i32>} : memref<8x32xf32, #tpu.memory_space<vmem>>, vector<8x32xf32>,
    %c0_397 = arith.constant 0 : index
    %c0_398 = arith.constant 0 : index
    %877 = vector.load %arg15[%c0_397, %c0_398] : memref<8x32xf32, #tpu.memory_space<vmem>>, vector<8x32xf32>
    %878 = vector.shape_cast %861 : vector<8x1xi1> to vector<8x1xi1>
    %879 = vector.broadcast %878 : vector<8x1xi1> to vector<8x32xi1>
    %880 = arith.select %879, %855, %877 : vector<8x32xi1>, vector<8x32xf32>
    %c0_399 = arith.constant 0 : index
    %c0_400 = arith.constant 0 : index
    %881 = vector.load %arg15[%c0_399, %c0_400] : memref<8x32xf32, #tpu.memory_space<vmem>>, vector<8x32xf32>
    tpu.vector_store %arg15[%c0_399, %c0_400], %880 {strides = array<i32>} : memref<8x32xf32, #tpu.memory_space<vmem>>, vector<8x32xf32>,
    %cst_401 = arith.constant 0.000000e+00 : f32
    %882 = vector.shape_cast %859 : vector<8x1xi1> to vector<8x1xi1>
    %883 = vector.broadcast %882 : vector<8x1xi1> to vector<8x32xi1>
    %884 = vector.broadcast %cst_401 : f32 to vector<8x32xf32>
    %885 = arith.select %883, %827, %884 : vector<8x32xi1>, vector<8x32xf32>
    %886 = arith.index_cast %c7_i32_359 : i32 to index
    %c0_402 = arith.constant 0 : index
    %c0_403 = arith.constant 0 : index
    %887 = vector.load %arg16[%886, %c0_402, %c0_403] : memref<8x8x32xf32, #tpu.memory_space<vmem>>, vector<1x8x32xf32>
    %888 = vector.shape_cast %887 : vector<1x8x32xf32> to vector<8x32xf32>
    %889 = vector.shape_cast %885 : vector<8x32xf32> to vector<1x8x32xf32>
    tpu.vector_store %arg16[%886, %c0_402, %c0_403], %889 {strides = array<i32>} : memref<8x8x32xf32, #tpu.memory_space<vmem>>, vector<1x8x32xf32>,
    %cst_404 = arith.constant 0.000000e+00 : f32
    %890 = vector.shape_cast %861 : vector<8x1xi1> to vector<8x1xi1>
    %891 = vector.broadcast %890 : vector<8x1xi1> to vector<8x32xi1>
    %892 = vector.broadcast %cst_404 : f32 to vector<8x32xf32>
    %893 = arith.select %891, %857, %892 : vector<8x32xi1>, vector<8x32xf32>
    %894 = arith.index_cast %789 : i32 to index
    %c0_405 = arith.constant 0 : index
    %c0_406 = arith.constant 0 : index
    %895 = vector.load %arg17[%894, %c0_405, %c0_406] : memref<8x8x32xf32, #tpu.memory_space<vmem>>, vector<1x8x32xf32>
    %896 = vector.shape_cast %895 : vector<1x8x32xf32> to vector<8x32xf32>
    %897 = vector.shape_cast %893 : vector<8x32xf32> to vector<1x8x32xf32>
    tpu.vector_store %arg17[%894, %c0_405, %c0_406], %897 {strides = array<i32>} : memref<8x8x32xf32, #tpu.memory_space<vmem>>, vector<1x8x32xf32>,
    %c8_i32 = arith.constant 8 : i32
    %c0_407 = arith.constant 0 : index
    %c0_408 = arith.constant 0 : index
    %c0_409 = arith.constant 0 : index
    %898 = vector.load %arg16[%c0_407, %c0_408, %c0_409] : memref<8x8x32xf32, #tpu.memory_space<vmem>>, vector<8x8x32xf32>
    %c0_410 = arith.constant 0 : index
    %c0_411 = arith.constant 0 : index
    %c0_412 = arith.constant 0 : index
    %899 = vector.load %arg9[%c0_410, %c0_411, %c0_412] : memref<8x8x64xf32, #tpu.memory_space<vmem>>, vector<8x8x32xf32>
    tpu.vector_store %arg9[%c0_410, %c0_411, %c0_412], %898 {strides = array<i32>} : memref<8x8x64xf32, #tpu.memory_space<vmem>>, vector<8x8x32xf32>,
    %c0_413 = arith.constant 0 : index
    %c0_414 = arith.constant 0 : index
    %c0_415 = arith.constant 0 : index
    %900 = vector.load %arg17[%c0_413, %c0_414, %c0_415] : memref<8x8x32xf32, #tpu.memory_space<vmem>>, vector<8x8x32xf32>
    %c0_416 = arith.constant 0 : index
    %c0_417 = arith.constant 0 : index
    %c32 = arith.constant 32 : index
    %901 = vector.load %arg9[%c0_416, %c0_417, %c32] : memref<8x8x64xf32, #tpu.memory_space<vmem>>, vector<8x8x32xf32>
    tpu.vector_store %arg9[%c0_416, %c0_417, %c32], %900 {strides = array<i32>} : memref<8x8x64xf32, #tpu.memory_space<vmem>>, vector<8x8x32xf32>,
    return
  }
  func.func @transform_0(%arg0: i32) -> (i32, i32, i32) {
    %c0_i32 = arith.constant 0 : i32
    %c0_i32_0 = arith.constant 0 : i32
    %c0_i32_1 = arith.constant 0 : i32
    return %c0_i32, %arg0, %c0_i32_0 : i32, i32, i32
  }
  func.func @transform_1(%arg0: i32) -> (i32, i32) {
    %c0_i32 = arith.constant 0 : i32
    %c0_i32_0 = arith.constant 0 : i32
    return %arg0, %c0_i32 : i32, i32
  }
  func.func @transform_2(%arg0: i32) -> (i32, i32) {
    %c0_i32 = arith.constant 0 : i32
    %c0_i32_0 = arith.constant 0 : i32
    %c0_i32_1 = arith.constant 0 : i32
    return %c0_i32, %c0_i32_0 : i32, i32
  }
  func.func @transform_3(%arg0: i32) -> (i32, i32) {
    %c0_i32 = arith.constant 0 : i32
    %c0_i32_0 = arith.constant 0 : i32
    %c0_i32_1 = arith.constant 0 : i32
    return %c0_i32, %c0_i32_0 : i32, i32
  }
  func.func @transform_4(%arg0: i32) -> (i32, i32) {
    %c0_i32 = arith.constant 0 : i32
    %c0_i32_0 = arith.constant 0 : i32
    %c0_i32_1 = arith.constant 0 : i32
    return %c0_i32, %c0_i32_0 : i32, i32
  }
  func.func @transform_5(%arg0: i32) -> (i32, i32) {
    %c0_i32 = arith.constant 0 : i32
    %c0_i32_0 = arith.constant 0 : i32
    %c0_i32_1 = arith.constant 0 : i32
    return %c0_i32, %c0_i32_0 : i32, i32
  }
  func.func @transform_6(%arg0: i32) -> (i32, i32) {
    %c0_i32 = arith.constant 0 : i32
    %c0_i32_0 = arith.constant 0 : i32
    %c0_i32_1 = arith.constant 0 : i32
    return %c0_i32, %c0_i32_0 : i32, i32
  }
  func.func @transform_7(%arg0: i32) -> (i32, i32) {
    %c0_i32 = arith.constant 0 : i32
    %c0_i32_0 = arith.constant 0 : i32
    %c0_i32_1 = arith.constant 0 : i32
    return %c0_i32, %c0_i32_0 : i32, i32
  }
  func.func @transform_8(%arg0: i32) -> (i32, i32, i32) {
    %c0_i32 = arith.constant 0 : i32
    %c0_i32_0 = arith.constant 0 : i32
    %c0_i32_1 = arith.constant 0 : i32
    return %c0_i32, %arg0, %c0_i32_0 : i32, i32, i32
  }
}

</mosaic_0001>

<llo_original>
// kernel: recurrent_qa_head_forward.2
$region0: #{recurrent_qa_head_forward.2}
  #allocation0 [shape = 'u32[]', space=smem, size = 0x4, offset = 0x4, fixed_abs, tag = 'smem constant byte address 0x4 - core index']
  #allocation1 [shape = 'u32[144,128]{1,0:T(1,128)}', space=vmem, size = 0x12000, scoped, tag = 'internal scratch']
  #allocation2 [shape = 'f32[8,8,128]{2,1,0:T(8,128)}', space=vmem, size = 0x8000, scoped, tag = 'scratch operand']
  #allocation3 [shape = 'f32[8,8,128]{2,1,0:T(8,128)}', space=vmem, size = 0x8000, scoped, tag = 'scratch operand']
  #allocation4 [shape = 'f32[8,32]{1,0:T(8,128)}', space=vmem, size = 0x1000, scoped, tag = 'scratch operand']
  #allocation5 [shape = 'f32[8,32]{1,0:T(8,128)}', space=vmem, size = 0x1000, scoped, tag = 'scratch operand']
  #allocation6 [shape = 'f32[8,32]{1,0:T(8,128)}', space=vmem, size = 0x1000, scoped, tag = 'scratch operand']
  #allocation7 [shape = 'f32[8,32]{1,0:T(8,128)}', space=vmem, size = 0x1000, scoped, tag = 'scratch operand']
  #allocation8 [shape = 'f32[8,8,32]{2,1,0:T(8,128)}', space=vmem, size = 0x8000, scoped, tag = 'scratch operand']
  #allocation9 [shape = 'f32[8,8,32]{2,1,0:T(8,128)}', space=vmem, size = 0x8000, scoped, tag = 'scratch operand']
  %s0 = inlined_call_operand.vmem [shape: f32[8,8,64], index: 0, kind: input, shape index: {}]
  %s1 = inlined_call_operand.vmem [shape: s32[8,1], index: 1, kind: input, shape index: {}]
  %s2 = inlined_call_operand.vmem [shape: bf16[64,128], index: 2, kind: input, shape index: {}]
  %s3 = inlined_call_operand.vmem [shape: bf16[32,128], index: 3, kind: input, shape index: {}]
  %s4 = inlined_call_operand.vmem [shape: f32[1,128], index: 4, kind: input, shape index: {}]
  %s5 = inlined_call_operand.vmem [shape: bf16[64,128], index: 5, kind: input, shape index: {}]
  %s6 = inlined_call_operand.vmem [shape: bf16[32,128], index: 6, kind: input, shape index: {}]
  %s7 = inlined_call_operand.vmem [shape: f32[1,128], index: 7, kind: input, shape index: {}]
  %s8 = inlined_call_operand.vmem [shape: f32[8,8,64], index: 8, kind: output, shape index: {}]
  %s9 = sld [smem:[#allocation0]]
  $region42: #{recurrent_qa_head_forward.2} parent=0
    _
  %s11 = ssub.s32 1, %s9
  %s12 = scalar_select 0, %s11, %s9
  // Predicated region
  $region2: #{recurrent_qa_head_forward.2} parent=0 // pred_check
    _
  $region3: #{recurrent_qa_head_forward.2} parent=0 // pred_check_branch
    %14 = sbr.rel (0) target = $region5
  $region4: #{recurrent_qa_head_forward.2} parent=0 // pred_region
    _
  $region5: #{recurrent_qa_head_forward.2} parent=0 // pred_fallthru
    _
  // Predicated region
  $region6: #{recurrent_qa_head_forward.2} parent=0 // pred_check
    _
  $region7: #{recurrent_qa_head_forward.2} parent=0 // pred_check_branch
    %16 = sbr.rel (0) target = $region9
  $region8: #{recurrent_qa_head_forward.2} parent=0 // pred_region
    _
  $region9: #{recurrent_qa_head_forward.2} parent=0 // pred_fallthru
    _
  // Predicated region
  $region10: #{recurrent_qa_head_forward.2} parent=0 // pred_check
    _
  $region11: #{recurrent_qa_head_forward.2} parent=0 // pred_check_branch
    %18 = sbr.rel (0) target = $region13
  $region12: #{recurrent_qa_head_forward.2} parent=0 // pred_region
    _
  $region13: #{recurrent_qa_head_forward.2} parent=0 // pred_fallthru
    _
  // Predicated region
  $region14: #{recurrent_qa_head_forward.2} parent=0 // pred_check
    _
  $region15: #{recurrent_qa_head_forward.2} parent=0 // pred_check_branch
    %20 = sbr.rel (0) target = $region17
  $region16: #{recurrent_qa_head_forward.2} parent=0 // pred_region
    _
  $region17: #{recurrent_qa_head_forward.2} parent=0 // pred_fallthru
    _
  // Predicated region
  $region18: #{recurrent_qa_head_forward.2} parent=0 // pred_check
    _
  $region19: #{recurrent_qa_head_forward.2} parent=0 // pred_check_branch
    %22 = sbr.rel (0) target = $region21
  $region20: #{recurrent_qa_head_forward.2} parent=0 // pred_region
    _
  $region21: #{recurrent_qa_head_forward.2} parent=0 // pred_fallthru
    _
  // Predicated region
  $region22: #{recurrent_qa_head_forward.2} parent=0 // pred_check
    _
  $region23: #{recurrent_qa_head_forward.2} parent=0 // pred_check_branch
    %24 = sbr.rel (0) target = $region25
  $region24: #{recurrent_qa_head_forward.2} parent=0 // pred_region
    _
  $region25: #{recurrent_qa_head_forward.2} parent=0 // pred_fallthru
    _
  // Predicated region
  $region26: #{recurrent_qa_head_forward.2} parent=0 // pred_check
    _
  $region27: #{recurrent_qa_head_forward.2} parent=0 // pred_check_branch
    %26 = sbr.rel (0) target = $region29
  $region28: #{recurrent_qa_head_forward.2} parent=0 // pred_region
    _
  $region29: #{recurrent_qa_head_forward.2} parent=0 // pred_fallthru
    _
  // Predicated region
  $region30: #{recurrent_qa_head_forward.2} parent=0 // pred_check
    _
  $region31: #{recurrent_qa_head_forward.2} parent=0 // pred_check_branch
    %28 = sbr.rel (0) target = $region33
  $region32: #{recurrent_qa_head_forward.2} parent=0 // pred_region
    _
  $region33: #{recurrent_qa_head_forward.2} parent=0 // pred_fallthru
    _
  %v30 = vld [vmem:[%s1] sm:$0xff]
  %v31 = vld [vmem:[%s0] sm:$0xff]
  %v32 = vld [vmem:[%s0 + $0x8] sm:$0xff]
  %v33 = vld [vmem:[%s0 + $0x10] sm:$0xff]
  %v34 = vld [vmem:[%s0 + $0x18] sm:$0xff]
  %v35 = vld [vmem:[%s0 + $0x20] sm:$0xff]
  %v36 = vld [vmem:[%s0 + $0x28] sm:$0xff]
  %v37 = vld [vmem:[%s0 + $0x30] sm:$0xff]
  %v38 = vld [vmem:[%s0 + $0x38] sm:$0xff]
  %v39 = vpack.c.bf16 %v32, %v31
  %v40 = vpack.c.bf16 %v34, %v33
  %v41 = vpack.c.bf16 %v36, %v35
  %v42 = vpack.c.bf16 %v38, %v37
  %v43 = vld [vmem:[%s2] sm:$0xf]
  %v44 = vld [vmem:[%s2 + $0x4] sm:$0xf]
  %v45 = vld [vmem:[%s2 + $0x8] sm:$0xf]
  %v46 = vld [vmem:[%s2 + $0xc] sm:$0xf]
  %v47 = vld [vmem:[%s2 + $0x10] sm:$0xf]
  %v48 = vld [vmem:[%s2 + $0x14] sm:$0xf]
  %v49 = vld [vmem:[%s2 + $0x18] sm:$0xf]
  %v50 = vld [vmem:[%s2 + $0x1c] sm:$0xf]
  %v51 = vld [vmem:[%s4] sm:$0x1]
  %v53 = vlaneseq
  %v54 = vshrl.u32 %v53, 7
  %v55 = vsub.s32 0, %v54
  %v56 = vrot.slane %v51, %v55
  %v66 = vunpack.c.l.b16 %v43
  %v67 = vunpack.c.l.b16 %v44
  %v68 = vunpack.c.l.b16 %v45
  %v69 = vunpack.c.l.b16 %v46
  %v70 = vunpack.c.l.b16 %v47
  %v71 = vunpack.c.l.b16 %v48
  %v72 = vunpack.c.l.b16 %v49
  %v73 = vunpack.c.l.b16 %v50
  %v74 = vpack.c.b16 %v67, %v66
  %v75 = vpack.c.b16 %v69, %v68
  %v76 = vpack.c.b16 %v71, %v70
  %v77 = vpack.c.b16 %v73, %v72
  %vm82 = vcmask 523264
  %v84 = vsel %vm82, %v39, 0
  %v87 = vsel %vm82, %v40, 0
  %v90 = vsel %vm82, %v41, 0
  %v93 = vsel %vm82, %v42, 0
  %95 = vmatprep.subr.bf16.mxu0 0
  %96 = vmatpush1.bf16.msra.mxu0 %v74
  %97 = vmatprep.subr.bf16.mxu0 0
  %98 = vmatpush1.bf16.msra.mxu0 %v75
  %99 = vmatprep.subr.bf16.mxu0 0
  %100 = vmatpush1.bf16.msra.mxu0 %v76
  %101 = vmatprep.subr.bf16.mxu0 0
  %102 = vmatpush1.bf16.msra.mxu0 %v77
  %103 = vmatprep.subr.bf16.mxu0 0
  %104 = vmatpush1.bf16.msra.mxu0 0
  %105 = vmatprep.subr.bf16.mxu0 0
  %106 = vmatpush1.bf16.msra.mxu0 0
  %107 = vmatprep.subr.bf16.mxu0 0
  %108 = vmatpush1.bf16.msra.mxu0 0
  %109 = vmatprep.subr.bf16.mxu0 0
  %110 = vmatpush1.bf16.msra.mxu0 0
  %111 = vmatprep.subr.bf16.mxu0 0
  %112 = vmatpush1.bf16.msra.mxu0 0
  %113 = vmatprep.subr.bf16.mxu0 0
  %114 = vmatpush1.bf16.msra.mxu0 0
  %115 = vmatprep.subr.bf16.mxu0 0
  %116 = vmatpush1.bf16.msra.mxu0 0
  %117 = vmatprep.subr.bf16.mxu0 0
  %118 = vmatpush1.bf16.msra.mxu0 0
  %119 = vmatprep.subr.bf16.mxu0 0
  %120 = vmatpush1.bf16.msra.mxu0 0
  %121 = vmatprep.subr.bf16.mxu0 0
  %122 = vmatpush1.bf16.msra.mxu0 0
  %123 = vmatprep.subr.bf16.mxu0 0
  %124 = vmatpush1.bf16.msra.mxu0 0
  %125 = vmatprep.subr.bf16.mxu0 0
  %126 = vmatpush1.bf16.msra.mxu0 0
  %127 = vmatprep.mubr.bf16.mxu0 0
  %128 = vmatmul.mubr.bf16.gmra.mrb[0].mxu0 %v84
  %v129 = vpop.f32.mrb[0].mxu0
  %v130 = vadd.f32 %v56, %v129
  %v131 = vpop.f32.mrb[0].mxu0
  %v132 = vpop.f32.mrb[0].mxu0
  %v133 = vadd.f32 %v56, %v132
  %v134 = vpop.f32.mrb[0].mxu0
  %135 = vmatprep.mubr.bf16.mxu0 0
  %136 = vmatmul.mubr.bf16.gmra.mrb[0].mxu0 %v87
  %v137 = vpop.f32.mrb[0].mxu0
  %v138 = vadd.f32 %v56, %v137
  %v139 = vpop.f32.mrb[0].mxu0
  %v140 = vpop.f32.mrb[0].mxu0
  %v141 = vadd.f32 %v56, %v140
  %v142 = vpop.f32.mrb[0].mxu0
  %143 = vmatprep.mubr.bf16.mxu0 0
  %144 = vmatmul.mubr.bf16.gmra.mrb[0].mxu0 %v90
  %v145 = vpop.f32.mrb[0].mxu0
  %v146 = vadd.f32 %v56, %v145
  %v147 = vpop.f32.mrb[0].mxu0
  %v148 = vpop.f32.mrb[0].mxu0
  %v149 = vadd.f32 %v56, %v148
  %v150 = vpop.f32.mrb[0].mxu0
  %151 = vmatprep.mubr.bf16.mxu0 0
  %152 = vmatmul.mubr.bf16.gmra.mrb[0].mxu0 %v93
  %v153 = vpop.f32.mrb[0].mxu0
  %v154 = vadd.f32 %v56, %v153
  %v155 = vpop.f32.mrb[0].mxu0
  %v156 = vpop.f32.mrb[0].mxu0
  %v157 = vadd.f32 %v56, %v156
  %v158 = vpop.f32.mrb[0].mxu0
  %159 = vdwg.mxu0
  %v160 = vld [vmem:[%s5] sm:$0xf]
  %v161 = vld [vmem:[%s5 + $0x4] sm:$0xf]
  %v162 = vld [vmem:[%s5 + $0x8] sm:$0xf]
  %v163 = vld [vmem:[%s5 + $0xc] sm:$0xf]
  %v164 = vld [vmem:[%s5 + $0x10] sm:$0xf]
  %v165 = vld [vmem:[%s5 + $0x14] sm:$0xf]
  %v166 = vld [vmem:[%s5 + $0x18] sm:$0xf]
  %v167 = vld [vmem:[%s5 + $0x1c] sm:$0xf]
  %v168 = vld [vmem:[%s7] sm:$0x1]
  %v170 = vlaneseq
  %v171 = vshrl.u32 %v170, 7
  %v172 = vsub.s32 0, %v171
  %v173 = vrot.slane %v168, %v172
  %v183 = vunpack.c.l.b16 %v160
  %v184 = vunpack.c.l.b16 %v161
  %v185 = vunpack.c.l.b16 %v162
  %v186 = vunpack.c.l.b16 %v163
  %v187 = vunpack.c.l.b16 %v164
  %v188 = vunpack.c.l.b16 %v165
  %v189 = vunpack.c.l.b16 %v166
  %v190 = vunpack.c.l.b16 %v167
  %v191 = vpack.c.b16 %v184, %v183
  %v192 = vpack.c.b16 %v186, %v185
  %v193 = vpack.c.b16 %v188, %v187
  %v194 = vpack.c.b16 %v190, %v189
  %199 = vmatprep.subr.bf16.mxu0 0
  %200 = vmatpush1.bf16.msra.mxu0 %v191
  %201 = vmatprep.subr.bf16.mxu0 0
  %202 = vmatpush1.bf16.msra.mxu0 %v192
  %203 = vmatprep.subr.bf16.mxu0 0
  %204 = vmatpush1.bf16.msra.mxu0 %v193
  %205 = vmatprep.subr.bf16.mxu0 0
  %206 = vmatpush1.bf16.msra.mxu0 %v194
  %207 = vmatprep.subr.bf16.mxu0 0
  %208 = vmatpush1.bf16.msra.mxu0 0
  %209 = vmatprep.subr.bf16.mxu0 0
  %210 = vmatpush1.bf16.msra.mxu0 0
  %211 = vmatprep.subr.bf16.mxu0 0
  %212 = vmatpush1.bf16.msra.mxu0 0
  %213 = vmatprep.subr.bf16.mxu0 0
  %214 = vmatpush1.bf16.msra.mxu0 0
  %215 = vmatprep.subr.bf16.mxu0 0
  %216 = vmatpush1.bf16.msra.mxu0 0
  %217 = vmatprep.subr.bf16.mxu0 0
  %218 = vmatpush1.bf16.msra.mxu0 0
  %219 = vmatprep.subr.bf16.mxu0 0
  %220 = vmatpush1.bf16.msra.mxu0 0
  %221 = vmatprep.subr.bf16.mxu0 0
  %222 = vmatpush1.bf16.msra.mxu0 0
  %223 = vmatprep.subr.bf16.mxu0 0
  %224 = vmatpush1.bf16.msra.mxu0 0
  %225 = vmatprep.subr.bf16.mxu0 0
  %226 = vmatpush1.bf16.msra.mxu0 0
  %227 = vmatprep.subr.bf16.mxu0 0
  %228 = vmatpush1.bf16.msra.mxu0 0
  %229 = vmatprep.subr.bf16.mxu0 0
  %230 = vmatpush1.bf16.msra.mxu0 0
  %231 = vmatprep.mubr.bf16.mxu0 0
  %232 = vmatmul.mubr.bf16.gmra.mrb[0].mxu0 %v84
  %v233 = vpop.f32.mrb[0].mxu0
  %v234 = vadd.f32 %v173, %v233
  %v235 = vpop.f32.mrb[0].mxu0
  %v236 = vpop.f32.mrb[0].mxu0
  %v237 = vadd.f32 %v173, %v236
  %v238 = vpop.f32.mrb[0].mxu0
  %239 = vmatprep.mubr.bf16.mxu0 0
  %240 = vmatmul.mubr.bf16.gmra.mrb[0].mxu0 %v87
  %v241 = vpop.f32.mrb[0].mxu0
  %v242 = vadd.f32 %v173, %v241
  %v243 = vpop.f32.mrb[0].mxu0
  %v244 = vpop.f32.mrb[0].mxu0
  %v245 = vadd.f32 %v173, %v244
  %v246 = vpop.f32.mrb[0].mxu0
  %247 = vmatprep.mubr.bf16.mxu0 0
  %248 = vmatmul.mubr.bf16.gmra.mrb[0].mxu0 %v90
  %v249 = vpop.f32.mrb[0].mxu0
  %v250 = vadd.f32 %v173, %v249
  %v251 = vpop.f32.mrb[0].mxu0
  %v252 = vpop.f32.mrb[0].mxu0
  %v253 = vadd.f32 %v173, %v252
  %v254 = vpop.f32.mrb[0].mxu0
  %255 = vmatprep.mubr.bf16.mxu0 0
  %256 = vmatmul.mubr.bf16.gmra.mrb[0].mxu0 %v93
  %v257 = vpop.f32.mrb[0].mxu0
  %v258 = vadd.f32 %v173, %v257
  %v259 = vpop.f32.mrb[0].mxu0
  %v260 = vpop.f32.mrb[0].mxu0
  %v261 = vadd.f32 %v173, %v260
  %v262 = vpop.f32.mrb[0].mxu0
  %263 = vdwg.mxu0
  %264 = vst [vmem:[#allocation2] sm:$0xff] %v130
  %265 = vst [vmem:[#allocation2 + $0x8] sm:$0xff] %v133
  %266 = vst [vmem:[#allocation2 + $0x10] sm:$0xff] %v138
  %267 = vst [vmem:[#allocation2 + $0x18] sm:$0xff] %v141
  %268 = vst [vmem:[#allocation2 + $0x20] sm:$0xff] %v146
  %269 = vst [vmem:[#allocation2 + $0x28] sm:$0xff] %v149
  %270 = vst [vmem:[#allocation2 + $0x30] sm:$0xff] %v154
  %271 = vst [vmem:[#allocation2 + $0x38] sm:$0xff] %v157
  %272 = vst [vmem:[#allocation3] sm:$0xff] %v234
  %273 = vst [vmem:[#allocation3 + $0x8] sm:$0xff] %v237
  %274 = vst [vmem:[#allocation3 + $0x10] sm:$0xff] %v242
  %275 = vst [vmem:[#allocation3 + $0x18] sm:$0xff] %v245
  %276 = vst [vmem:[#allocation3 + $0x20] sm:$0xff] %v250
  %277 = vst [vmem:[#allocation3 + $0x28] sm:$0xff] %v253
  %278 = vst [vmem:[#allocation3 + $0x30] sm:$0xff] %v258
  %279 = vst [vmem:[#allocation3 + $0x38] sm:$0xff] %v261
  %vm280 = vcmask 261120
  %281 = vst.msk [vmem:[#allocation4] sm:$0xff] %vm280, 0.0
  %282 = vst.msk [vmem:[#allocation5] sm:$0xff] %vm280, 0.0
  %283 = vst.msk [vmem:[#allocation6] sm:$0xff] %vm280, 0.0
  %284 = vst.msk [vmem:[#allocation7] sm:$0xff] %vm280, 0.0
  %v285 = vld [vmem:[#allocation4] sm:$0xff]
  %v286 = vpack.c.bf16 %v285, %v285
  %v287 = vld [vmem:[%s3] sm:$0xf]
  %v288 = vld [vmem:[%s3 + $0x4] sm:$0xf]
  %v289 = vld [vmem:[%s3 + $0x8] sm:$0xf]
  %v290 = vld [vmem:[%s3 + $0xc] sm:$0xf]
  %v295 = vunpack.c.l.b16 %v287
  %v296 = vunpack.c.l.b16 %v288
  %v297 = vunpack.c.l.b16 %v289
  %v298 = vunpack.c.l.b16 %v290
  %v299 = vpack.c.b16 %v296, %v295
  %v300 = vpack.c.b16 %v298, %v297
  %v304 = vsel %vm280, %v286, 0
  %306 = vmatprep.subr.bf16.mxu0 0
  %307 = vmatpush1.bf16.msra.mxu0 %v299
  %308 = vmatprep.subr.bf16.mxu0 0
  %309 = vmatpush1.bf16.msra.mxu0 %v300
  %310 = vmatprep.subr.bf16.mxu0 0
  %311 = vmatpush1.bf16.msra.mxu0 0
  %312 = vmatprep.subr.bf16.mxu0 0
  %313 = vmatpush1.bf16.msra.mxu0 0
  %314 = vmatprep.subr.bf16.mxu0 0
  %315 = vmatpush1.bf16.msra.mxu0 0
  %316 = vmatprep.subr.bf16.mxu0 0
  %317 = vmatpush1.bf16.msra.mxu0 0
  %318 = vmatprep.subr.bf16.mxu0 0
  %319 = vmatpush1.bf16.msra.mxu0 0
  %320 = vmatprep.subr.bf16.mxu0 0
  %321 = vmatpush1.bf16.msra.mxu0 0
  %322 = vmatprep.subr.bf16.mxu0 0
  %323 = vmatpush1.bf16.msra.mxu0 0
  %324 = vmatprep.subr.bf16.mxu0 0
  %325 = vmatpush1.bf16.msra.mxu0 0
  %326 = vmatprep.subr.bf16.mxu0 0
  %327 = vmatpush1.bf16.msra.mxu0 0
  %328 = vmatprep.subr.bf16.mxu0 0
  %329 = vmatpush1.bf16.msra.mxu0 0
  %330 = vmatprep.subr.bf16.mxu0 0
  %331 = vmatpush1.bf16.msra.mxu0 0
  %332 = vmatprep.subr.bf16.mxu0 0
  %333 = vmatpush1.bf16.msra.mxu0 0
  %334 = vmatprep.subr.bf16.mxu0 0
  %335 = vmatpush1.bf16.msra.mxu0 0
  %336 = vmatprep.subr.bf16.mxu0 0
  %337 = vmatpush1.bf16.msra.mxu0 0
  %338 = vmatprep.mubr.bf16.mxu0 0
  %339 = vmatmul.mubr.bf16.gmra.mrb[0].mxu0 %v304
  %v340 = vpop.f32.mrb[0].mxu0
  %v341 = vadd.f32 0.0, %v340
  %v342 = vpop.f32.mrb[0].mxu0
  %v343 = vpop.f32.mrb[0].mxu0
  %v344 = vpop.f32.mrb[0].mxu0
  %345 = vdwg.mxu0
  %v346 = vld [vmem:[#allocation6] sm:$0xff]
  %v347 = vpack.c.bf16 %v346, %v346
  %v348 = vld [vmem:[%s6] sm:$0xf]
  %v349 = vld [vmem:[%s6 + $0x4] sm:$0xf]
  %v350 = vld [vmem:[%s6 + $0x8] sm:$0xf]
  %v351 = vld [vmem:[%s6 + $0xc] sm:$0xf]
  %v356 = vunpack.c.l.b16 %v348
  %v357 = vunpack.c.l.b16 %v349
  %v358 = vunpack.c.l.b16 %v350
  %v359 = vunpack.c.l.b16 %v351
  %v360 = vpack.c.b16 %v357, %v356
  %v361 = vpack.c.b16 %v359, %v358
  %v365 = vsel %vm280, %v347, 0
  %367 = vmatprep.subr.bf16.mxu0 0
  %368 = vmatpush1.bf16.msra.mxu0 %v360
  %369 = vmatprep.subr.bf16.mxu0 0
  %370 = vmatpush1.bf16.msra.mxu0 %v361
  %371 = vmatprep.subr.bf16.mxu0 0
  %372 = vmatpush1.bf16.msra.mxu0 0
  %373 = vmatprep.subr.bf16.mxu0 0
  %374 = vmatpush1.bf16.msra.mxu0 0
  %375 = vmatprep.subr.bf16.mxu0 0
  %376 = vmatpush1.bf16.msra.mxu0 0
  %377 = vmatprep.subr.bf16.mxu0 0
  %378 = vmatpush1.bf16.msra.mxu0 0
  %379 = vmatprep.subr.bf16.mxu0 0
  %380 = vmatpush1.bf16.msra.mxu0 0
  %381 = vmatprep.subr.bf16.mxu0 0
  %382 = vmatpush1.bf16.msra.mxu0 0
  %383 = vmatprep.subr.bf16.mxu0 0
  %384 = vmatpush1.bf16.msra.mxu0 0
  %385 = vmatprep.subr.bf16.mxu0 0
  %386 = vmatpush1.bf16.msra.mxu0 0
  %387 = vmatprep.subr.bf16.mxu0 0
  %388 = vmatpush1.bf16.msra.mxu0 0
  %389 = vmatprep.subr.bf16.mxu0 0
  %390 = vmatpush1.bf16.msra.mxu0 0
  %391 = vmatprep.subr.bf16.mxu0 0
  %392 = vmatpush1.bf16.msra.mxu0 0
  %393 = vmatprep.subr.bf16.mxu0 0
  %394 = vmatpush1.bf16.msra.mxu0 0
  %395 = vmatprep.subr.bf16.mxu0 0
  %396 = vmatpush1.bf16.msra.mxu0 0
  %397 = vmatprep.subr.bf16.mxu0 0
  %398 = vmatpush1.bf16.msra.mxu0 0
  %399 = vmatprep.mubr.bf16.mxu0 0
  %400 = vmatmul.mubr.bf16.gmra.mrb[0].mxu0 %v365
  %v401 = vpop.f32.mrb[0].mxu0
  %v402 = vadd.f32 0.0, %v401
  %v403 = vpop.f32.mrb[0].mxu0
  %v404 = vpop.f32.mrb[0].mxu0
  %v405 = vpop.f32.mrb[0].mxu0
  %406 = vdwg.mxu0
  %v407 = vld [vmem:[#allocation2] sm:$0xff]
  %v408 = vadd.f32 %v407, %v341
  %v409 = vld [vmem:[#allocation5] sm:$0xff]
  %v410 = vxor.u32 %v408, 2147483648
  %v411 = vmul.f32 %v410, 1.442695
  %v412 = vpow.pop %v411
  %v413 = vadd.f32 %v412, 1.0
  %v414 = vrcp.pop %v413
  %v415 = vmul.f32 1.0, %v414
  %v416 = vtanh.pop %v408
  %418 = vrot.lane.b32.xlu0 %v409, 32
  %v419 = vpop.permute.xlu0 %418
  %v421 = vmul.f32 %v415, %v419
  %423 = vrot.lane.b32.xlu0 %v416, 64
  %v424 = vpop.permute.xlu0 %423
  %v426 = vmul.f32 %v415, %v424
  %428 = vrot.lane.b32.xlu0 %v426, 32
  %v429 = vpop.permute.xlu0 %428
  %v431 = vadd.f32 %v421, %v429
  %v432 = vtanh.pop %v431
  %434 = vrot.lane.b32.xlu0 %v432, 64
  %v435 = vpop.permute.xlu0 %434
  %v437 = vmul.f32 %v415, %v435
  %s438 = scalar_lea.vmem [#allocation3], 56
  %v439 = vld [vmem:[%s438] sm:$0xff]
  %v440 = vadd.f32 %v439, %v402
  %v441 = vld [vmem:[#allocation7] sm:$0xff]
  %v442 = vxor.u32 %v440, 2147483648
  %v443 = vmul.f32 %v442, 1.442695
  %v444 = vpow.pop %v443
  %v445 = vadd.f32 %v444, 1.0
  %v446 = vrcp.pop %v445
  %v447 = vmul.f32 1.0, %v446
  %v448 = vtanh.pop %v440
  %450 = vrot.lane.b32.xlu0 %v441, 32
  %v451 = vpop.permute.xlu0 %450
  %v453 = vmul.f32 %v447, %v451
  %455 = vrot.lane.b32.xlu0 %v448, 64
  %v456 = vpop.permute.xlu0 %455
  %v458 = vmul.f32 %v447, %v456
  %460 = vrot.lane.b32.xlu0 %v458, 32
  %v461 = vpop.permute.xlu0 %460
  %v463 = vadd.f32 %v453, %v461
  %v464 = vtanh.pop %v463
  %466 = vrot.lane.b32.xlu0 %v464, 64
  %v467 = vpop.permute.xlu0 %466
  %v469 = vmul.f32 %v447, %v467
  %vm470 = vcmp.gt.s32.totalorder %v30, 0
  %vm471 = vcmp.gt.s32.totalorder %v30, 7
  %v472 = vsel %vm470, 1, 0
  %473 = vset.pattern.permute.xlu0 0
  %474 = vperm.xlu0 %473, %v472
  %v475 = vpop.permute.xlu0 %474
  %vm476 = vcmp.eq.s32.totalorder %v475, 1
  %478 = vrot.lane.b32.xlu0 %v285, 96
  %v479 = vpop.permute.xlu0 %478
  %v481 = vsel %vm476, %v437, %v479
  %483 = vrot.lane.b32.xlu0 %v481, 32
  %v484 = vpop.permute.xlu0 %483
  %486 = vst.msk [vmem:[#allocation4] sm:$0xff] %vm280, %v484
  %v487 = vld [vmem:[#allocation5] sm:$0xff]
  %489 = vrot.lane.b32.xlu0 %v487, 32
  %v490 = vpop.permute.xlu0 %489
  %v492 = vsel %vm476, %v431, %v490
  %494 = vrot.lane.b32.xlu0 %v492, 96
  %v495 = vpop.permute.xlu0 %494
  %497 = vst.msk [vmem:[#allocation5] sm:$0xff] %vm280, %v495
  %v498 = vld [vmem:[#allocation6] sm:$0xff]
  %v499 = vsel %vm471, 1, 0
  %500 = vset.pattern.permute.xlu0 0
  %501 = vperm.xlu0 %500, %v499
  %v502 = vpop.permute.xlu0 %501
  %vm503 = vcmp.eq.s32.totalorder %v502, 1
  %505 = vrot.lane.b32.xlu0 %v498, 96
  %v506 = vpop.permute.xlu0 %505
  %v508 = vsel %vm503, %v469, %v506
  %510 = vrot.lane.b32.xlu0 %v508, 32
  %v511 = vpop.permute.xlu0 %510
  %513 = vst.msk [vmem:[#allocation6] sm:$0xff] %vm280, %v511
  %v514 = vld [vmem:[#allocation7] sm:$0xff]
  %516 = vrot.lane.b32.xlu0 %v514, 32
  %v517 = vpop.permute.xlu0 %516
  %v519 = vsel %vm503, %v463, %v517
  %521 = vrot.lane.b32.xlu0 %v519, 96
  %v522 = vpop.permute.xlu0 %521
  %524 = vst.msk [vmem:[#allocation7] sm:$0xff] %vm280, %v522
  %v525 = vsel %vm476, %v437, 0.0
  %527 = vrot.lane.b32.xlu0 %v525, 32
  %v528 = vpop.permute.xlu0 %527
  %530 = vst.msk [vmem:[#allocation8] sm:$0xff] %vm280, %v528
  %v531 = vsel %vm503, %v469, 0.0
  %533 = vrot.lane.b32.xlu0 %v531, 32
  %v534 = vpop.permute.xlu0 %533
  %s536 = scalar_lea.vmem [#allocation9], 56
  %537 = vst.msk [vmem:[%s536] sm:$0xff] %vm280, %v534
  %v538 = vld [vmem:[#allocation4] sm:$0xff]
  %v539 = vpack.c.bf16 %v538, %v538
  %v540 = vld [vmem:[%s3] sm:$0xf]
  %v541 = vld [vmem:[%s3 + $0x4] sm:$0xf]
  %v542 = vld [vmem:[%s3 + $0x8] sm:$0xf]
  %v543 = vld [vmem:[%s3 + $0xc] sm:$0xf]
  %v548 = vunpack.c.l.b16 %v540
  %v549 = vunpack.c.l.b16 %v541
  %v550 = vunpack.c.l.b16 %v542
  %v551 = vunpack.c.l.b16 %v543
  %v552 = vpack.c.b16 %v549, %v548
  %v553 = vpack.c.b16 %v551, %v550
  %v557 = vsel %vm280, %v539, 0
  %559 = vmatprep.subr.bf16.mxu0 0
  %560 = vmatpush1.bf16.msra.mxu0 %v552
  %561 = vmatprep.subr.bf16.mxu0 0
  %562 = vmatpush1.bf16.msra.mxu0 %v553
  %563 = vmatprep.subr.bf16.mxu0 0
  %564 = vmatpush1.bf16.msra.mxu0 0
  %565 = vmatprep.subr.bf16.mxu0 0
  %566 = vmatpush1.bf16.msra.mxu0 0
  %567 = vmatprep.subr.bf16.mxu0 0
  %568 = vmatpush1.bf16.msra.mxu0 0
  %569 = vmatprep.subr.bf16.mxu0 0
  %570 = vmatpush1.bf16.msra.mxu0 0
  %571 = vmatprep.subr.bf16.mxu0 0
  %572 = vmatpush1.bf16.msra.mxu0 0
  %573 = vmatprep.subr.bf16.mxu0 0
  %574 = vmatpush1.bf16.msra.mxu0 0
  %575 = vmatprep.subr.bf16.mxu0 0
  %576 = vmatpush1.bf16.msra.mxu0 0
  %577 = vmatprep.subr.bf16.mxu0 0
  %578 = vmatpush1.bf16.msra.mxu0 0
  %579 = vmatprep.subr.bf16.mxu0 0
  %580 = vmatpush1.bf16.msra.mxu0 0
  %581 = vmatprep.subr.bf16.mxu0 0
  %582 = vmatpush1.bf16.msra.mxu0 0
  %583 = vmatprep.subr.bf16.mxu0 0
  %584 = vmatpush1.bf16.msra.mxu0 0
  %585 = vmatprep.subr.bf16.mxu0 0
  %586 = vmatpush1.bf16.msra.mxu0 0
  %587 = vmatprep.subr.bf16.mxu0 0
  %588 = vmatpush1.bf16.msra.mxu0 0
  %589 = vmatprep.subr.bf16.mxu0 0
  %590 = vmatpush1.bf16.msra.mxu0 0
  %591 = vmatprep.mubr.bf16.mxu0 0
  %592 = vmatmul.mubr.bf16.gmra.mrb[0].mxu0 %v557
  %v593 = vpop.f32.mrb[0].mxu0
  %v594 = vadd.f32 0.0, %v593
  %v595 = vpop.f32.mrb[0].mxu0
  %v596 = vpop.f32.mrb[0].mxu0
  %v597 = vpop.f32.mrb[0].mxu0
  %598 = vdwg.mxu0
  %v599 = vld [vmem:[#allocation6] sm:$0xff]
  %v600 = vpack.c.bf16 %v599, %v599
  %v601 = vld [vmem:[%s6] sm:$0xf]
  %v602 = vld [vmem:[%s6 + $0x4] sm:$0xf]
  %v603 = vld [vmem:[%s6 + $0x8] sm:$0xf]
  %v604 = vld [vmem:[%s6 + $0xc] sm:$0xf]
  %v609 = vunpack.c.l.b16 %v601
  %v610 = vunpack.c.l.b16 %v602
  %v611 = vunpack.c.l.b16 %v603
  %v612 = vunpack.c.l.b16 %v604
  %v613 = vpack.c.b16 %v610, %v609
  %v614 = vpack.c.b16 %v612, %v611
  %v618 = vsel %vm280, %v600, 0
  %620 = vmatprep.subr.bf16.mxu0 0
  %621 = vmatpush1.bf16.msra.mxu0 %v613
  %622 = vmatprep.subr.bf16.mxu0 0
  %623 = vmatpush1.bf16.msra.mxu0 %v614
  %624 = vmatprep.subr.bf16.mxu0 0
  %625 = vmatpush1.bf16.msra.mxu0 0
  %626 = vmatprep.subr.bf16.mxu0 0
  %627 = vmatpush1.bf16.msra.mxu0 0
  %628 = vmatprep.subr.bf16.mxu0 0
  %629 = vmatpush1.bf16.msra.mxu0 0
  %630 = vmatprep.subr.bf16.mxu0 0
  %631 = vmatpush1.bf16.msra.mxu0 0
  %632 = vmatprep.subr.bf16.mxu0 0
  %633 = vmatpush1.bf16.msra.mxu0 0
  %634 = vmatprep.subr.bf16.mxu0 0
  %635 = vmatpush1.bf16.msra.mxu0 0
  %636 = vmatprep.subr.bf16.mxu0 0
  %637 = vmatpush1.bf16.msra.mxu0 0
  %638 = vmatprep.subr.bf16.mxu0 0
  %639 = vmatpush1.bf16.msra.mxu0 0
  %640 = vmatprep.subr.bf16.mxu0 0
  %641 = vmatpush1.bf16.msra.mxu0 0
  %642 = vmatprep.subr.bf16.mxu0 0
  %643 = vmatpush1.bf16.msra.mxu0 0
  %644 = vmatprep.subr.bf16.mxu0 0
  %645 = vmatpush1.bf16.msra.mxu0 0
  %646 = vmatprep.subr.bf16.mxu0 0
  %647 = vmatpush1.bf16.msra.mxu0 0
  %648 = vmatprep.subr.bf16.mxu0 0
  %649 = vmatpush1.bf16.msra.mxu0 0
  %650 = vmatprep.subr.bf16.mxu0 0
  %651 = vmatpush1.bf16.msra.mxu0 0
  %652 = vmatprep.mubr.bf16.mxu0 0
  %653 = vmatmul.mubr.bf16.gmra.mrb[0].mxu0 %v618
  %v654 = vpop.f32.mrb[0].mxu0
  %v655 = vadd.f32 0.0, %v654
  %v656 = vpop.f32.mrb[0].mxu0
  %v657 = vpop.f32.mrb[0].mxu0
  %v658 = vpop.f32.mrb[0].mxu0
  %659 = vdwg.mxu0
  %s660 = scalar_lea.vmem [#allocation2], 8
  %v661 = vld [vmem:[%s660] sm:$0xff]
  %v662 = vadd.f32 %v661, %v594
  %v663 = vld [vmem:[#allocation5] sm:$0xff]
  %v664 = vxor.u32 %v662, 2147483648
  %v665 = vmul.f32 %v664, 1.442695
  %v666 = vpow.pop %v665
  %v667 = vadd.f32 %v666, 1.0
  %v668 = vrcp.pop %v667
  %v669 = vmul.f32 1.0, %v668
  %v670 = vtanh.pop %v662
  %672 = vrot.lane.b32.xlu0 %v663, 32
  %v673 = vpop.permute.xlu0 %672
  %v675 = vmul.f32 %v669, %v673
  %677 = vrot.lane.b32.xlu0 %v670, 64
  %v678 = vpop.permute.xlu0 %677
  %v680 = vmul.f32 %v669, %v678
  %682 = vrot.lane.b32.xlu0 %v680, 32
  %v683 = vpop.permute.xlu0 %682
  %v685 = vadd.f32 %v675, %v683
  %v686 = vtanh.pop %v685
  %688 = vrot.lane.b32.xlu0 %v686, 64
  %v689 = vpop.permute.xlu0 %688
  %v691 = vmul.f32 %v669, %v689
  %s692 = scalar_lea.vmem [#allocation3], 48
  %v693 = vld [vmem:[%s692] sm:$0xff]
  %v694 = vadd.f32 %v693, %v655
  %v695 = vld [vmem:[#allocation7] sm:$0xff]
  %v696 = vxor.u32 %v694, 2147483648
  %v697 = vmul.f32 %v696, 1.442695
  %v698 = vpow.pop %v697
  %v699 = vadd.f32 %v698, 1.0
  %v700 = vrcp.pop %v699
  %v701 = vmul.f32 1.0, %v700
  %v702 = vtanh.pop %v694
  %704 = vrot.lane.b32.xlu0 %v695, 32
  %v705 = vpop.permute.xlu0 %704
  %v707 = vmul.f32 %v701, %v705
  %709 = vrot.lane.b32.xlu0 %v702, 64
  %v710 = vpop.permute.xlu0 %709
  %v712 = vmul.f32 %v701, %v710
  %714 = vrot.lane.b32.xlu0 %v712, 32
  %v715 = vpop.permute.xlu0 %714
  %v717 = vadd.f32 %v707, %v715
  %v718 = vtanh.pop %v717
  %720 = vrot.lane.b32.xlu0 %v718, 64
  %v721 = vpop.permute.xlu0 %720
  %v723 = vmul.f32 %v701, %v721
  %vm724 = vcmp.gt.s32.totalorder %v30, 1
  %vm725 = vcmp.gt.s32.totalorder %v30, 6
  %v726 = vsel %vm724, 1, 0
  %727 = vset.pattern.permute.xlu0 0
  %728 = vperm.xlu0 %727, %v726
  %v729 = vpop.permute.xlu0 %728
  %vm730 = vcmp.eq.s32.totalorder %v729, 1
  %732 = vrot.lane.b32.xlu0 %v538, 96
  %v733 = vpop.permute.xlu0 %732
  %v735 = vsel %vm730, %v691, %v733
  %737 = vrot.lane.b32.xlu0 %v735, 32
  %v738 = vpop.permute.xlu0 %737
  %740 = vst.msk [vmem:[#allocation4] sm:$0xff] %vm280, %v738
  %v741 = vld [vmem:[#allocation5] sm:$0xff]
  %743 = vrot.lane.b32.xlu0 %v741, 32
  %v744 = vpop.permute.xlu0 %743
  %v746 = vsel %vm730, %v685, %v744
  %748 = vrot.lane.b32.xlu0 %v746, 96
  %v749 = vpop.permute.xlu0 %748
  %751 = vst.msk [vmem:[#allocation5] sm:$0xff] %vm280, %v749
  %v752 = vld [vmem:[#allocation6] sm:$0xff]
  %v753 = vsel %vm725, 1, 0
  %754 = vset.pattern.permute.xlu0 0
  %755 = vperm.xlu0 %754, %v753
  %v756 = vpop.permute.xlu0 %755
  %vm757 = vcmp.eq.s32.totalorder %v756, 1
  %759 = vrot.lane.b32.xlu0 %v752, 96
  %v760 = vpop.permute.xlu0 %759
  %v762 = vsel %vm757, %v723, %v760
  %764 = vrot.lane.b32.xlu0 %v762, 32
  %v765 = vpop.permute.xlu0 %764
  %767 = vst.msk [vmem:[#allocation6] sm:$0xff] %vm280, %v765
  %v768 = vld [vmem:[#allocation7] sm:$0xff]
  %770 = vrot.lane.b32.xlu0 %v768, 32
  %v771 = vpop.permute.xlu0 %770
  %v773 = vsel %vm757, %v717, %v771
  %775 = vrot.lane.b32.xlu0 %v773, 96
  %v776 = vpop.permute.xlu0 %775
  %778 = vst.msk [vmem:[#allocation7] sm:$0xff] %vm280, %v776
  %v779 = vsel %vm730, %v691, 0.0
  %781 = vrot.lane.b32.xlu0 %v779, 32
  %v782 = vpop.permute.xlu0 %781
  %s784 = scalar_lea.vmem [#allocation8], 8
  %785 = vst.msk [vmem:[%s784] sm:$0xff] %vm280, %v782
  %v786 = vsel %vm757, %v723, 0.0
  %788 = vrot.lane.b32.xlu0 %v786, 32
  %v789 = vpop.permute.xlu0 %788
  %s791 = scalar_lea.vmem [#allocation9], 48
  %792 = vst.msk [vmem:[%s791] sm:$0xff] %vm280, %v789
  %v793 = vld [vmem:[#allocation4] sm:$0xff]
  %v794 = vpack.c.bf16 %v793, %v793
  %v795 = vld [vmem:[%s3] sm:$0xf]
  %v796 = vld [vmem:[%s3 + $0x4] sm:$0xf]
  %v797 = vld [vmem:[%s3 + $0x8] sm:$0xf]
  %v798 = vld [vmem:[%s3 + $0xc] sm:$0xf]
  %v803 = vunpack.c.l.b16 %v795
  %v804 = vunpack.c.l.b16 %v796
  %v805 = vunpack.c.l.b16 %v797
  %v806 = vunpack.c.l.b16 %v798
  %v807 = vpack.c.b16 %v804, %v803
  %v808 = vpack.c.b16 %v806, %v805
  %v812 = vsel %vm280, %v794, 0
  %814 = vmatprep.subr.bf16.mxu0 0
  %815 = vmatpush1.bf16.msra.mxu0 %v807
  %816 = vmatprep.subr.bf16.mxu0 0
  %817 = vmatpush1.bf16.msra.mxu0 %v808
  %818 = vmatprep.subr.bf16.mxu0 0
  %819 = vmatpush1.bf16.msra.mxu0 0
  %820 = vmatprep.subr.bf16.mxu0 0
  %821 = vmatpush1.bf16.msra.mxu0 0
  %822 = vmatprep.subr.bf16.mxu0 0
  %823 = vmatpush1.bf16.msra.mxu0 0
  %824 = vmatprep.subr.bf16.mxu0 0
  %825 = vmatpush1.bf16.msra.mxu0 0
  %826 = vmatprep.subr.bf16.mxu0 0
  %827 = vmatpush1.bf16.msra.mxu0 0
  %828 = vmatprep.subr.bf16.mxu0 0
  %829 = vmatpush1.bf16.msra.mxu0 0
  %830 = vmatprep.subr.bf16.mxu0 0
  %831 = vmatpush1.bf16.msra.mxu0 0
  %832 = vmatprep.subr.bf16.mxu0 0
  %833 = vmatpush1.bf16.msra.mxu0 0
  %834 = vmatprep.subr.bf16.mxu0 0
  %835 = vmatpush1.bf16.msra.mxu0 0
  %836 = vmatprep.subr.bf16.mxu0 0
  %837 = vmatpush1.bf16.msra.mxu0 0
  %838 = vmatprep.subr.bf16.mxu0 0
  %839 = vmatpush1.bf16.msra.mxu0 0
  %840 = vmatprep.subr.bf16.mxu0 0
  %841 = vmatpush1.bf16.msra.mxu0 0
  %842 = vmatprep.subr.bf16.mxu0 0
  %843 = vmatpush1.bf16.msra.mxu0 0
  %844 = vmatprep.subr.bf16.mxu0 0
  %845 = vmatpush1.bf16.msra.mxu0 0
  %846 = vmatprep.mubr.bf16.mxu0 0
  %847 = vmatmul.mubr.bf16.gmra.mrb[0].mxu0 %v812
  %v848 = vpop.f32.mrb[0].mxu0
  %v849 = vadd.f32 0.0, %v848
  %v850 = vpop.f32.mrb[0].mxu0
  %v851 = vpop.f32.mrb[0].mxu0
  %v852 = vpop.f32.mrb[0].mxu0
  %853 = vdwg.mxu0
  %v854 = vld [vmem:[#allocation6] sm:$0xff]
  %v855 = vpack.c.bf16 %v854, %v854
  %v856 = vld [vmem:[%s6] sm:$0xf]
  %v857 = vld [vmem:[%s6 + $0x4] sm:$0xf]
  %v858 = vld [vmem:[%s6 + $0x8] sm:$0xf]
  %v859 = vld [vmem:[%s6 + $0xc] sm:$0xf]
  %v864 = vunpack.c.l.b16 %v856
  %v865 = vunpack.c.l.b16 %v857
  %v866 = vunpack.c.l.b16 %v858
  %v867 = vunpack.c.l.b16 %v859
  %v868 = vpack.c.b16 %v865, %v864
  %v869 = vpack.c.b16 %v867, %v866
  %v873 = vsel %vm280, %v855, 0
  %875 = vmatprep.subr.bf16.mxu0 0
  %876 = vmatpush1.bf16.msra.mxu0 %v868
  %877 = vmatprep.subr.bf16.mxu0 0
  %878 = vmatpush1.bf16.msra.mxu0 %v869
  %879 = vmatprep.subr.bf16.mxu0 0
  %880 = vmatpush1.bf16.msra.mxu0 0
  %881 = vmatprep.subr.bf16.mxu0 0
  %882 = vmatpush1.bf16.msra.mxu0 0
  %883 = vmatprep.subr.bf16.mxu0 0
  %884 = vmatpush1.bf16.msra.mxu0 0
  %885 = vmatprep.subr.bf16.mxu0 0
  %886 = vmatpush1.bf16.msra.mxu0 0
  %887 = vmatprep.subr.bf16.mxu0 0
  %888 = vmatpush1.bf16.msra.mxu0 0
  %889 = vmatprep.subr.bf16.mxu0 0
  %890 = vmatpush1.bf16.msra.mxu0 0
  %891 = vmatprep.subr.bf16.mxu0 0
  %892 = vmatpush1.bf16.msra.mxu0 0
  %893 = vmatprep.subr.bf16.mxu0 0
  %894 = vmatpush1.bf16.msra.mxu0 0
  %895 = vmatprep.subr.bf16.mxu0 0
  %896 = vmatpush1.bf16.msra.mxu0 0
  %897 = vmatprep.subr.bf16.mxu0 0
  %898 = vmatpush1.bf16.msra.mxu0 0
  %899 = vmatprep.subr.bf16.mxu0 0
  %900 = vmatpush1.bf16.msra.mxu0 0
  %901 = vmatprep.subr.bf16.mxu0 0
  %902 = vmatpush1.bf16.msra.mxu0 0
  %903 = vmatprep.subr.bf16.mxu0 0
  %904 = vmatpush1.bf16.msra.mxu0 0
  %905 = vmatprep.subr.bf16.mxu0 0
  %906 = vmatpush1.bf16.msra.mxu0 0
  %907 = vmatprep.mubr.bf16.mxu0 0
  %908 = vmatmul.mubr.bf16.gmra.mrb[0].mxu0 %v873
  %v909 = vpop.f32.mrb[0].mxu0
  %v910 = vadd.f32 0.0, %v909
  %v911 = vpop.f32.mrb[0].mxu0
  %v912 = vpop.f32.mrb[0].mxu0
  %v913 = vpop.f32.mrb[0].mxu0
  %914 = vdwg.mxu0
  %s915 = scalar_lea.vmem [#allocation2], 16
  %v916 = vld [vmem:[%s915] sm:$0xff]
  %v917 = vadd.f32 %v916, %v849
  %v918 = vld [vmem:[#allocation5] sm:$0xff]
  %v919 = vxor.u32 %v917, 2147483648
  %v920 = vmul.f32 %v919, 1.442695
  %v921 = vpow.pop %v920
  %v922 = vadd.f32 %v921, 1.0
  %v923 = vrcp.pop %v922
  %v924 = vmul.f32 1.0, %v923
  %v925 = vtanh.pop %v917
  %927 = vrot.lane.b32.xlu0 %v918, 32
  %v928 = vpop.permute.xlu0 %927
  %v930 = vmul.f32 %v924, %v928
  %932 = vrot.lane.b32.xlu0 %v925, 64
  %v933 = vpop.permute.xlu0 %932
  %v935 = vmul.f32 %v924, %v933
  %937 = vrot.lane.b32.xlu0 %v935, 32
  %v938 = vpop.permute.xlu0 %937
  %v940 = vadd.f32 %v930, %v938
  %v941 = vtanh.pop %v940
  %943 = vrot.lane.b32.xlu0 %v941, 64
  %v944 = vpop.permute.xlu0 %943
  %v946 = vmul.f32 %v924, %v944
  %s947 = scalar_lea.vmem [#allocation3], 40
  %v948 = vld [vmem:[%s947] sm:$0xff]
  %v949 = vadd.f32 %v948, %v910
  %v950 = vld [vmem:[#allocation7] sm:$0xff]
  %v951 = vxor.u32 %v949, 2147483648
  %v952 = vmul.f32 %v951, 1.442695
  %v953 = vpow.pop %v952
  %v954 = vadd.f32 %v953, 1.0
  %v955 = vrcp.pop %v954
  %v956 = vmul.f32 1.0, %v955
  %v957 = vtanh.pop %v949
  %959 = vrot.lane.b32.xlu0 %v950, 32
  %v960 = vpop.permute.xlu0 %959
  %v962 = vmul.f32 %v956, %v960
  %964 = vrot.lane.b32.xlu0 %v957, 64
  %v965 = vpop.permute.xlu0 %964
  %v967 = vmul.f32 %v956, %v965
  %969 = vrot.lane.b32.xlu0 %v967, 32
  %v970 = vpop.permute.xlu0 %969
  %v972 = vadd.f32 %v962, %v970
  %v973 = vtanh.pop %v972
  %975 = vrot.lane.b32.xlu0 %v973, 64
  %v976 = vpop.permute.xlu0 %975
  %v978 = vmul.f32 %v956, %v976
  %vm979 = vcmp.gt.s32.totalorder %v30, 2
  %vm980 = vcmp.gt.s32.totalorder %v30, 5
  %v981 = vsel %vm979, 1, 0
  %982 = vset.pattern.permute.xlu0 0
  %983 = vperm.xlu0 %982, %v981
  %v984 = vpop.permute.xlu0 %983
  %vm985 = vcmp.eq.s32.totalorder %v984, 1
  %987 = vrot.lane.b32.xlu0 %v793, 96
  %v988 = vpop.permute.xlu0 %987
  %v990 = vsel %vm985, %v946, %v988
  %992 = vrot.lane.b32.xlu0 %v990, 32
  %v993 = vpop.permute.xlu0 %992
  %995 = vst.msk [vmem:[#allocation4] sm:$0xff] %vm280, %v993
  %v996 = vld [vmem:[#allocation5] sm:$0xff]
  %998 = vrot.lane.b32.xlu0 %v996, 32
  %v999 = vpop.permute.xlu0 %998
  %v1001 = vsel %vm985, %v940, %v999
  %1003 = vrot.lane.b32.xlu0 %v1001, 96
  %v1004 = vpop.permute.xlu0 %1003
  %1006 = vst.msk [vmem:[#allocation5] sm:$0xff] %vm280, %v1004
  %v1007 = vld [vmem:[#allocation6] sm:$0xff]
  %v1008 = vsel %vm980, 1, 0
  %1009 = vset.pattern.permute.xlu0 0
  %1010 = vperm.xlu0 %1009, %v1008
  %v1011 = vpop.permute.xlu0 %1010
  %vm1012 = vcmp.eq.s32.totalorder %v1011, 1
  %1014 = vrot.lane.b32.xlu0 %v1007, 96
  %v1015 = vpop.permute.xlu0 %1014
  %v1017 = vsel %vm1012, %v978, %v1015
  %1019 = vrot.lane.b32.xlu0 %v1017, 32
  %v1020 = vpop.permute.xlu0 %1019
  %1022 = vst.msk [vmem:[#allocation6] sm:$0xff] %vm280, %v1020
  %v1023 = vld [vmem:[#allocation7] sm:$0xff]
  %1025 = vrot.lane.b32.xlu0 %v1023, 32
  %v1026 = vpop.permute.xlu0 %1025
  %v1028 = vsel %vm1012, %v972, %v1026
  %1030 = vrot.lane.b32.xlu0 %v1028, 96
  %v1031 = vpop.permute.xlu0 %1030
  %1033 = vst.msk [vmem:[#allocation7] sm:$0xff] %vm280, %v1031
  %v1034 = vsel %vm985, %v946, 0.0
  %1036 = vrot.lane.b32.xlu0 %v1034, 32
  %v1037 = vpop.permute.xlu0 %1036
  %s1039 = scalar_lea.vmem [#allocation8], 16
  %1040 = vst.msk [vmem:[%s1039] sm:$0xff] %vm280, %v1037
  %v1041 = vsel %vm1012, %v978, 0.0
  %1043 = vrot.lane.b32.xlu0 %v1041, 32
  %v1044 = vpop.permute.xlu0 %1043
  %s1046 = scalar_lea.vmem [#allocation9], 40
  %1047 = vst.msk [vmem:[%s1046] sm:$0xff] %vm280, %v1044
  %v1048 = vld [vmem:[#allocation4] sm:$0xff]
  %v1049 = vpack.c.bf16 %v1048, %v1048
  %v1050 = vld [vmem:[%s3] sm:$0xf]
  %v1051 = vld [vmem:[%s3 + $0x4] sm:$0xf]
  %v1052 = vld [vmem:[%s3 + $0x8] sm:$0xf]
  %v1053 = vld [vmem:[%s3 + $0xc] sm:$0xf]
  %v1058 = vunpack.c.l.b16 %v1050
  %v1059 = vunpack.c.l.b16 %v1051
  %v1060 = vunpack.c.l.b16 %v1052
  %v1061 = vunpack.c.l.b16 %v1053
  %v1062 = vpack.c.b16 %v1059, %v1058
  %v1063 = vpack.c.b16 %v1061, %v1060
  %v1067 = vsel %vm280, %v1049, 0
  %1069 = vmatprep.subr.bf16.mxu0 0
  %1070 = vmatpush1.bf16.msra.mxu0 %v1062
  %1071 = vmatprep.subr.bf16.mxu0 0
  %1072 = vmatpush1.bf16.msra.mxu0 %v1063
  %1073 = vmatprep.subr.bf16.mxu0 0
  %1074 = vmatpush1.bf16.msra.mxu0 0
  %1075 = vmatprep.subr.bf16.mxu0 0
  %1076 = vmatpush1.bf16.msra.mxu0 0
  %1077 = vmatprep.subr.bf16.mxu0 0
  %1078 = vmatpush1.bf16.msra.mxu0 0
  %1079 = vmatprep.subr.bf16.mxu0 0
  %1080 = vmatpush1.bf16.msra.mxu0 0
  %1081 = vmatprep.subr.bf16.mxu0 0
  %1082 = vmatpush1.bf16.msra.mxu0 0
  %1083 = vmatprep.subr.bf16.mxu0 0
  %1084 = vmatpush1.bf16.msra.mxu0 0
  %1085 = vmatprep.subr.bf16.mxu0 0
  %1086 = vmatpush1.bf16.msra.mxu0 0
  %1087 = vmatprep.subr.bf16.mxu0 0
  %1088 = vmatpush1.bf16.msra.mxu0 0
  %1089 = vmatprep.subr.bf16.mxu0 0
  %1090 = vmatpush1.bf16.msra.mxu0 0
  %1091 = vmatprep.subr.bf16.mxu0 0
  %1092 = vmatpush1.bf16.msra.mxu0 0
  %1093 = vmatprep.subr.bf16.mxu0 0
  %1094 = vmatpush1.bf16.msra.mxu0 0
  %1095 = vmatprep.subr.bf16.mxu0 0
  %1096 = vmatpush1.bf16.msra.mxu0 0
  %1097 = vmatprep.subr.bf16.mxu0 0
  %1098 = vmatpush1.bf16.msra.mxu0 0
  %1099 = vmatprep.subr.bf16.mxu0 0
  %1100 = vmatpush1.bf16.msra.mxu0 0
  %1101 = vmatprep.mubr.bf16.mxu0 0
  %1102 = vmatmul.mubr.bf16.gmra.mrb[0].mxu0 %v1067
  %v1103 = vpop.f32.mrb[0].mxu0
  %v1104 = vadd.f32 0.0, %v1103
  %v1105 = vpop.f32.mrb[0].mxu0
  %v1106 = vpop.f32.mrb[0].mxu0
  %v1107 = vpop.f32.mrb[0].mxu0
  %1108 = vdwg.mxu0
  %v1109 = vld [vmem:[#allocation6] sm:$0xff]
  %v1110 = vpack.c.bf16 %v1109, %v1109
  %v1111 = vld [vmem:[%s6] sm:$0xf]
  %v1112 = vld [vmem:[%s6 + $0x4] sm:$0xf]
  %v1113 = vld [vmem:[%s6 + $0x8] sm:$0xf]
  %v1114 = vld [vmem:[%s6 + $0xc] sm:$0xf]
  %v1119 = vunpack.c.l.b16 %v1111
  %v1120 = vunpack.c.l.b16 %v1112
  %v1121 = vunpack.c.l.b16 %v1113
  %v1122 = vunpack.c.l.b16 %v1114
  %v1123 = vpack.c.b16 %v1120, %v1119
  %v1124 = vpack.c.b16 %v1122, %v1121
  %v1128 = vsel %vm280, %v1110, 0
  %1130 = vmatprep.subr.bf16.mxu0 0
  %1131 = vmatpush1.bf16.msra.mxu0 %v1123
  %1132 = vmatprep.subr.bf16.mxu0 0
  %1133 = vmatpush1.bf16.msra.mxu0 %v1124
  %1134 = vmatprep.subr.bf16.mxu0 0
  %1135 = vmatpush1.bf16.msra.mxu0 0
  %1136 = vmatprep.subr.bf16.mxu0 0
  %1137 = vmatpush1.bf16.msra.mxu0 0
  %1138 = vmatprep.subr.bf16.mxu0 0
  %1139 = vmatpush1.bf16.msra.mxu0 0
  %1140 = vmatprep.subr.bf16.mxu0 0
  %1141 = vmatpush1.bf16.msra.mxu0 0
  %1142 = vmatprep.subr.bf16.mxu0 0
  %1143 = vmatpush1.bf16.msra.mxu0 0
  %1144 = vmatprep.subr.bf16.mxu0 0
  %1145 = vmatpush1.bf16.msra.mxu0 0
  %1146 = vmatprep.subr.bf16.mxu0 0
  %1147 = vmatpush1.bf16.msra.mxu0 0
  %1148 = vmatprep.subr.bf16.mxu0 0
  %1149 = vmatpush1.bf16.msra.mxu0 0
  %1150 = vmatprep.subr.bf16.mxu0 0
  %1151 = vmatpush1.bf16.msra.mxu0 0
  %1152 = vmatprep.subr.bf16.mxu0 0
  %1153 = vmatpush1.bf16.msra.mxu0 0
  %1154 = vmatprep.subr.bf16.mxu0 0
  %1155 = vmatpush1.bf16.msra.mxu0 0
  %1156 = vmatprep.subr.bf16.mxu0 0
  %1157 = vmatpush1.bf16.msra.mxu0 0
  %1158 = vmatprep.subr.bf16.mxu0 0
  %1159 = vmatpush1.bf16.msra.mxu0 0
  %1160 = vmatprep.subr.bf16.mxu0 0
  %1161 = vmatpush1.bf16.msra.mxu0 0
  %1162 = vmatprep.mubr.bf16.mxu0 0
  %1163 = vmatmul.mubr.bf16.gmra.mrb[0].mxu0 %v1128
  %v1164 = vpop.f32.mrb[0].mxu0
  %v1165 = vadd.f32 0.0, %v1164
  %v1166 = vpop.f32.mrb[0].mxu0
  %v1167 = vpop.f32.mrb[0].mxu0
  %v1168 = vpop.f32.mrb[0].mxu0
  %1169 = vdwg.mxu0
  %s1170 = scalar_lea.vmem [#allocation2], 24
  %v1171 = vld [vmem:[%s1170] sm:$0xff]
  %v1172 = vadd.f32 %v1171, %v1104
  %v1173 = vld [vmem:[#allocation5] sm:$0xff]
  %v1174 = vxor.u32 %v1172, 2147483648
  %v1175 = vmul.f32 %v1174, 1.442695
  %v1176 = vpow.pop %v1175
  %v1177 = vadd.f32 %v1176, 1.0
  %v1178 = vrcp.pop %v1177
  %v1179 = vmul.f32 1.0, %v1178
  %v1180 = vtanh.pop %v1172
  %1182 = vrot.lane.b32.xlu0 %v1173, 32
  %v1183 = vpop.permute.xlu0 %1182
  %v1185 = vmul.f32 %v1179, %v1183
  %1187 = vrot.lane.b32.xlu0 %v1180, 64
  %v1188 = vpop.permute.xlu0 %1187
  %v1190 = vmul.f32 %v1179, %v1188
  %1192 = vrot.lane.b32.xlu0 %v1190, 32
  %v1193 = vpop.permute.xlu0 %1192
  %v1195 = vadd.f32 %v1185, %v1193
  %v1196 = vtanh.pop %v1195
  %1198 = vrot.lane.b32.xlu0 %v1196, 64
  %v1199 = vpop.permute.xlu0 %1198
  %v1201 = vmul.f32 %v1179, %v1199
  %s1202 = scalar_lea.vmem [#allocation3], 32
  %v1203 = vld [vmem:[%s1202] sm:$0xff]
  %v1204 = vadd.f32 %v1203, %v1165
  %v1205 = vld [vmem:[#allocation7] sm:$0xff]
  %v1206 = vxor.u32 %v1204, 2147483648
  %v1207 = vmul.f32 %v1206, 1.442695
  %v1208 = vpow.pop %v1207
  %v1209 = vadd.f32 %v1208, 1.0
  %v1210 = vrcp.pop %v1209
  %v1211 = vmul.f32 1.0, %v1210
  %v1212 = vtanh.pop %v1204
  %1214 = vrot.lane.b32.xlu0 %v1205, 32
  %v1215 = vpop.permute.xlu0 %1214
  %v1217 = vmul.f32 %v1211, %v1215
  %1219 = vrot.lane.b32.xlu0 %v1212, 64
  %v1220 = vpop.permute.xlu0 %1219
  %v1222 = vmul.f32 %v1211, %v1220
  %1224 = vrot.lane.b32.xlu0 %v1222, 32
  %v1225 = vpop.permute.xlu0 %1224
  %v1227 = vadd.f32 %v1217, %v1225
  %v1228 = vtanh.pop %v1227
  %1230 = vrot.lane.b32.xlu0 %v1228, 64
  %v1231 = vpop.permute.xlu0 %1230
  %v1233 = vmul.f32 %v1211, %v1231
  %vm1234 = vcmp.gt.s32.totalorder %v30, 3
  %vm1235 = vcmp.gt.s32.totalorder %v30, 4
  %v1236 = vsel %vm1234, 1, 0
  %1237 = vset.pattern.permute.xlu0 0
  %1238 = vperm.xlu0 %1237, %v1236
  %v1239 = vpop.permute.xlu0 %1238
  %vm1240 = vcmp.eq.s32.totalorder %v1239, 1
  %1242 = vrot.lane.b32.xlu0 %v1048, 96
  %v1243 = vpop.permute.xlu0 %1242
  %v1245 = vsel %vm1240, %v1201, %v1243
  %1247 = vrot.lane.b32.xlu0 %v1245, 32
  %v1248 = vpop.permute.xlu0 %1247
  %1250 = vst.msk [vmem:[#allocation4] sm:$0xff] %vm280, %v1248
  %v1251 = vld [vmem:[#allocation5] sm:$0xff]
  %1253 = vrot.lane.b32.xlu0 %v1251, 32
  %v1254 = vpop.permute.xlu0 %1253
  %v1256 = vsel %vm1240, %v1195, %v1254
  %1258 = vrot.lane.b32.xlu0 %v1256, 96
  %v1259 = vpop.permute.xlu0 %1258
  %1261 = vst.msk [vmem:[#allocation5] sm:$0xff] %vm280, %v1259
  %v1262 = vld [vmem:[#allocation6] sm:$0xff]
  %v1263 = vsel %vm1235, 1, 0
  %1264 = vset.pattern.permute.xlu0 0
  %1265 = vperm.xlu0 %1264, %v1263
  %v1266 = vpop.permute.xlu0 %1265
  %vm1267 = vcmp.eq.s32.totalorder %v1266, 1
  %1269 = vrot.lane.b32.xlu0 %v1262, 96
  %v1270 = vpop.permute.xlu0 %1269
  %v1272 = vsel %vm1267, %v1233, %v1270
  %1274 = vrot.lane.b32.xlu0 %v1272, 32
  %v1275 = vpop.permute.xlu0 %1274
  %1277 = vst.msk [vmem:[#allocation6] sm:$0xff] %vm280, %v1275
  %v1278 = vld [vmem:[#allocation7] sm:$0xff]
  %1280 = vrot.lane.b32.xlu0 %v1278, 32
  %v1281 = vpop.permute.xlu0 %1280
  %v1283 = vsel %vm1267, %v1227, %v1281
  %1285 = vrot.lane.b32.xlu0 %v1283, 96
  %v1286 = vpop.permute.xlu0 %1285
  %1288 = vst.msk [vmem:[#allocation7] sm:$0xff] %vm280, %v1286
  %v1289 = vsel %vm1240, %v1201, 0.0
  %1291 = vrot.lane.b32.xlu0 %v1289, 32
  %v1292 = vpop.permute.xlu0 %1291
  %s1294 = scalar_lea.vmem [#allocation8], 24
  %1295 = vst.msk [vmem:[%s1294] sm:$0xff] %vm280, %v1292
  %v1296 = vsel %vm1267, %v1233, 0.0
  %1298 = vrot.lane.b32.xlu0 %v1296, 32
  %v1299 = vpop.permute.xlu0 %1298
  %s1301 = scalar_lea.vmem [#allocation9], 32
  %1302 = vst.msk [vmem:[%s1301] sm:$0xff] %vm280, %v1299
  %v1303 = vld [vmem:[#allocation4] sm:$0xff]
  %v1304 = vpack.c.bf16 %v1303, %v1303
  %v1305 = vld [vmem:[%s3] sm:$0xf]
  %v1306 = vld [vmem:[%s3 + $0x4] sm:$0xf]
  %v1307 = vld [vmem:[%s3 + $0x8] sm:$0xf]
  %v1308 = vld [vmem:[%s3 + $0xc] sm:$0xf]
  %v1313 = vunpack.c.l.b16 %v1305
  %v1314 = vunpack.c.l.b16 %v1306
  %v1315 = vunpack.c.l.b16 %v1307
  %v1316 = vunpack.c.l.b16 %v1308
  %v1317 = vpack.c.b16 %v1314, %v1313
  %v1318 = vpack.c.b16 %v1316, %v1315
  %v1322 = vsel %vm280, %v1304, 0
  %1324 = vmatprep.subr.bf16.mxu0 0
  %1325 = vmatpush1.bf16.msra.mxu0 %v1317
  %1326 = vmatprep.subr.bf16.mxu0 0
  %1327 = vmatpush1.bf16.msra.mxu0 %v1318
  %1328 = vmatprep.subr.bf16.mxu0 0
  %1329 = vmatpush1.bf16.msra.mxu0 0
  %1330 = vmatprep.subr.bf16.mxu0 0
  %1331 = vmatpush1.bf16.msra.mxu0 0
  %1332 = vmatprep.subr.bf16.mxu0 0
  %1333 = vmatpush1.bf16.msra.mxu0 0
  %1334 = vmatprep.subr.bf16.mxu0 0
  %1335 = vmatpush1.bf16.msra.mxu0 0
  %1336 = vmatprep.subr.bf16.mxu0 0
  %1337 = vmatpush1.bf16.msra.mxu0 0
  %1338 = vmatprep.subr.bf16.mxu0 0
  %1339 = vmatpush1.bf16.msra.mxu0 0
  %1340 = vmatprep.subr.bf16.mxu0 0
  %1341 = vmatpush1.bf16.msra.mxu0 0
  %1342 = vmatprep.subr.bf16.mxu0 0
  %1343 = vmatpush1.bf16.msra.mxu0 0
  %1344 = vmatprep.subr.bf16.mxu0 0
  %1345 = vmatpush1.bf16.msra.mxu0 0
  %1346 = vmatprep.subr.bf16.mxu0 0
  %1347 = vmatpush1.bf16.msra.mxu0 0
  %1348 = vmatprep.subr.bf16.mxu0 0
  %1349 = vmatpush1.bf16.msra.mxu0 0
  %1350 = vmatprep.subr.bf16.mxu0 0
  %1351 = vmatpush1.bf16.msra.mxu0 0
  %1352 = vmatprep.subr.bf16.mxu0 0
  %1353 = vmatpush1.bf16.msra.mxu0 0
  %1354 = vmatprep.subr.bf16.mxu0 0
  %1355 = vmatpush1.bf16.msra.mxu0 0
  %1356 = vmatprep.mubr.bf16.mxu0 0
  %1357 = vmatmul.mubr.bf16.gmra.mrb[0].mxu0 %v1322
  %v1358 = vpop.f32.mrb[0].mxu0
  %v1359 = vadd.f32 0.0, %v1358
  %v1360 = vpop.f32.mrb[0].mxu0
  %v1361 = vpop.f32.mrb[0].mxu0
  %v1362 = vpop.f32.mrb[0].mxu0
  %1363 = vdwg.mxu0
  %v1364 = vld [vmem:[#allocation6] sm:$0xff]
  %v1365 = vpack.c.bf16 %v1364, %v1364
  %v1366 = vld [vmem:[%s6] sm:$0xf]
  %v1367 = vld [vmem:[%s6 + $0x4] sm:$0xf]
  %v1368 = vld [vmem:[%s6 + $0x8] sm:$0xf]
  %v1369 = vld [vmem:[%s6 + $0xc] sm:$0xf]
  %v1374 = vunpack.c.l.b16 %v1366
  %v1375 = vunpack.c.l.b16 %v1367
  %v1376 = vunpack.c.l.b16 %v1368
  %v1377 = vunpack.c.l.b16 %v1369
  %v1378 = vpack.c.b16 %v1375, %v1374
  %v1379 = vpack.c.b16 %v1377, %v1376
  %v1383 = vsel %vm280, %v1365, 0
  %1385 = vmatprep.subr.bf16.mxu0 0
  %1386 = vmatpush1.bf16.msra.mxu0 %v1378
  %1387 = vmatprep.subr.bf16.mxu0 0
  %1388 = vmatpush1.bf16.msra.mxu0 %v1379
  %1389 = vmatprep.subr.bf16.mxu0 0
  %1390 = vmatpush1.bf16.msra.mxu0 0
  %1391 = vmatprep.subr.bf16.mxu0 0
  %1392 = vmatpush1.bf16.msra.mxu0 0
  %1393 = vmatprep.subr.bf16.mxu0 0
  %1394 = vmatpush1.bf16.msra.mxu0 0
  %1395 = vmatprep.subr.bf16.mxu0 0
  %1396 = vmatpush1.bf16.msra.mxu0 0
  %1397 = vmatprep.subr.bf16.mxu0 0
  %1398 = vmatpush1.bf16.msra.mxu0 0
  %1399 = vmatprep.subr.bf16.mxu0 0
  %1400 = vmatpush1.bf16.msra.mxu0 0
  %1401 = vmatprep.subr.bf16.mxu0 0
  %1402 = vmatpush1.bf16.msra.mxu0 0
  %1403 = vmatprep.subr.bf16.mxu0 0
  %1404 = vmatpush1.bf16.msra.mxu0 0
  %1405 = vmatprep.subr.bf16.mxu0 0
  %1406 = vmatpush1.bf16.msra.mxu0 0
  %1407 = vmatprep.subr.bf16.mxu0 0
  %1408 = vmatpush1.bf16.msra.mxu0 0
  %1409 = vmatprep.subr.bf16.mxu0 0
  %1410 = vmatpush1.bf16.msra.mxu0 0
  %1411 = vmatprep.subr.bf16.mxu0 0
  %1412 = vmatpush1.bf16.msra.mxu0 0
  %1413 = vmatprep.subr.bf16.mxu0 0
  %1414 = vmatpush1.bf16.msra.mxu0 0
  %1415 = vmatprep.subr.bf16.mxu0 0
  %1416 = vmatpush1.bf16.msra.mxu0 0
  %1417 = vmatprep.mubr.bf16.mxu0 0
  %1418 = vmatmul.mubr.bf16.gmra.mrb[0].mxu0 %v1383
  %v1419 = vpop.f32.mrb[0].mxu0
  %v1420 = vadd.f32 0.0, %v1419
  %v1421 = vpop.f32.mrb[0].mxu0
  %v1422 = vpop.f32.mrb[0].mxu0
  %v1423 = vpop.f32.mrb[0].mxu0
  %1424 = vdwg.mxu0
  %s1425 = scalar_lea.vmem [#allocation2], 32
  %v1426 = vld [vmem:[%s1425] sm:$0xff]
  %v1427 = vadd.f32 %v1426, %v1359
  %v1428 = vld [vmem:[#allocation5] sm:$0xff]
  %v1429 = vxor.u32 %v1427, 2147483648
  %v1430 = vmul.f32 %v1429, 1.442695
  %v1431 = vpow.pop %v1430
  %v1432 = vadd.f32 %v1431, 1.0
  %v1433 = vrcp.pop %v1432
  %v1434 = vmul.f32 1.0, %v1433
  %v1435 = vtanh.pop %v1427
  %1437 = vrot.lane.b32.xlu0 %v1428, 32
  %v1438 = vpop.permute.xlu0 %1437
  %v1440 = vmul.f32 %v1434, %v1438
  %1442 = vrot.lane.b32.xlu0 %v1435, 64
  %v1443 = vpop.permute.xlu0 %1442
  %v1445 = vmul.f32 %v1434, %v1443
  %1447 = vrot.lane.b32.xlu0 %v1445, 32
  %v1448 = vpop.permute.xlu0 %1447
  %v1450 = vadd.f32 %v1440, %v1448
  %v1451 = vtanh.pop %v1450
  %1453 = vrot.lane.b32.xlu0 %v1451, 64
  %v1454 = vpop.permute.xlu0 %1453
  %v1456 = vmul.f32 %v1434, %v1454
  %s1457 = scalar_lea.vmem [#allocation3], 24
  %v1458 = vld [vmem:[%s1457] sm:$0xff]
  %v1459 = vadd.f32 %v1458, %v1420
  %v1460 = vld [vmem:[#allocation7] sm:$0xff]
  %v1461 = vxor.u32 %v1459, 2147483648
  %v1462 = vmul.f32 %v1461, 1.442695
  %v1463 = vpow.pop %v1462
  %v1464 = vadd.f32 %v1463, 1.0
  %v1465 = vrcp.pop %v1464
  %v1466 = vmul.f32 1.0, %v1465
  %v1467 = vtanh.pop %v1459
  %1469 = vrot.lane.b32.xlu0 %v1460, 32
  %v1470 = vpop.permute.xlu0 %1469
  %v1472 = vmul.f32 %v1466, %v1470
  %1474 = vrot.lane.b32.xlu0 %v1467, 64
  %v1475 = vpop.permute.xlu0 %1474
  %v1477 = vmul.f32 %v1466, %v1475
  %1479 = vrot.lane.b32.xlu0 %v1477, 32
  %v1480 = vpop.permute.xlu0 %1479
  %v1482 = vadd.f32 %v1472, %v1480
  %v1483 = vtanh.pop %v1482
  %1485 = vrot.lane.b32.xlu0 %v1483, 64
  %v1486 = vpop.permute.xlu0 %1485
  %v1488 = vmul.f32 %v1466, %v1486
  %1490 = vrot.lane.b32.xlu0 %v1303, 96
  %v1491 = vpop.permute.xlu0 %1490
  %v1493 = vsel %vm1267, %v1456, %v1491
  %1495 = vrot.lane.b32.xlu0 %v1493, 32
  %v1496 = vpop.permute.xlu0 %1495
  %1498 = vst.msk [vmem:[#allocation4] sm:$0xff] %vm280, %v1496
  %v1499 = vld [vmem:[#allocation5] sm:$0xff]
  %1501 = vrot.lane.b32.xlu0 %v1499, 32
  %v1502 = vpop.permute.xlu0 %1501
  %v1504 = vsel %vm1267, %v1450, %v1502
  %1506 = vrot.lane.b32.xlu0 %v1504, 96
  %v1507 = vpop.permute.xlu0 %1506
  %1509 = vst.msk [vmem:[#allocation5] sm:$0xff] %vm280, %v1507
  %v1510 = vld [vmem:[#allocation6] sm:$0xff]
  %1512 = vrot.lane.b32.xlu0 %v1510, 96
  %v1513 = vpop.permute.xlu0 %1512
  %v1515 = vsel %vm1240, %v1488, %v1513
  %1517 = vrot.lane.b32.xlu0 %v1515, 32
  %v1518 = vpop.permute.xlu0 %1517
  %1520 = vst.msk [vmem:[#allocation6] sm:$0xff] %vm280, %v1518
  %v1521 = vld [vmem:[#allocation7] sm:$0xff]
  %1523 = vrot.lane.b32.xlu0 %v1521, 32
  %v1524 = vpop.permute.xlu0 %1523
  %v1526 = vsel %vm1240, %v1482, %v1524
  %1528 = vrot.lane.b32.xlu0 %v1526, 96
  %v1529 = vpop.permute.xlu0 %1528
  %1531 = vst.msk [vmem:[#allocation7] sm:$0xff] %vm280, %v1529
  %v1532 = vsel %vm1267, %v1456, 0.0
  %1534 = vrot.lane.b32.xlu0 %v1532, 32
  %v1535 = vpop.permute.xlu0 %1534
  %s1537 = scalar_lea.vmem [#allocation8], 32
  %1538 = vst.msk [vmem:[%s1537] sm:$0xff] %vm280, %v1535
  %v1539 = vsel %vm1240, %v1488, 0.0
  %1541 = vrot.lane.b32.xlu0 %v1539, 32
  %v1542 = vpop.permute.xlu0 %1541
  %s1544 = scalar_lea.vmem [#allocation9], 24
  %1545 = vst.msk [vmem:[%s1544] sm:$0xff] %vm280, %v1542
  %v1546 = vld [vmem:[#allocation4] sm:$0xff]
  %v1547 = vpack.c.bf16 %v1546, %v1546
  %v1548 = vld [vmem:[%s3] sm:$0xf]
  %v1549 = vld [vmem:[%s3 + $0x4] sm:$0xf]
  %v1550 = vld [vmem:[%s3 + $0x8] sm:$0xf]
  %v1551 = vld [vmem:[%s3 + $0xc] sm:$0xf]
  %v1556 = vunpack.c.l.b16 %v1548
  %v1557 = vunpack.c.l.b16 %v1549
  %v1558 = vunpack.c.l.b16 %v1550
  %v1559 = vunpack.c.l.b16 %v1551
  %v1560 = vpack.c.b16 %v1557, %v1556
  %v1561 = vpack.c.b16 %v1559, %v1558
  %v1565 = vsel %vm280, %v1547, 0
  %1567 = vmatprep.subr.bf16.mxu0 0
  %1568 = vmatpush1.bf16.msra.mxu0 %v1560
  %1569 = vmatprep.subr.bf16.mxu0 0
  %1570 = vmatpush1.bf16.msra.mxu0 %v1561
  %1571 = vmatprep.subr.bf16.mxu0 0
  %1572 = vmatpush1.bf16.msra.mxu0 0
  %1573 = vmatprep.subr.bf16.mxu0 0
  %1574 = vmatpush1.bf16.msra.mxu0 0
  %1575 = vmatprep.subr.bf16.mxu0 0
  %1576 = vmatpush1.bf16.msra.mxu0 0
  %1577 = vmatprep.subr.bf16.mxu0 0
  %1578 = vmatpush1.bf16.msra.mxu0 0
  %1579 = vmatprep.subr.bf16.mxu0 0
  %1580 = vmatpush1.bf16.msra.mxu0 0
  %1581 = vmatprep.subr.bf16.mxu0 0
  %1582 = vmatpush1.bf16.msra.mxu0 0
  %1583 = vmatprep.subr.bf16.mxu0 0
  %1584 = vmatpush1.bf16.msra.mxu0 0
  %1585 = vmatprep.subr.bf16.mxu0 0
  %1586 = vmatpush1.bf16.msra.mxu0 0
  %1587 = vmatprep.subr.bf16.mxu0 0
  %1588 = vmatpush1.bf16.msra.mxu0 0
  %1589 = vmatprep.subr.bf16.mxu0 0
  %1590 = vmatpush1.bf16.msra.mxu0 0
  %1591 = vmatprep.subr.bf16.mxu0 0
  %1592 = vmatpush1.bf16.msra.mxu0 0
  %1593 = vmatprep.subr.bf16.mxu0 0
  %1594 = vmatpush1.bf16.msra.mxu0 0
  %1595 = vmatprep.subr.bf16.mxu0 0
  %1596 = vmatpush1.bf16.msra.mxu0 0
  %1597 = vmatprep.subr.bf16.mxu0 0
  %1598 = vmatpush1.bf16.msra.mxu0 0
  %1599 = vmatprep.mubr.bf16.mxu0 0
  %1600 = vmatmul.mubr.bf16.gmra.mrb[0].mxu0 %v1565
  %v1601 = vpop.f32.mrb[0].mxu0
  %v1602 = vadd.f32 0.0, %v1601
  %v1603 = vpop.f32.mrb[0].mxu0
  %v1604 = vpop.f32.mrb[0].mxu0
  %v1605 = vpop.f32.mrb[0].mxu0
  %1606 = vdwg.mxu0
  %v1607 = vld [vmem:[#allocation6] sm:$0xff]
  %v1608 = vpack.c.bf16 %v1607, %v1607
  %v1609 = vld [vmem:[%s6] sm:$0xf]
  %v1610 = vld [vmem:[%s6 + $0x4] sm:$0xf]
  %v1611 = vld [vmem:[%s6 + $0x8] sm:$0xf]
  %v1612 = vld [vmem:[%s6 + $0xc] sm:$0xf]
  %v1617 = vunpack.c.l.b16 %v1609
  %v1618 = vunpack.c.l.b16 %v1610
  %v1619 = vunpack.c.l.b16 %v1611
  %v1620 = vunpack.c.l.b16 %v1612
  %v1621 = vpack.c.b16 %v1618, %v1617
  %v1622 = vpack.c.b16 %v1620, %v1619
  %v1626 = vsel %vm280, %v1608, 0
  %1628 = vmatprep.subr.bf16.mxu0 0
  %1629 = vmatpush1.bf16.msra.mxu0 %v1621
  %1630 = vmatprep.subr.bf16.mxu0 0
  %1631 = vmatpush1.bf16.msra.mxu0 %v1622
  %1632 = vmatprep.subr.bf16.mxu0 0
  %1633 = vmatpush1.bf16.msra.mxu0 0
  %1634 = vmatprep.subr.bf16.mxu0 0
  %1635 = vmatpush1.bf16.msra.mxu0 0
  %1636 = vmatprep.subr.bf16.mxu0 0
  %1637 = vmatpush1.bf16.msra.mxu0 0
  %1638 = vmatprep.subr.bf16.mxu0 0
  %1639 = vmatpush1.bf16.msra.mxu0 0
  %1640 = vmatprep.subr.bf16.mxu0 0
  %1641 = vmatpush1.bf16.msra.mxu0 0
  %1642 = vmatprep.subr.bf16.mxu0 0
  %1643 = vmatpush1.bf16.msra.mxu0 0
  %1644 = vmatprep.subr.bf16.mxu0 0
  %1645 = vmatpush1.bf16.msra.mxu0 0
  %1646 = vmatprep.subr.bf16.mxu0 0
  %1647 = vmatpush1.bf16.msra.mxu0 0
  %1648 = vmatprep.subr.bf16.mxu0 0
  %1649 = vmatpush1.bf16.msra.mxu0 0
  %1650 = vmatprep.subr.bf16.mxu0 0
  %1651 = vmatpush1.bf16.msra.mxu0 0
  %1652 = vmatprep.subr.bf16.mxu0 0
  %1653 = vmatpush1.bf16.msra.mxu0 0
  %1654 = vmatprep.subr.bf16.mxu0 0
  %1655 = vmatpush1.bf16.msra.mxu0 0
  %1656 = vmatprep.subr.bf16.mxu0 0
  %1657 = vmatpush1.bf16.msra.mxu0 0
  %1658 = vmatprep.subr.bf16.mxu0 0
  %1659 = vmatpush1.bf16.msra.mxu0 0
  %1660 = vmatprep.mubr.bf16.mxu0 0
  %1661 = vmatmul.mubr.bf16.gmra.mrb[0].mxu0 %v1626
  %v1662 = vpop.f32.mrb[0].mxu0
  %v1663 = vadd.f32 0.0, %v1662
  %v1664 = vpop.f32.mrb[0].mxu0
  %v1665 = vpop.f32.mrb[0].mxu0
  %v1666 = vpop.f32.mrb[0].mxu0
  %1667 = vdwg.mxu0
  %s1668 = scalar_lea.vmem [#allocation2], 40
  %v1669 = vld [vmem:[%s1668] sm:$0xff]
  %v1670 = vadd.f32 %v1669, %v1602
  %v1671 = vld [vmem:[#allocation5] sm:$0xff]
  %v1672 = vxor.u32 %v1670, 2147483648
  %v1673 = vmul.f32 %v1672, 1.442695
  %v1674 = vpow.pop %v1673
  %v1675 = vadd.f32 %v1674, 1.0
  %v1676 = vrcp.pop %v1675
  %v1677 = vmul.f32 1.0, %v1676
  %v1678 = vtanh.pop %v1670
  %1680 = vrot.lane.b32.xlu0 %v1671, 32
  %v1681 = vpop.permute.xlu0 %1680
  %v1683 = vmul.f32 %v1677, %v1681
  %1685 = vrot.lane.b32.xlu0 %v1678, 64
  %v1686 = vpop.permute.xlu0 %1685
  %v1688 = vmul.f32 %v1677, %v1686
  %1690 = vrot.lane.b32.xlu0 %v1688, 32
  %v1691 = vpop.permute.xlu0 %1690
  %v1693 = vadd.f32 %v1683, %v1691
  %v1694 = vtanh.pop %v1693
  %1696 = vrot.lane.b32.xlu0 %v1694, 64
  %v1697 = vpop.permute.xlu0 %1696
  %v1699 = vmul.f32 %v1677, %v1697
  %s1700 = scalar_lea.vmem [#allocation3], 16
  %v1701 = vld [vmem:[%s1700] sm:$0xff]
  %v1702 = vadd.f32 %v1701, %v1663
  %v1703 = vld [vmem:[#allocation7] sm:$0xff]
  %v1704 = vxor.u32 %v1702, 2147483648
  %v1705 = vmul.f32 %v1704, 1.442695
  %v1706 = vpow.pop %v1705
  %v1707 = vadd.f32 %v1706, 1.0
  %v1708 = vrcp.pop %v1707
  %v1709 = vmul.f32 1.0, %v1708
  %v1710 = vtanh.pop %v1702
  %1712 = vrot.lane.b32.xlu0 %v1703, 32
  %v1713 = vpop.permute.xlu0 %1712
  %v1715 = vmul.f32 %v1709, %v1713
  %1717 = vrot.lane.b32.xlu0 %v1710, 64
  %v1718 = vpop.permute.xlu0 %1717
  %v1720 = vmul.f32 %v1709, %v1718
  %1722 = vrot.lane.b32.xlu0 %v1720, 32
  %v1723 = vpop.permute.xlu0 %1722
  %v1725 = vadd.f32 %v1715, %v1723
  %v1726 = vtanh.pop %v1725
  %1728 = vrot.lane.b32.xlu0 %v1726, 64
  %v1729 = vpop.permute.xlu0 %1728
  %v1731 = vmul.f32 %v1709, %v1729
  %1733 = vrot.lane.b32.xlu0 %v1546, 96
  %v1734 = vpop.permute.xlu0 %1733
  %v1736 = vsel %vm1012, %v1699, %v1734
  %1738 = vrot.lane.b32.xlu0 %v1736, 32
  %v1739 = vpop.permute.xlu0 %1738
  %1741 = vst.msk [vmem:[#allocation4] sm:$0xff] %vm280, %v1739
  %v1742 = vld [vmem:[#allocation5] sm:$0xff]
  %1744 = vrot.lane.b32.xlu0 %v1742, 32
  %v1745 = vpop.permute.xlu0 %1744
  %v1747 = vsel %vm1012, %v1693, %v1745
  %1749 = vrot.lane.b32.xlu0 %v1747, 96
  %v1750 = vpop.permute.xlu0 %1749
  %1752 = vst.msk [vmem:[#allocation5] sm:$0xff] %vm280, %v1750
  %v1753 = vld [vmem:[#allocation6] sm:$0xff]
  %1755 = vrot.lane.b32.xlu0 %v1753, 96
  %v1756 = vpop.permute.xlu0 %1755
  %v1758 = vsel %vm985, %v1731, %v1756
  %1760 = vrot.lane.b32.xlu0 %v1758, 32
  %v1761 = vpop.permute.xlu0 %1760
  %1763 = vst.msk [vmem:[#allocation6] sm:$0xff] %vm280, %v1761
  %v1764 = vld [vmem:[#allocation7] sm:$0xff]
  %1766 = vrot.lane.b32.xlu0 %v1764, 32
  %v1767 = vpop.permute.xlu0 %1766
  %v1769 = vsel %vm985, %v1725, %v1767
  %1771 = vrot.lane.b32.xlu0 %v1769, 96
  %v1772 = vpop.permute.xlu0 %1771
  %1774 = vst.msk [vmem:[#allocation7] sm:$0xff] %vm280, %v1772
  %v1775 = vsel %vm1012, %v1699, 0.0
  %1777 = vrot.lane.b32.xlu0 %v1775, 32
  %v1778 = vpop.permute.xlu0 %1777
  %s1780 = scalar_lea.vmem [#allocation8], 40
  %1781 = vst.msk [vmem:[%s1780] sm:$0xff] %vm280, %v1778
  %v1782 = vsel %vm985, %v1731, 0.0
  %1784 = vrot.lane.b32.xlu0 %v1782, 32
  %v1785 = vpop.permute.xlu0 %1784
  %s1787 = scalar_lea.vmem [#allocation9], 16
  %1788 = vst.msk [vmem:[%s1787] sm:$0xff] %vm280, %v1785
  %v1789 = vld [vmem:[#allocation4] sm:$0xff]
  %v1790 = vpack.c.bf16 %v1789, %v1789
  %v1791 = vld [vmem:[%s3] sm:$0xf]
  %v1792 = vld [vmem:[%s3 + $0x4] sm:$0xf]
  %v1793 = vld [vmem:[%s3 + $0x8] sm:$0xf]
  %v1794 = vld [vmem:[%s3 + $0xc] sm:$0xf]
  %v1799 = vunpack.c.l.b16 %v1791
  %v1800 = vunpack.c.l.b16 %v1792
  %v1801 = vunpack.c.l.b16 %v1793
  %v1802 = vunpack.c.l.b16 %v1794
  %v1803 = vpack.c.b16 %v1800, %v1799
  %v1804 = vpack.c.b16 %v1802, %v1801
  %v1808 = vsel %vm280, %v1790, 0
  %1810 = vmatprep.subr.bf16.mxu0 0
  %1811 = vmatpush1.bf16.msra.mxu0 %v1803
  %1812 = vmatprep.subr.bf16.mxu0 0
  %1813 = vmatpush1.bf16.msra.mxu0 %v1804
  %1814 = vmatprep.subr.bf16.mxu0 0
  %1815 = vmatpush1.bf16.msra.mxu0 0
  %1816 = vmatprep.subr.bf16.mxu0 0
  %1817 = vmatpush1.bf16.msra.mxu0 0
  %1818 = vmatprep.subr.bf16.mxu0 0
  %1819 = vmatpush1.bf16.msra.mxu0 0
  %1820 = vmatprep.subr.bf16.mxu0 0
  %1821 = vmatpush1.bf16.msra.mxu0 0
  %1822 = vmatprep.subr.bf16.mxu0 0
  %1823 = vmatpush1.bf16.msra.mxu0 0
  %1824 = vmatprep.subr.bf16.mxu0 0
  %1825 = vmatpush1.bf16.msra.mxu0 0
  %1826 = vmatprep.subr.bf16.mxu0 0
  %1827 = vmatpush1.bf16.msra.mxu0 0
  %1828 = vmatprep.subr.bf16.mxu0 0
  %1829 = vmatpush1.bf16.msra.mxu0 0
  %1830 = vmatprep.subr.bf16.mxu0 0
  %1831 = vmatpush1.bf16.msra.mxu0 0
  %1832 = vmatprep.subr.bf16.mxu0 0
  %1833 = vmatpush1.bf16.msra.mxu0 0
  %1834 = vmatprep.subr.bf16.mxu0 0
  %1835 = vmatpush1.bf16.msra.mxu0 0
  %1836 = vmatprep.subr.bf16.mxu0 0
  %1837 = vmatpush1.bf16.msra.mxu0 0
  %1838 = vmatprep.subr.bf16.mxu0 0
  %1839 = vmatpush1.bf16.msra.mxu0 0
  %1840 = vmatprep.subr.bf16.mxu0 0
  %1841 = vmatpush1.bf16.msra.mxu0 0
  %1842 = vmatprep.mubr.bf16.mxu0 0
  %1843 = vmatmul.mubr.bf16.gmra.mrb[0].mxu0 %v1808
  %v1844 = vpop.f32.mrb[0].mxu0
  %v1845 = vadd.f32 0.0, %v1844
  %v1846 = vpop.f32.mrb[0].mxu0
  %v1847 = vpop.f32.mrb[0].mxu0
  %v1848 = vpop.f32.mrb[0].mxu0
  %1849 = vdwg.mxu0
  %v1850 = vld [vmem:[#allocation6] sm:$0xff]
  %v1851 = vpack.c.bf16 %v1850, %v1850
  %v1852 = vld [vmem:[%s6] sm:$0xf]
  %v1853 = vld [vmem:[%s6 + $0x4] sm:$0xf]
  %v1854 = vld [vmem:[%s6 + $0x8] sm:$0xf]
  %v1855 = vld [vmem:[%s6 + $0xc] sm:$0xf]
  %v1860 = vunpack.c.l.b16 %v1852
  %v1861 = vunpack.c.l.b16 %v1853
  %v1862 = vunpack.c.l.b16 %v1854
  %v1863 = vunpack.c.l.b16 %v1855
  %v1864 = vpack.c.b16 %v1861, %v1860
  %v1865 = vpack.c.b16 %v1863, %v1862
  %v1869 = vsel %vm280, %v1851, 0
  %1871 = vmatprep.subr.bf16.mxu0 0
  %1872 = vmatpush1.bf16.msra.mxu0 %v1864
  %1873 = vmatprep.subr.bf16.mxu0 0
  %1874 = vmatpush1.bf16.msra.mxu0 %v1865
  %1875 = vmatprep.subr.bf16.mxu0 0
  %1876 = vmatpush1.bf16.msra.mxu0 0
  %1877 = vmatprep.subr.bf16.mxu0 0
  %1878 = vmatpush1.bf16.msra.mxu0 0
  %1879 = vmatprep.subr.bf16.mxu0 0
  %1880 = vmatpush1.bf16.msra.mxu0 0
  %1881 = vmatprep.subr.bf16.mxu0 0
  %1882 = vmatpush1.bf16.msra.mxu0 0
  %1883 = vmatprep.subr.bf16.mxu0 0
  %1884 = vmatpush1.bf16.msra.mxu0 0
  %1885 = vmatprep.subr.bf16.mxu0 0
  %1886 = vmatpush1.bf16.msra.mxu0 0
  %1887 = vmatprep.subr.bf16.mxu0 0
  %1888 = vmatpush1.bf16.msra.mxu0 0
  %1889 = vmatprep.subr.bf16.mxu0 0
  %1890 = vmatpush1.bf16.msra.mxu0 0
  %1891 = vmatprep.subr.bf16.mxu0 0
  %1892 = vmatpush1.bf16.msra.mxu0 0
  %1893 = vmatprep.subr.bf16.mxu0 0
  %1894 = vmatpush1.bf16.msra.mxu0 0
  %1895 = vmatprep.subr.bf16.mxu0 0
  %1896 = vmatpush1.bf16.msra.mxu0 0
  %1897 = vmatprep.subr.bf16.mxu0 0
  %1898 = vmatpush1.bf16.msra.mxu0 0
  %1899 = vmatprep.subr.bf16.mxu0 0
  %1900 = vmatpush1.bf16.msra.mxu0 0
  %1901 = vmatprep.subr.bf16.mxu0 0
  %1902 = vmatpush1.bf16.msra.mxu0 0
  %1903 = vmatprep.mubr.bf16.mxu0 0
  %1904 = vmatmul.mubr.bf16.gmra.mrb[0].mxu0 %v1869
  %v1905 = vpop.f32.mrb[0].mxu0
  %v1906 = vadd.f32 0.0, %v1905
  %v1907 = vpop.f32.mrb[0].mxu0
  %v1908 = vpop.f32.mrb[0].mxu0
  %v1909 = vpop.f32.mrb[0].mxu0
  %1910 = vdwg.mxu0
  %s1911 = scalar_lea.vmem [#allocation2], 48
  %v1912 = vld [vmem:[%s1911] sm:$0xff]
  %v1913 = vadd.f32 %v1912, %v1845
  %v1914 = vld [vmem:[#allocation5] sm:$0xff]
  %v1915 = vxor.u32 %v1913, 2147483648
  %v1916 = vmul.f32 %v1915, 1.442695
  %v1917 = vpow.pop %v1916
  %v1918 = vadd.f32 %v1917, 1.0
  %v1919 = vrcp.pop %v1918
  %v1920 = vmul.f32 1.0, %v1919
  %v1921 = vtanh.pop %v1913
  %1923 = vrot.lane.b32.xlu0 %v1914, 32
  %v1924 = vpop.permute.xlu0 %1923
  %v1926 = vmul.f32 %v1920, %v1924
  %1928 = vrot.lane.b32.xlu0 %v1921, 64
  %v1929 = vpop.permute.xlu0 %1928
  %v1931 = vmul.f32 %v1920, %v1929
  %1933 = vrot.lane.b32.xlu0 %v1931, 32
  %v1934 = vpop.permute.xlu0 %1933
  %v1936 = vadd.f32 %v1926, %v1934
  %v1937 = vtanh.pop %v1936
  %1939 = vrot.lane.b32.xlu0 %v1937, 64
  %v1940 = vpop.permute.xlu0 %1939
  %v1942 = vmul.f32 %v1920, %v1940
  %s1943 = scalar_lea.vmem [#allocation3], 8
  %v1944 = vld [vmem:[%s1943] sm:$0xff]
  %v1945 = vadd.f32 %v1944, %v1906
  %v1946 = vld [vmem:[#allocation7] sm:$0xff]
  %v1947 = vxor.u32 %v1945, 2147483648
  %v1948 = vmul.f32 %v1947, 1.442695
  %v1949 = vpow.pop %v1948
  %v1950 = vadd.f32 %v1949, 1.0
  %v1951 = vrcp.pop %v1950
  %v1952 = vmul.f32 1.0, %v1951
  %v1953 = vtanh.pop %v1945
  %1955 = vrot.lane.b32.xlu0 %v1946, 32
  %v1956 = vpop.permute.xlu0 %1955
  %v1958 = vmul.f32 %v1952, %v1956
  %1960 = vrot.lane.b32.xlu0 %v1953, 64
  %v1961 = vpop.permute.xlu0 %1960
  %v1963 = vmul.f32 %v1952, %v1961
  %1965 = vrot.lane.b32.xlu0 %v1963, 32
  %v1966 = vpop.permute.xlu0 %1965
  %v1968 = vadd.f32 %v1958, %v1966
  %v1969 = vtanh.pop %v1968
  %1971 = vrot.lane.b32.xlu0 %v1969, 64
  %v1972 = vpop.permute.xlu0 %1971
  %v1974 = vmul.f32 %v1952, %v1972
  %1976 = vrot.lane.b32.xlu0 %v1789, 96
  %v1977 = vpop.permute.xlu0 %1976
  %v1979 = vsel %vm757, %v1942, %v1977
  %1981 = vrot.lane.b32.xlu0 %v1979, 32
  %v1982 = vpop.permute.xlu0 %1981
  %1984 = vst.msk [vmem:[#allocation4] sm:$0xff] %vm280, %v1982
  %v1985 = vld [vmem:[#allocation5] sm:$0xff]
  %1987 = vrot.lane.b32.xlu0 %v1985, 32
  %v1988 = vpop.permute.xlu0 %1987
  %v1990 = vsel %vm757, %v1936, %v1988
  %1992 = vrot.lane.b32.xlu0 %v1990, 96
  %v1993 = vpop.permute.xlu0 %1992
  %1995 = vst.msk [vmem:[#allocation5] sm:$0xff] %vm280, %v1993
  %v1996 = vld [vmem:[#allocation6] sm:$0xff]
  %1998 = vrot.lane.b32.xlu0 %v1996, 96
  %v1999 = vpop.permute.xlu0 %1998
  %v2001 = vsel %vm730, %v1974, %v1999
  %2003 = vrot.lane.b32.xlu0 %v2001, 32
  %v2004 = vpop.permute.xlu0 %2003
  %2006 = vst.msk [vmem:[#allocation6] sm:$0xff] %vm280, %v2004
  %v2007 = vld [vmem:[#allocation7] sm:$0xff]
  %2009 = vrot.lane.b32.xlu0 %v2007, 32
  %v2010 = vpop.permute.xlu0 %2009
  %v2012 = vsel %vm730, %v1968, %v2010
  %2014 = vrot.lane.b32.xlu0 %v2012, 96
  %v2015 = vpop.permute.xlu0 %2014
  %2017 = vst.msk [vmem:[#allocation7] sm:$0xff] %vm280, %v2015
  %v2018 = vsel %vm757, %v1942, 0.0
  %2020 = vrot.lane.b32.xlu0 %v2018, 32
  %v2021 = vpop.permute.xlu0 %2020
  %s2023 = scalar_lea.vmem [#allocation8], 48
  %2024 = vst.msk [vmem:[%s2023] sm:$0xff] %vm280, %v2021
  %v2025 = vsel %vm730, %v1974, 0.0
  %2027 = vrot.lane.b32.xlu0 %v2025, 32
  %v2028 = vpop.permute.xlu0 %2027
  %s2030 = scalar_lea.vmem [#allocation9], 8
  %2031 = vst.msk [vmem:[%s2030] sm:$0xff] %vm280, %v2028
  %v2032 = vld [vmem:[#allocation4] sm:$0xff]
  %v2033 = vpack.c.bf16 %v2032, %v2032
  %v2034 = vld [vmem:[%s3] sm:$0xf]
  %v2035 = vld [vmem:[%s3 + $0x4] sm:$0xf]
  %v2036 = vld [vmem:[%s3 + $0x8] sm:$0xf]
  %v2037 = vld [vmem:[%s3 + $0xc] sm:$0xf]
  %v2042 = vunpack.c.l.b16 %v2034
  %v2043 = vunpack.c.l.b16 %v2035
  %v2044 = vunpack.c.l.b16 %v2036
  %v2045 = vunpack.c.l.b16 %v2037
  %v2046 = vpack.c.b16 %v2043, %v2042
  %v2047 = vpack.c.b16 %v2045, %v2044
  %v2051 = vsel %vm280, %v2033, 0
  %2053 = vmatprep.subr.bf16.mxu0 0
  %2054 = vmatpush1.bf16.msra.mxu0 %v2046
  %2055 = vmatprep.subr.bf16.mxu0 0
  %2056 = vmatpush1.bf16.msra.mxu0 %v2047
  %2057 = vmatprep.subr.bf16.mxu0 0
  %2058 = vmatpush1.bf16.msra.mxu0 0
  %2059 = vmatprep.subr.bf16.mxu0 0
  %2060 = vmatpush1.bf16.msra.mxu0 0
  %2061 = vmatprep.subr.bf16.mxu0 0
  %2062 = vmatpush1.bf16.msra.mxu0 0
  %2063 = vmatprep.subr.bf16.mxu0 0
  %2064 = vmatpush1.bf16.msra.mxu0 0
  %2065 = vmatprep.subr.bf16.mxu0 0
  %2066 = vmatpush1.bf16.msra.mxu0 0
  %2067 = vmatprep.subr.bf16.mxu0 0
  %2068 = vmatpush1.bf16.msra.mxu0 0
  %2069 = vmatprep.subr.bf16.mxu0 0
  %2070 = vmatpush1.bf16.msra.mxu0 0
  %2071 = vmatprep.subr.bf16.mxu0 0
  %2072 = vmatpush1.bf16.msra.mxu0 0
  %2073 = vmatprep.subr.bf16.mxu0 0
  %2074 = vmatpush1.bf16.msra.mxu0 0
  %2075 = vmatprep.subr.bf16.mxu0 0
  %2076 = vmatpush1.bf16.msra.mxu0 0
  %2077 = vmatprep.subr.bf16.mxu0 0
  %2078 = vmatpush1.bf16.msra.mxu0 0
  %2079 = vmatprep.subr.bf16.mxu0 0
  %2080 = vmatpush1.bf16.msra.mxu0 0
  %2081 = vmatprep.subr.bf16.mxu0 0
  %2082 = vmatpush1.bf16.msra.mxu0 0
  %2083 = vmatprep.subr.bf16.mxu0 0
  %2084 = vmatpush1.bf16.msra.mxu0 0
  %2085 = vmatprep.mubr.bf16.mxu0 0
  %2086 = vmatmul.mubr.bf16.gmra.mrb[0].mxu0 %v2051
  %v2087 = vpop.f32.mrb[0].mxu0
  %v2088 = vadd.f32 0.0, %v2087
  %v2089 = vpop.f32.mrb[0].mxu0
  %v2090 = vpop.f32.mrb[0].mxu0
  %v2091 = vpop.f32.mrb[0].mxu0
  %2092 = vdwg.mxu0
  %v2093 = vld [vmem:[#allocation6] sm:$0xff]
  %v2094 = vpack.c.bf16 %v2093, %v2093
  %v2095 = vld [vmem:[%s6] sm:$0xf]
  %v2096 = vld [vmem:[%s6 + $0x4] sm:$0xf]
  %v2097 = vld [vmem:[%s6 + $0x8] sm:$0xf]
  %v2098 = vld [vmem:[%s6 + $0xc] sm:$0xf]
  %v2103 = vunpack.c.l.b16 %v2095
  %v2104 = vunpack.c.l.b16 %v2096
  %v2105 = vunpack.c.l.b16 %v2097
  %v2106 = vunpack.c.l.b16 %v2098
  %v2107 = vpack.c.b16 %v2104, %v2103
  %v2108 = vpack.c.b16 %v2106, %v2105
  %v2112 = vsel %vm280, %v2094, 0
  %2114 = vmatprep.subr.bf16.mxu0 0
  %2115 = vmatpush1.bf16.msra.mxu0 %v2107
  %2116 = vmatprep.subr.bf16.mxu0 0
  %2117 = vmatpush1.bf16.msra.mxu0 %v2108
  %2118 = vmatprep.subr.bf16.mxu0 0
  %2119 = vmatpush1.bf16.msra.mxu0 0
  %2120 = vmatprep.subr.bf16.mxu0 0
  %2121 = vmatpush1.bf16.msra.mxu0 0
  %2122 = vmatprep.subr.bf16.mxu0 0
  %2123 = vmatpush1.bf16.msra.mxu0 0
  %2124 = vmatprep.subr.bf16.mxu0 0
  %2125 = vmatpush1.bf16.msra.mxu0 0
  %2126 = vmatprep.subr.bf16.mxu0 0
  %2127 = vmatpush1.bf16.msra.mxu0 0
  %2128 = vmatprep.subr.bf16.mxu0 0
  %2129 = vmatpush1.bf16.msra.mxu0 0
  %2130 = vmatprep.subr.bf16.mxu0 0
  %2131 = vmatpush1.bf16.msra.mxu0 0
  %2132 = vmatprep.subr.bf16.mxu0 0
  %2133 = vmatpush1.bf16.msra.mxu0 0
  %2134 = vmatprep.subr.bf16.mxu0 0
  %2135 = vmatpush1.bf16.msra.mxu0 0
  %2136 = vmatprep.subr.bf16.mxu0 0
  %2137 = vmatpush1.bf16.msra.mxu0 0
  %2138 = vmatprep.subr.bf16.mxu0 0
  %2139 = vmatpush1.bf16.msra.mxu0 0
  %2140 = vmatprep.subr.bf16.mxu0 0
  %2141 = vmatpush1.bf16.msra.mxu0 0
  %2142 = vmatprep.subr.bf16.mxu0 0
  %2143 = vmatpush1.bf16.msra.mxu0 0
  %2144 = vmatprep.subr.bf16.mxu0 0
  %2145 = vmatpush1.bf16.msra.mxu0 0
  %2146 = vmatprep.mubr.bf16.mxu0 0
  %2147 = vmatmul.mubr.bf16.gmra.mrb[0].mxu0 %v2112
  %v2148 = vpop.f32.mrb[0].mxu0
  %v2149 = vadd.f32 0.0, %v2148
  %v2150 = vpop.f32.mrb[0].mxu0
  %v2151 = vpop.f32.mrb[0].mxu0
  %v2152 = vpop.f32.mrb[0].mxu0
  %2153 = vdwg.mxu0
  %s2154 = scalar_lea.vmem [#allocation2], 56
  %v2155 = vld [vmem:[%s2154] sm:$0xff]
  %v2156 = vadd.f32 %v2155, %v2088
  %v2157 = vld [vmem:[#allocation5] sm:$0xff]
  %v2158 = vxor.u32 %v2156, 2147483648
  %v2159 = vmul.f32 %v2158, 1.442695
  %v2160 = vpow.pop %v2159
  %v2161 = vadd.f32 %v2160, 1.0
  %v2162 = vrcp.pop %v2161
  %v2163 = vmul.f32 1.0, %v2162
  %v2164 = vtanh.pop %v2156
  %2166 = vrot.lane.b32.xlu0 %v2157, 32
  %v2167 = vpop.permute.xlu0 %2166
  %v2169 = vmul.f32 %v2163, %v2167
  %2171 = vrot.lane.b32.xlu0 %v2164, 64
  %v2172 = vpop.permute.xlu0 %2171
  %v2174 = vmul.f32 %v2163, %v2172
  %2176 = vrot.lane.b32.xlu0 %v2174, 32
  %v2177 = vpop.permute.xlu0 %2176
  %v2179 = vadd.f32 %v2169, %v2177
  %v2180 = vtanh.pop %v2179
  %2182 = vrot.lane.b32.xlu0 %v2180, 64
  %v2183 = vpop.permute.xlu0 %2182
  %v2185 = vmul.f32 %v2163, %v2183
  %v2186 = vld [vmem:[#allocation3] sm:$0xff]
  %v2187 = vadd.f32 %v2186, %v2149
  %v2188 = vld [vmem:[#allocation7] sm:$0xff]
  %v2189 = vxor.u32 %v2187, 2147483648
  %v2190 = vmul.f32 %v2189, 1.442695
  %v2191 = vpow.pop %v2190
  %v2192 = vadd.f32 %v2191, 1.0
  %v2193 = vrcp.pop %v2192
  %v2194 = vmul.f32 1.0, %v2193
  %v2195 = vtanh.pop %v2187
  %2197 = vrot.lane.b32.xlu0 %v2188, 32
  %v2198 = vpop.permute.xlu0 %2197
  %v2200 = vmul.f32 %v2194, %v2198
  %2202 = vrot.lane.b32.xlu0 %v2195, 64
  %v2203 = vpop.permute.xlu0 %2202
  %v2205 = vmul.f32 %v2194, %v2203
  %2207 = vrot.lane.b32.xlu0 %v2205, 32
  %v2208 = vpop.permute.xlu0 %2207
  %v2210 = vadd.f32 %v2200, %v2208
  %v2211 = vtanh.pop %v2210
  %2213 = vrot.lane.b32.xlu0 %v2211, 64
  %v2214 = vpop.permute.xlu0 %2213
  %v2216 = vmul.f32 %v2194, %v2214
  %2218 = vrot.lane.b32.xlu0 %v2032, 96
  %v2219 = vpop.permute.xlu0 %2218
  %v2221 = vsel %vm503, %v2185, %v2219
  %2223 = vrot.lane.b32.xlu0 %v2221, 32
  %v2224 = vpop.permute.xlu0 %2223
  %2226 = vst.msk [vmem:[#allocation4] sm:$0xff] %vm280, %v2224
  %v2227 = vld [vmem:[#allocation5] sm:$0xff]
  %2229 = vrot.lane.b32.xlu0 %v2227, 32
  %v2230 = vpop.permute.xlu0 %2229
  %v2232 = vsel %vm503, %v2179, %v2230
  %2234 = vrot.lane.b32.xlu0 %v2232, 96
  %v2235 = vpop.permute.xlu0 %2234
  %2237 = vst.msk [vmem:[#allocation5] sm:$0xff] %vm280, %v2235
  %v2238 = vld [vmem:[#allocation6] sm:$0xff]
  %2240 = vrot.lane.b32.xlu0 %v2238, 96
  %v2241 = vpop.permute.xlu0 %2240
  %v2243 = vsel %vm476, %v2216, %v2241
  %2245 = vrot.lane.b32.xlu0 %v2243, 32
  %v2246 = vpop.permute.xlu0 %2245
  %2248 = vst.msk [vmem:[#allocation6] sm:$0xff] %vm280, %v2246
  %v2249 = vld [vmem:[#allocation7] sm:$0xff]
  %2251 = vrot.lane.b32.xlu0 %v2249, 32
  %v2252 = vpop.permute.xlu0 %2251
  %v2254 = vsel %vm476, %v2210, %v2252
  %2256 = vrot.lane.b32.xlu0 %v2254, 96
  %v2257 = vpop.permute.xlu0 %2256
  %2259 = vst.msk [vmem:[#allocation7] sm:$0xff] %vm280, %v2257
  %v2260 = vsel %vm503, %v2185, 0.0
  %2262 = vrot.lane.b32.xlu0 %v2260, 32
  %v2263 = vpop.permute.xlu0 %2262
  %s2265 = scalar_lea.vmem [#allocation8], 56
  %2266 = vst.msk [vmem:[%s2265] sm:$0xff] %vm280, %v2263
  %v2267 = vsel %vm476, %v2216, 0.0
  %2269 = vrot.lane.b32.xlu0 %v2267, 32
  %v2270 = vpop.permute.xlu0 %2269
  %2272 = vst.msk [vmem:[#allocation9] sm:$0xff] %vm280, %v2270
  %v2273 = vld [vmem:[#allocation8] sm:$0xff]
  %v2274 = vld [vmem:[#allocation8 + $0x8] sm:$0xff]
  %v2275 = vld [vmem:[#allocation8 + $0x10] sm:$0xff]
  %v2276 = vld [vmem:[#allocation8 + $0x18] sm:$0xff]
  %v2277 = vld [vmem:[#allocation8 + $0x20] sm:$0xff]
  %v2278 = vld [vmem:[#allocation8 + $0x28] sm:$0xff]
  %v2279 = vld [vmem:[#allocation8 + $0x30] sm:$0xff]
  %v2280 = vld [vmem:[#allocation8 + $0x38] sm:$0xff]
  %2281 = vst.msk [vmem:[%s8] sm:$0xff] %vm280, %v2273
  %2282 = vst.msk [vmem:[%s8 + $0x8] sm:$0xff] %vm280, %v2274
  %2283 = vst.msk [vmem:[%s8 + $0x10] sm:$0xff] %vm280, %v2275
  %2284 = vst.msk [vmem:[%s8 + $0x18] sm:$0xff] %vm280, %v2276
  %2285 = vst.msk [vmem:[%s8 + $0x20] sm:$0xff] %vm280, %v2277
  %2286 = vst.msk [vmem:[%s8 + $0x28] sm:$0xff] %vm280, %v2278
  %2287 = vst.msk [vmem:[%s8 + $0x30] sm:$0xff] %vm280, %v2279
  %2288 = vst.msk [vmem:[%s8 + $0x38] sm:$0xff] %vm280, %v2280
  %v2289 = vld [vmem:[#allocation9] sm:$0xff]
  %v2290 = vld [vmem:[#allocation9 + $0x8] sm:$0xff]
  %v2291 = vld [vmem:[#allocation9 + $0x10] sm:$0xff]
  %v2292 = vld [vmem:[#allocation9 + $0x18] sm:$0xff]
  %v2293 = vld [vmem:[#allocation9 + $0x20] sm:$0xff]
  %v2294 = vld [vmem:[#allocation9 + $0x28] sm:$0xff]
  %v2295 = vld [vmem:[#allocation9 + $0x30] sm:$0xff]
  %v2296 = vld [vmem:[#allocation9 + $0x38] sm:$0xff]
  %2305 = vrot.lane.b32.xlu0 %v2289, 32
  %v2306 = vpop.permute.xlu0 %2305
  %2307 = vrot.lane.b32.xlu0 %v2290, 32
  %v2308 = vpop.permute.xlu0 %2307
  %2309 = vrot.lane.b32.xlu0 %v2291, 32
  %v2310 = vpop.permute.xlu0 %2309
  %2311 = vrot.lane.b32.xlu0 %v2292, 32
  %v2312 = vpop.permute.xlu0 %2311
  %2313 = vrot.lane.b32.xlu0 %v2293, 32
  %v2314 = vpop.permute.xlu0 %2313
  %2315 = vrot.lane.b32.xlu0 %v2294, 32
  %v2316 = vpop.permute.xlu0 %2315
  %2317 = vrot.lane.b32.xlu0 %v2295, 32
  %v2318 = vpop.permute.xlu0 %2317
  %2319 = vrot.lane.b32.xlu0 %v2296, 32
  %v2320 = vpop.permute.xlu0 %2319
  %vm2329 = vcmask 523520
  %2330 = vst.msk [vmem:[%s8] sm:$0xff] %vm2329, %v2306
  %2331 = vst.msk [vmem:[%s8 + $0x8] sm:$0xff] %vm2329, %v2308
  %2332 = vst.msk [vmem:[%s8 + $0x10] sm:$0xff] %vm2329, %v2310
  %2333 = vst.msk [vmem:[%s8 + $0x18] sm:$0xff] %vm2329, %v2312
  %2334 = vst.msk [vmem:[%s8 + $0x20] sm:$0xff] %vm2329, %v2314
  %2335 = vst.msk [vmem:[%s8 + $0x28] sm:$0xff] %vm2329, %v2316
  %2336 = vst.msk [vmem:[%s8 + $0x30] sm:$0xff] %vm2329, %v2318
  %2337 = vst.msk [vmem:[%s8 + $0x38] sm:$0xff] %vm2329, %v2320
  // Predicated region
  $region34: #{recurrent_qa_head_forward.2} parent=0 // pred_check
    _
  $region35: #{recurrent_qa_head_forward.2} parent=0 // pred_check_branch
    %2339 = sbr.rel (0) target = $region37
  $region36: #{recurrent_qa_head_forward.2} parent=0 // pred_region
    _
  $region37: #{recurrent_qa_head_forward.2} parent=0 // pred_fallthru
    _
  // Predicated region
  $region38: #{recurrent_qa_head_forward.2} parent=0 // pred_check
    _
  $region39: #{recurrent_qa_head_forward.2} parent=0 // pred_check_branch
    %2341 = sbr.rel (0) target = $region41
  $region40: #{recurrent_qa_head_forward.2} parent=0 // pred_region
    _
  $region41: #{recurrent_qa_head_forward.2} parent=0 // pred_fallthru
    _

// kernel: recurrent_qa_head_forward.3
$region0: #{recurrent_qa_head_forward.3}
  #allocation0 [shape = 'u32[]', space=smem, size = 0x4, offset = 0x4, fixed_abs, tag = 'smem constant byte address 0x4 - core index']
  #allocation1 [shape = 'u32[144,128]{1,0:T(1,128)}', space=vmem, size = 0x12000, scoped, tag = 'internal scratch']
  #allocation2 [shape = 'f32[8,8,128]{2,1,0:T(8,128)}', space=vmem, size = 0x8000, scoped, tag = 'scratch operand']
  #allocation3 [shape = 'f32[8,8,128]{2,1,0:T(8,128)}', space=vmem, size = 0x8000, scoped, tag = 'scratch operand']
  #allocation4 [shape = 'f32[8,32]{1,0:T(8,128)}', space=vmem, size = 0x1000, scoped, tag = 'scratch operand']
  #allocation5 [shape = 'f32[8,32]{1,0:T(8,128)}', space=vmem, size = 0x1000, scoped, tag = 'scratch operand']
  #allocation6 [shape = 'f32[8,32]{1,0:T(8,128)}', space=vmem, size = 0x1000, scoped, tag = 'scratch operand']
  #allocation7 [shape = 'f32[8,32]{1,0:T(8,128)}', space=vmem, size = 0x1000, scoped, tag = 'scratch operand']
  #allocation8 [shape = 'f32[8,8,32]{2,1,0:T(8,128)}', space=vmem, size = 0x8000, scoped, tag = 'scratch operand']
  #allocation9 [shape = 'f32[8,8,32]{2,1,0:T(8,128)}', space=vmem, size = 0x8000, scoped, tag = 'scratch operand']
  %s0 = inlined_call_operand.vmem [shape: f32[8,8,64], index: 0, kind: input, shape index: {}]
  %s1 = inlined_call_operand.vmem [shape: s32[8,1], index: 1, kind: input, shape index: {}]
  %s2 = inlined_call_operand.vmem [shape: bf16[64,128], index: 2, kind: input, shape index: {}]
  %s3 = inlined_call_operand.vmem [shape: bf16[32,128], index: 3, kind: input, shape index: {}]
  %s4 = inlined_call_operand.vmem [shape: f32[1,128], index: 4, kind: input, shape index: {}]
  %s5 = inlined_call_operand.vmem [shape: bf16[64,128], index: 5, kind: input, shape index: {}]
  %s6 = inlined_call_operand.vmem [shape: bf16[32,128], index: 6, kind: input, shape index: {}]
  %s7 = inlined_call_operand.vmem [shape: f32[1,128], index: 7, kind: input, shape index: {}]
  %s8 = inlined_call_operand.vmem [shape: bf16[32,128], index: 8, kind: input, shape index: {}]
  %s9 = inlined_call_operand.vmem [shape: bf16[32,128], index: 9, kind: input, shape index: {}]
  %s10 = inlined_call_operand.vmem [shape: f32[1,128], index: 10, kind: input, shape index: {}]
  %s11 = inlined_call_operand.vmem [shape: f32[8,8,128], index: 11, kind: output, shape index: {}]
  %s12 = sld [smem:[#allocation0]]
  $region54: #{recurrent_qa_head_forward.3} parent=0
    _
  %s14 = ssub.s32 1, %s12
  %s15 = scalar_select 0, %s14, %s12
  // Predicated region
  $region2: #{recurrent_qa_head_forward.3} parent=0 // pred_check
    _
  $region3: #{recurrent_qa_head_forward.3} parent=0 // pred_check_branch
    %17 = sbr.rel (0) target = $region5
  $region4: #{recurrent_qa_head_forward.3} parent=0 // pred_region
    _
  $region5: #{recurrent_qa_head_forward.3} parent=0 // pred_fallthru
    _
  // Predicated region
  $region6: #{recurrent_qa_head_forward.3} parent=0 // pred_check
    _
  $region7: #{recurrent_qa_head_forward.3} parent=0 // pred_check_branch
    %19 = sbr.rel (0) target = $region9
  $region8: #{recurrent_qa_head_forward.3} parent=0 // pred_region
    _
  $region9: #{recurrent_qa_head_forward.3} parent=0 // pred_fallthru
    _
  // Predicated region
  $region10: #{recurrent_qa_head_forward.3} parent=0 // pred_check
    _
  $region11: #{recurrent_qa_head_forward.3} parent=0 // pred_check_branch
    %21 = sbr.rel (0) target = $region13
  $region12: #{recurrent_qa_head_forward.3} parent=0 // pred_region
    _
  $region13: #{recurrent_qa_head_forward.3} parent=0 // pred_fallthru
    _
  // Predicated region
  $region14: #{recurrent_qa_head_forward.3} parent=0 // pred_check
    _
  $region15: #{recurrent_qa_head_forward.3} parent=0 // pred_check_branch
    %23 = sbr.rel (0) target = $region17
  $region16: #{recurrent_qa_head_forward.3} parent=0 // pred_region
    _
  $region17: #{recurrent_qa_head_forward.3} parent=0 // pred_fallthru
    _
  // Predicated region
  $region18: #{recurrent_qa_head_forward.3} parent=0 // pred_check
    _
  $region19: #{recurrent_qa_head_forward.3} parent=0 // pred_check_branch
    %25 = sbr.rel (0) target = $region21
  $region20: #{recurrent_qa_head_forward.3} parent=0 // pred_region
    _
  $region21: #{recurrent_qa_head_forward.3} parent=0 // pred_fallthru
    _
  // Predicated region
  $region22: #{recurrent_qa_head_forward.3} parent=0 // pred_check
    _
  $region23: #{recurrent_qa_head_forward.3} parent=0 // pred_check_branch
    %27 = sbr.rel (0) target = $region25
  $region24: #{recurrent_qa_head_forward.3} parent=0 // pred_region
    _
  $region25: #{recurrent_qa_head_forward.3} parent=0 // pred_fallthru
    _
  // Predicated region
  $region26: #{recurrent_qa_head_forward.3} parent=0 // pred_check
    _
  $region27: #{recurrent_qa_head_forward.3} parent=0 // pred_check_branch
    %29 = sbr.rel (0) target = $region29
  $region28: #{recurrent_qa_head_forward.3} parent=0 // pred_region
    _
  $region29: #{recurrent_qa_head_forward.3} parent=0 // pred_fallthru
    _
  // Predicated region
  $region30: #{recurrent_qa_head_forward.3} parent=0 // pred_check
    _
  $region31: #{recurrent_qa_head_forward.3} parent=0 // pred_check_branch
    %31 = sbr.rel (0) target = $region33
  $region32: #{recurrent_qa_head_forward.3} parent=0 // pred_region
    _
  $region33: #{recurrent_qa_head_forward.3} parent=0 // pred_fallthru
    _
  // Predicated region
  $region34: #{recurrent_qa_head_forward.3} parent=0 // pred_check
    _
  $region35: #{recurrent_qa_head_forward.3} parent=0 // pred_check_branch
    %33 = sbr.rel (0) target = $region37
  $region36: #{recurrent_qa_head_forward.3} parent=0 // pred_region
    _
  $region37: #{recurrent_qa_head_forward.3} parent=0 // pred_fallthru
    _
  // Predicated region
  $region38: #{recurrent_qa_head_forward.3} parent=0 // pred_check
    _
  $region39: #{recurrent_qa_head_forward.3} parent=0 // pred_check_branch
    %35 = sbr.rel (0) target = $region41
  $region40: #{recurrent_qa_head_forward.3} parent=0 // pred_region
    _
  $region41: #{recurrent_qa_head_forward.3} parent=0 // pred_fallthru
    _
  // Predicated region
  $region42: #{recurrent_qa_head_forward.3} parent=0 // pred_check
    _
  $region43: #{recurrent_qa_head_forward.3} parent=0 // pred_check_branch
    %37 = sbr.rel (0) target = $region45
  $region44: #{recurrent_qa_head_forward.3} parent=0 // pred_region
    _
  $region45: #{recurrent_qa_head_forward.3} parent=0 // pred_fallthru
    _
  %v39 = vld [vmem:[%s1] sm:$0xff]
  %v40 = vld [vmem:[%s0] sm:$0xff]
  %v41 = vld [vmem:[%s0 + $0x8] sm:$0xff]
  %v42 = vld [vmem:[%s0 + $0x10] sm:$0xff]
  %v43 = vld [vmem:[%s0 + $0x18] sm:$0xff]
  %v44 = vld [vmem:[%s0 + $0x20] sm:$0xff]
  %v45 = vld [vmem:[%s0 + $0x28] sm:$0xff]
  %v46 = vld [vmem:[%s0 + $0x30] sm:$0xff]
  %v47 = vld [vmem:[%s0 + $0x38] sm:$0xff]
  %v48 = vpack.c.bf16 %v41, %v40
  %v49 = vpack.c.bf16 %v43, %v42
  %v50 = vpack.c.bf16 %v45, %v44
  %v51 = vpack.c.bf16 %v47, %v46
  %v52 = vld [vmem:[%s2] sm:$0xf]
  %v53 = vld [vmem:[%s2 + $0x4] sm:$0xf]
  %v54 = vld [vmem:[%s2 + $0x8] sm:$0xf]
  %v55 = vld [vmem:[%s2 + $0xc] sm:$0xf]
  %v56 = vld [vmem:[%s2 + $0x10] sm:$0xf]
  %v57 = vld [vmem:[%s2 + $0x14] sm:$0xf]
  %v58 = vld [vmem:[%s2 + $0x18] sm:$0xf]
  %v59 = vld [vmem:[%s2 + $0x1c] sm:$0xf]
  %v60 = vld [vmem:[%s4] sm:$0x1]
  %v62 = vlaneseq
  %v63 = vshrl.u32 %v62, 7
  %v64 = vsub.s32 0, %v63
  %v65 = vrot.slane %v60, %v64
  %v75 = vunpack.c.l.b16 %v52
  %v76 = vunpack.c.l.b16 %v53
  %v77 = vunpack.c.l.b16 %v54
  %v78 = vunpack.c.l.b16 %v55
  %v79 = vunpack.c.l.b16 %v56
  %v80 = vunpack.c.l.b16 %v57
  %v81 = vunpack.c.l.b16 %v58
  %v82 = vunpack.c.l.b16 %v59
  %v83 = vpack.c.b16 %v76, %v75
  %v84 = vpack.c.b16 %v78, %v77
  %v85 = vpack.c.b16 %v80, %v79
  %v86 = vpack.c.b16 %v82, %v81
  %vm91 = vcmask 523264
  %v93 = vsel %vm91, %v48, 0
  %v96 = vsel %vm91, %v49, 0
  %v99 = vsel %vm91, %v50, 0
  %v102 = vsel %vm91, %v51, 0
  %104 = vmatprep.subr.bf16.mxu0 0
  %105 = vmatpush1.bf16.msra.mxu0 %v83
  %106 = vmatprep.subr.bf16.mxu0 0
  %107 = vmatpush1.bf16.msra.mxu0 %v84
  %108 = vmatprep.subr.bf16.mxu0 0
  %109 = vmatpush1.bf16.msra.mxu0 %v85
  %110 = vmatprep.subr.bf16.mxu0 0
  %111 = vmatpush1.bf16.msra.mxu0 %v86
  %112 = vmatprep.subr.bf16.mxu0 0
  %113 = vmatpush1.bf16.msra.mxu0 0
  %114 = vmatprep.subr.bf16.mxu0 0
  %115 = vmatpush1.bf16.msra.mxu0 0
  %116 = vmatprep.subr.bf16.mxu0 0
  %117 = vmatpush1.bf16.msra.mxu0 0
  %118 = vmatprep.subr.bf16.mxu0 0
  %119 = vmatpush1.bf16.msra.mxu0 0
  %120 = vmatprep.subr.bf16.mxu0 0
  %121 = vmatpush1.bf16.msra.mxu0 0
  %122 = vmatprep.subr.bf16.mxu0 0
  %123 = vmatpush1.bf16.msra.mxu0 0
  %124 = vmatprep.subr.bf16.mxu0 0
  %125 = vmatpush1.bf16.msra.mxu0 0
  %126 = vmatprep.subr.bf16.mxu0 0
  %127 = vmatpush1.bf16.msra.mxu0 0
  %128 = vmatprep.subr.bf16.mxu0 0
  %129 = vmatpush1.bf16.msra.mxu0 0
  %130 = vmatprep.subr.bf16.mxu0 0
  %131 = vmatpush1.bf16.msra.mxu0 0
  %132 = vmatprep.subr.bf16.mxu0 0
  %133 = vmatpush1.bf16.msra.mxu0 0
  %134 = vmatprep.subr.bf16.mxu0 0
  %135 = vmatpush1.bf16.msra.mxu0 0
  %136 = vmatprep.mubr.bf16.mxu0 0
  %137 = vmatmul.mubr.bf16.gmra.mrb[0].mxu0 %v93
  %v138 = vpop.f32.mrb[0].mxu0
  %v139 = vadd.f32 %v65, %v138
  %v140 = vpop.f32.mrb[0].mxu0
  %v141 = vpop.f32.mrb[0].mxu0
  %v142 = vadd.f32 %v65, %v141
  %v143 = vpop.f32.mrb[0].mxu0
  %144 = vmatprep.mubr.bf16.mxu0 0
  %145 = vmatmul.mubr.bf16.gmra.mrb[0].mxu0 %v96
  %v146 = vpop.f32.mrb[0].mxu0
  %v147 = vadd.f32 %v65, %v146
  %v148 = vpop.f32.mrb[0].mxu0
  %v149 = vpop.f32.mrb[0].mxu0
  %v150 = vadd.f32 %v65, %v149
  %v151 = vpop.f32.mrb[0].mxu0
  %152 = vmatprep.mubr.bf16.mxu0 0
  %153 = vmatmul.mubr.bf16.gmra.mrb[0].mxu0 %v99
  %v154 = vpop.f32.mrb[0].mxu0
  %v155 = vadd.f32 %v65, %v154
  %v156 = vpop.f32.mrb[0].mxu0
  %v157 = vpop.f32.mrb[0].mxu0
  %v158 = vadd.f32 %v65, %v157
  %v159 = vpop.f32.mrb[0].mxu0
  %160 = vmatprep.mubr.bf16.mxu0 0
  %161 = vmatmul.mubr.bf16.gmra.mrb[0].mxu0 %v102
  %v162 = vpop.f32.mrb[0].mxu0
  %v163 = vadd.f32 %v65, %v162
  %v164 = vpop.f32.mrb[0].mxu0
  %v165 = vpop.f32.mrb[0].mxu0
  %v166 = vadd.f32 %v65, %v165
  %v167 = vpop.f32.mrb[0].mxu0
  %168 = vdwg.mxu0
  %v169 = vld [vmem:[%s5] sm:$0xf]
  %v170 = vld [vmem:[%s5 + $0x4] sm:$0xf]
  %v171 = vld [vmem:[%s5 + $0x8] sm:$0xf]
  %v172 = vld [vmem:[%s5 + $0xc] sm:$0xf]
  %v173 = vld [vmem:[%s5 + $0x10] sm:$0xf]
  %v174 = vld [vmem:[%s5 + $0x14] sm:$0xf]
  %v175 = vld [vmem:[%s5 + $0x18] sm:$0xf]
  %v176 = vld [vmem:[%s5 + $0x1c] sm:$0xf]
  %v177 = vld [vmem:[%s7] sm:$0x1]
  %v179 = vlaneseq
  %v180 = vshrl.u32 %v179, 7
  %v181 = vsub.s32 0, %v180
  %v182 = vrot.slane %v177, %v181
  %v192 = vunpack.c.l.b16 %v169
  %v193 = vunpack.c.l.b16 %v170
  %v194 = vunpack.c.l.b16 %v171
  %v195 = vunpack.c.l.b16 %v172
  %v196 = vunpack.c.l.b16 %v173
  %v197 = vunpack.c.l.b16 %v174
  %v198 = vunpack.c.l.b16 %v175
  %v199 = vunpack.c.l.b16 %v176
  %v200 = vpack.c.b16 %v193, %v192
  %v201 = vpack.c.b16 %v195, %v194
  %v202 = vpack.c.b16 %v197, %v196
  %v203 = vpack.c.b16 %v199, %v198
  %208 = vmatprep.subr.bf16.mxu0 0
  %209 = vmatpush1.bf16.msra.mxu0 %v200
  %210 = vmatprep.subr.bf16.mxu0 0
  %211 = vmatpush1.bf16.msra.mxu0 %v201
  %212 = vmatprep.subr.bf16.mxu0 0
  %213 = vmatpush1.bf16.msra.mxu0 %v202
  %214 = vmatprep.subr.bf16.mxu0 0
  %215 = vmatpush1.bf16.msra.mxu0 %v203
  %216 = vmatprep.subr.bf16.mxu0 0
  %217 = vmatpush1.bf16.msra.mxu0 0
  %218 = vmatprep.subr.bf16.mxu0 0
  %219 = vmatpush1.bf16.msra.mxu0 0
  %220 = vmatprep.subr.bf16.mxu0 0
  %221 = vmatpush1.bf16.msra.mxu0 0
  %222 = vmatprep.subr.bf16.mxu0 0
  %223 = vmatpush1.bf16.msra.mxu0 0
  %224 = vmatprep.subr.bf16.mxu0 0
  %225 = vmatpush1.bf16.msra.mxu0 0
  %226 = vmatprep.subr.bf16.mxu0 0
  %227 = vmatpush1.bf16.msra.mxu0 0
  %228 = vmatprep.subr.bf16.mxu0 0
  %229 = vmatpush1.bf16.msra.mxu0 0
  %230 = vmatprep.subr.bf16.mxu0 0
  %231 = vmatpush1.bf16.msra.mxu0 0
  %232 = vmatprep.subr.bf16.mxu0 0
  %233 = vmatpush1.bf16.msra.mxu0 0
  %234 = vmatprep.subr.bf16.mxu0 0
  %235 = vmatpush1.bf16.msra.mxu0 0
  %236 = vmatprep.subr.bf16.mxu0 0
  %237 = vmatpush1.bf16.msra.mxu0 0
  %238 = vmatprep.subr.bf16.mxu0 0
  %239 = vmatpush1.bf16.msra.mxu0 0
  %240 = vmatprep.mubr.bf16.mxu0 0
  %241 = vmatmul.mubr.bf16.gmra.mrb[0].mxu0 %v93
  %v242 = vpop.f32.mrb[0].mxu0
  %v243 = vadd.f32 %v182, %v242
  %v244 = vpop.f32.mrb[0].mxu0
  %v245 = vpop.f32.mrb[0].mxu0
  %v246 = vadd.f32 %v182, %v245
  %v247 = vpop.f32.mrb[0].mxu0
  %248 = vmatprep.mubr.bf16.mxu0 0
  %249 = vmatmul.mubr.bf16.gmra.mrb[0].mxu0 %v96
  %v250 = vpop.f32.mrb[0].mxu0
  %v251 = vadd.f32 %v182, %v250
  %v252 = vpop.f32.mrb[0].mxu0
  %v253 = vpop.f32.mrb[0].mxu0
  %v254 = vadd.f32 %v182, %v253
  %v255 = vpop.f32.mrb[0].mxu0
  %256 = vmatprep.mubr.bf16.mxu0 0
  %257 = vmatmul.mubr.bf16.gmra.mrb[0].mxu0 %v99
  %v258 = vpop.f32.mrb[0].mxu0
  %v259 = vadd.f32 %v182, %v258
  %v260 = vpop.f32.mrb[0].mxu0
  %v261 = vpop.f32.mrb[0].mxu0
  %v262 = vadd.f32 %v182, %v261
  %v263 = vpop.f32.mrb[0].mxu0
  %264 = vmatprep.mubr.bf16.mxu0 0
  %265 = vmatmul.mubr.bf16.gmra.mrb[0].mxu0 %v102
  %v266 = vpop.f32.mrb[0].mxu0
  %v267 = vadd.f32 %v182, %v266
  %v268 = vpop.f32.mrb[0].mxu0
  %v269 = vpop.f32.mrb[0].mxu0
  %v270 = vadd.f32 %v182, %v269
  %v271 = vpop.f32.mrb[0].mxu0
  %272 = vdwg.mxu0
  %273 = vst [vmem:[#allocation2] sm:$0xff] %v139
  %274 = vst [vmem:[#allocation2 + $0x8] sm:$0xff] %v142
  %275 = vst [vmem:[#allocation2 + $0x10] sm:$0xff] %v147
  %276 = vst [vmem:[#allocation2 + $0x18] sm:$0xff] %v150
  %277 = vst [vmem:[#allocation2 + $0x20] sm:$0xff] %v155
  %278 = vst [vmem:[#allocation2 + $0x28] sm:$0xff] %v158
  %279 = vst [vmem:[#allocation2 + $0x30] sm:$0xff] %v163
  %280 = vst [vmem:[#allocation2 + $0x38] sm:$0xff] %v166
  %281 = vst [vmem:[#allocation3] sm:$0xff] %v243
  %282 = vst [vmem:[#allocation3 + $0x8] sm:$0xff] %v246
  %283 = vst [vmem:[#allocation3 + $0x10] sm:$0xff] %v251
  %284 = vst [vmem:[#allocation3 + $0x18] sm:$0xff] %v254
  %285 = vst [vmem:[#allocation3 + $0x20] sm:$0xff] %v259
  %286 = vst [vmem:[#allocation3 + $0x28] sm:$0xff] %v262
  %287 = vst [vmem:[#allocation3 + $0x30] sm:$0xff] %v267
  %288 = vst [vmem:[#allocation3 + $0x38] sm:$0xff] %v270
  %vm289 = vcmask 261120
  %290 = vst.msk [vmem:[#allocation4] sm:$0xff] %vm289, 0.0
  %291 = vst.msk [vmem:[#allocation5] sm:$0xff] %vm289, 0.0
  %292 = vst.msk [vmem:[#allocation6] sm:$0xff] %vm289, 0.0
  %293 = vst.msk [vmem:[#allocation7] sm:$0xff] %vm289, 0.0
  %v294 = vld [vmem:[#allocation4] sm:$0xff]
  %v295 = vpack.c.bf16 %v294, %v294
  %v296 = vld [vmem:[%s3] sm:$0xf]
  %v297 = vld [vmem:[%s3 + $0x4] sm:$0xf]
  %v298 = vld [vmem:[%s3 + $0x8] sm:$0xf]
  %v299 = vld [vmem:[%s3 + $0xc] sm:$0xf]
  %v304 = vunpack.c.l.b16 %v296
  %v305 = vunpack.c.l.b16 %v297
  %v306 = vunpack.c.l.b16 %v298
  %v307 = vunpack.c.l.b16 %v299
  %v308 = vpack.c.b16 %v305, %v304
  %v309 = vpack.c.b16 %v307, %v306
  %v313 = vsel %vm289, %v295, 0
  %315 = vmatprep.subr.bf16.mxu0 0
  %316 = vmatpush1.bf16.msra.mxu0 %v308
  %317 = vmatprep.subr.bf16.mxu0 0
  %318 = vmatpush1.bf16.msra.mxu0 %v309
  %319 = vmatprep.subr.bf16.mxu0 0
  %320 = vmatpush1.bf16.msra.mxu0 0
  %321 = vmatprep.subr.bf16.mxu0 0
  %322 = vmatpush1.bf16.msra.mxu0 0
  %323 = vmatprep.subr.bf16.mxu0 0
  %324 = vmatpush1.bf16.msra.mxu0 0
  %325 = vmatprep.subr.bf16.mxu0 0
  %326 = vmatpush1.bf16.msra.mxu0 0
  %327 = vmatprep.subr.bf16.mxu0 0
  %328 = vmatpush1.bf16.msra.mxu0 0
  %329 = vmatprep.subr.bf16.mxu0 0
  %330 = vmatpush1.bf16.msra.mxu0 0
  %331 = vmatprep.subr.bf16.mxu0 0
  %332 = vmatpush1.bf16.msra.mxu0 0
  %333 = vmatprep.subr.bf16.mxu0 0
  %334 = vmatpush1.bf16.msra.mxu0 0
  %335 = vmatprep.subr.bf16.mxu0 0
  %336 = vmatpush1.bf16.msra.mxu0 0
  %337 = vmatprep.subr.bf16.mxu0 0
  %338 = vmatpush1.bf16.msra.mxu0 0
  %339 = vmatprep.subr.bf16.mxu0 0
  %340 = vmatpush1.bf16.msra.mxu0 0
  %341 = vmatprep.subr.bf16.mxu0 0
  %342 = vmatpush1.bf16.msra.mxu0 0
  %343 = vmatprep.subr.bf16.mxu0 0
  %344 = vmatpush1.bf16.msra.mxu0 0
  %345 = vmatprep.subr.bf16.mxu0 0
  %346 = vmatpush1.bf16.msra.mxu0 0
  %347 = vmatprep.mubr.bf16.mxu0 0
  %348 = vmatmul.mubr.bf16.gmra.mrb[0].mxu0 %v313
  %v349 = vpop.f32.mrb[0].mxu0
  %v350 = vadd.f32 0.0, %v349
  %v351 = vpop.f32.mrb[0].mxu0
  %v352 = vpop.f32.mrb[0].mxu0
  %v353 = vpop.f32.mrb[0].mxu0
  %354 = vdwg.mxu0
  %v355 = vld [vmem:[#allocation6] sm:$0xff]
  %v356 = vpack.c.bf16 %v355, %v355
  %v357 = vld [vmem:[%s6] sm:$0xf]
  %v358 = vld [vmem:[%s6 + $0x4] sm:$0xf]
  %v359 = vld [vmem:[%s6 + $0x8] sm:$0xf]
  %v360 = vld [vmem:[%s6 + $0xc] sm:$0xf]
  %v365 = vunpack.c.l.b16 %v357
  %v366 = vunpack.c.l.b16 %v358
  %v367 = vunpack.c.l.b16 %v359
  %v368 = vunpack.c.l.b16 %v360
  %v369 = vpack.c.b16 %v366, %v365
  %v370 = vpack.c.b16 %v368, %v367
  %v374 = vsel %vm289, %v356, 0
  %376 = vmatprep.subr.bf16.mxu0 0
  %377 = vmatpush1.bf16.msra.mxu0 %v369
  %378 = vmatprep.subr.bf16.mxu0 0
  %379 = vmatpush1.bf16.msra.mxu0 %v370
  %380 = vmatprep.subr.bf16.mxu0 0
  %381 = vmatpush1.bf16.msra.mxu0 0
  %382 = vmatprep.subr.bf16.mxu0 0
  %383 = vmatpush1.bf16.msra.mxu0 0
  %384 = vmatprep.subr.bf16.mxu0 0
  %385 = vmatpush1.bf16.msra.mxu0 0
  %386 = vmatprep.subr.bf16.mxu0 0
  %387 = vmatpush1.bf16.msra.mxu0 0
  %388 = vmatprep.subr.bf16.mxu0 0
  %389 = vmatpush1.bf16.msra.mxu0 0
  %390 = vmatprep.subr.bf16.mxu0 0
  %391 = vmatpush1.bf16.msra.mxu0 0
  %392 = vmatprep.subr.bf16.mxu0 0
  %393 = vmatpush1.bf16.msra.mxu0 0
  %394 = vmatprep.subr.bf16.mxu0 0
  %395 = vmatpush1.bf16.msra.mxu0 0
  %396 = vmatprep.subr.bf16.mxu0 0
  %397 = vmatpush1.bf16.msra.mxu0 0
  %398 = vmatprep.subr.bf16.mxu0 0
  %399 = vmatpush1.bf16.msra.mxu0 0
  %400 = vmatprep.subr.bf16.mxu0 0
  %401 = vmatpush1.bf16.msra.mxu0 0
  %402 = vmatprep.subr.bf16.mxu0 0
  %403 = vmatpush1.bf16.msra.mxu0 0
  %404 = vmatprep.subr.bf16.mxu0 0
  %405 = vmatpush1.bf16.msra.mxu0 0
  %406 = vmatprep.subr.bf16.mxu0 0
  %407 = vmatpush1.bf16.msra.mxu0 0
  %408 = vmatprep.mubr.bf16.mxu0 0
  %409 = vmatmul.mubr.bf16.gmra.mrb[0].mxu0 %v374
  %v410 = vpop.f32.mrb[0].mxu0
  %v411 = vadd.f32 0.0, %v410
  %v412 = vpop.f32.mrb[0].mxu0
  %v413 = vpop.f32.mrb[0].mxu0
  %v414 = vpop.f32.mrb[0].mxu0
  %415 = vdwg.mxu0
  %v416 = vld [vmem:[#allocation2] sm:$0xff]
  %v417 = vadd.f32 %v416, %v350
  %v418 = vld [vmem:[#allocation5] sm:$0xff]
  %v419 = vxor.u32 %v417, 2147483648
  %v420 = vmul.f32 %v419, 1.442695
  %v421 = vpow.pop %v420
  %v422 = vadd.f32 %v421, 1.0
  %v423 = vrcp.pop %v422
  %v424 = vmul.f32 1.0, %v423
  %v425 = vtanh.pop %v417
  %427 = vrot.lane.b32.xlu0 %v418, 32
  %v428 = vpop.permute.xlu0 %427
  %v430 = vmul.f32 %v424, %v428
  %432 = vrot.lane.b32.xlu0 %v425, 64
  %v433 = vpop.permute.xlu0 %432
  %v435 = vmul.f32 %v424, %v433
  %437 = vrot.lane.b32.xlu0 %v435, 32
  %v438 = vpop.permute.xlu0 %437
  %v440 = vadd.f32 %v430, %v438
  %v441 = vtanh.pop %v440
  %443 = vrot.lane.b32.xlu0 %v441, 64
  %v444 = vpop.permute.xlu0 %443
  %v446 = vmul.f32 %v424, %v444
  %s447 = scalar_lea.vmem [#allocation3], 56
  %v448 = vld [vmem:[%s447] sm:$0xff]
  %v449 = vadd.f32 %v448, %v411
  %v450 = vld [vmem:[#allocation7] sm:$0xff]
  %v451 = vxor.u32 %v449, 2147483648
  %v452 = vmul.f32 %v451, 1.442695
  %v453 = vpow.pop %v452
  %v454 = vadd.f32 %v453, 1.0
  %v455 = vrcp.pop %v454
  %v456 = vmul.f32 1.0, %v455
  %v457 = vtanh.pop %v449
  %459 = vrot.lane.b32.xlu0 %v450, 32
  %v460 = vpop.permute.xlu0 %459
  %v462 = vmul.f32 %v456, %v460
  %464 = vrot.lane.b32.xlu0 %v457, 64
  %v465 = vpop.permute.xlu0 %464
  %v467 = vmul.f32 %v456, %v465
  %469 = vrot.lane.b32.xlu0 %v467, 32
  %v470 = vpop.permute.xlu0 %469
  %v472 = vadd.f32 %v462, %v470
  %v473 = vtanh.pop %v472
  %475 = vrot.lane.b32.xlu0 %v473, 64
  %v476 = vpop.permute.xlu0 %475
  %v478 = vmul.f32 %v456, %v476
  %vm479 = vcmp.gt.s32.totalorder %v39, 0
  %vm480 = vcmp.gt.s32.totalorder %v39, 7
  %v481 = vsel %vm479, 1, 0
  %482 = vset.pattern.permute.xlu0 0
  %483 = vperm.xlu0 %482, %v481
  %v484 = vpop.permute.xlu0 %483
  %vm485 = vcmp.eq.s32.totalorder %v484, 1
  %487 = vrot.lane.b32.xlu0 %v294, 96
  %v488 = vpop.permute.xlu0 %487
  %v490 = vsel %vm485, %v446, %v488
  %492 = vrot.lane.b32.xlu0 %v490, 32
  %v493 = vpop.permute.xlu0 %492
  %495 = vst.msk [vmem:[#allocation4] sm:$0xff] %vm289, %v493
  %v496 = vld [vmem:[#allocation5] sm:$0xff]
  %498 = vrot.lane.b32.xlu0 %v496, 32
  %v499 = vpop.permute.xlu0 %498
  %v501 = vsel %vm485, %v440, %v499
  %503 = vrot.lane.b32.xlu0 %v501, 96
  %v504 = vpop.permute.xlu0 %503
  %506 = vst.msk [vmem:[#allocation5] sm:$0xff] %vm289, %v504
  %v507 = vld [vmem:[#allocation6] sm:$0xff]
  %v508 = vsel %vm480, 1, 0
  %509 = vset.pattern.permute.xlu0 0
  %510 = vperm.xlu0 %509, %v508
  %v511 = vpop.permute.xlu0 %510
  %vm512 = vcmp.eq.s32.totalorder %v511, 1
  %514 = vrot.lane.b32.xlu0 %v507, 96
  %v515 = vpop.permute.xlu0 %514
  %v517 = vsel %vm512, %v478, %v515
  %519 = vrot.lane.b32.xlu0 %v517, 32
  %v520 = vpop.permute.xlu0 %519
  %522 = vst.msk [vmem:[#allocation6] sm:$0xff] %vm289, %v520
  %v523 = vld [vmem:[#allocation7] sm:$0xff]
  %525 = vrot.lane.b32.xlu0 %v523, 32
  %v526 = vpop.permute.xlu0 %525
  %v528 = vsel %vm512, %v472, %v526
  %530 = vrot.lane.b32.xlu0 %v528, 96
  %v531 = vpop.permute.xlu0 %530
  %533 = vst.msk [vmem:[#allocation7] sm:$0xff] %vm289, %v531
  %v534 = vsel %vm485, %v446, 0.0
  %536 = vrot.lane.b32.xlu0 %v534, 32
  %v537 = vpop.permute.xlu0 %536
  %539 = vst.msk [vmem:[#allocation8] sm:$0xff] %vm289, %v537
  %v540 = vsel %vm512, %v478, 0.0
  %542 = vrot.lane.b32.xlu0 %v540, 32
  %v543 = vpop.permute.xlu0 %542
  %s545 = scalar_lea.vmem [#allocation9], 56
  %546 = vst.msk [vmem:[%s545] sm:$0xff] %vm289, %v543
  %v547 = vld [vmem:[#allocation4] sm:$0xff]
  %v548 = vpack.c.bf16 %v547, %v547
  %v549 = vld [vmem:[%s3] sm:$0xf]
  %v550 = vld [vmem:[%s3 + $0x4] sm:$0xf]
  %v551 = vld [vmem:[%s3 + $0x8] sm:$0xf]
  %v552 = vld [vmem:[%s3 + $0xc] sm:$0xf]
  %v557 = vunpack.c.l.b16 %v549
  %v558 = vunpack.c.l.b16 %v550
  %v559 = vunpack.c.l.b16 %v551
  %v560 = vunpack.c.l.b16 %v552
  %v561 = vpack.c.b16 %v558, %v557
  %v562 = vpack.c.b16 %v560, %v559
  %v566 = vsel %vm289, %v548, 0
  %568 = vmatprep.subr.bf16.mxu0 0
  %569 = vmatpush1.bf16.msra.mxu0 %v561
  %570 = vmatprep.subr.bf16.mxu0 0
  %571 = vmatpush1.bf16.msra.mxu0 %v562
  %572 = vmatprep.subr.bf16.mxu0 0
  %573 = vmatpush1.bf16.msra.mxu0 0
  %574 = vmatprep.subr.bf16.mxu0 0
  %575 = vmatpush1.bf16.msra.mxu0 0
  %576 = vmatprep.subr.bf16.mxu0 0
  %577 = vmatpush1.bf16.msra.mxu0 0
  %578 = vmatprep.subr.bf16.mxu0 0
  %579 = vmatpush1.bf16.msra.mxu0 0
  %580 = vmatprep.subr.bf16.mxu0 0
  %581 = vmatpush1.bf16.msra.mxu0 0
  %582 = vmatprep.subr.bf16.mxu0 0
  %583 = vmatpush1.bf16.msra.mxu0 0
  %584 = vmatprep.subr.bf16.mxu0 0
  %585 = vmatpush1.bf16.msra.mxu0 0
  %586 = vmatprep.subr.bf16.mxu0 0
  %587 = vmatpush1.bf16.msra.mxu0 0
  %588 = vmatprep.subr.bf16.mxu0 0
  %589 = vmatpush1.bf16.msra.mxu0 0
  %590 = vmatprep.subr.bf16.mxu0 0
  %591 = vmatpush1.bf16.msra.mxu0 0
  %592 = vmatprep.subr.bf16.mxu0 0
  %593 = vmatpush1.bf16.msra.mxu0 0
  %594 = vmatprep.subr.bf16.mxu0 0
  %595 = vmatpush1.bf16.msra.mxu0 0
  %596 = vmatprep.subr.bf16.mxu0 0
  %597 = vmatpush1.bf16.msra.mxu0 0
  %598 = vmatprep.subr.bf16.mxu0 0
  %599 = vmatpush1.bf16.msra.mxu0 0
  %600 = vmatprep.mubr.bf16.mxu0 0
  %601 = vmatmul.mubr.bf16.gmra.mrb[0].mxu0 %v566
  %v602 = vpop.f32.mrb[0].mxu0
  %v603 = vadd.f32 0.0, %v602
  %v604 = vpop.f32.mrb[0].mxu0
  %v605 = vpop.f32.mrb[0].mxu0
  %v606 = vpop.f32.mrb[0].mxu0
  %607 = vdwg.mxu0
  %v608 = vld [vmem:[#allocation6] sm:$0xff]
  %v609 = vpack.c.bf16 %v608, %v608
  %v610 = vld [vmem:[%s6] sm:$0xf]
  %v611 = vld [vmem:[%s6 + $0x4] sm:$0xf]
  %v612 = vld [vmem:[%s6 + $0x8] sm:$0xf]
  %v613 = vld [vmem:[%s6 + $0xc] sm:$0xf]
  %v618 = vunpack.c.l.b16 %v610
  %v619 = vunpack.c.l.b16 %v611
  %v620 = vunpack.c.l.b16 %v612
  %v621 = vunpack.c.l.b16 %v613
  %v622 = vpack.c.b16 %v619, %v618
  %v623 = vpack.c.b16 %v621, %v620
  %v627 = vsel %vm289, %v609, 0
  %629 = vmatprep.subr.bf16.mxu0 0
  %630 = vmatpush1.bf16.msra.mxu0 %v622
  %631 = vmatprep.subr.bf16.mxu0 0
  %632 = vmatpush1.bf16.msra.mxu0 %v623
  %633 = vmatprep.subr.bf16.mxu0 0
  %634 = vmatpush1.bf16.msra.mxu0 0
  %635 = vmatprep.subr.bf16.mxu0 0
  %636 = vmatpush1.bf16.msra.mxu0 0
  %637 = vmatprep.subr.bf16.mxu0 0
  %638 = vmatpush1.bf16.msra.mxu0 0
  %639 = vmatprep.subr.bf16.mxu0 0
  %640 = vmatpush1.bf16.msra.mxu0 0
  %641 = vmatprep.subr.bf16.mxu0 0
  %642 = vmatpush1.bf16.msra.mxu0 0
  %643 = vmatprep.subr.bf16.mxu0 0
  %644 = vmatpush1.bf16.msra.mxu0 0
  %645 = vmatprep.subr.bf16.mxu0 0
  %646 = vmatpush1.bf16.msra.mxu0 0
  %647 = vmatprep.subr.bf16.mxu0 0
  %648 = vmatpush1.bf16.msra.mxu0 0
  %649 = vmatprep.subr.bf16.mxu0 0
  %650 = vmatpush1.bf16.msra.mxu0 0
  %651 = vmatprep.subr.bf16.mxu0 0
  %652 = vmatpush1.bf16.msra.mxu0 0
  %653 = vmatprep.subr.bf16.mxu0 0
  %654 = vmatpush1.bf16.msra.mxu0 0
  %655 = vmatprep.subr.bf16.mxu0 0
  %656 = vmatpush1.bf16.msra.mxu0 0
  %657 = vmatprep.subr.bf16.mxu0 0
  %658 = vmatpush1.bf16.msra.mxu0 0
  %659 = vmatprep.subr.bf16.mxu0 0
  %660 = vmatpush1.bf16.msra.mxu0 0
  %661 = vmatprep.mubr.bf16.mxu0 0
  %662 = vmatmul.mubr.bf16.gmra.mrb[0].mxu0 %v627
  %v663 = vpop.f32.mrb[0].mxu0
  %v664 = vadd.f32 0.0, %v663
  %v665 = vpop.f32.mrb[0].mxu0
  %v666 = vpop.f32.mrb[0].mxu0
  %v667 = vpop.f32.mrb[0].mxu0
  %668 = vdwg.mxu0
  %s669 = scalar_lea.vmem [#allocation2], 8
  %v670 = vld [vmem:[%s669] sm:$0xff]
  %v671 = vadd.f32 %v670, %v603
  %v672 = vld [vmem:[#allocation5] sm:$0xff]
  %v673 = vxor.u32 %v671, 2147483648
  %v674 = vmul.f32 %v673, 1.442695
  %v675 = vpow.pop %v674
  %v676 = vadd.f32 %v675, 1.0
  %v677 = vrcp.pop %v676
  %v678 = vmul.f32 1.0, %v677
  %v679 = vtanh.pop %v671
  %681 = vrot.lane.b32.xlu0 %v672, 32
  %v682 = vpop.permute.xlu0 %681
  %v684 = vmul.f32 %v678, %v682
  %686 = vrot.lane.b32.xlu0 %v679, 64
  %v687 = vpop.permute.xlu0 %686
  %v689 = vmul.f32 %v678, %v687
  %691 = vrot.lane.b32.xlu0 %v689, 32
  %v692 = vpop.permute.xlu0 %691
  %v694 = vadd.f32 %v684, %v692
  %v695 = vtanh.pop %v694
  %697 = vrot.lane.b32.xlu0 %v695, 64
  %v698 = vpop.permute.xlu0 %697
  %v700 = vmul.f32 %v678, %v698
  %s701 = scalar_lea.vmem [#allocation3], 48
  %v702 = vld [vmem:[%s701] sm:$0xff]
  %v703 = vadd.f32 %v702, %v664
  %v704 = vld [vmem:[#allocation7] sm:$0xff]
  %v705 = vxor.u32 %v703, 2147483648
  %v706 = vmul.f32 %v705, 1.442695
  %v707 = vpow.pop %v706
  %v708 = vadd.f32 %v707, 1.0
  %v709 = vrcp.pop %v708
  %v710 = vmul.f32 1.0, %v709
  %v711 = vtanh.pop %v703
  %713 = vrot.lane.b32.xlu0 %v704, 32
  %v714 = vpop.permute.xlu0 %713
  %v716 = vmul.f32 %v710, %v714
  %718 = vrot.lane.b32.xlu0 %v711, 64
  %v719 = vpop.permute.xlu0 %718
  %v721 = vmul.f32 %v710, %v719
  %723 = vrot.lane.b32.xlu0 %v721, 32
  %v724 = vpop.permute.xlu0 %723
  %v726 = vadd.f32 %v716, %v724
  %v727 = vtanh.pop %v726
  %729 = vrot.lane.b32.xlu0 %v727, 64
  %v730 = vpop.permute.xlu0 %729
  %v732 = vmul.f32 %v710, %v730
  %vm733 = vcmp.gt.s32.totalorder %v39, 1
  %vm734 = vcmp.gt.s32.totalorder %v39, 6
  %v735 = vsel %vm733, 1, 0
  %736 = vset.pattern.permute.xlu0 0
  %737 = vperm.xlu0 %736, %v735
  %v738 = vpop.permute.xlu0 %737
  %vm739 = vcmp.eq.s32.totalorder %v738, 1
  %741 = vrot.lane.b32.xlu0 %v547, 96
  %v742 = vpop.permute.xlu0 %741
  %v744 = vsel %vm739, %v700, %v742
  %746 = vrot.lane.b32.xlu0 %v744, 32
  %v747 = vpop.permute.xlu0 %746
  %749 = vst.msk [vmem:[#allocation4] sm:$0xff] %vm289, %v747
  %v750 = vld [vmem:[#allocation5] sm:$0xff]
  %752 = vrot.lane.b32.xlu0 %v750, 32
  %v753 = vpop.permute.xlu0 %752
  %v755 = vsel %vm739, %v694, %v753
  %757 = vrot.lane.b32.xlu0 %v755, 96
  %v758 = vpop.permute.xlu0 %757
  %760 = vst.msk [vmem:[#allocation5] sm:$0xff] %vm289, %v758
  %v761 = vld [vmem:[#allocation6] sm:$0xff]
  %v762 = vsel %vm734, 1, 0
  %763 = vset.pattern.permute.xlu0 0
  %764 = vperm.xlu0 %763, %v762
  %v765 = vpop.permute.xlu0 %764
  %vm766 = vcmp.eq.s32.totalorder %v765, 1
  %768 = vrot.lane.b32.xlu0 %v761, 96
  %v769 = vpop.permute.xlu0 %768
  %v771 = vsel %vm766, %v732, %v769
  %773 = vrot.lane.b32.xlu0 %v771, 32
  %v774 = vpop.permute.xlu0 %773
  %776 = vst.msk [vmem:[#allocation6] sm:$0xff] %vm289, %v774
  %v777 = vld [vmem:[#allocation7] sm:$0xff]
  %779 = vrot.lane.b32.xlu0 %v777, 32
  %v780 = vpop.permute.xlu0 %779
  %v782 = vsel %vm766, %v726, %v780
  %784 = vrot.lane.b32.xlu0 %v782, 96
  %v785 = vpop.permute.xlu0 %784
  %787 = vst.msk [vmem:[#allocation7] sm:$0xff] %vm289, %v785
  %v788 = vsel %vm739, %v700, 0.0
  %790 = vrot.lane.b32.xlu0 %v788, 32
  %v791 = vpop.permute.xlu0 %790
  %s793 = scalar_lea.vmem [#allocation8], 8
  %794 = vst.msk [vmem:[%s793] sm:$0xff] %vm289, %v791
  %v795 = vsel %vm766, %v732, 0.0
  %797 = vrot.lane.b32.xlu0 %v795, 32
  %v798 = vpop.permute.xlu0 %797
  %s800 = scalar_lea.vmem [#allocation9], 48
  %801 = vst.msk [vmem:[%s800] sm:$0xff] %vm289, %v798
  %v802 = vld [vmem:[#allocation4] sm:$0xff]
  %v803 = vpack.c.bf16 %v802, %v802
  %v804 = vld [vmem:[%s3] sm:$0xf]
  %v805 = vld [vmem:[%s3 + $0x4] sm:$0xf]
  %v806 = vld [vmem:[%s3 + $0x8] sm:$0xf]
  %v807 = vld [vmem:[%s3 + $0xc] sm:$0xf]
  %v812 = vunpack.c.l.b16 %v804
  %v813 = vunpack.c.l.b16 %v805
  %v814 = vunpack.c.l.b16 %v806
  %v815 = vunpack.c.l.b16 %v807
  %v816 = vpack.c.b16 %v813, %v812
  %v817 = vpack.c.b16 %v815, %v814
  %v821 = vsel %vm289, %v803, 0
  %823 = vmatprep.subr.bf16.mxu0 0
  %824 = vmatpush1.bf16.msra.mxu0 %v816
  %825 = vmatprep.subr.bf16.mxu0 0
  %826 = vmatpush1.bf16.msra.mxu0 %v817
  %827 = vmatprep.subr.bf16.mxu0 0
  %828 = vmatpush1.bf16.msra.mxu0 0
  %829 = vmatprep.subr.bf16.mxu0 0
  %830 = vmatpush1.bf16.msra.mxu0 0
  %831 = vmatprep.subr.bf16.mxu0 0
  %832 = vmatpush1.bf16.msra.mxu0 0
  %833 = vmatprep.subr.bf16.mxu0 0
  %834 = vmatpush1.bf16.msra.mxu0 0
  %835 = vmatprep.subr.bf16.mxu0 0
  %836 = vmatpush1.bf16.msra.mxu0 0
  %837 = vmatprep.subr.bf16.mxu0 0
  %838 = vmatpush1.bf16.msra.mxu0 0
  %839 = vmatprep.subr.bf16.mxu0 0
  %840 = vmatpush1.bf16.msra.mxu0 0
  %841 = vmatprep.subr.bf16.mxu0 0
  %842 = vmatpush1.bf16.msra.mxu0 0
  %843 = vmatprep.subr.bf16.mxu0 0
  %844 = vmatpush1.bf16.msra.mxu0 0
  %845 = vmatprep.subr.bf16.mxu0 0
  %846 = vmatpush1.bf16.msra.mxu0 0
  %847 = vmatprep.subr.bf16.mxu0 0
  %848 = vmatpush1.bf16.msra.mxu0 0
  %849 = vmatprep.subr.bf16.mxu0 0
  %850 = vmatpush1.bf16.msra.mxu0 0
  %851 = vmatprep.subr.bf16.mxu0 0
  %852 = vmatpush1.bf16.msra.mxu0 0
  %853 = vmatprep.subr.bf16.mxu0 0
  %854 = vmatpush1.bf16.msra.mxu0 0
  %855 = vmatprep.mubr.bf16.mxu0 0
  %856 = vmatmul.mubr.bf16.gmra.mrb[0].mxu0 %v821
  %v857 = vpop.f32.mrb[0].mxu0
  %v858 = vadd.f32 0.0, %v857
  %v859 = vpop.f32.mrb[0].mxu0
  %v860 = vpop.f32.mrb[0].mxu0
  %v861 = vpop.f32.mrb[0].mxu0
  %862 = vdwg.mxu0
  %v863 = vld [vmem:[#allocation6] sm:$0xff]
  %v864 = vpack.c.bf16 %v863, %v863
  %v865 = vld [vmem:[%s6] sm:$0xf]
  %v866 = vld [vmem:[%s6 + $0x4] sm:$0xf]
  %v867 = vld [vmem:[%s6 + $0x8] sm:$0xf]
  %v868 = vld [vmem:[%s6 + $0xc] sm:$0xf]
  %v873 = vunpack.c.l.b16 %v865
  %v874 = vunpack.c.l.b16 %v866
  %v875 = vunpack.c.l.b16 %v867
  %v876 = vunpack.c.l.b16 %v868
  %v877 = vpack.c.b16 %v874, %v873
  %v878 = vpack.c.b16 %v876, %v875
  %v882 = vsel %vm289, %v864, 0
  %884 = vmatprep.subr.bf16.mxu0 0
  %885 = vmatpush1.bf16.msra.mxu0 %v877
  %886 = vmatprep.subr.bf16.mxu0 0
  %887 = vmatpush1.bf16.msra.mxu0 %v878
  %888 = vmatprep.subr.bf16.mxu0 0
  %889 = vmatpush1.bf16.msra.mxu0 0
  %890 = vmatprep.subr.bf16.mxu0 0
  %891 = vmatpush1.bf16.msra.mxu0 0
  %892 = vmatprep.subr.bf16.mxu0 0
  %893 = vmatpush1.bf16.msra.mxu0 0
  %894 = vmatprep.subr.bf16.mxu0 0
  %895 = vmatpush1.bf16.msra.mxu0 0
  %896 = vmatprep.subr.bf16.mxu0 0
  %897 = vmatpush1.bf16.msra.mxu0 0
  %898 = vmatprep.subr.bf16.mxu0 0
  %899 = vmatpush1.bf16.msra.mxu0 0
  %900 = vmatprep.subr.bf16.mxu0 0
  %901 = vmatpush1.bf16.msra.mxu0 0
  %902 = vmatprep.subr.bf16.mxu0 0
  %903 = vmatpush1.bf16.msra.mxu0 0
  %904 = vmatprep.subr.bf16.mxu0 0
  %905 = vmatpush1.bf16.msra.mxu0 0
  %906 = vmatprep.subr.bf16.mxu0 0
  %907 = vmatpush1.bf16.msra.mxu0 0
  %908 = vmatprep.subr.bf16.mxu0 0
  %909 = vmatpush1.bf16.msra.mxu0 0
  %910 = vmatprep.subr.bf16.mxu0 0
  %911 = vmatpush1.bf16.msra.mxu0 0
  %912 = vmatprep.subr.bf16.mxu0 0
  %913 = vmatpush1.bf16.msra.mxu0 0
  %914 = vmatprep.subr.bf16.mxu0 0
  %915 = vmatpush1.bf16.msra.mxu0 0
  %916 = vmatprep.mubr.bf16.mxu0 0
  %917 = vmatmul.mubr.bf16.gmra.mrb[0].mxu0 %v882
  %v918 = vpop.f32.mrb[0].mxu0
  %v919 = vadd.f32 0.0, %v918
  %v920 = vpop.f32.mrb[0].mxu0
  %v921 = vpop.f32.mrb[0].mxu0
  %v922 = vpop.f32.mrb[0].mxu0
  %923 = vdwg.mxu0
  %s924 = scalar_lea.vmem [#allocation2], 16
  %v925 = vld [vmem:[%s924] sm:$0xff]
  %v926 = vadd.f32 %v925, %v858
  %v927 = vld [vmem:[#allocation5] sm:$0xff]
  %v928 = vxor.u32 %v926, 2147483648
  %v929 = vmul.f32 %v928, 1.442695
  %v930 = vpow.pop %v929
  %v931 = vadd.f32 %v930, 1.0
  %v932 = vrcp.pop %v931
  %v933 = vmul.f32 1.0, %v932
  %v934 = vtanh.pop %v926
  %936 = vrot.lane.b32.xlu0 %v927, 32
  %v937 = vpop.permute.xlu0 %936
  %v939 = vmul.f32 %v933, %v937
  %941 = vrot.lane.b32.xlu0 %v934, 64
  %v942 = vpop.permute.xlu0 %941
  %v944 = vmul.f32 %v933, %v942
  %946 = vrot.lane.b32.xlu0 %v944, 32
  %v947 = vpop.permute.xlu0 %946
  %v949 = vadd.f32 %v939, %v947
  %v950 = vtanh.pop %v949
  %952 = vrot.lane.b32.xlu0 %v950, 64
  %v953 = vpop.permute.xlu0 %952
  %v955 = vmul.f32 %v933, %v953
  %s956 = scalar_lea.vmem [#allocation3], 40
  %v957 = vld [vmem:[%s956] sm:$0xff]
  %v958 = vadd.f32 %v957, %v919
  %v959 = vld [vmem:[#allocation7] sm:$0xff]
  %v960 = vxor.u32 %v958, 2147483648
  %v961 = vmul.f32 %v960, 1.442695
  %v962 = vpow.pop %v961
  %v963 = vadd.f32 %v962, 1.0
  %v964 = vrcp.pop %v963
  %v965 = vmul.f32 1.0, %v964
  %v966 = vtanh.pop %v958
  %968 = vrot.lane.b32.xlu0 %v959, 32
  %v969 = vpop.permute.xlu0 %968
  %v971 = vmul.f32 %v965, %v969
  %973 = vrot.lane.b32.xlu0 %v966, 64
  %v974 = vpop.permute.xlu0 %973
  %v976 = vmul.f32 %v965, %v974
  %978 = vrot.lane.b32.xlu0 %v976, 32
  %v979 = vpop.permute.xlu0 %978
  %v981 = vadd.f32 %v971, %v979
  %v982 = vtanh.pop %v981
  %984 = vrot.lane.b32.xlu0 %v982, 64
  %v985 = vpop.permute.xlu0 %984
  %v987 = vmul.f32 %v965, %v985
  %vm988 = vcmp.gt.s32.totalorder %v39, 2
  %vm989 = vcmp.gt.s32.totalorder %v39, 5
  %v990 = vsel %vm988, 1, 0
  %991 = vset.pattern.permute.xlu0 0
  %992 = vperm.xlu0 %991, %v990
  %v993 = vpop.permute.xlu0 %992
  %vm994 = vcmp.eq.s32.totalorder %v993, 1
  %996 = vrot.lane.b32.xlu0 %v802, 96
  %v997 = vpop.permute.xlu0 %996
  %v999 = vsel %vm994, %v955, %v997
  %1001 = vrot.lane.b32.xlu0 %v999, 32
  %v1002 = vpop.permute.xlu0 %1001
  %1004 = vst.msk [vmem:[#allocation4] sm:$0xff] %vm289, %v1002
  %v1005 = vld [vmem:[#allocation5] sm:$0xff]
  %1007 = vrot.lane.b32.xlu0 %v1005, 32
  %v1008 = vpop.permute.xlu0 %1007
  %v1010 = vsel %vm994, %v949, %v1008
  %1012 = vrot.lane.b32.xlu0 %v1010, 96
  %v1013 = vpop.permute.xlu0 %1012
  %1015 = vst.msk [vmem:[#allocation5] sm:$0xff] %vm289, %v1013
  %v1016 = vld [vmem:[#allocation6] sm:$0xff]
  %v1017 = vsel %vm989, 1, 0
  %1018 = vset.pattern.permute.xlu0 0
  %1019 = vperm.xlu0 %1018, %v1017
  %v1020 = vpop.permute.xlu0 %1019
  %vm1021 = vcmp.eq.s32.totalorder %v1020, 1
  %1023 = vrot.lane.b32.xlu0 %v1016, 96
  %v1024 = vpop.permute.xlu0 %1023
  %v1026 = vsel %vm1021, %v987, %v1024
  %1028 = vrot.lane.b32.xlu0 %v1026, 32
  %v1029 = vpop.permute.xlu0 %1028
  %1031 = vst.msk [vmem:[#allocation6] sm:$0xff] %vm289, %v1029
  %v1032 = vld [vmem:[#allocation7] sm:$0xff]
  %1034 = vrot.lane.b32.xlu0 %v1032, 32
  %v1035 = vpop.permute.xlu0 %1034
  %v1037 = vsel %vm1021, %v981, %v1035
  %1039 = vrot.lane.b32.xlu0 %v1037, 96
  %v1040 = vpop.permute.xlu0 %1039
  %1042 = vst.msk [vmem:[#allocation7] sm:$0xff] %vm289, %v1040
  %v1043 = vsel %vm994, %v955, 0.0
  %1045 = vrot.lane.b32.xlu0 %v1043, 32
  %v1046 = vpop.permute.xlu0 %1045
  %s1048 = scalar_lea.vmem [#allocation8], 16
  %1049 = vst.msk [vmem:[%s1048] sm:$0xff] %vm289, %v1046
  %v1050 = vsel %vm1021, %v987, 0.0
  %1052 = vrot.lane.b32.xlu0 %v1050, 32
  %v1053 = vpop.permute.xlu0 %1052
  %s1055 = scalar_lea.vmem [#allocation9], 40
  %1056 = vst.msk [vmem:[%s1055] sm:$0xff] %vm289, %v1053
  %v1057 = vld [vmem:[#allocation4] sm:$0xff]
  %v1058 = vpack.c.bf16 %v1057, %v1057
  %v1059 = vld [vmem:[%s3] sm:$0xf]
  %v1060 = vld [vmem:[%s3 + $0x4] sm:$0xf]
  %v1061 = vld [vmem:[%s3 + $0x8] sm:$0xf]
  %v1062 = vld [vmem:[%s3 + $0xc] sm:$0xf]
  %v1067 = vunpack.c.l.b16 %v1059
  %v1068 = vunpack.c.l.b16 %v1060
  %v1069 = vunpack.c.l.b16 %v1061
  %v1070 = vunpack.c.l.b16 %v1062
  %v1071 = vpack.c.b16 %v1068, %v1067
  %v1072 = vpack.c.b16 %v1070, %v1069
  %v1076 = vsel %vm289, %v1058, 0
  %1078 = vmatprep.subr.bf16.mxu0 0
  %1079 = vmatpush1.bf16.msra.mxu0 %v1071
  %1080 = vmatprep.subr.bf16.mxu0 0
  %1081 = vmatpush1.bf16.msra.mxu0 %v1072
  %1082 = vmatprep.subr.bf16.mxu0 0
  %1083 = vmatpush1.bf16.msra.mxu0 0
  %1084 = vmatprep.subr.bf16.mxu0 0
  %1085 = vmatpush1.bf16.msra.mxu0 0
  %1086 = vmatprep.subr.bf16.mxu0 0
  %1087 = vmatpush1.bf16.msra.mxu0 0
  %1088 = vmatprep.subr.bf16.mxu0 0
  %1089 = vmatpush1.bf16.msra.mxu0 0
  %1090 = vmatprep.subr.bf16.mxu0 0
  %1091 = vmatpush1.bf16.msra.mxu0 0
  %1092 = vmatprep.subr.bf16.mxu0 0
  %1093 = vmatpush1.bf16.msra.mxu0 0
  %1094 = vmatprep.subr.bf16.mxu0 0
  %1095 = vmatpush1.bf16.msra.mxu0 0
  %1096 = vmatprep.subr.bf16.mxu0 0
  %1097 = vmatpush1.bf16.msra.mxu0 0
  %1098 = vmatprep.subr.bf16.mxu0 0
  %1099 = vmatpush1.bf16.msra.mxu0 0
  %1100 = vmatprep.subr.bf16.mxu0 0
  %1101 = vmatpush1.bf16.msra.mxu0 0
  %1102 = vmatprep.subr.bf16.mxu0 0
  %1103 = vmatpush1.bf16.msra.mxu0 0
  %1104 = vmatprep.subr.bf16.mxu0 0
  %1105 = vmatpush1.bf16.msra.mxu0 0
  %1106 = vmatprep.subr.bf16.mxu0 0
  %1107 = vmatpush1.bf16.msra.mxu0 0
  %1108 = vmatprep.subr.bf16.mxu0 0
  %1109 = vmatpush1.bf16.msra.mxu0 0
  %1110 = vmatprep.mubr.bf16.mxu0 0
  %1111 = vmatmul.mubr.bf16.gmra.mrb[0].mxu0 %v1076
  %v1112 = vpop.f32.mrb[0].mxu0
  %v1113 = vadd.f32 0.0, %v1112
  %v1114 = vpop.f32.mrb[0].mxu0
  %v1115 = vpop.f32.mrb[0].mxu0
  %v1116 = vpop.f32.mrb[0].mxu0
  %1117 = vdwg.mxu0
  %v1118 = vld [vmem:[#allocation6] sm:$0xff]
  %v1119 = vpack.c.bf16 %v1118, %v1118
  %v1120 = vld [vmem:[%s6] sm:$0xf]
  %v1121 = vld [vmem:[%s6 + $0x4] sm:$0xf]
  %v1122 = vld [vmem:[%s6 + $0x8] sm:$0xf]
  %v1123 = vld [vmem:[%s6 + $0xc] sm:$0xf]
  %v1128 = vunpack.c.l.b16 %v1120
  %v1129 = vunpack.c.l.b16 %v1121
  %v1130 = vunpack.c.l.b16 %v1122
  %v1131 = vunpack.c.l.b16 %v1123
  %v1132 = vpack.c.b16 %v1129, %v1128
  %v1133 = vpack.c.b16 %v1131, %v1130
  %v1137 = vsel %vm289, %v1119, 0
  %1139 = vmatprep.subr.bf16.mxu0 0
  %1140 = vmatpush1.bf16.msra.mxu0 %v1132
  %1141 = vmatprep.subr.bf16.mxu0 0
  %1142 = vmatpush1.bf16.msra.mxu0 %v1133
  %1143 = vmatprep.subr.bf16.mxu0 0
  %1144 = vmatpush1.bf16.msra.mxu0 0
  %1145 = vmatprep.subr.bf16.mxu0 0
  %1146 = vmatpush1.bf16.msra.mxu0 0
  %1147 = vmatprep.subr.bf16.mxu0 0
  %1148 = vmatpush1.bf16.msra.mxu0 0
  %1149 = vmatprep.subr.bf16.mxu0 0
  %1150 = vmatpush1.bf16.msra.mxu0 0
  %1151 = vmatprep.subr.bf16.mxu0 0
  %1152 = vmatpush1.bf16.msra.mxu0 0
  %1153 = vmatprep.subr.bf16.mxu0 0
  %1154 = vmatpush1.bf16.msra.mxu0 0
  %1155 = vmatprep.subr.bf16.mxu0 0
  %1156 = vmatpush1.bf16.msra.mxu0 0
  %1157 = vmatprep.subr.bf16.mxu0 0
  %1158 = vmatpush1.bf16.msra.mxu0 0
  %1159 = vmatprep.subr.bf16.mxu0 0
  %1160 = vmatpush1.bf16.msra.mxu0 0
  %1161 = vmatprep.subr.bf16.mxu0 0
  %1162 = vmatpush1.bf16.msra.mxu0 0
  %1163 = vmatprep.subr.bf16.mxu0 0
  %1164 = vmatpush1.bf16.msra.mxu0 0
  %1165 = vmatprep.subr.bf16.mxu0 0
  %1166 = vmatpush1.bf16.msra.mxu0 0
  %1167 = vmatprep.subr.bf16.mxu0 0
  %1168 = vmatpush1.bf16.msra.mxu0 0
  %1169 = vmatprep.subr.bf16.mxu0 0
  %1170 = vmatpush1.bf16.msra.mxu0 0
  %1171 = vmatprep.mubr.bf16.mxu0 0
  %1172 = vmatmul.mubr.bf16.gmra.mrb[0].mxu0 %v1137
  %v1173 = vpop.f32.mrb[0].mxu0
  %v1174 = vadd.f32 0.0, %v1173
  %v1175 = vpop.f32.mrb[0].mxu0
  %v1176 = vpop.f32.mrb[0].mxu0
  %v1177 = vpop.f32.mrb[0].mxu0
  %1178 = vdwg.mxu0
  %s1179 = scalar_lea.vmem [#allocation2], 24
  %v1180 = vld [vmem:[%s1179] sm:$0xff]
  %v1181 = vadd.f32 %v1180, %v1113
  %v1182 = vld [vmem:[#allocation5] sm:$0xff]
  %v1183 = vxor.u32 %v1181, 2147483648
  %v1184 = vmul.f32 %v1183, 1.442695
  %v1185 = vpow.pop %v1184
  %v1186 = vadd.f32 %v1185, 1.0
  %v1187 = vrcp.pop %v1186
  %v1188 = vmul.f32 1.0, %v1187
  %v1189 = vtanh.pop %v1181
  %1191 = vrot.lane.b32.xlu0 %v1182, 32
  %v1192 = vpop.permute.xlu0 %1191
  %v1194 = vmul.f32 %v1188, %v1192
  %1196 = vrot.lane.b32.xlu0 %v1189, 64
  %v1197 = vpop.permute.xlu0 %1196
  %v1199 = vmul.f32 %v1188, %v1197
  %1201 = vrot.lane.b32.xlu0 %v1199, 32
  %v1202 = vpop.permute.xlu0 %1201
  %v1204 = vadd.f32 %v1194, %v1202
  %v1205 = vtanh.pop %v1204
  %1207 = vrot.lane.b32.xlu0 %v1205, 64
  %v1208 = vpop.permute.xlu0 %1207
  %v1210 = vmul.f32 %v1188, %v1208
  %s1211 = scalar_lea.vmem [#allocation3], 32
  %v1212 = vld [vmem:[%s1211] sm:$0xff]
  %v1213 = vadd.f32 %v1212, %v1174
  %v1214 = vld [vmem:[#allocation7] sm:$0xff]
  %v1215 = vxor.u32 %v1213, 2147483648
  %v1216 = vmul.f32 %v1215, 1.442695
  %v1217 = vpow.pop %v1216
  %v1218 = vadd.f32 %v1217, 1.0
  %v1219 = vrcp.pop %v1218
  %v1220 = vmul.f32 1.0, %v1219
  %v1221 = vtanh.pop %v1213
  %1223 = vrot.lane.b32.xlu0 %v1214, 32
  %v1224 = vpop.permute.xlu0 %1223
  %v1226 = vmul.f32 %v1220, %v1224
  %1228 = vrot.lane.b32.xlu0 %v1221, 64
  %v1229 = vpop.permute.xlu0 %1228
  %v1231 = vmul.f32 %v1220, %v1229
  %1233 = vrot.lane.b32.xlu0 %v1231, 32
  %v1234 = vpop.permute.xlu0 %1233
  %v1236 = vadd.f32 %v1226, %v1234
  %v1237 = vtanh.pop %v1236
  %1239 = vrot.lane.b32.xlu0 %v1237, 64
  %v1240 = vpop.permute.xlu0 %1239
  %v1242 = vmul.f32 %v1220, %v1240
  %vm1243 = vcmp.gt.s32.totalorder %v39, 3
  %vm1244 = vcmp.gt.s32.totalorder %v39, 4
  %v1245 = vsel %vm1243, 1, 0
  %1246 = vset.pattern.permute.xlu0 0
  %1247 = vperm.xlu0 %1246, %v1245
  %v1248 = vpop.permute.xlu0 %1247
  %vm1249 = vcmp.eq.s32.totalorder %v1248, 1
  %1251 = vrot.lane.b32.xlu0 %v1057, 96
  %v1252 = vpop.permute.xlu0 %1251
  %v1254 = vsel %vm1249, %v1210, %v1252
  %1256 = vrot.lane.b32.xlu0 %v1254, 32
  %v1257 = vpop.permute.xlu0 %1256
  %1259 = vst.msk [vmem:[#allocation4] sm:$0xff] %vm289, %v1257
  %v1260 = vld [vmem:[#allocation5] sm:$0xff]
  %1262 = vrot.lane.b32.xlu0 %v1260, 32
  %v1263 = vpop.permute.xlu0 %1262
  %v1265 = vsel %vm1249, %v1204, %v1263
  %1267 = vrot.lane.b32.xlu0 %v1265, 96
  %v1268 = vpop.permute.xlu0 %1267
  %1270 = vst.msk [vmem:[#allocation5] sm:$0xff] %vm289, %v1268
  %v1271 = vld [vmem:[#allocation6] sm:$0xff]
  %v1272 = vsel %vm1244, 1, 0
  %1273 = vset.pattern.permute.xlu0 0
  %1274 = vperm.xlu0 %1273, %v1272
  %v1275 = vpop.permute.xlu0 %1274
  %vm1276 = vcmp.eq.s32.totalorder %v1275, 1
  %1278 = vrot.lane.b32.xlu0 %v1271, 96
  %v1279 = vpop.permute.xlu0 %1278
  %v1281 = vsel %vm1276, %v1242, %v1279
  %1283 = vrot.lane.b32.xlu0 %v1281, 32
  %v1284 = vpop.permute.xlu0 %1283
  %1286 = vst.msk [vmem:[#allocation6] sm:$0xff] %vm289, %v1284
  %v1287 = vld [vmem:[#allocation7] sm:$0xff]
  %1289 = vrot.lane.b32.xlu0 %v1287, 32
  %v1290 = vpop.permute.xlu0 %1289
  %v1292 = vsel %vm1276, %v1236, %v1290
  %1294 = vrot.lane.b32.xlu0 %v1292, 96
  %v1295 = vpop.permute.xlu0 %1294
  %1297 = vst.msk [vmem:[#allocation7] sm:$0xff] %vm289, %v1295
  %v1298 = vsel %vm1249, %v1210, 0.0
  %1300 = vrot.lane.b32.xlu0 %v1298, 32
  %v1301 = vpop.permute.xlu0 %1300
  %s1303 = scalar_lea.vmem [#allocation8], 24
  %1304 = vst.msk [vmem:[%s1303] sm:$0xff] %vm289, %v1301
  %v1305 = vsel %vm1276, %v1242, 0.0
  %1307 = vrot.lane.b32.xlu0 %v1305, 32
  %v1308 = vpop.permute.xlu0 %1307
  %s1310 = scalar_lea.vmem [#allocation9], 32
  %1311 = vst.msk [vmem:[%s1310] sm:$0xff] %vm289, %v1308
  %v1312 = vld [vmem:[#allocation4] sm:$0xff]
  %v1313 = vpack.c.bf16 %v1312, %v1312
  %v1314 = vld [vmem:[%s3] sm:$0xf]
  %v1315 = vld [vmem:[%s3 + $0x4] sm:$0xf]
  %v1316 = vld [vmem:[%s3 + $0x8] sm:$0xf]
  %v1317 = vld [vmem:[%s3 + $0xc] sm:$0xf]
  %v1322 = vunpack.c.l.b16 %v1314
  %v1323 = vunpack.c.l.b16 %v1315
  %v1324 = vunpack.c.l.b16 %v1316
  %v1325 = vunpack.c.l.b16 %v1317
  %v1326 = vpack.c.b16 %v1323, %v1322
  %v1327 = vpack.c.b16 %v1325, %v1324
  %v1331 = vsel %vm289, %v1313, 0
  %1333 = vmatprep.subr.bf16.mxu0 0
  %1334 = vmatpush1.bf16.msra.mxu0 %v1326
  %1335 = vmatprep.subr.bf16.mxu0 0
  %1336 = vmatpush1.bf16.msra.mxu0 %v1327
  %1337 = vmatprep.subr.bf16.mxu0 0
  %1338 = vmatpush1.bf16.msra.mxu0 0
  %1339 = vmatprep.subr.bf16.mxu0 0
  %1340 = vmatpush1.bf16.msra.mxu0 0
  %1341 = vmatprep.subr.bf16.mxu0 0
  %1342 = vmatpush1.bf16.msra.mxu0 0
  %1343 = vmatprep.subr.bf16.mxu0 0
  %1344 = vmatpush1.bf16.msra.mxu0 0
  %1345 = vmatprep.subr.bf16.mxu0 0
  %1346 = vmatpush1.bf16.msra.mxu0 0
  %1347 = vmatprep.subr.bf16.mxu0 0
  %1348 = vmatpush1.bf16.msra.mxu0 0
  %1349 = vmatprep.subr.bf16.mxu0 0
  %1350 = vmatpush1.bf16.msra.mxu0 0
  %1351 = vmatprep.subr.bf16.mxu0 0
  %1352 = vmatpush1.bf16.msra.mxu0 0
  %1353 = vmatprep.subr.bf16.mxu0 0
  %1354 = vmatpush1.bf16.msra.mxu0 0
  %1355 = vmatprep.subr.bf16.mxu0 0
  %1356 = vmatpush1.bf16.msra.mxu0 0
  %1357 = vmatprep.subr.bf16.mxu0 0
  %1358 = vmatpush1.bf16.msra.mxu0 0
  %1359 = vmatprep.subr.bf16.mxu0 0
  %1360 = vmatpush1.bf16.msra.mxu0 0
  %1361 = vmatprep.subr.bf16.mxu0 0
  %1362 = vmatpush1.bf16.msra.mxu0 0
  %1363 = vmatprep.subr.bf16.mxu0 0
  %1364 = vmatpush1.bf16.msra.mxu0 0
  %1365 = vmatprep.mubr.bf16.mxu0 0
  %1366 = vmatmul.mubr.bf16.gmra.mrb[0].mxu0 %v1331
  %v1367 = vpop.f32.mrb[0].mxu0
  %v1368 = vadd.f32 0.0, %v1367
  %v1369 = vpop.f32.mrb[0].mxu0
  %v1370 = vpop.f32.mrb[0].mxu0
  %v1371 = vpop.f32.mrb[0].mxu0
  %1372 = vdwg.mxu0
  %v1373 = vld [vmem:[#allocation6] sm:$0xff]
  %v1374 = vpack.c.bf16 %v1373, %v1373
  %v1375 = vld [vmem:[%s6] sm:$0xf]
  %v1376 = vld [vmem:[%s6 + $0x4] sm:$0xf]
  %v1377 = vld [vmem:[%s6 + $0x8] sm:$0xf]
  %v1378 = vld [vmem:[%s6 + $0xc] sm:$0xf]
  %v1383 = vunpack.c.l.b16 %v1375
  %v1384 = vunpack.c.l.b16 %v1376
  %v1385 = vunpack.c.l.b16 %v1377
  %v1386 = vunpack.c.l.b16 %v1378
  %v1387 = vpack.c.b16 %v1384, %v1383
  %v1388 = vpack.c.b16 %v1386, %v1385
  %v1392 = vsel %vm289, %v1374, 0
  %1394 = vmatprep.subr.bf16.mxu0 0
  %1395 = vmatpush1.bf16.msra.mxu0 %v1387
  %1396 = vmatprep.subr.bf16.mxu0 0
  %1397 = vmatpush1.bf16.msra.mxu0 %v1388
  %1398 = vmatprep.subr.bf16.mxu0 0
  %1399 = vmatpush1.bf16.msra.mxu0 0
  %1400 = vmatprep.subr.bf16.mxu0 0
  %1401 = vmatpush1.bf16.msra.mxu0 0
  %1402 = vmatprep.subr.bf16.mxu0 0
  %1403 = vmatpush1.bf16.msra.mxu0 0
  %1404 = vmatprep.subr.bf16.mxu0 0
  %1405 = vmatpush1.bf16.msra.mxu0 0
  %1406 = vmatprep.subr.bf16.mxu0 0
  %1407 = vmatpush1.bf16.msra.mxu0 0
  %1408 = vmatprep.subr.bf16.mxu0 0
  %1409 = vmatpush1.bf16.msra.mxu0 0
  %1410 = vmatprep.subr.bf16.mxu0 0
  %1411 = vmatpush1.bf16.msra.mxu0 0
  %1412 = vmatprep.subr.bf16.mxu0 0
  %1413 = vmatpush1.bf16.msra.mxu0 0
  %1414 = vmatprep.subr.bf16.mxu0 0
  %1415 = vmatpush1.bf16.msra.mxu0 0
  %1416 = vmatprep.subr.bf16.mxu0 0
  %1417 = vmatpush1.bf16.msra.mxu0 0
  %1418 = vmatprep.subr.bf16.mxu0 0
  %1419 = vmatpush1.bf16.msra.mxu0 0
  %1420 = vmatprep.subr.bf16.mxu0 0
  %1421 = vmatpush1.bf16.msra.mxu0 0
  %1422 = vmatprep.subr.bf16.mxu0 0
  %1423 = vmatpush1.bf16.msra.mxu0 0
  %1424 = vmatprep.subr.bf16.mxu0 0
  %1425 = vmatpush1.bf16.msra.mxu0 0
  %1426 = vmatprep.mubr.bf16.mxu0 0
  %1427 = vmatmul.mubr.bf16.gmra.mrb[0].mxu0 %v1392
  %v1428 = vpop.f32.mrb[0].mxu0
  %v1429 = vadd.f32 0.0, %v1428
  %v1430 = vpop.f32.mrb[0].mxu0
  %v1431 = vpop.f32.mrb[0].mxu0
  %v1432 = vpop.f32.mrb[0].mxu0
  %1433 = vdwg.mxu0
  %s1434 = scalar_lea.vmem [#allocation2], 32
  %v1435 = vld [vmem:[%s1434] sm:$0xff]
  %v1436 = vadd.f32 %v1435, %v1368
  %v1437 = vld [vmem:[#allocation5] sm:$0xff]
  %v1438 = vxor.u32 %v1436, 2147483648
  %v1439 = vmul.f32 %v1438, 1.442695
  %v1440 = vpow.pop %v1439
  %v1441 = vadd.f32 %v1440, 1.0
  %v1442 = vrcp.pop %v1441
  %v1443 = vmul.f32 1.0, %v1442
  %v1444 = vtanh.pop %v1436
  %1446 = vrot.lane.b32.xlu0 %v1437, 32
  %v1447 = vpop.permute.xlu0 %1446
  %v1449 = vmul.f32 %v1443, %v1447
  %1451 = vrot.lane.b32.xlu0 %v1444, 64
  %v1452 = vpop.permute.xlu0 %1451
  %v1454 = vmul.f32 %v1443, %v1452
  %1456 = vrot.lane.b32.xlu0 %v1454, 32
  %v1457 = vpop.permute.xlu0 %1456
  %v1459 = vadd.f32 %v1449, %v1457
  %v1460 = vtanh.pop %v1459
  %1462 = vrot.lane.b32.xlu0 %v1460, 64
  %v1463 = vpop.permute.xlu0 %1462
  %v1465 = vmul.f32 %v1443, %v1463
  %s1466 = scalar_lea.vmem [#allocation3], 24
  %v1467 = vld [vmem:[%s1466] sm:$0xff]
  %v1468 = vadd.f32 %v1467, %v1429
  %v1469 = vld [vmem:[#allocation7] sm:$0xff]
  %v1470 = vxor.u32 %v1468, 2147483648
  %v1471 = vmul.f32 %v1470, 1.442695
  %v1472 = vpow.pop %v1471
  %v1473 = vadd.f32 %v1472, 1.0
  %v1474 = vrcp.pop %v1473
  %v1475 = vmul.f32 1.0, %v1474
  %v1476 = vtanh.pop %v1468
  %1478 = vrot.lane.b32.xlu0 %v1469, 32
  %v1479 = vpop.permute.xlu0 %1478
  %v1481 = vmul.f32 %v1475, %v1479
  %1483 = vrot.lane.b32.xlu0 %v1476, 64
  %v1484 = vpop.permute.xlu0 %1483
  %v1486 = vmul.f32 %v1475, %v1484
  %1488 = vrot.lane.b32.xlu0 %v1486, 32
  %v1489 = vpop.permute.xlu0 %1488
  %v1491 = vadd.f32 %v1481, %v1489
  %v1492 = vtanh.pop %v1491
  %1494 = vrot.lane.b32.xlu0 %v1492, 64
  %v1495 = vpop.permute.xlu0 %1494
  %v1497 = vmul.f32 %v1475, %v1495
  %1499 = vrot.lane.b32.xlu0 %v1312, 96
  %v1500 = vpop.permute.xlu0 %1499
  %v1502 = vsel %vm1276, %v1465, %v1500
  %1504 = vrot.lane.b32.xlu0 %v1502, 32
  %v1505 = vpop.permute.xlu0 %1504
  %1507 = vst.msk [vmem:[#allocation4] sm:$0xff] %vm289, %v1505
  %v1508 = vld [vmem:[#allocation5] sm:$0xff]
  %1510 = vrot.lane.b32.xlu0 %v1508, 32
  %v1511 = vpop.permute.xlu0 %1510
  %v1513 = vsel %vm1276, %v1459, %v1511
  %1515 = vrot.lane.b32.xlu0 %v1513, 96
  %v1516 = vpop.permute.xlu0 %1515
  %1518 = vst.msk [vmem:[#allocation5] sm:$0xff] %vm289, %v1516
  %v1519 = vld [vmem:[#allocation6] sm:$0xff]
  %1521 = vrot.lane.b32.xlu0 %v1519, 96
  %v1522 = vpop.permute.xlu0 %1521
  %v1524 = vsel %vm1249, %v1497, %v1522
  %1526 = vrot.lane.b32.xlu0 %v1524, 32
  %v1527 = vpop.permute.xlu0 %1526
  %1529 = vst.msk [vmem:[#allocation6] sm:$0xff] %vm289, %v1527
  %v1530 = vld [vmem:[#allocation7] sm:$0xff]
  %1532 = vrot.lane.b32.xlu0 %v1530, 32
  %v1533 = vpop.permute.xlu0 %1532
  %v1535 = vsel %vm1249, %v1491, %v1533
  %1537 = vrot.lane.b32.xlu0 %v1535, 96
  %v1538 = vpop.permute.xlu0 %1537
  %1540 = vst.msk [vmem:[#allocation7] sm:$0xff] %vm289, %v1538
  %v1541 = vsel %vm1276, %v1465, 0.0
  %1543 = vrot.lane.b32.xlu0 %v1541, 32
  %v1544 = vpop.permute.xlu0 %1543
  %s1546 = scalar_lea.vmem [#allocation8], 32
  %1547 = vst.msk [vmem:[%s1546] sm:$0xff] %vm289, %v1544
  %v1548 = vsel %vm1249, %v1497, 0.0
  %1550 = vrot.lane.b32.xlu0 %v1548, 32
  %v1551 = vpop.permute.xlu0 %1550
  %s1553 = scalar_lea.vmem [#allocation9], 24
  %1554 = vst.msk [vmem:[%s1553] sm:$0xff] %vm289, %v1551
  %v1555 = vld [vmem:[#allocation4] sm:$0xff]
  %v1556 = vpack.c.bf16 %v1555, %v1555
  %v1557 = vld [vmem:[%s3] sm:$0xf]
  %v1558 = vld [vmem:[%s3 + $0x4] sm:$0xf]
  %v1559 = vld [vmem:[%s3 + $0x8] sm:$0xf]
  %v1560 = vld [vmem:[%s3 + $0xc] sm:$0xf]
  %v1565 = vunpack.c.l.b16 %v1557
  %v1566 = vunpack.c.l.b16 %v1558
  %v1567 = vunpack.c.l.b16 %v1559
  %v1568 = vunpack.c.l.b16 %v1560
  %v1569 = vpack.c.b16 %v1566, %v1565
  %v1570 = vpack.c.b16 %v1568, %v1567
  %v1574 = vsel %vm289, %v1556, 0
  %1576 = vmatprep.subr.bf16.mxu0 0
  %1577 = vmatpush1.bf16.msra.mxu0 %v1569
  %1578 = vmatprep.subr.bf16.mxu0 0
  %1579 = vmatpush1.bf16.msra.mxu0 %v1570
  %1580 = vmatprep.subr.bf16.mxu0 0
  %1581 = vmatpush1.bf16.msra.mxu0 0
  %1582 = vmatprep.subr.bf16.mxu0 0
  %1583 = vmatpush1.bf16.msra.mxu0 0
  %1584 = vmatprep.subr.bf16.mxu0 0
  %1585 = vmatpush1.bf16.msra.mxu0 0
  %1586 = vmatprep.subr.bf16.mxu0 0
  %1587 = vmatpush1.bf16.msra.mxu0 0
  %1588 = vmatprep.subr.bf16.mxu0 0
  %1589 = vmatpush1.bf16.msra.mxu0 0
  %1590 = vmatprep.subr.bf16.mxu0 0
  %1591 = vmatpush1.bf16.msra.mxu0 0
  %1592 = vmatprep.subr.bf16.mxu0 0
  %1593 = vmatpush1.bf16.msra.mxu0 0
  %1594 = vmatprep.subr.bf16.mxu0 0
  %1595 = vmatpush1.bf16.msra.mxu0 0
  %1596 = vmatprep.subr.bf16.mxu0 0
  %1597 = vmatpush1.bf16.msra.mxu0 0
  %1598 = vmatprep.subr.bf16.mxu0 0
  %1599 = vmatpush1.bf16.msra.mxu0 0
  %1600 = vmatprep.subr.bf16.mxu0 0
  %1601 = vmatpush1.bf16.msra.mxu0 0
  %1602 = vmatprep.subr.bf16.mxu0 0
  %1603 = vmatpush1.bf16.msra.mxu0 0
  %1604 = vmatprep.subr.bf16.mxu0 0
  %1605 = vmatpush1.bf16.msra.mxu0 0
  %1606 = vmatprep.subr.bf16.mxu0 0
  %1607 = vmatpush1.bf16.msra.mxu0 0
  %1608 = vmatprep.mubr.bf16.mxu0 0
  %1609 = vmatmul.mubr.bf16.gmra.mrb[0].mxu0 %v1574
  %v1610 = vpop.f32.mrb[0].mxu0
  %v1611 = vadd.f32 0.0, %v1610
  %v1612 = vpop.f32.mrb[0].mxu0
  %v1613 = vpop.f32.mrb[0].mxu0
  %v1614 = vpop.f32.mrb[0].mxu0
  %1615 = vdwg.mxu0
  %v1616 = vld [vmem:[#allocation6] sm:$0xff]
  %v1617 = vpack.c.bf16 %v1616, %v1616
  %v1618 = vld [vmem:[%s6] sm:$0xf]
  %v1619 = vld [vmem:[%s6 + $0x4] sm:$0xf]
  %v1620 = vld [vmem:[%s6 + $0x8] sm:$0xf]
  %v1621 = vld [vmem:[%s6 + $0xc] sm:$0xf]
  %v1626 = vunpack.c.l.b16 %v1618
  %v1627 = vunpack.c.l.b16 %v1619
  %v1628 = vunpack.c.l.b16 %v1620
  %v1629 = vunpack.c.l.b16 %v1621
  %v1630 = vpack.c.b16 %v1627, %v1626
  %v1631 = vpack.c.b16 %v1629, %v1628
  %v1635 = vsel %vm289, %v1617, 0
  %1637 = vmatprep.subr.bf16.mxu0 0
  %1638 = vmatpush1.bf16.msra.mxu0 %v1630
  %1639 = vmatprep.subr.bf16.mxu0 0
  %1640 = vmatpush1.bf16.msra.mxu0 %v1631
  %1641 = vmatprep.subr.bf16.mxu0 0
  %1642 = vmatpush1.bf16.msra.mxu0 0
  %1643 = vmatprep.subr.bf16.mxu0 0
  %1644 = vmatpush1.bf16.msra.mxu0 0
  %1645 = vmatprep.subr.bf16.mxu0 0
  %1646 = vmatpush1.bf16.msra.mxu0 0
  %1647 = vmatprep.subr.bf16.mxu0 0
  %1648 = vmatpush1.bf16.msra.mxu0 0
  %1649 = vmatprep.subr.bf16.mxu0 0
  %1650 = vmatpush1.bf16.msra.mxu0 0
  %1651 = vmatprep.subr.bf16.mxu0 0
  %1652 = vmatpush1.bf16.msra.mxu0 0
  %1653 = vmatprep.subr.bf16.mxu0 0
  %1654 = vmatpush1.bf16.msra.mxu0 0
  %1655 = vmatprep.subr.bf16.mxu0 0
  %1656 = vmatpush1.bf16.msra.mxu0 0
  %1657 = vmatprep.subr.bf16.mxu0 0
  %1658 = vmatpush1.bf16.msra.mxu0 0
  %1659 = vmatprep.subr.bf16.mxu0 0
  %1660 = vmatpush1.bf16.msra.mxu0 0
  %1661 = vmatprep.subr.bf16.mxu0 0
  %1662 = vmatpush1.bf16.msra.mxu0 0
  %1663 = vmatprep.subr.bf16.mxu0 0
  %1664 = vmatpush1.bf16.msra.mxu0 0
  %1665 = vmatprep.subr.bf16.mxu0 0
  %1666 = vmatpush1.bf16.msra.mxu0 0
  %1667 = vmatprep.subr.bf16.mxu0 0
  %1668 = vmatpush1.bf16.msra.mxu0 0
  %1669 = vmatprep.mubr.bf16.mxu0 0
  %1670 = vmatmul.mubr.bf16.gmra.mrb[0].mxu0 %v1635
  %v1671 = vpop.f32.mrb[0].mxu0
  %v1672 = vadd.f32 0.0, %v1671
  %v1673 = vpop.f32.mrb[0].mxu0
  %v1674 = vpop.f32.mrb[0].mxu0
  %v1675 = vpop.f32.mrb[0].mxu0
  %1676 = vdwg.mxu0
  %s1677 = scalar_lea.vmem [#allocation2], 40
  %v1678 = vld [vmem:[%s1677] sm:$0xff]
  %v1679 = vadd.f32 %v1678, %v1611
  %v1680 = vld [vmem:[#allocation5] sm:$0xff]
  %v1681 = vxor.u32 %v1679, 2147483648
  %v1682 = vmul.f32 %v1681, 1.442695
  %v1683 = vpow.pop %v1682
  %v1684 = vadd.f32 %v1683, 1.0
  %v1685 = vrcp.pop %v1684
  %v1686 = vmul.f32 1.0, %v1685
  %v1687 = vtanh.pop %v1679
  %1689 = vrot.lane.b32.xlu0 %v1680, 32
  %v1690 = vpop.permute.xlu0 %1689
  %v1692 = vmul.f32 %v1686, %v1690
  %1694 = vrot.lane.b32.xlu0 %v1687, 64
  %v1695 = vpop.permute.xlu0 %1694
  %v1697 = vmul.f32 %v1686, %v1695
  %1699 = vrot.lane.b32.xlu0 %v1697, 32
  %v1700 = vpop.permute.xlu0 %1699
  %v1702 = vadd.f32 %v1692, %v1700
  %v1703 = vtanh.pop %v1702
  %1705 = vrot.lane.b32.xlu0 %v1703, 64
  %v1706 = vpop.permute.xlu0 %1705
  %v1708 = vmul.f32 %v1686, %v1706
  %s1709 = scalar_lea.vmem [#allocation3], 16
  %v1710 = vld [vmem:[%s1709] sm:$0xff]
  %v1711 = vadd.f32 %v1710, %v1672
  %v1712 = vld [vmem:[#allocation7] sm:$0xff]
  %v1713 = vxor.u32 %v1711, 2147483648
  %v1714 = vmul.f32 %v1713, 1.442695
  %v1715 = vpow.pop %v1714
  %v1716 = vadd.f32 %v1715, 1.0
  %v1717 = vrcp.pop %v1716
  %v1718 = vmul.f32 1.0, %v1717
  %v1719 = vtanh.pop %v1711
  %1721 = vrot.lane.b32.xlu0 %v1712, 32
  %v1722 = vpop.permute.xlu0 %1721
  %v1724 = vmul.f32 %v1718, %v1722
  %1726 = vrot.lane.b32.xlu0 %v1719, 64
  %v1727 = vpop.permute.xlu0 %1726
  %v1729 = vmul.f32 %v1718, %v1727
  %1731 = vrot.lane.b32.xlu0 %v1729, 32
  %v1732 = vpop.permute.xlu0 %1731
  %v1734 = vadd.f32 %v1724, %v1732
  %v1735 = vtanh.pop %v1734
  %1737 = vrot.lane.b32.xlu0 %v1735, 64
  %v1738 = vpop.permute.xlu0 %1737
  %v1740 = vmul.f32 %v1718, %v1738
  %1742 = vrot.lane.b32.xlu0 %v1555, 96
  %v1743 = vpop.permute.xlu0 %1742
  %v1745 = vsel %vm1021, %v1708, %v1743
  %1747 = vrot.lane.b32.xlu0 %v1745, 32
  %v1748 = vpop.permute.xlu0 %1747
  %1750 = vst.msk [vmem:[#allocation4] sm:$0xff] %vm289, %v1748
  %v1751 = vld [vmem:[#allocation5] sm:$0xff]
  %1753 = vrot.lane.b32.xlu0 %v1751, 32
  %v1754 = vpop.permute.xlu0 %1753
  %v1756 = vsel %vm1021, %v1702, %v1754
  %1758 = vrot.lane.b32.xlu0 %v1756, 96
  %v1759 = vpop.permute.xlu0 %1758
  %1761 = vst.msk [vmem:[#allocation5] sm:$0xff] %vm289, %v1759
  %v1762 = vld [vmem:[#allocation6] sm:$0xff]
  %1764 = vrot.lane.b32.xlu0 %v1762, 96
  %v1765 = vpop.permute.xlu0 %1764
  %v1767 = vsel %vm994, %v1740, %v1765
  %1769 = vrot.lane.b32.xlu0 %v1767, 32
  %v1770 = vpop.permute.xlu0 %1769
  %1772 = vst.msk [vmem:[#allocation6] sm:$0xff] %vm289, %v1770
  %v1773 = vld [vmem:[#allocation7] sm:$0xff]
  %1775 = vrot.lane.b32.xlu0 %v1773, 32
  %v1776 = vpop.permute.xlu0 %1775
  %v1778 = vsel %vm994, %v1734, %v1776
  %1780 = vrot.lane.b32.xlu0 %v1778, 96
  %v1781 = vpop.permute.xlu0 %1780
  %1783 = vst.msk [vmem:[#allocation7] sm:$0xff] %vm289, %v1781
  %v1784 = vsel %vm1021, %v1708, 0.0
  %1786 = vrot.lane.b32.xlu0 %v1784, 32
  %v1787 = vpop.permute.xlu0 %1786
  %s1789 = scalar_lea.vmem [#allocation8], 40
  %1790 = vst.msk [vmem:[%s1789] sm:$0xff] %vm289, %v1787
  %v1791 = vsel %vm994, %v1740, 0.0
  %1793 = vrot.lane.b32.xlu0 %v1791, 32
  %v1794 = vpop.permute.xlu0 %1793
  %s1796 = scalar_lea.vmem [#allocation9], 16
  %1797 = vst.msk [vmem:[%s1796] sm:$0xff] %vm289, %v1794
  %v1798 = vld [vmem:[#allocation4] sm:$0xff]
  %v1799 = vpack.c.bf16 %v1798, %v1798
  %v1800 = vld [vmem:[%s3] sm:$0xf]
  %v1801 = vld [vmem:[%s3 + $0x4] sm:$0xf]
  %v1802 = vld [vmem:[%s3 + $0x8] sm:$0xf]
  %v1803 = vld [vmem:[%s3 + $0xc] sm:$0xf]
  %v1808 = vunpack.c.l.b16 %v1800
  %v1809 = vunpack.c.l.b16 %v1801
  %v1810 = vunpack.c.l.b16 %v1802
  %v1811 = vunpack.c.l.b16 %v1803
  %v1812 = vpack.c.b16 %v1809, %v1808
  %v1813 = vpack.c.b16 %v1811, %v1810
  %v1817 = vsel %vm289, %v1799, 0
  %1819 = vmatprep.subr.bf16.mxu0 0
  %1820 = vmatpush1.bf16.msra.mxu0 %v1812
  %1821 = vmatprep.subr.bf16.mxu0 0
  %1822 = vmatpush1.bf16.msra.mxu0 %v1813
  %1823 = vmatprep.subr.bf16.mxu0 0
  %1824 = vmatpush1.bf16.msra.mxu0 0
  %1825 = vmatprep.subr.bf16.mxu0 0
  %1826 = vmatpush1.bf16.msra.mxu0 0
  %1827 = vmatprep.subr.bf16.mxu0 0
  %1828 = vmatpush1.bf16.msra.mxu0 0
  %1829 = vmatprep.subr.bf16.mxu0 0
  %1830 = vmatpush1.bf16.msra.mxu0 0
  %1831 = vmatprep.subr.bf16.mxu0 0
  %1832 = vmatpush1.bf16.msra.mxu0 0
  %1833 = vmatprep.subr.bf16.mxu0 0
  %1834 = vmatpush1.bf16.msra.mxu0 0
  %1835 = vmatprep.subr.bf16.mxu0 0
  %1836 = vmatpush1.bf16.msra.mxu0 0
  %1837 = vmatprep.subr.bf16.mxu0 0
  %1838 = vmatpush1.bf16.msra.mxu0 0
  %1839 = vmatprep.subr.bf16.mxu0 0
  %1840 = vmatpush1.bf16.msra.mxu0 0
  %1841 = vmatprep.subr.bf16.mxu0 0
  %1842 = vmatpush1.bf16.msra.mxu0 0
  %1843 = vmatprep.subr.bf16.mxu0 0
  %1844 = vmatpush1.bf16.msra.mxu0 0
  %1845 = vmatprep.subr.bf16.mxu0 0
  %1846 = vmatpush1.bf16.msra.mxu0 0
  %1847 = vmatprep.subr.bf16.mxu0 0
  %1848 = vmatpush1.bf16.msra.mxu0 0
  %1849 = vmatprep.subr.bf16.mxu0 0
  %1850 = vmatpush1.bf16.msra.mxu0 0
  %1851 = vmatprep.mubr.bf16.mxu0 0
  %1852 = vmatmul.mubr.bf16.gmra.mrb[0].mxu0 %v1817
  %v1853 = vpop.f32.mrb[0].mxu0
  %v1854 = vadd.f32 0.0, %v1853
  %v1855 = vpop.f32.mrb[0].mxu0
  %v1856 = vpop.f32.mrb[0].mxu0
  %v1857 = vpop.f32.mrb[0].mxu0
  %1858 = vdwg.mxu0
  %v1859 = vld [vmem:[#allocation6] sm:$0xff]
  %v1860 = vpack.c.bf16 %v1859, %v1859
  %v1861 = vld [vmem:[%s6] sm:$0xf]
  %v1862 = vld [vmem:[%s6 + $0x4] sm:$0xf]
  %v1863 = vld [vmem:[%s6 + $0x8] sm:$0xf]
  %v1864 = vld [vmem:[%s6 + $0xc] sm:$0xf]
  %v1869 = vunpack.c.l.b16 %v1861
  %v1870 = vunpack.c.l.b16 %v1862
  %v1871 = vunpack.c.l.b16 %v1863
  %v1872 = vunpack.c.l.b16 %v1864
  %v1873 = vpack.c.b16 %v1870, %v1869
  %v1874 = vpack.c.b16 %v1872, %v1871
  %v1878 = vsel %vm289, %v1860, 0
  %1880 = vmatprep.subr.bf16.mxu0 0
  %1881 = vmatpush1.bf16.msra.mxu0 %v1873
  %1882 = vmatprep.subr.bf16.mxu0 0
  %1883 = vmatpush1.bf16.msra.mxu0 %v1874
  %1884 = vmatprep.subr.bf16.mxu0 0
  %1885 = vmatpush1.bf16.msra.mxu0 0
  %1886 = vmatprep.subr.bf16.mxu0 0
  %1887 = vmatpush1.bf16.msra.mxu0 0
  %1888 = vmatprep.subr.bf16.mxu0 0
  %1889 = vmatpush1.bf16.msra.mxu0 0
  %1890 = vmatprep.subr.bf16.mxu0 0
  %1891 = vmatpush1.bf16.msra.mxu0 0
  %1892 = vmatprep.subr.bf16.mxu0 0
  %1893 = vmatpush1.bf16.msra.mxu0 0
  %1894 = vmatprep.subr.bf16.mxu0 0
  %1895 = vmatpush1.bf16.msra.mxu0 0
  %1896 = vmatprep.subr.bf16.mxu0 0
  %1897 = vmatpush1.bf16.msra.mxu0 0
  %1898 = vmatprep.subr.bf16.mxu0 0
  %1899 = vmatpush1.bf16.msra.mxu0 0
  %1900 = vmatprep.subr.bf16.mxu0 0
  %1901 = vmatpush1.bf16.msra.mxu0 0
  %1902 = vmatprep.subr.bf16.mxu0 0
  %1903 = vmatpush1.bf16.msra.mxu0 0
  %1904 = vmatprep.subr.bf16.mxu0 0
  %1905 = vmatpush1.bf16.msra.mxu0 0
  %1906 = vmatprep.subr.bf16.mxu0 0
  %1907 = vmatpush1.bf16.msra.mxu0 0
  %1908 = vmatprep.subr.bf16.mxu0 0
  %1909 = vmatpush1.bf16.msra.mxu0 0
  %1910 = vmatprep.subr.bf16.mxu0 0
  %1911 = vmatpush1.bf16.msra.mxu0 0
  %1912 = vmatprep.mubr.bf16.mxu0 0
  %1913 = vmatmul.mubr.bf16.gmra.mrb[0].mxu0 %v1878
  %v1914 = vpop.f32.mrb[0].mxu0
  %v1915 = vadd.f32 0.0, %v1914
  %v1916 = vpop.f32.mrb[0].mxu0
  %v1917 = vpop.f32.mrb[0].mxu0
  %v1918 = vpop.f32.mrb[0].mxu0
  %1919 = vdwg.mxu0
  %s1920 = scalar_lea.vmem [#allocation2], 48
  %v1921 = vld [vmem:[%s1920] sm:$0xff]
  %v1922 = vadd.f32 %v1921, %v1854
  %v1923 = vld [vmem:[#allocation5] sm:$0xff]
  %v1924 = vxor.u32 %v1922, 2147483648
  %v1925 = vmul.f32 %v1924, 1.442695
  %v1926 = vpow.pop %v1925
  %v1927 = vadd.f32 %v1926, 1.0
  %v1928 = vrcp.pop %v1927
  %v1929 = vmul.f32 1.0, %v1928
  %v1930 = vtanh.pop %v1922
  %1932 = vrot.lane.b32.xlu0 %v1923, 32
  %v1933 = vpop.permute.xlu0 %1932
  %v1935 = vmul.f32 %v1929, %v1933
  %1937 = vrot.lane.b32.xlu0 %v1930, 64
  %v1938 = vpop.permute.xlu0 %1937
  %v1940 = vmul.f32 %v1929, %v1938
  %1942 = vrot.lane.b32.xlu0 %v1940, 32
  %v1943 = vpop.permute.xlu0 %1942
  %v1945 = vadd.f32 %v1935, %v1943
  %v1946 = vtanh.pop %v1945
  %1948 = vrot.lane.b32.xlu0 %v1946, 64
  %v1949 = vpop.permute.xlu0 %1948
  %v1951 = vmul.f32 %v1929, %v1949
  %s1952 = scalar_lea.vmem [#allocation3], 8
  %v1953 = vld [vmem:[%s1952] sm:$0xff]
  %v1954 = vadd.f32 %v1953, %v1915
  %v1955 = vld [vmem:[#allocation7] sm:$0xff]
  %v1956 = vxor.u32 %v1954, 2147483648
  %v1957 = vmul.f32 %v1956, 1.442695
  %v1958 = vpow.pop %v1957
  %v1959 = vadd.f32 %v1958, 1.0
  %v1960 = vrcp.pop %v1959
  %v1961 = vmul.f32 1.0, %v1960
  %v1962 = vtanh.pop %v1954
  %1964 = vrot.lane.b32.xlu0 %v1955, 32
  %v1965 = vpop.permute.xlu0 %1964
  %v1967 = vmul.f32 %v1961, %v1965
  %1969 = vrot.lane.b32.xlu0 %v1962, 64
  %v1970 = vpop.permute.xlu0 %1969
  %v1972 = vmul.f32 %v1961, %v1970
  %1974 = vrot.lane.b32.xlu0 %v1972, 32
  %v1975 = vpop.permute.xlu0 %1974
  %v1977 = vadd.f32 %v1967, %v1975
  %v1978 = vtanh.pop %v1977
  %1980 = vrot.lane.b32.xlu0 %v1978, 64
  %v1981 = vpop.permute.xlu0 %1980
  %v1983 = vmul.f32 %v1961, %v1981
  %1985 = vrot.lane.b32.xlu0 %v1798, 96
  %v1986 = vpop.permute.xlu0 %1985
  %v1988 = vsel %vm766, %v1951, %v1986
  %1990 = vrot.lane.b32.xlu0 %v1988, 32
  %v1991 = vpop.permute.xlu0 %1990
  %1993 = vst.msk [vmem:[#allocation4] sm:$0xff] %vm289, %v1991
  %v1994 = vld [vmem:[#allocation5] sm:$0xff]
  %1996 = vrot.lane.b32.xlu0 %v1994, 32
  %v1997 = vpop.permute.xlu0 %1996
  %v1999 = vsel %vm766, %v1945, %v1997
  %2001 = vrot.lane.b32.xlu0 %v1999, 96
  %v2002 = vpop.permute.xlu0 %2001
  %2004 = vst.msk [vmem:[#allocation5] sm:$0xff] %vm289, %v2002
  %v2005 = vld [vmem:[#allocation6] sm:$0xff]
  %2007 = vrot.lane.b32.xlu0 %v2005, 96
  %v2008 = vpop.permute.xlu0 %2007
  %v2010 = vsel %vm739, %v1983, %v2008
  %2012 = vrot.lane.b32.xlu0 %v2010, 32
  %v2013 = vpop.permute.xlu0 %2012
  %2015 = vst.msk [vmem:[#allocation6] sm:$0xff] %vm289, %v2013
  %v2016 = vld [vmem:[#allocation7] sm:$0xff]
  %2018 = vrot.lane.b32.xlu0 %v2016, 32
  %v2019 = vpop.permute.xlu0 %2018
  %v2021 = vsel %vm739, %v1977, %v2019
  %2023 = vrot.lane.b32.xlu0 %v2021, 96
  %v2024 = vpop.permute.xlu0 %2023
  %2026 = vst.msk [vmem:[#allocation7] sm:$0xff] %vm289, %v2024
  %v2027 = vsel %vm766, %v1951, 0.0
  %2029 = vrot.lane.b32.xlu0 %v2027, 32
  %v2030 = vpop.permute.xlu0 %2029
  %s2032 = scalar_lea.vmem [#allocation8], 48
  %2033 = vst.msk [vmem:[%s2032] sm:$0xff] %vm289, %v2030
  %v2034 = vsel %vm739, %v1983, 0.0
  %2036 = vrot.lane.b32.xlu0 %v2034, 32
  %v2037 = vpop.permute.xlu0 %2036
  %s2039 = scalar_lea.vmem [#allocation9], 8
  %2040 = vst.msk [vmem:[%s2039] sm:$0xff] %vm289, %v2037
  %v2041 = vld [vmem:[#allocation4] sm:$0xff]
  %v2042 = vpack.c.bf16 %v2041, %v2041
  %v2043 = vld [vmem:[%s3] sm:$0xf]
  %v2044 = vld [vmem:[%s3 + $0x4] sm:$0xf]
  %v2045 = vld [vmem:[%s3 + $0x8] sm:$0xf]
  %v2046 = vld [vmem:[%s3 + $0xc] sm:$0xf]
  %v2051 = vunpack.c.l.b16 %v2043
  %v2052 = vunpack.c.l.b16 %v2044
  %v2053 = vunpack.c.l.b16 %v2045
  %v2054 = vunpack.c.l.b16 %v2046
  %v2055 = vpack.c.b16 %v2052, %v2051
  %v2056 = vpack.c.b16 %v2054, %v2053
  %v2060 = vsel %vm289, %v2042, 0
  %2062 = vmatprep.subr.bf16.mxu0 0
  %2063 = vmatpush1.bf16.msra.mxu0 %v2055
  %2064 = vmatprep.subr.bf16.mxu0 0
  %2065 = vmatpush1.bf16.msra.mxu0 %v2056
  %2066 = vmatprep.subr.bf16.mxu0 0
  %2067 = vmatpush1.bf16.msra.mxu0 0
  %2068 = vmatprep.subr.bf16.mxu0 0
  %2069 = vmatpush1.bf16.msra.mxu0 0
  %2070 = vmatprep.subr.bf16.mxu0 0
  %2071 = vmatpush1.bf16.msra.mxu0 0
  %2072 = vmatprep.subr.bf16.mxu0 0
  %2073 = vmatpush1.bf16.msra.mxu0 0
  %2074 = vmatprep.subr.bf16.mxu0 0
  %2075 = vmatpush1.bf16.msra.mxu0 0
  %2076 = vmatprep.subr.bf16.mxu0 0
  %2077 = vmatpush1.bf16.msra.mxu0 0
  %2078 = vmatprep.subr.bf16.mxu0 0
  %2079 = vmatpush1.bf16.msra.mxu0 0
  %2080 = vmatprep.subr.bf16.mxu0 0
  %2081 = vmatpush1.bf16.msra.mxu0 0
  %2082 = vmatprep.subr.bf16.mxu0 0
  %2083 = vmatpush1.bf16.msra.mxu0 0
  %2084 = vmatprep.subr.bf16.mxu0 0
  %2085 = vmatpush1.bf16.msra.mxu0 0
  %2086 = vmatprep.subr.bf16.mxu0 0
  %2087 = vmatpush1.bf16.msra.mxu0 0
  %2088 = vmatprep.subr.bf16.mxu0 0
  %2089 = vmatpush1.bf16.msra.mxu0 0
  %2090 = vmatprep.subr.bf16.mxu0 0
  %2091 = vmatpush1.bf16.msra.mxu0 0
  %2092 = vmatprep.subr.bf16.mxu0 0
  %2093 = vmatpush1.bf16.msra.mxu0 0
  %2094 = vmatprep.mubr.bf16.mxu0 0
  %2095 = vmatmul.mubr.bf16.gmra.mrb[0].mxu0 %v2060
  %v2096 = vpop.f32.mrb[0].mxu0
  %v2097 = vadd.f32 0.0, %v2096
  %v2098 = vpop.f32.mrb[0].mxu0
  %v2099 = vpop.f32.mrb[0].mxu0
  %v2100 = vpop.f32.mrb[0].mxu0
  %2101 = vdwg.mxu0
  %v2102 = vld [vmem:[#allocation6] sm:$0xff]
  %v2103 = vpack.c.bf16 %v2102, %v2102
  %v2104 = vld [vmem:[%s6] sm:$0xf]
  %v2105 = vld [vmem:[%s6 + $0x4] sm:$0xf]
  %v2106 = vld [vmem:[%s6 + $0x8] sm:$0xf]
  %v2107 = vld [vmem:[%s6 + $0xc] sm:$0xf]
  %v2112 = vunpack.c.l.b16 %v2104
  %v2113 = vunpack.c.l.b16 %v2105
  %v2114 = vunpack.c.l.b16 %v2106
  %v2115 = vunpack.c.l.b16 %v2107
  %v2116 = vpack.c.b16 %v2113, %v2112
  %v2117 = vpack.c.b16 %v2115, %v2114
  %v2121 = vsel %vm289, %v2103, 0
  %2123 = vmatprep.subr.bf16.mxu0 0
  %2124 = vmatpush1.bf16.msra.mxu0 %v2116
  %2125 = vmatprep.subr.bf16.mxu0 0
  %2126 = vmatpush1.bf16.msra.mxu0 %v2117
  %2127 = vmatprep.subr.bf16.mxu0 0
  %2128 = vmatpush1.bf16.msra.mxu0 0
  %2129 = vmatprep.subr.bf16.mxu0 0
  %2130 = vmatpush1.bf16.msra.mxu0 0
  %2131 = vmatprep.subr.bf16.mxu0 0
  %2132 = vmatpush1.bf16.msra.mxu0 0
  %2133 = vmatprep.subr.bf16.mxu0 0
  %2134 = vmatpush1.bf16.msra.mxu0 0
  %2135 = vmatprep.subr.bf16.mxu0 0
  %2136 = vmatpush1.bf16.msra.mxu0 0
  %2137 = vmatprep.subr.bf16.mxu0 0
  %2138 = vmatpush1.bf16.msra.mxu0 0
  %2139 = vmatprep.subr.bf16.mxu0 0
  %2140 = vmatpush1.bf16.msra.mxu0 0
  %2141 = vmatprep.subr.bf16.mxu0 0
  %2142 = vmatpush1.bf16.msra.mxu0 0
  %2143 = vmatprep.subr.bf16.mxu0 0
  %2144 = vmatpush1.bf16.msra.mxu0 0
  %2145 = vmatprep.subr.bf16.mxu0 0
  %2146 = vmatpush1.bf16.msra.mxu0 0
  %2147 = vmatprep.subr.bf16.mxu0 0
  %2148 = vmatpush1.bf16.msra.mxu0 0
  %2149 = vmatprep.subr.bf16.mxu0 0
  %2150 = vmatpush1.bf16.msra.mxu0 0
  %2151 = vmatprep.subr.bf16.mxu0 0
  %2152 = vmatpush1.bf16.msra.mxu0 0
  %2153 = vmatprep.subr.bf16.mxu0 0
  %2154 = vmatpush1.bf16.msra.mxu0 0
  %2155 = vmatprep.mubr.bf16.mxu0 0
  %2156 = vmatmul.mubr.bf16.gmra.mrb[0].mxu0 %v2121
  %v2157 = vpop.f32.mrb[0].mxu0
  %v2158 = vadd.f32 0.0, %v2157
  %v2159 = vpop.f32.mrb[0].mxu0
  %v2160 = vpop.f32.mrb[0].mxu0
  %v2161 = vpop.f32.mrb[0].mxu0
  %2162 = vdwg.mxu0
  %s2163 = scalar_lea.vmem [#allocation2], 56
  %v2164 = vld [vmem:[%s2163] sm:$0xff]
  %v2165 = vadd.f32 %v2164, %v2097
  %v2166 = vld [vmem:[#allocation5] sm:$0xff]
  %v2167 = vxor.u32 %v2165, 2147483648
  %v2168 = vmul.f32 %v2167, 1.442695
  %v2169 = vpow.pop %v2168
  %v2170 = vadd.f32 %v2169, 1.0
  %v2171 = vrcp.pop %v2170
  %v2172 = vmul.f32 1.0, %v2171
  %v2173 = vtanh.pop %v2165
  %2175 = vrot.lane.b32.xlu0 %v2166, 32
  %v2176 = vpop.permute.xlu0 %2175
  %v2178 = vmul.f32 %v2172, %v2176
  %2180 = vrot.lane.b32.xlu0 %v2173, 64
  %v2181 = vpop.permute.xlu0 %2180
  %v2183 = vmul.f32 %v2172, %v2181
  %2185 = vrot.lane.b32.xlu0 %v2183, 32
  %v2186 = vpop.permute.xlu0 %2185
  %v2188 = vadd.f32 %v2178, %v2186
  %v2189 = vtanh.pop %v2188
  %2191 = vrot.lane.b32.xlu0 %v2189, 64
  %v2192 = vpop.permute.xlu0 %2191
  %v2194 = vmul.f32 %v2172, %v2192
  %v2195 = vld [vmem:[#allocation3] sm:$0xff]
  %v2196 = vadd.f32 %v2195, %v2158
  %v2197 = vld [vmem:[#allocation7] sm:$0xff]
  %v2198 = vxor.u32 %v2196, 2147483648
  %v2199 = vmul.f32 %v2198, 1.442695
  %v2200 = vpow.pop %v2199
  %v2201 = vadd.f32 %v2200, 1.0
  %v2202 = vrcp.pop %v2201
  %v2203 = vmul.f32 1.0, %v2202
  %v2204 = vtanh.pop %v2196
  %2206 = vrot.lane.b32.xlu0 %v2197, 32
  %v2207 = vpop.permute.xlu0 %2206
  %v2209 = vmul.f32 %v2203, %v2207
  %2211 = vrot.lane.b32.xlu0 %v2204, 64
  %v2212 = vpop.permute.xlu0 %2211
  %v2214 = vmul.f32 %v2203, %v2212
  %2216 = vrot.lane.b32.xlu0 %v2214, 32
  %v2217 = vpop.permute.xlu0 %2216
  %v2219 = vadd.f32 %v2209, %v2217
  %v2220 = vtanh.pop %v2219
  %2222 = vrot.lane.b32.xlu0 %v2220, 64
  %v2223 = vpop.permute.xlu0 %2222
  %v2225 = vmul.f32 %v2203, %v2223
  %2227 = vrot.lane.b32.xlu0 %v2041, 96
  %v2228 = vpop.permute.xlu0 %2227
  %v2230 = vsel %vm512, %v2194, %v2228
  %2232 = vrot.lane.b32.xlu0 %v2230, 32
  %v2233 = vpop.permute.xlu0 %2232
  %2235 = vst.msk [vmem:[#allocation4] sm:$0xff] %vm289, %v2233
  %v2236 = vld [vmem:[#allocation5] sm:$0xff]
  %2238 = vrot.lane.b32.xlu0 %v2236, 32
  %v2239 = vpop.permute.xlu0 %2238
  %v2241 = vsel %vm512, %v2188, %v2239
  %2243 = vrot.lane.b32.xlu0 %v2241, 96
  %v2244 = vpop.permute.xlu0 %2243
  %2246 = vst.msk [vmem:[#allocation5] sm:$0xff] %vm289, %v2244
  %v2247 = vld [vmem:[#allocation6] sm:$0xff]
  %2249 = vrot.lane.b32.xlu0 %v2247, 96
  %v2250 = vpop.permute.xlu0 %2249
  %v2252 = vsel %vm485, %v2225, %v2250
  %2254 = vrot.lane.b32.xlu0 %v2252, 32
  %v2255 = vpop.permute.xlu0 %2254
  %2257 = vst.msk [vmem:[#allocation6] sm:$0xff] %vm289, %v2255
  %v2258 = vld [vmem:[#allocation7] sm:$0xff]
  %2260 = vrot.lane.b32.xlu0 %v2258, 32
  %v2261 = vpop.permute.xlu0 %2260
  %v2263 = vsel %vm485, %v2219, %v2261
  %2265 = vrot.lane.b32.xlu0 %v2263, 96
  %v2266 = vpop.permute.xlu0 %2265
  %2268 = vst.msk [vmem:[#allocation7] sm:$0xff] %vm289, %v2266
  %v2269 = vsel %vm512, %v2194, 0.0
  %2271 = vrot.lane.b32.xlu0 %v2269, 32
  %v2272 = vpop.permute.xlu0 %2271
  %s2274 = scalar_lea.vmem [#allocation8], 56
  %2275 = vst.msk [vmem:[%s2274] sm:$0xff] %vm289, %v2272
  %v2276 = vsel %vm485, %v2225, 0.0
  %2278 = vrot.lane.b32.xlu0 %v2276, 32
  %v2279 = vpop.permute.xlu0 %2278
  %2281 = vst.msk [vmem:[#allocation9] sm:$0xff] %vm289, %v2279
  %v2282 = vld [vmem:[#allocation8] sm:$0xff]
  %v2283 = vld [vmem:[#allocation8 + $0x8] sm:$0xff]
  %v2284 = vld [vmem:[#allocation8 + $0x10] sm:$0xff]
  %v2285 = vld [vmem:[#allocation8 + $0x18] sm:$0xff]
  %v2286 = vld [vmem:[#allocation8 + $0x20] sm:$0xff]
  %v2287 = vld [vmem:[#allocation8 + $0x28] sm:$0xff]
  %v2288 = vld [vmem:[#allocation8 + $0x30] sm:$0xff]
  %v2289 = vld [vmem:[#allocation8 + $0x38] sm:$0xff]
  %v2290 = vpack.c.bf16 %v2283, %v2282
  %v2291 = vpack.c.bf16 %v2285, %v2284
  %v2292 = vpack.c.bf16 %v2287, %v2286
  %v2293 = vpack.c.bf16 %v2289, %v2288
  %v2294 = vld [vmem:[#allocation9] sm:$0xff]
  %v2295 = vld [vmem:[#allocation9 + $0x8] sm:$0xff]
  %v2296 = vld [vmem:[#allocation9 + $0x10] sm:$0xff]
  %v2297 = vld [vmem:[#allocation9 + $0x18] sm:$0xff]
  %v2298 = vld [vmem:[#allocation9 + $0x20] sm:$0xff]
  %v2299 = vld [vmem:[#allocation9 + $0x28] sm:$0xff]
  %v2300 = vld [vmem:[#allocation9 + $0x30] sm:$0xff]
  %v2301 = vld [vmem:[#allocation9 + $0x38] sm:$0xff]
  %v2302 = vpack.c.bf16 %v2295, %v2294
  %v2303 = vpack.c.bf16 %v2297, %v2296
  %v2304 = vpack.c.bf16 %v2299, %v2298
  %v2305 = vpack.c.bf16 %v2301, %v2300
  %v2306 = vld [vmem:[%s8] sm:$0xf]
  %v2307 = vld [vmem:[%s8 + $0x4] sm:$0xf]
  %v2308 = vld [vmem:[%s8 + $0x8] sm:$0xf]
  %v2309 = vld [vmem:[%s8 + $0xc] sm:$0xf]
  %v2310 = vld [vmem:[%s9] sm:$0xf]
  %v2311 = vld [vmem:[%s9 + $0x4] sm:$0xf]
  %v2312 = vld [vmem:[%s9 + $0x8] sm:$0xf]
  %v2313 = vld [vmem:[%s9 + $0xc] sm:$0xf]
  %v2318 = vunpack.c.l.b16 %v2310
  %v2319 = vunpack.c.l.b16 %v2311
  %v2320 = vunpack.c.l.b16 %v2312
  %v2321 = vunpack.c.l.b16 %v2313
  %v2322 = vpack.c.b16 %v2319, %v2318
  %v2323 = vpack.c.b16 %v2321, %v2320
  %v2327 = vsel %vm289, %v2302, 0
  %v2330 = vsel %vm289, %v2303, 0
  %v2333 = vsel %vm289, %v2304, 0
  %v2336 = vsel %vm289, %v2305, 0
  %2338 = vmatprep.subr.bf16.mxu0 0
  %2339 = vmatpush1.bf16.msra.mxu0 %v2322
  %2340 = vmatprep.subr.bf16.mxu0 0
  %2341 = vmatpush1.bf16.msra.mxu0 %v2323
  %2342 = vmatprep.subr.bf16.mxu0 0
  %2343 = vmatpush1.bf16.msra.mxu0 0
  %2344 = vmatprep.subr.bf16.mxu0 0
  %2345 = vmatpush1.bf16.msra.mxu0 0
  %2346 = vmatprep.subr.bf16.mxu0 0
  %2347 = vmatpush1.bf16.msra.mxu0 0
  %2348 = vmatprep.subr.bf16.mxu0 0
  %2349 = vmatpush1.bf16.msra.mxu0 0
  %2350 = vmatprep.subr.bf16.mxu0 0
  %2351 = vmatpush1.bf16.msra.mxu0 0
  %2352 = vmatprep.subr.bf16.mxu0 0
  %2353 = vmatpush1.bf16.msra.mxu0 0
  %2354 = vmatprep.subr.bf16.mxu0 0
  %2355 = vmatpush1.bf16.msra.mxu0 0
  %2356 = vmatprep.subr.bf16.mxu0 0
  %2357 = vmatpush1.bf16.msra.mxu0 0
  %2358 = vmatprep.subr.bf16.mxu0 0
  %2359 = vmatpush1.bf16.msra.mxu0 0
  %2360 = vmatprep.subr.bf16.mxu0 0
  %2361 = vmatpush1.bf16.msra.mxu0 0
  %2362 = vmatprep.subr.bf16.mxu0 0
  %2363 = vmatpush1.bf16.msra.mxu0 0
  %2364 = vmatprep.subr.bf16.mxu0 0
  %2365 = vmatpush1.bf16.msra.mxu0 0
  %2366 = vmatprep.subr.bf16.mxu0 0
  %2367 = vmatpush1.bf16.msra.mxu0 0
  %2368 = vmatprep.subr.bf16.mxu0 0
  %2369 = vmatpush1.bf16.msra.mxu0 0
  %2370 = vmatprep.mubr.bf16.mxu0 0
  %2371 = vmatmul.mubr.bf16.gmra.mrb[0].mxu0 %v2327
  %v2372 = vpop.f32.mrb[0].mxu0
  %v2373 = vadd.f32 0.0, %v2372
  %v2374 = vpop.f32.mrb[0].mxu0
  %v2375 = vpop.f32.mrb[0].mxu0
  %v2376 = vadd.f32 0.0, %v2375
  %v2377 = vpop.f32.mrb[0].mxu0
  %2378 = vmatprep.mubr.bf16.mxu0 0
  %2379 = vmatmul.mubr.bf16.gmra.mrb[0].mxu0 %v2330
  %v2380 = vpop.f32.mrb[0].mxu0
  %v2381 = vadd.f32 0.0, %v2380
  %v2382 = vpop.f32.mrb[0].mxu0
  %v2383 = vpop.f32.mrb[0].mxu0
  %v2384 = vadd.f32 0.0, %v2383
  %v2385 = vpop.f32.mrb[0].mxu0
  %2386 = vmatprep.mubr.bf16.mxu0 0
  %2387 = vmatmul.mubr.bf16.gmra.mrb[0].mxu0 %v2333
  %v2388 = vpop.f32.mrb[0].mxu0
  %v2389 = vadd.f32 0.0, %v2388
  %v2390 = vpop.f32.mrb[0].mxu0
  %v2391 = vpop.f32.mrb[0].mxu0
  %v2392 = vadd.f32 0.0, %v2391
  %v2393 = vpop.f32.mrb[0].mxu0
  %2394 = vmatprep.mubr.bf16.mxu0 0
  %2395 = vmatmul.mubr.bf16.gmra.mrb[0].mxu0 %v2336
  %v2396 = vpop.f32.mrb[0].mxu0
  %v2397 = vadd.f32 0.0, %v2396
  %v2398 = vpop.f32.mrb[0].mxu0
  %v2399 = vpop.f32.mrb[0].mxu0
  %v2400 = vadd.f32 0.0, %v2399
  %v2401 = vpop.f32.mrb[0].mxu0
  %2402 = vdwg.mxu0
  %v2407 = vunpack.c.l.b16 %v2306
  %v2408 = vunpack.c.l.b16 %v2307
  %v2409 = vunpack.c.l.b16 %v2308
  %v2410 = vunpack.c.l.b16 %v2309
  %v2411 = vpack.c.b16 %v2408, %v2407
  %v2412 = vpack.c.b16 %v2410, %v2409
  %v2416 = vsel %vm289, %v2290, 0
  %v2419 = vsel %vm289, %v2291, 0
  %v2422 = vsel %vm289, %v2292, 0
  %v2425 = vsel %vm289, %v2293, 0
  %2427 = vmatprep.subr.bf16.mxu0 0
  %2428 = vmatpush1.bf16.msra.mxu0 %v2411
  %2429 = vmatprep.subr.bf16.mxu0 0
  %2430 = vmatpush1.bf16.msra.mxu0 %v2412
  %2431 = vmatprep.subr.bf16.mxu0 0
  %2432 = vmatpush1.bf16.msra.mxu0 0
  %2433 = vmatprep.subr.bf16.mxu0 0
  %2434 = vmatpush1.bf16.msra.mxu0 0
  %2435 = vmatprep.subr.bf16.mxu0 0
  %2436 = vmatpush1.bf16.msra.mxu0 0
  %2437 = vmatprep.subr.bf16.mxu0 0
  %2438 = vmatpush1.bf16.msra.mxu0 0
  %2439 = vmatprep.subr.bf16.mxu0 0
  %2440 = vmatpush1.bf16.msra.mxu0 0
  %2441 = vmatprep.subr.bf16.mxu0 0
  %2442 = vmatpush1.bf16.msra.mxu0 0
  %2443 = vmatprep.subr.bf16.mxu0 0
  %2444 = vmatpush1.bf16.msra.mxu0 0
  %2445 = vmatprep.subr.bf16.mxu0 0
  %2446 = vmatpush1.bf16.msra.mxu0 0
  %2447 = vmatprep.subr.bf16.mxu0 0
  %2448 = vmatpush1.bf16.msra.mxu0 0
  %2449 = vmatprep.subr.bf16.mxu0 0
  %2450 = vmatpush1.bf16.msra.mxu0 0
  %2451 = vmatprep.subr.bf16.mxu0 0
  %2452 = vmatpush1.bf16.msra.mxu0 0
  %2453 = vmatprep.subr.bf16.mxu0 0
  %2454 = vmatpush1.bf16.msra.mxu0 0
  %2455 = vmatprep.subr.bf16.mxu0 0
  %2456 = vmatpush1.bf16.msra.mxu0 0
  %2457 = vmatprep.subr.bf16.mxu0 0
  %2458 = vmatpush1.bf16.msra.mxu0 0
  %2459 = vmatprep.mubr.bf16.mxu0 0
  %2460 = vmatmul.mubr.bf16.gmra.mrb[0].mxu0 %v2416
  %v2461 = vpop.f32.mrb[0].mxu0
  %v2462 = vadd.f32 %v2373, %v2461
  %v2463 = vpop.f32.mrb[0].mxu0
  %v2464 = vpop.f32.mrb[0].mxu0
  %v2465 = vadd.f32 %v2376, %v2464
  %v2466 = vpop.f32.mrb[0].mxu0
  %2467 = vmatprep.mubr.bf16.mxu0 0
  %2468 = vmatmul.mubr.bf16.gmra.mrb[0].mxu0 %v2419
  %v2469 = vpop.f32.mrb[0].mxu0
  %v2470 = vadd.f32 %v2381, %v2469
  %v2471 = vpop.f32.mrb[0].mxu0
  %v2472 = vpop.f32.mrb[0].mxu0
  %v2473 = vadd.f32 %v2384, %v2472
  %v2474 = vpop.f32.mrb[0].mxu0
  %2475 = vmatprep.mubr.bf16.mxu0 0
  %2476 = vmatmul.mubr.bf16.gmra.mrb[0].mxu0 %v2422
  %v2477 = vpop.f32.mrb[0].mxu0
  %v2478 = vadd.f32 %v2389, %v2477
  %v2479 = vpop.f32.mrb[0].mxu0
  %v2480 = vpop.f32.mrb[0].mxu0
  %v2481 = vadd.f32 %v2392, %v2480
  %v2482 = vpop.f32.mrb[0].mxu0
  %2483 = vmatprep.mubr.bf16.mxu0 0
  %2484 = vmatmul.mubr.bf16.gmra.mrb[0].mxu0 %v2425
  %v2485 = vpop.f32.mrb[0].mxu0
  %v2486 = vadd.f32 %v2397, %v2485
  %v2487 = vpop.f32.mrb[0].mxu0
  %v2488 = vpop.f32.mrb[0].mxu0
  %v2489 = vadd.f32 %v2400, %v2488
  %v2490 = vpop.f32.mrb[0].mxu0
  %2491 = vdwg.mxu0
  %v2492 = vld [vmem:[%s10] sm:$0x1]
  %v2494 = vlaneseq
  %v2495 = vshrl.u32 %v2494, 7
  %v2496 = vsub.s32 0, %v2495
  %v2497 = vrot.slane %v2492, %v2496
  %v2499 = vadd.f32 %v2462, %v2497
  %v2500 = vadd.f32 %v2465, %v2497
  %v2501 = vadd.f32 %v2470, %v2497
  %v2502 = vadd.f32 %v2473, %v2497
  %v2503 = vadd.f32 %v2478, %v2497
  %v2504 = vadd.f32 %v2481, %v2497
  %v2505 = vadd.f32 %v2486, %v2497
  %v2506 = vadd.f32 %v2489, %v2497
  %2507 = vst [vmem:[%s11] sm:$0xff] %v2499
  %2508 = vst [vmem:[%s11 + $0x8] sm:$0xff] %v2500
  %2509 = vst [vmem:[%s11 + $0x10] sm:$0xff] %v2501
  %2510 = vst [vmem:[%s11 + $0x18] sm:$0xff] %v2502
  %2511 = vst [vmem:[%s11 + $0x20] sm:$0xff] %v2503
  %2512 = vst [vmem:[%s11 + $0x28] sm:$0xff] %v2504
  %2513 = vst [vmem:[%s11 + $0x30] sm:$0xff] %v2505
  %2514 = vst [vmem:[%s11 + $0x38] sm:$0xff] %v2506
  // Predicated region
  $region46: #{recurrent_qa_head_forward.3} parent=0 // pred_check
    _
  $region47: #{recurrent_qa_head_forward.3} parent=0 // pred_check_branch
    %2516 = sbr.rel (0) target = $region49
  $region48: #{recurrent_qa_head_forward.3} parent=0 // pred_region
    _
  $region49: #{recurrent_qa_head_forward.3} parent=0 // pred_fallthru
    _
  // Predicated region
  $region50: #{recurrent_qa_head_forward.3} parent=0 // pred_check
    _
  $region51: #{recurrent_qa_head_forward.3} parent=0 // pred_check_branch
    %2518 = sbr.rel (0) target = $region53
  $region52: #{recurrent_qa_head_forward.3} parent=0 // pred_region
    _
  $region53: #{recurrent_qa_head_forward.3} parent=0 // pred_fallthru
    _

</llo_original>
